<compile_context>
chip_gen: v5e
topology: v5e:2x2
jax: 0.10.0
libtpu: 0.0.40
codegen_flags: <defaults>
</compile_context>

<pallas_src>
import jax
import jax.numpy as jnp
from jax.experimental import pallas as pl
from jax.experimental.pallas import tpu as pltpu


def _round_up(n, m):
    return ((n + m - 1) // m) * m


# ----------------------------------------------------------------------------
# Fused LeNet kernel: one grid step == TB images.  R = TB * 8.
#   x_ref   (8, R, 128)  rows grouped by (shift m in {0,1}) x (h % 4); row
#                        b*8+t of group m*4+s is image b, input row 4*(t+m)+s,
#                        lanes = w*3 + c (96 real, zero-padded to 128)
#   t1_ref  (5, 128, 256) conv1 Toeplitz slabs, N = par*128 + cout*14 + pw
#   t2_ref  (5, 128, 256) conv2 Toeplitz slabs, N = par*128 + cout*5  + pw
#   ps_ref  (2, R, R)     constant "shift rows up by 1 / 2" 0-1 matrices
#   sel_ref (5, TB, R)    constant "pick row ph of every 8-row block" matrices
#   w1..w3 / c1..c3       zero-padded fc weights / biases (lane dims 128-pad)
#   out_ref (TB, 128)     logits (columns >= num_classes are exactly zero)
# ----------------------------------------------------------------------------
def _lenet_kernel(x_ref, t1_ref, b1_ref, t2_ref, b2_ref, ps_ref, sel_ref,
                  w1_ref, c1_ref, w2_ref, c2_ref, w3_ref, c3_ref, out_ref):
    f32 = jnp.float32

    def dot(a, b):
        return jnp.dot(a, b, preferred_element_type=f32)

    xs = [x_ref[g] for g in range(8)]          # eight (R, 128) row-group slabs
    t1s = [t1_ref[k] for k in range(5)]        # (128, 256) each
    t2s = [t2_ref[k] for k in range(5)]        # (128, 256) each
    b1 = b1_ref[...]                           # (1, 256)
    b2 = b2_ref[...]                           # (1, 256)

    # ---- conv1 + bias + ReLU + 2x2 max-pool --------------------------------
    # Output rows are produced per parity group q = oh % 4 (7 valid rows per
    # 8-row image block).  Processing (0,1) then (2,3) keeps only one big
    # accumulator and one pooled result live at a time.
    def conv1_pair(q_pair):
        pooled = None
        for q in q_pair:
            acc = None
            for kh in range(5):
                m, s = divmod(q + kh, 4)
                part = dot(xs[4 * m + s], t1s[kh])            # (R, 256)
                acc = part if acc is None else acc + part
            y = jnp.maximum(acc + b1, 0.0)
            w = jnp.maximum(y[:, :128], y[:, 128:])           # pool over width
            pooled = w if pooled is None else jnp.maximum(pooled, w)
        return pooled                                         # (R, 128)

    p_even = conv1_pair((0, 1))   # pooled rows 0,2,...,12 (block rows 0..6)
    p_odd = conv1_pair((2, 3))    # pooled rows 1,3,...,13 (block rows 0..6)

    # Per-image-block row shifts needed by conv2, realised as matmuls with
    # constant 0/1 matrices (no relayout / roll / concat required).
    pools = {
        (0, 0): p_even,
        (0, 1): p_odd,
        (1, 0): dot(ps_ref[0], p_even),
        (1, 1): dot(ps_ref[0], p_odd),
        (2, 0): dot(ps_ref[1], p_even),
        (2, 1): dot(ps_ref[1], p_odd),
    }

    # ---- conv2 + bias + ReLU + 2x2 max-pool --------------------------------
    zs = []
    for q in range(2):                                        # q = oh2 % 2
        acc = None
        for kh in range(5):
            m, s = divmod(q + kh, 2)
            part = dot(pools[(m, s)], t2s[kh])                # (R, 256)
            acc = part if acc is None else acc + part
        z = jnp.maximum(acc + b2, 0.0)
        zs.append(jnp.maximum(z[:, :128], z[:, 128:]))        # pool over width
    p2 = jnp.maximum(zs[0], zs[1])      # (R, 128): block rows 0..4 = ph,
                                        # lanes = c2*5 + pw (80 real)

    # ---- fc1 / fc2 / fc3 ----------------------------------------------------
    h = None
    for ph in range(5):
        row = dot(sel_ref[ph], p2)                            # (TB, 128)
        part = dot(row, w1_ref[ph])                           # (TB, H1p)
        h = part if h is None else h + part
    h = jnp.maximum(h + c1_ref[...], 0.0)
    h = jnp.maximum(dot(h, w2_ref[...]) + c2_ref[...], 0.0)
    out_ref[...] = dot(h, w3_ref[...]) + c3_ref[...]


# ----------------------------------------------------------------------------
# One-time weight packing: Toeplitz conv slabs (128-lane aligned halves),
# layout-matched biases, row-permuted + zero-padded fc weights.
# ----------------------------------------------------------------------------
def pack_params(params):
    f32 = jnp.float32
    w1 = params["w_conv1"].astype(f32)        # (5, 5, 3, C1)   HWIO
    w2 = params["w_conv2"].astype(f32)        # (5, 5, C1, C2)  HWIO
    C1, C2 = w1.shape[-1], w2.shape[-1]

    # conv1 Toeplitz: K = w_in*3 + cin (96 -> 128), N = par*128 + cout*14 + pw,
    # where the conv output column is ow = 2*pw + par.
    m1 = (jnp.arange(32)[:, None, None]
          == jnp.arange(28)[None, :, None] + jnp.arange(5)[None, None, :]
          ).astype(f32)                                        # (32, 28, 5)
    t1 = jnp.einsum("wok,hkcd->hwcod", m1, w1)                 # (5,32,3,28,C1)
    t1 = t1.reshape(5, 32, 3, 14, 2, C1).transpose(0, 1, 2, 4, 5, 3)
    t1 = t1.reshape(5, 96, 2, C1 * 14)
    t1 = jnp.pad(t1, ((0, 0), (0, 128 - 96), (0, 0), (0, 128 - C1 * 14)))
    t1 = t1.reshape(5, 128, 256)

    # conv2 Toeplitz: K = cin*14 + w (84 -> 128), N = par*128 + cout*5 + pw.
    m2 = (jnp.arange(14)[:, None, None]
          == jnp.arange(10)[None, :, None] + jnp.arange(5)[None, None, :]
          ).astype(f32)                                        # (14, 10, 5)
    t2 = jnp.einsum("wok,hkcd->hcwod", m2, w2)                 # (5,C1,14,10,C2)
    t2 = t2.reshape(5, C1, 14, 5, 2, C2).transpose(0, 1, 2, 4, 5, 3)
    t2 = t2.reshape(5, C1 * 14, 2, C2 * 5)
    t2 = jnp.pad(t2, ((0, 0), (0, 128 - C1 * 14), (0, 0), (0, 128 - C2 * 5)))
    t2 = t2.reshape(5, 128, 256)

    b1r = jnp.broadcast_to(params["b_conv1"].astype(f32)[None, :, None],
                           (2, C1, 14)).reshape(2, C1 * 14)
    b1r = jnp.pad(b1r, ((0, 0), (0, 128 - C1 * 14))).reshape(1, 256)
    b2r = jnp.broadcast_to(params["b_conv2"].astype(f32)[None, :, None],
                           (2, C2, 5)).reshape(2, C2 * 5)
    b2r = jnp.pad(b2r, ((0, 0), (0, 128 - C2 * 5))).reshape(1, 256)

    wf1, bf1 = params["w_fc1"].astype(f32), params["b_fc1"].astype(f32)
    wf2, bf2 = params["w_fc2"].astype(f32), params["b_fc2"].astype(f32)
    wf3, bf3 = params["w_fc3"].astype(f32), params["b_fc3"].astype(f32)
    H1, H2, NC = wf1.shape[1], wf2.shape[1], wf3.shape[1]
    H1p, H2p, NCp = _round_up(H1, 128), _round_up(H2, 128), _round_up(NC, 128)

    # fc1 rows permuted from PyTorch's NCHW flatten (c2*25 + ph*5 + pw) to the
    # kernel's (ph, c2*5 + pw) layout; K padded 80 -> 128, out dims 128-padded.
    w1r = wf1.reshape(C2, 5, 5, H1).transpose(1, 0, 2, 3).reshape(5, C2 * 5, H1)
    w1r = jnp.pad(w1r, ((0, 0), (0, 128 - C2 * 5), (0, H1p - H1)))
    c1r = jnp.pad(bf1, (0, H1p - H1)).reshape(1, H1p)
    w2r = jnp.pad(wf2, ((0, H1p - H1), (0, H2p - H2)))
    c2r = jnp.pad(bf2, (0, H2p - H2)).reshape(1, H2p)
    w3r = jnp.pad(wf3, ((0, H2p - H2), (0, NCp - NC)))
    c3r = jnp.pad(bf3, (0, NCp - NC)).reshape(1, NCp)

    return {"t1": t1, "b1": b1r, "t2": t2, "b2": b2r,
            "w1": w1r, "c1": c1r, "w2": w2r, "c2": c2r,
            "w3": w3r, "c3": c3r}


# ----------------------------------------------------------------------------
# Forward (drop-in: raw params + NCHW input)
# ----------------------------------------------------------------------------
def lenet_forward(params, x_nchw, *, block_batch=32):
    B = x_nchw.shape[0]
    assert x_nchw.shape[1:] == (3, 32, 32), "LeNet expects (B, 3, 32, 32)"
    C1 = params["w_conv1"].shape[-1]
    C2 = params["w_conv2"].shape[-1]
    NC = params["w_fc3"].shape[1]
    assert C2 == 16, "fc1 input is hard-coded to 16*5*5 in the module"
    assert C1 * 14 <= 128 and C2 * 5 <= 128

    TB = min(_round_up(block_batch, 8), _round_up(B, 8))  # images / grid step
    Bp = _round_up(B, TB)
    R = TB * 8

    p = pack_params(params)
    NCp = p["w3"].shape[-1]

    # Input: NCHW -> NHWC -> (W, C) merged onto 96 lanes (pad to 128); rows
    # grouped by (shift m, h % 4) so every conv1 operand inside the kernel is
    # a contiguous, already row-aligned (R, 128) slab.
    x = jnp.transpose(x_nchw, (0, 2, 3, 1)).astype(jnp.float32)
    x = x.reshape(B, 32, 96)
    x = jnp.pad(x, ((0, Bp - B), (0, 4), (0, 128 - 96)))           # (Bp,36,128)
    groups = []
    for m in range(2):
        xm = x[:, 4 * m:4 * m + 32, :]                             # (Bp,32,128)
        xm = xm.reshape(Bp, 8, 4, 128).transpose(2, 0, 1, 3)       # (4,Bp,8,128)
        groups.append(xm.reshape(4, Bp * 8, 128))
    xg = jnp.concatenate(groups, axis=0)                           # (8,Bp*8,128)

    # Constant 0/1 matrices: per-block row shifts (conv2) and row gather (fc1).
    i = jnp.arange(R)
    pshift = jnp.stack(
        [(i[None, :] == i[:, None] + m).astype(jnp.float32) for m in (1, 2)])
    sel = jnp.stack(
        [(i[None, :] == jnp.arange(TB)[:, None] * 8 + ph).astype(jnp.float32)
         for ph in range(5)])                                      # (5, TB, R)

    def const_spec(shape):
        return pl.BlockSpec(shape, lambda idx: (0,) * len(shape))

    out = pl.pallas_call(
        _lenet_kernel,
        out_shape=jax.ShapeDtypeStruct((Bp, NCp), jnp.float32),
        grid=(Bp // TB,),
        in_specs=[
            pl.BlockSpec((8, R, 128), lambda idx: (0, idx, 0)),
            const_spec(p["t1"].shape), const_spec(p["b1"].shape),
            const_spec(p["t2"].shape), const_spec(p["b2"].shape),
            const_spec(pshift.shape), const_spec(sel.shape),
            const_spec(p["w1"].shape), const_spec(p["c1"].shape),
            const_spec(p["w2"].shape), const_spec(p["c2"].shape),
            const_spec(p["w3"].shape), const_spec(p["c3"].shape),
        ],
        out_specs=pl.BlockSpec((TB, NCp), lambda idx: (idx, 0)),
        compiler_params=pltpu.CompilerParams(
            dimension_semantics=("parallel",),
            vmem_limit_bytes=48 * 1024 * 1024),
    )(xg, p["t1"], p["b1"], p["t2"], p["b2"], pshift, sel,
      p["w1"], p["c1"], p["w2"], p["c2"], p["w3"], p["c3"])
    return out[:B, :NC]


# ----------------------------------------------------------------------------
# Plain-JAX reference (mirrors the PyTorch module) for the self-check
# ----------------------------------------------------------------------------
def lenet_reference(params, x_nchw):
    x = jnp.transpose(x_nchw, (0, 2, 3, 1))
    dn = ("NHWC", "HWIO", "NHWC")

    def pool(y):
        b, hh, ww, c = y.shape
        return y.reshape(b, hh // 2, 2, ww // 2, 2, c).max(axis=(2, 4))

    y = jax.lax.conv_general_dilated(x, params["w_conv1"], (1, 1), "VALID",
                                     dimension_numbers=dn)
    y = pool(jax.nn.relu(y + params["b_conv1"]))
    y = jax.lax.conv_general_dilated(y, params["w_conv2"], (1, 1), "VALID",
                                     dimension_numbers=dn)
    y = pool(jax.nn.relu(y + params["b_conv2"]))
    flat = jnp.transpose(y, (0, 3, 1, 2)).reshape(x.shape[0], -1)
    h = jax.nn.relu(flat @ params["w_fc1"] + params["b_fc1"])
    h = jax.nn.relu(h @ params["w_fc2"] + params["b_fc2"])
    return h @ params["w_fc3"] + params["b_fc3"]


# ----------------------------------------------------------------------------
# Deterministic parameter init (mimics nn.Conv2d / nn.Linear default uniform)
# ----------------------------------------------------------------------------
def init_params(key, num_classes, hidden_dim_1, hidden_dim_2,
                conv_hidden_dim_1, conv_hidden_dim_2):
    ks = jax.random.split(key, 10)

    def u(k, shape, fan_in):
        bound = 1.0 / float(fan_in) ** 0.5
        return jax.random.uniform(k, shape, jnp.float32, -bound, bound)

    c1, c2 = conv_hidden_dim_1, conv_hidden_dim_2
    return {
        "w_conv1": u(ks[0], (5, 5, 3, c1), 5 * 5 * 3),              # HWIO
        "b_conv1": u(ks[1], (c1,), 5 * 5 * 3),
        "w_conv2": u(ks[2], (5, 5, c1, c2), 5 * 5 * c1),
        "b_conv2": u(ks[3], (c2,), 5 * 5 * c1),
        "w_fc1": u(ks[4], (16 * 5 * 5, hidden_dim_1), 16 * 5 * 5),  # (in, out)
        "b_fc1": u(ks[5], (hidden_dim_1,), 16 * 5 * 5),
        "w_fc2": u(ks[6], (hidden_dim_1, hidden_dim_2), hidden_dim_1),
        "b_fc2": u(ks[7], (hidden_dim_2,), hidden_dim_1),
        "w_fc3": u(ks[8], (hidden_dim_2, num_classes), hidden_dim_2),
        "b_fc3": u(ks[9], (num_classes,), hidden_dim_2),
    }


if __name__ == "__main__":
    # Classic LeNet config (conv_hidden_dim_2 must be 16 and input 32x32 for
    # the module's hard-coded x.view(-1, 16*5*5) to hold).
    num_classes, hidden_dim_1, hidden_dim_2 = 10, 120, 84
    conv_hidden_dim_1, conv_hidden_dim_2 = 6, 16

    key = jax.random.PRNGKey(0)
    k_params, k_x = jax.random.split(key)
    params = init_params(k_params, num_classes, hidden_dim_1, hidden_dim_2,
                         conv_hidden_dim_1, conv_hidden_dim_2)
    batch = 32
    x = jax.random.normal(k_x, (batch, 3, 32, 32), jnp.float32)     # NCHW

    # block_batch=16 -> 16 images per grid step, grid of 2 steps.
    fwd = jax.jit(lambda pp, xx: lenet_forward(pp, xx, block_batch=16))
    out = fwd(params, x)
    jax.block_until_ready(out)
    assert out.shape == (batch, num_classes)

    # Correctness self-check against plain JAX (loose tol: only MXU precision
    # differences remain; a layout bug would be orders of magnitude larger).
    with jax.default_matmul_precision("highest"):
        ref = jax.jit(lenet_reference)(params, x)
    err = float(jnp.max(jnp.abs(out - ref)))
    assert jnp.allclose(out, ref, atol=2e-2, rtol=2e-2), f"max err {err}"

    print("KERNEL_OK")
</pallas_src>

<mosaic_0001>
module attributes {stable_mosaic.version = 11 : i64} {
  func.func @_lenet_kernel(%arg0: i32, %arg1: memref<8x128x128xf32, #tpu.memory_space<vmem>>, %arg2: memref<5x128x256xf32, #tpu.memory_space<vmem>>, %arg3: memref<1x256xf32, #tpu.memory_space<vmem>>, %arg4: memref<5x128x256xf32, #tpu.memory_space<vmem>>, %arg5: memref<1x256xf32, #tpu.memory_space<vmem>>, %arg6: memref<2x128x128xf32, #tpu.memory_space<vmem>>, %arg7: memref<5x16x128xf32, #tpu.memory_space<vmem>>, %arg8: memref<5x128x128xf32, #tpu.memory_space<vmem>>, %arg9: memref<1x128xf32, #tpu.memory_space<vmem>>, %arg10: memref<128x128xf32, #tpu.memory_space<vmem>>, %arg11: memref<1x128xf32, #tpu.memory_space<vmem>>, %arg12: memref<128x128xf32, #tpu.memory_space<vmem>>, %arg13: memref<1x128xf32, #tpu.memory_space<vmem>>, %arg14: memref<16x128xf32, #tpu.memory_space<vmem>>) attributes {dimension_semantics = [#tpu.dimension_semantics<parallel>], iteration_bounds = array<i64: 2>, scalar_prefetch = 0 : i64, scratch_operands = 0 : i64, tpu.core_type = #tpu.core_type<tc>, window_params = [{transform_indices = @transform_0, window_bounds = array<i64: 8, 128, 128>}, {pipeline_mode = #tpu.pipeline_mode<synchronous>, transform_indices = @transform_1, window_bounds = array<i64: 5, 128, 256>}, {pipeline_mode = #tpu.pipeline_mode<synchronous>, transform_indices = @transform_2, window_bounds = array<i64: 1, 256>}, {pipeline_mode = #tpu.pipeline_mode<synchronous>, transform_indices = @transform_3, window_bounds = array<i64: 5, 128, 256>}, {pipeline_mode = #tpu.pipeline_mode<synchronous>, transform_indices = @transform_4, window_bounds = array<i64: 1, 256>}, {pipeline_mode = #tpu.pipeline_mode<synchronous>, transform_indices = @transform_5, window_bounds = array<i64: 2, 128, 128>}, {pipeline_mode = #tpu.pipeline_mode<synchronous>, transform_indices = @transform_6, window_bounds = array<i64: 5, 16, 128>}, {pipeline_mode = #tpu.pipeline_mode<synchronous>, transform_indices = @transform_7, window_bounds = array<i64: 5, 128, 128>}, {pipeline_mode = #tpu.pipeline_mode<synchronous>, transform_indices = @transform_8, window_bounds = array<i64: 1, 128>}, {pipeline_mode = #tpu.pipeline_mode<synchronous>, transform_indices = @transform_9, window_bounds = array<i64: 128, 128>}, {pipeline_mode = #tpu.pipeline_mode<synchronous>, transform_indices = @transform_10, window_bounds = array<i64: 1, 128>}, {pipeline_mode = #tpu.pipeline_mode<synchronous>, transform_indices = @transform_11, window_bounds = array<i64: 128, 128>}, {pipeline_mode = #tpu.pipeline_mode<synchronous>, transform_indices = @transform_12, window_bounds = array<i64: 1, 128>}, {transform_indices = @transform_13, window_bounds = array<i64: 16, 128>}]} {
    %c0 = arith.constant 0 : index
    %c0_0 = arith.constant 0 : index
    %c0_1 = arith.constant 0 : index
    %0 = vector.load %arg1[%c0, %c0_0, %c0_1] : memref<8x128x128xf32, #tpu.memory_space<vmem>>, vector<1x128x128xf32>
    %1 = vector.shape_cast %0 : vector<1x128x128xf32> to vector<128x128xf32>
    %c1 = arith.constant 1 : index
    %c0_2 = arith.constant 0 : index
    %c0_3 = arith.constant 0 : index
    %2 = vector.load %arg1[%c1, %c0_2, %c0_3] : memref<8x128x128xf32, #tpu.memory_space<vmem>>, vector<1x128x128xf32>
    %3 = vector.shape_cast %2 : vector<1x128x128xf32> to vector<128x128xf32>
    %c2 = arith.constant 2 : index
    %c0_4 = arith.constant 0 : index
    %c0_5 = arith.constant 0 : index
    %4 = vector.load %arg1[%c2, %c0_4, %c0_5] : memref<8x128x128xf32, #tpu.memory_space<vmem>>, vector<1x128x128xf32>
    %5 = vector.shape_cast %4 : vector<1x128x128xf32> to vector<128x128xf32>
    %c3 = arith.constant 3 : index
    %c0_6 = arith.constant 0 : index
    %c0_7 = arith.constant 0 : index
    %6 = vector.load %arg1[%c3, %c0_6, %c0_7] : memref<8x128x128xf32, #tpu.memory_space<vmem>>, vector<1x128x128xf32>
    %7 = vector.shape_cast %6 : vector<1x128x128xf32> to vector<128x128xf32>
    %c4 = arith.constant 4 : index
    %c0_8 = arith.constant 0 : index
    %c0_9 = arith.constant 0 : index
    %8 = vector.load %arg1[%c4, %c0_8, %c0_9] : memref<8x128x128xf32, #tpu.memory_space<vmem>>, vector<1x128x128xf32>
    %9 = vector.shape_cast %8 : vector<1x128x128xf32> to vector<128x128xf32>
    %c5 = arith.constant 5 : index
    %c0_10 = arith.constant 0 : index
    %c0_11 = arith.constant 0 : index
    %10 = vector.load %arg1[%c5, %c0_10, %c0_11] : memref<8x128x128xf32, #tpu.memory_space<vmem>>, vector<1x128x128xf32>
    %11 = vector.shape_cast %10 : vector<1x128x128xf32> to vector<128x128xf32>
    %c6 = arith.constant 6 : index
    %c0_12 = arith.constant 0 : index
    %c0_13 = arith.constant 0 : index
    %12 = vector.load %arg1[%c6, %c0_12, %c0_13] : memref<8x128x128xf32, #tpu.memory_space<vmem>>, vector<1x128x128xf32>
    %13 = vector.shape_cast %12 : vector<1x128x128xf32> to vector<128x128xf32>
    %c7 = arith.constant 7 : index
    %c0_14 = arith.constant 0 : index
    %c0_15 = arith.constant 0 : index
    %14 = vector.load %arg1[%c7, %c0_14, %c0_15] : memref<8x128x128xf32, #tpu.memory_space<vmem>>, vector<1x128x128xf32>
    %15 = vector.shape_cast %14 : vector<1x128x128xf32> to vector<128x128xf32>
    %c0_16 = arith.constant 0 : index
    %c0_17 = arith.constant 0 : index
    %c0_18 = arith.constant 0 : index
    %16 = vector.load %arg2[%c0_16, %c0_17, %c0_18] : memref<5x128x256xf32, #tpu.memory_space<vmem>>, vector<1x128x256xf32>
    %17 = vector.shape_cast %16 : vector<1x128x256xf32> to vector<128x256xf32>
    %c1_19 = arith.constant 1 : index
    %c0_20 = arith.constant 0 : index
    %c0_21 = arith.constant 0 : index
    %18 = vector.load %arg2[%c1_19, %c0_20, %c0_21] : memref<5x128x256xf32, #tpu.memory_space<vmem>>, vector<1x128x256xf32>
    %19 = vector.shape_cast %18 : vector<1x128x256xf32> to vector<128x256xf32>
    %c2_22 = arith.constant 2 : index
    %c0_23 = arith.constant 0 : index
    %c0_24 = arith.constant 0 : index
    %20 = vector.load %arg2[%c2_22, %c0_23, %c0_24] : memref<5x128x256xf32, #tpu.memory_space<vmem>>, vector<1x128x256xf32>
    %21 = vector.shape_cast %20 : vector<1x128x256xf32> to vector<128x256xf32>
    %c3_25 = arith.constant 3 : index
    %c0_26 = arith.constant 0 : index
    %c0_27 = arith.constant 0 : index
    %22 = vector.load %arg2[%c3_25, %c0_26, %c0_27] : memref<5x128x256xf32, #tpu.memory_space<vmem>>, vector<1x128x256xf32>
    %23 = vector.shape_cast %22 : vector<1x128x256xf32> to vector<128x256xf32>
    %c4_28 = arith.constant 4 : index
    %c0_29 = arith.constant 0 : index
    %c0_30 = arith.constant 0 : index
    %24 = vector.load %arg2[%c4_28, %c0_29, %c0_30] : memref<5x128x256xf32, #tpu.memory_space<vmem>>, vector<1x128x256xf32>
    %25 = vector.shape_cast %24 : vector<1x128x256xf32> to vector<128x256xf32>
    %c0_31 = arith.constant 0 : index
    %c0_32 = arith.constant 0 : index
    %c0_33 = arith.constant 0 : index
    %26 = vector.load %arg4[%c0_31, %c0_32, %c0_33] : memref<5x128x256xf32, #tpu.memory_space<vmem>>, vector<1x128x256xf32>
    %27 = vector.shape_cast %26 : vector<1x128x256xf32> to vector<128x256xf32>
    %c1_34 = arith.constant 1 : index
    %c0_35 = arith.constant 0 : index
    %c0_36 = arith.constant 0 : index
    %28 = vector.load %arg4[%c1_34, %c0_35, %c0_36] : memref<5x128x256xf32, #tpu.memory_space<vmem>>, vector<1x128x256xf32>
    %29 = vector.shape_cast %28 : vector<1x128x256xf32> to vector<128x256xf32>
    %c2_37 = arith.constant 2 : index
    %c0_38 = arith.constant 0 : index
    %c0_39 = arith.constant 0 : index
    %30 = vector.load %arg4[%c2_37, %c0_38, %c0_39] : memref<5x128x256xf32, #tpu.memory_space<vmem>>, vector<1x128x256xf32>
    %31 = vector.shape_cast %30 : vector<1x128x256xf32> to vector<128x256xf32>
    %c3_40 = arith.constant 3 : index
    %c0_41 = arith.constant 0 : index
    %c0_42 = arith.constant 0 : index
    %32 = vector.load %arg4[%c3_40, %c0_41, %c0_42] : memref<5x128x256xf32, #tpu.memory_space<vmem>>, vector<1x128x256xf32>
    %33 = vector.shape_cast %32 : vector<1x128x256xf32> to vector<128x256xf32>
    %c4_43 = arith.constant 4 : index
    %c0_44 = arith.constant 0 : index
    %c0_45 = arith.constant 0 : index
    %34 = vector.load %arg4[%c4_43, %c0_44, %c0_45] : memref<5x128x256xf32, #tpu.memory_space<vmem>>, vector<1x128x256xf32>
    %35 = vector.shape_cast %34 : vector<1x128x256xf32> to vector<128x256xf32>
    %c0_46 = arith.constant 0 : index
    %c0_47 = arith.constant 0 : index
    %36 = vector.load %arg3[%c0_46, %c0_47] : memref<1x256xf32, #tpu.memory_space<vmem>>, vector<1x256xf32>
    %c0_48 = arith.constant 0 : index
    %c0_49 = arith.constant 0 : index
    %37 = vector.load %arg5[%c0_48, %c0_49] : memref<1x256xf32, #tpu.memory_space<vmem>>, vector<1x256xf32>
    %cst = arith.constant dense<0.000000e+00> : vector<128x256xf32>
    %38 = tpu.matmul %1, %17, %cst {dimension_numbers = #tpu.dot_dimension_numbers<[1], [0], [0], [1], [0, 0, 1, 1], [], []>} : vector<128x128xf32>, vector<128x256xf32>, vector<128x256xf32> -> vector<128x256xf32>
    %cst_50 = arith.constant dense<0.000000e+00> : vector<128x256xf32>
    %39 = tpu.matmul %3, %19, %cst_50 {dimension_numbers = #tpu.dot_dimension_numbers<[1], [0], [0], [1], [0, 0, 1, 1], [], []>} : vector<128x128xf32>, vector<128x256xf32>, vector<128x256xf32> -> vector<128x256xf32>
    %40 = arith.addf %38, %39 : vector<128x256xf32>
    %cst_51 = arith.constant dense<0.000000e+00> : vector<128x256xf32>
    %41 = tpu.matmul %5, %21, %cst_51 {dimension_numbers = #tpu.dot_dimension_numbers<[1], [0], [0], [1], [0, 0, 1, 1], [], []>} : vector<128x128xf32>, vector<128x256xf32>, vector<128x256xf32> -> vector<128x256xf32>
    %42 = arith.addf %40, %41 : vector<128x256xf32>
    %cst_52 = arith.constant dense<0.000000e+00> : vector<128x256xf32>
    %43 = tpu.matmul %7, %23, %cst_52 {dimension_numbers = #tpu.dot_dimension_numbers<[1], [0], [0], [1], [0, 0, 1, 1], [], []>} : vector<128x128xf32>, vector<128x256xf32>, vector<128x256xf32> -> vector<128x256xf32>
    %44 = arith.addf %42, %43 : vector<128x256xf32>
    %cst_53 = arith.constant dense<0.000000e+00> : vector<128x256xf32>
    %45 = tpu.matmul %9, %25, %cst_53 {dimension_numbers = #tpu.dot_dimension_numbers<[1], [0], [0], [1], [0, 0, 1, 1], [], []>} : vector<128x128xf32>, vector<128x256xf32>, vector<128x256xf32> -> vector<128x256xf32>
    %46 = arith.addf %44, %45 : vector<128x256xf32>
    %47 = vector.broadcast %36 : vector<1x256xf32> to vector<128x256xf32>
    %48 = arith.addf %46, %47 : vector<128x256xf32>
    %cst_54 = arith.constant 0.000000e+00 : f32
    %49 = vector.broadcast %cst_54 : f32 to vector<128x256xf32>
    %50 = arith.maximumf %48, %49 : vector<128x256xf32>
    %51 = vector.extract_strided_slice %50 {offsets = [0, 0], sizes = [128, 128], strides = [1, 1]} : vector<128x256xf32> to vector<128x128xf32>
    %52 = vector.extract_strided_slice %50 {offsets = [0, 128], sizes = [128, 128], strides = [1, 1]} : vector<128x256xf32> to vector<128x128xf32>
    %53 = arith.maximumf %51, %52 : vector<128x128xf32>
    %cst_55 = arith.constant dense<0.000000e+00> : vector<128x256xf32>
    %54 = tpu.matmul %3, %17, %cst_55 {dimension_numbers = #tpu.dot_dimension_numbers<[1], [0], [0], [1], [0, 0, 1, 1], [], []>} : vector<128x128xf32>, vector<128x256xf32>, vector<128x256xf32> -> vector<128x256xf32>
    %cst_56 = arith.constant dense<0.000000e+00> : vector<128x256xf32>
    %55 = tpu.matmul %5, %19, %cst_56 {dimension_numbers = #tpu.dot_dimension_numbers<[1], [0], [0], [1], [0, 0, 1, 1], [], []>} : vector<128x128xf32>, vector<128x256xf32>, vector<128x256xf32> -> vector<128x256xf32>
    %56 = arith.addf %54, %55 : vector<128x256xf32>
    %cst_57 = arith.constant dense<0.000000e+00> : vector<128x256xf32>
    %57 = tpu.matmul %7, %21, %cst_57 {dimension_numbers = #tpu.dot_dimension_numbers<[1], [0], [0], [1], [0, 0, 1, 1], [], []>} : vector<128x128xf32>, vector<128x256xf32>, vector<128x256xf32> -> vector<128x256xf32>
    %58 = arith.addf %56, %57 : vector<128x256xf32>
    %cst_58 = arith.constant dense<0.000000e+00> : vector<128x256xf32>
    %59 = tpu.matmul %9, %23, %cst_58 {dimension_numbers = #tpu.dot_dimension_numbers<[1], [0], [0], [1], [0, 0, 1, 1], [], []>} : vector<128x128xf32>, vector<128x256xf32>, vector<128x256xf32> -> vector<128x256xf32>
    %60 = arith.addf %58, %59 : vector<128x256xf32>
    %cst_59 = arith.constant dense<0.000000e+00> : vector<128x256xf32>
    %61 = tpu.matmul %11, %25, %cst_59 {dimension_numbers = #tpu.dot_dimension_numbers<[1], [0], [0], [1], [0, 0, 1, 1], [], []>} : vector<128x128xf32>, vector<128x256xf32>, vector<128x256xf32> -> vector<128x256xf32>
    %62 = arith.addf %60, %61 : vector<128x256xf32>
    %63 = vector.broadcast %36 : vector<1x256xf32> to vector<128x256xf32>
    %64 = arith.addf %62, %63 : vector<128x256xf32>
    %cst_60 = arith.constant 0.000000e+00 : f32
    %65 = vector.broadcast %cst_60 : f32 to vector<128x256xf32>
    %66 = arith.maximumf %64, %65 : vector<128x256xf32>
    %67 = vector.extract_strided_slice %66 {offsets = [0, 0], sizes = [128, 128], strides = [1, 1]} : vector<128x256xf32> to vector<128x128xf32>
    %68 = vector.extract_strided_slice %66 {offsets = [0, 128], sizes = [128, 128], strides = [1, 1]} : vector<128x256xf32> to vector<128x128xf32>
    %69 = arith.maximumf %67, %68 : vector<128x128xf32>
    %70 = arith.maximumf %53, %69 : vector<128x128xf32>
    %cst_61 = arith.constant dense<0.000000e+00> : vector<128x256xf32>
    %71 = tpu.matmul %5, %17, %cst_61 {dimension_numbers = #tpu.dot_dimension_numbers<[1], [0], [0], [1], [0, 0, 1, 1], [], []>} : vector<128x128xf32>, vector<128x256xf32>, vector<128x256xf32> -> vector<128x256xf32>
    %cst_62 = arith.constant dense<0.000000e+00> : vector<128x256xf32>
    %72 = tpu.matmul %7, %19, %cst_62 {dimension_numbers = #tpu.dot_dimension_numbers<[1], [0], [0], [1], [0, 0, 1, 1], [], []>} : vector<128x128xf32>, vector<128x256xf32>, vector<128x256xf32> -> vector<128x256xf32>
    %73 = arith.addf %71, %72 : vector<128x256xf32>
    %cst_63 = arith.constant dense<0.000000e+00> : vector<128x256xf32>
    %74 = tpu.matmul %9, %21, %cst_63 {dimension_numbers = #tpu.dot_dimension_numbers<[1], [0], [0], [1], [0, 0, 1, 1], [], []>} : vector<128x128xf32>, vector<128x256xf32>, vector<128x256xf32> -> vector<128x256xf32>
    %75 = arith.addf %73, %74 : vector<128x256xf32>
    %cst_64 = arith.constant dense<0.000000e+00> : vector<128x256xf32>
    %76 = tpu.matmul %11, %23, %cst_64 {dimension_numbers = #tpu.dot_dimension_numbers<[1], [0], [0], [1], [0, 0, 1, 1], [], []>} : vector<128x128xf32>, vector<128x256xf32>, vector<128x256xf32> -> vector<128x256xf32>
    %77 = arith.addf %75, %76 : vector<128x256xf32>
    %cst_65 = arith.constant dense<0.000000e+00> : vector<128x256xf32>
    %78 = tpu.matmul %13, %25, %cst_65 {dimension_numbers = #tpu.dot_dimension_numbers<[1], [0], [0], [1], [0, 0, 1, 1], [], []>} : vector<128x128xf32>, vector<128x256xf32>, vector<128x256xf32> -> vector<128x256xf32>
    %79 = arith.addf %77, %78 : vector<128x256xf32>
    %80 = vector.broadcast %36 : vector<1x256xf32> to vector<128x256xf32>
    %81 = arith.addf %79, %80 : vector<128x256xf32>
    %cst_66 = arith.constant 0.000000e+00 : f32
    %82 = vector.broadcast %cst_66 : f32 to vector<128x256xf32>
    %83 = arith.maximumf %81, %82 : vector<128x256xf32>
    %84 = vector.extract_strided_slice %83 {offsets = [0, 0], sizes = [128, 128], strides = [1, 1]} : vector<128x256xf32> to vector<128x128xf32>
    %85 = vector.extract_strided_slice %83 {offsets = [0, 128], sizes = [128, 128], strides = [1, 1]} : vector<128x256xf32> to vector<128x128xf32>
    %86 = arith.maximumf %84, %85 : vector<128x128xf32>
    %cst_67 = arith.constant dense<0.000000e+00> : vector<128x256xf32>
    %87 = tpu.matmul %7, %17, %cst_67 {dimension_numbers = #tpu.dot_dimension_numbers<[1], [0], [0], [1], [0, 0, 1, 1], [], []>} : vector<128x128xf32>, vector<128x256xf32>, vector<128x256xf32> -> vector<128x256xf32>
    %cst_68 = arith.constant dense<0.000000e+00> : vector<128x256xf32>
    %88 = tpu.matmul %9, %19, %cst_68 {dimension_numbers = #tpu.dot_dimension_numbers<[1], [0], [0], [1], [0, 0, 1, 1], [], []>} : vector<128x128xf32>, vector<128x256xf32>, vector<128x256xf32> -> vector<128x256xf32>
    %89 = arith.addf %87, %88 : vector<128x256xf32>
    %cst_69 = arith.constant dense<0.000000e+00> : vector<128x256xf32>
    %90 = tpu.matmul %11, %21, %cst_69 {dimension_numbers = #tpu.dot_dimension_numbers<[1], [0], [0], [1], [0, 0, 1, 1], [], []>} : vector<128x128xf32>, vector<128x256xf32>, vector<128x256xf32> -> vector<128x256xf32>
    %91 = arith.addf %89, %90 : vector<128x256xf32>
    %cst_70 = arith.constant dense<0.000000e+00> : vector<128x256xf32>
    %92 = tpu.matmul %13, %23, %cst_70 {dimension_numbers = #tpu.dot_dimension_numbers<[1], [0], [0], [1], [0, 0, 1, 1], [], []>} : vector<128x128xf32>, vector<128x256xf32>, vector<128x256xf32> -> vector<128x256xf32>
    %93 = arith.addf %91, %92 : vector<128x256xf32>
    %cst_71 = arith.constant dense<0.000000e+00> : vector<128x256xf32>
    %94 = tpu.matmul %15, %25, %cst_71 {dimension_numbers = #tpu.dot_dimension_numbers<[1], [0], [0], [1], [0, 0, 1, 1], [], []>} : vector<128x128xf32>, vector<128x256xf32>, vector<128x256xf32> -> vector<128x256xf32>
    %95 = arith.addf %93, %94 : vector<128x256xf32>
    %96 = vector.broadcast %36 : vector<1x256xf32> to vector<128x256xf32>
    %97 = arith.addf %95, %96 : vector<128x256xf32>
    %cst_72 = arith.constant 0.000000e+00 : f32
    %98 = vector.broadcast %cst_72 : f32 to vector<128x256xf32>
    %99 = arith.maximumf %97, %98 : vector<128x256xf32>
    %100 = vector.extract_strided_slice %99 {offsets = [0, 0], sizes = [128, 128], strides = [1, 1]} : vector<128x256xf32> to vector<128x128xf32>
    %101 = vector.extract_strided_slice %99 {offsets = [0, 128], sizes = [128, 128], strides = [1, 1]} : vector<128x256xf32> to vector<128x128xf32>
    %102 = arith.maximumf %100, %101 : vector<128x128xf32>
    %103 = arith.maximumf %86, %102 : vector<128x128xf32>
    %c0_73 = arith.constant 0 : index
    %c0_74 = arith.constant 0 : index
    %c0_75 = arith.constant 0 : index
    %104 = vector.load %arg6[%c0_73, %c0_74, %c0_75] : memref<2x128x128xf32, #tpu.memory_space<vmem>>, vector<1x128x128xf32>
    %105 = vector.shape_cast %104 : vector<1x128x128xf32> to vector<128x128xf32>
    %cst_76 = arith.constant dense<0.000000e+00> : vector<128x128xf32>
    %106 = tpu.matmul %105, %70, %cst_76 {dimension_numbers = #tpu.dot_dimension_numbers<[1], [0], [0], [1], [0, 0, 1, 1], [], []>} : vector<128x128xf32>, vector<128x128xf32>, vector<128x128xf32> -> vector<128x128xf32>
    %c0_77 = arith.constant 0 : index
    %c0_78 = arith.constant 0 : index
    %c0_79 = arith.constant 0 : index
    %107 = vector.load %arg6[%c0_77, %c0_78, %c0_79] : memref<2x128x128xf32, #tpu.memory_space<vmem>>, vector<1x128x128xf32>
    %108 = vector.shape_cast %107 : vector<1x128x128xf32> to vector<128x128xf32>
    %cst_80 = arith.constant dense<0.000000e+00> : vector<128x128xf32>
    %109 = tpu.matmul %108, %103, %cst_80 {dimension_numbers = #tpu.dot_dimension_numbers<[1], [0], [0], [1], [0, 0, 1, 1], [], []>} : vector<128x128xf32>, vector<128x128xf32>, vector<128x128xf32> -> vector<128x128xf32>
    %c1_81 = arith.constant 1 : index
    %c0_82 = arith.constant 0 : index
    %c0_83 = arith.constant 0 : index
    %110 = vector.load %arg6[%c1_81, %c0_82, %c0_83] : memref<2x128x128xf32, #tpu.memory_space<vmem>>, vector<1x128x128xf32>
    %111 = vector.shape_cast %110 : vector<1x128x128xf32> to vector<128x128xf32>
    %cst_84 = arith.constant dense<0.000000e+00> : vector<128x128xf32>
    %112 = tpu.matmul %111, %70, %cst_84 {dimension_numbers = #tpu.dot_dimension_numbers<[1], [0], [0], [1], [0, 0, 1, 1], [], []>} : vector<128x128xf32>, vector<128x128xf32>, vector<128x128xf32> -> vector<128x128xf32>
    %c1_85 = arith.constant 1 : index
    %c0_86 = arith.constant 0 : index
    %c0_87 = arith.constant 0 : index
    %113 = vector.load %arg6[%c1_85, %c0_86, %c0_87] : memref<2x128x128xf32, #tpu.memory_space<vmem>>, vector<1x128x128xf32>
    %114 = vector.shape_cast %113 : vector<1x128x128xf32> to vector<128x128xf32>
    %cst_88 = arith.constant dense<0.000000e+00> : vector<128x128xf32>
    %115 = tpu.matmul %114, %103, %cst_88 {dimension_numbers = #tpu.dot_dimension_numbers<[1], [0], [0], [1], [0, 0, 1, 1], [], []>} : vector<128x128xf32>, vector<128x128xf32>, vector<128x128xf32> -> vector<128x128xf32>
    %cst_89 = arith.constant dense<0.000000e+00> : vector<128x256xf32>
    %116 = tpu.matmul %70, %27, %cst_89 {dimension_numbers = #tpu.dot_dimension_numbers<[1], [0], [0], [1], [0, 0, 1, 1], [], []>} : vector<128x128xf32>, vector<128x256xf32>, vector<128x256xf32> -> vector<128x256xf32>
    %cst_90 = arith.constant dense<0.000000e+00> : vector<128x256xf32>
    %117 = tpu.matmul %103, %29, %cst_90 {dimension_numbers = #tpu.dot_dimension_numbers<[1], [0], [0], [1], [0, 0, 1, 1], [], []>} : vector<128x128xf32>, vector<128x256xf32>, vector<128x256xf32> -> vector<128x256xf32>
    %118 = arith.addf %116, %117 : vector<128x256xf32>
    %cst_91 = arith.constant dense<0.000000e+00> : vector<128x256xf32>
    %119 = tpu.matmul %106, %31, %cst_91 {dimension_numbers = #tpu.dot_dimension_numbers<[1], [0], [0], [1], [0, 0, 1, 1], [], []>} : vector<128x128xf32>, vector<128x256xf32>, vector<128x256xf32> -> vector<128x256xf32>
    %120 = arith.addf %118, %119 : vector<128x256xf32>
    %cst_92 = arith.constant dense<0.000000e+00> : vector<128x256xf32>
    %121 = tpu.matmul %109, %33, %cst_92 {dimension_numbers = #tpu.dot_dimension_numbers<[1], [0], [0], [1], [0, 0, 1, 1], [], []>} : vector<128x128xf32>, vector<128x256xf32>, vector<128x256xf32> -> vector<128x256xf32>
    %122 = arith.addf %120, %121 : vector<128x256xf32>
    %cst_93 = arith.constant dense<0.000000e+00> : vector<128x256xf32>
    %123 = tpu.matmul %112, %35, %cst_93 {dimension_numbers = #tpu.dot_dimension_numbers<[1], [0], [0], [1], [0, 0, 1, 1], [], []>} : vector<128x128xf32>, vector<128x256xf32>, vector<128x256xf32> -> vector<128x256xf32>
    %124 = arith.addf %122, %123 : vector<128x256xf32>
    %125 = vector.broadcast %37 : vector<1x256xf32> to vector<128x256xf32>
    %126 = arith.addf %124, %125 : vector<128x256xf32>
    %cst_94 = arith.constant 0.000000e+00 : f32
    %127 = vector.broadcast %cst_94 : f32 to vector<128x256xf32>
    %128 = arith.maximumf %126, %127 : vector<128x256xf32>
    %129 = vector.extract_strided_slice %128 {offsets = [0, 0], sizes = [128, 128], strides = [1, 1]} : vector<128x256xf32> to vector<128x128xf32>
    %130 = vector.extract_strided_slice %128 {offsets = [0, 128], sizes = [128, 128], strides = [1, 1]} : vector<128x256xf32> to vector<128x128xf32>
    %131 = arith.maximumf %129, %130 : vector<128x128xf32>
    %cst_95 = arith.constant dense<0.000000e+00> : vector<128x256xf32>
    %132 = tpu.matmul %103, %27, %cst_95 {dimension_numbers = #tpu.dot_dimension_numbers<[1], [0], [0], [1], [0, 0, 1, 1], [], []>} : vector<128x128xf32>, vector<128x256xf32>, vector<128x256xf32> -> vector<128x256xf32>
    %cst_96 = arith.constant dense<0.000000e+00> : vector<128x256xf32>
    %133 = tpu.matmul %106, %29, %cst_96 {dimension_numbers = #tpu.dot_dimension_numbers<[1], [0], [0], [1], [0, 0, 1, 1], [], []>} : vector<128x128xf32>, vector<128x256xf32>, vector<128x256xf32> -> vector<128x256xf32>
    %134 = arith.addf %132, %133 : vector<128x256xf32>
    %cst_97 = arith.constant dense<0.000000e+00> : vector<128x256xf32>
    %135 = tpu.matmul %109, %31, %cst_97 {dimension_numbers = #tpu.dot_dimension_numbers<[1], [0], [0], [1], [0, 0, 1, 1], [], []>} : vector<128x128xf32>, vector<128x256xf32>, vector<128x256xf32> -> vector<128x256xf32>
    %136 = arith.addf %134, %135 : vector<128x256xf32>
    %cst_98 = arith.constant dense<0.000000e+00> : vector<128x256xf32>
    %137 = tpu.matmul %112, %33, %cst_98 {dimension_numbers = #tpu.dot_dimension_numbers<[1], [0], [0], [1], [0, 0, 1, 1], [], []>} : vector<128x128xf32>, vector<128x256xf32>, vector<128x256xf32> -> vector<128x256xf32>
    %138 = arith.addf %136, %137 : vector<128x256xf32>
    %cst_99 = arith.constant dense<0.000000e+00> : vector<128x256xf32>
    %139 = tpu.matmul %115, %35, %cst_99 {dimension_numbers = #tpu.dot_dimension_numbers<[1], [0], [0], [1], [0, 0, 1, 1], [], []>} : vector<128x128xf32>, vector<128x256xf32>, vector<128x256xf32> -> vector<128x256xf32>
    %140 = arith.addf %138, %139 : vector<128x256xf32>
    %141 = vector.broadcast %37 : vector<1x256xf32> to vector<128x256xf32>
    %142 = arith.addf %140, %141 : vector<128x256xf32>
    %cst_100 = arith.constant 0.000000e+00 : f32
    %143 = vector.broadcast %cst_100 : f32 to vector<128x256xf32>
    %144 = arith.maximumf %142, %143 : vector<128x256xf32>
    %145 = vector.extract_strided_slice %144 {offsets = [0, 0], sizes = [128, 128], strides = [1, 1]} : vector<128x256xf32> to vector<128x128xf32>
    %146 = vector.extract_strided_slice %144 {offsets = [0, 128], sizes = [128, 128], strides = [1, 1]} : vector<128x256xf32> to vector<128x128xf32>
    %147 = arith.maximumf %145, %146 : vector<128x128xf32>
    %148 = arith.maximumf %131, %147 : vector<128x128xf32>
    %c0_101 = arith.constant 0 : index
    %c0_102 = arith.constant 0 : index
    %c0_103 = arith.constant 0 : index
    %149 = vector.load %arg7[%c0_101, %c0_102, %c0_103] : memref<5x16x128xf32, #tpu.memory_space<vmem>>, vector<1x16x128xf32>
    %150 = vector.shape_cast %149 : vector<1x16x128xf32> to vector<16x128xf32>
    %cst_104 = arith.constant dense<0.000000e+00> : vector<16x128xf32>
    %151 = tpu.matmul %150, %148, %cst_104 {dimension_numbers = #tpu.dot_dimension_numbers<[1], [0], [0], [1], [0, 0, 1, 1], [], []>} : vector<16x128xf32>, vector<128x128xf32>, vector<16x128xf32> -> vector<16x128xf32>
    %c0_105 = arith.constant 0 : index
    %c0_106 = arith.constant 0 : index
    %c0_107 = arith.constant 0 : index
    %152 = vector.load %arg8[%c0_105, %c0_106, %c0_107] : memref<5x128x128xf32, #tpu.memory_space<vmem>>, vector<1x128x128xf32>
    %153 = vector.shape_cast %152 : vector<1x128x128xf32> to vector<128x128xf32>
    %cst_108 = arith.constant dense<0.000000e+00> : vector<16x128xf32>
    %154 = tpu.matmul %151, %153, %cst_108 {dimension_numbers = #tpu.dot_dimension_numbers<[1], [0], [0], [1], [0, 0, 1, 1], [], []>} : vector<16x128xf32>, vector<128x128xf32>, vector<16x128xf32> -> vector<16x128xf32>
    %c1_109 = arith.constant 1 : index
    %c0_110 = arith.constant 0 : index
    %c0_111 = arith.constant 0 : index
    %155 = vector.load %arg7[%c1_109, %c0_110, %c0_111] : memref<5x16x128xf32, #tpu.memory_space<vmem>>, vector<1x16x128xf32>
    %156 = vector.shape_cast %155 : vector<1x16x128xf32> to vector<16x128xf32>
    %cst_112 = arith.constant dense<0.000000e+00> : vector<16x128xf32>
    %157 = tpu.matmul %156, %148, %cst_112 {dimension_numbers = #tpu.dot_dimension_numbers<[1], [0], [0], [1], [0, 0, 1, 1], [], []>} : vector<16x128xf32>, vector<128x128xf32>, vector<16x128xf32> -> vector<16x128xf32>
    %c1_113 = arith.constant 1 : index
    %c0_114 = arith.constant 0 : index
    %c0_115 = arith.constant 0 : index
    %158 = vector.load %arg8[%c1_113, %c0_114, %c0_115] : memref<5x128x128xf32, #tpu.memory_space<vmem>>, vector<1x128x128xf32>
    %159 = vector.shape_cast %158 : vector<1x128x128xf32> to vector<128x128xf32>
    %cst_116 = arith.constant dense<0.000000e+00> : vector<16x128xf32>
    %160 = tpu.matmul %157, %159, %cst_116 {dimension_numbers = #tpu.dot_dimension_numbers<[1], [0], [0], [1], [0, 0, 1, 1], [], []>} : vector<16x128xf32>, vector<128x128xf32>, vector<16x128xf32> -> vector<16x128xf32>
    %161 = arith.addf %154, %160 : vector<16x128xf32>
    %c2_117 = arith.constant 2 : index
    %c0_118 = arith.constant 0 : index
    %c0_119 = arith.constant 0 : index
    %162 = vector.load %arg7[%c2_117, %c0_118, %c0_119] : memref<5x16x128xf32, #tpu.memory_space<vmem>>, vector<1x16x128xf32>
    %163 = vector.shape_cast %162 : vector<1x16x128xf32> to vector<16x128xf32>
    %cst_120 = arith.constant dense<0.000000e+00> : vector<16x128xf32>
    %164 = tpu.matmul %163, %148, %cst_120 {dimension_numbers = #tpu.dot_dimension_numbers<[1], [0], [0], [1], [0, 0, 1, 1], [], []>} : vector<16x128xf32>, vector<128x128xf32>, vector<16x128xf32> -> vector<16x128xf32>
    %c2_121 = arith.constant 2 : index
    %c0_122 = arith.constant 0 : index
    %c0_123 = arith.constant 0 : index
    %165 = vector.load %arg8[%c2_121, %c0_122, %c0_123] : memref<5x128x128xf32, #tpu.memory_space<vmem>>, vector<1x128x128xf32>
    %166 = vector.shape_cast %165 : vector<1x128x128xf32> to vector<128x128xf32>
    %cst_124 = arith.constant dense<0.000000e+00> : vector<16x128xf32>
    %167 = tpu.matmul %164, %166, %cst_124 {dimension_numbers = #tpu.dot_dimension_numbers<[1], [0], [0], [1], [0, 0, 1, 1], [], []>} : vector<16x128xf32>, vector<128x128xf32>, vector<16x128xf32> -> vector<16x128xf32>
    %168 = arith.addf %161, %167 : vector<16x128xf32>
    %c3_125 = arith.constant 3 : index
    %c0_126 = arith.constant 0 : index
    %c0_127 = arith.constant 0 : index
    %169 = vector.load %arg7[%c3_125, %c0_126, %c0_127] : memref<5x16x128xf32, #tpu.memory_space<vmem>>, vector<1x16x128xf32>
    %170 = vector.shape_cast %169 : vector<1x16x128xf32> to vector<16x128xf32>
    %cst_128 = arith.constant dense<0.000000e+00> : vector<16x128xf32>
    %171 = tpu.matmul %170, %148, %cst_128 {dimension_numbers = #tpu.dot_dimension_numbers<[1], [0], [0], [1], [0, 0, 1, 1], [], []>} : vector<16x128xf32>, vector<128x128xf32>, vector<16x128xf32> -> vector<16x128xf32>
    %c3_129 = arith.constant 3 : index
    %c0_130 = arith.constant 0 : index
    %c0_131 = arith.constant 0 : index
    %172 = vector.load %arg8[%c3_129, %c0_130, %c0_131] : memref<5x128x128xf32, #tpu.memory_space<vmem>>, vector<1x128x128xf32>
    %173 = vector.shape_cast %172 : vector<1x128x128xf32> to vector<128x128xf32>
    %cst_132 = arith.constant dense<0.000000e+00> : vector<16x128xf32>
    %174 = tpu.matmul %171, %173, %cst_132 {dimension_numbers = #tpu.dot_dimension_numbers<[1], [0], [0], [1], [0, 0, 1, 1], [], []>} : vector<16x128xf32>, vector<128x128xf32>, vector<16x128xf32> -> vector<16x128xf32>
    %175 = arith.addf %168, %174 : vector<16x128xf32>
    %c4_133 = arith.constant 4 : index
    %c0_134 = arith.constant 0 : index
    %c0_135 = arith.constant 0 : index
    %176 = vector.load %arg7[%c4_133, %c0_134, %c0_135] : memref<5x16x128xf32, #tpu.memory_space<vmem>>, vector<1x16x128xf32>
    %177 = vector.shape_cast %176 : vector<1x16x128xf32> to vector<16x128xf32>
    %cst_136 = arith.constant dense<0.000000e+00> : vector<16x128xf32>
    %178 = tpu.matmul %177, %148, %cst_136 {dimension_numbers = #tpu.dot_dimension_numbers<[1], [0], [0], [1], [0, 0, 1, 1], [], []>} : vector<16x128xf32>, vector<128x128xf32>, vector<16x128xf32> -> vector<16x128xf32>
    %c4_137 = arith.constant 4 : index
    %c0_138 = arith.constant 0 : index
    %c0_139 = arith.constant 0 : index
    %179 = vector.load %arg8[%c4_137, %c0_138, %c0_139] : memref<5x128x128xf32, #tpu.memory_space<vmem>>, vector<1x128x128xf32>
    %180 = vector.shape_cast %179 : vector<1x128x128xf32> to vector<128x128xf32>
    %cst_140 = arith.constant dense<0.000000e+00> : vector<16x128xf32>
    %181 = tpu.matmul %178, %180, %cst_140 {dimension_numbers = #tpu.dot_dimension_numbers<[1], [0], [0], [1], [0, 0, 1, 1], [], []>} : vector<16x128xf32>, vector<128x128xf32>, vector<16x128xf32> -> vector<16x128xf32>
    %182 = arith.addf %175, %181 : vector<16x128xf32>
    %c0_141 = arith.constant 0 : index
    %c0_142 = arith.constant 0 : index
    %183 = vector.load %arg9[%c0_141, %c0_142] : memref<1x128xf32, #tpu.memory_space<vmem>>, vector<1x128xf32>
    %184 = vector.broadcast %183 : vector<1x128xf32> to vector<16x128xf32>
    %185 = arith.addf %182, %184 : vector<16x128xf32>
    %cst_143 = arith.constant 0.000000e+00 : f32
    %186 = vector.broadcast %cst_143 : f32 to vector<16x128xf32>
    %187 = arith.maximumf %185, %186 : vector<16x128xf32>
    %c0_144 = arith.constant 0 : index
    %c0_145 = arith.constant 0 : index
    %188 = vector.load %arg10[%c0_144, %c0_145] : memref<128x128xf32, #tpu.memory_space<vmem>>, vector<128x128xf32>
    %cst_146 = arith.constant dense<0.000000e+00> : vector<16x128xf32>
    %189 = tpu.matmul %187, %188, %cst_146 {dimension_numbers = #tpu.dot_dimension_numbers<[1], [0], [0], [1], [0, 0, 1, 1], [], []>} : vector<16x128xf32>, vector<128x128xf32>, vector<16x128xf32> -> vector<16x128xf32>
    %c0_147 = arith.constant 0 : index
    %c0_148 = arith.constant 0 : index
    %190 = vector.load %arg11[%c0_147, %c0_148] : memref<1x128xf32, #tpu.memory_space<vmem>>, vector<1x128xf32>
    %191 = vector.broadcast %190 : vector<1x128xf32> to vector<16x128xf32>
    %192 = arith.addf %189, %191 : vector<16x128xf32>
    %cst_149 = arith.constant 0.000000e+00 : f32
    %193 = vector.broadcast %cst_149 : f32 to vector<16x128xf32>
    %194 = arith.maximumf %192, %193 : vector<16x128xf32>
    %c0_150 = arith.constant 0 : index
    %c0_151 = arith.constant 0 : index
    %195 = vector.load %arg12[%c0_150, %c0_151] : memref<128x128xf32, #tpu.memory_space<vmem>>, vector<128x128xf32>
    %cst_152 = arith.constant dense<0.000000e+00> : vector<16x128xf32>
    %196 = tpu.matmul %194, %195, %cst_152 {dimension_numbers = #tpu.dot_dimension_numbers<[1], [0], [0], [1], [0, 0, 1, 1], [], []>} : vector<16x128xf32>, vector<128x128xf32>, vector<16x128xf32> -> vector<16x128xf32>
    %c0_153 = arith.constant 0 : index
    %c0_154 = arith.constant 0 : index
    %197 = vector.load %arg13[%c0_153, %c0_154] : memref<1x128xf32, #tpu.memory_space<vmem>>, vector<1x128xf32>
    %198 = vector.broadcast %197 : vector<1x128xf32> to vector<16x128xf32>
    %199 = arith.addf %196, %198 : vector<16x128xf32>
    %c0_155 = arith.constant 0 : index
    %c0_156 = arith.constant 0 : index
    %200 = vector.load %arg14[%c0_155, %c0_156] : memref<16x128xf32, #tpu.memory_space<vmem>>, vector<16x128xf32>
    tpu.vector_store %arg14[%c0_155, %c0_156], %199 {strides = array<i32>} : memref<16x128xf32, #tpu.memory_space<vmem>>, vector<16x128xf32>,
    return
  }
  func.func @transform_0(%arg0: i32) -> (i32, i32, i32) {
    %c0_i32 = arith.constant 0 : i32
    %c0_i32_0 = arith.constant 0 : i32
    %c0_i32_1 = arith.constant 0 : i32
    return %c0_i32, %arg0, %c0_i32_0 : i32, i32, i32
  }
  func.func @transform_1(%arg0: i32) -> (i32, i32, i32) {
    %c0_i32 = arith.constant 0 : i32
    %c0_i32_0 = arith.constant 0 : i32
    %c0_i32_1 = arith.constant 0 : i32
    %c0_i32_2 = arith.constant 0 : i32
    return %c0_i32, %c0_i32_0, %c0_i32_1 : i32, i32, i32
  }
  func.func @transform_2(%arg0: i32) -> (i32, i32) {
    %c0_i32 = arith.constant 0 : i32
    %c0_i32_0 = arith.constant 0 : i32
    %c0_i32_1 = arith.constant 0 : i32
    return %c0_i32, %c0_i32_0 : i32, i32
  }
  func.func @transform_3(%arg0: i32) -> (i32, i32, i32) {
    %c0_i32 = arith.constant 0 : i32
    %c0_i32_0 = arith.constant 0 : i32
    %c0_i32_1 = arith.constant 0 : i32
    %c0_i32_2 = arith.constant 0 : i32
    return %c0_i32, %c0_i32_0, %c0_i32_1 : i32, i32, i32
  }
  func.func @transform_4(%arg0: i32) -> (i32, i32) {
    %c0_i32 = arith.constant 0 : i32
    %c0_i32_0 = arith.constant 0 : i32
    %c0_i32_1 = arith.constant 0 : i32
    return %c0_i32, %c0_i32_0 : i32, i32
  }
  func.func @transform_5(%arg0: i32) -> (i32, i32, i32) {
    %c0_i32 = arith.constant 0 : i32
    %c0_i32_0 = arith.constant 0 : i32
    %c0_i32_1 = arith.constant 0 : i32
    %c0_i32_2 = arith.constant 0 : i32
    return %c0_i32, %c0_i32_0, %c0_i32_1 : i32, i32, i32
  }
  func.func @transform_6(%arg0: i32) -> (i32, i32, i32) {
    %c0_i32 = arith.constant 0 : i32
    %c0_i32_0 = arith.constant 0 : i32
    %c0_i32_1 = arith.constant 0 : i32
    %c0_i32_2 = arith.constant 0 : i32
    return %c0_i32, %c0_i32_0, %c0_i32_1 : i32, i32, i32
  }
  func.func @transform_7(%arg0: i32) -> (i32, i32, i32) {
    %c0_i32 = arith.constant 0 : i32
    %c0_i32_0 = arith.constant 0 : i32
    %c0_i32_1 = arith.constant 0 : i32
    %c0_i32_2 = arith.constant 0 : i32
    return %c0_i32, %c0_i32_0, %c0_i32_1 : i32, i32, i32
  }
  func.func @transform_8(%arg0: i32) -> (i32, i32) {
    %c0_i32 = arith.constant 0 : i32
    %c0_i32_0 = arith.constant 0 : i32
    %c0_i32_1 = arith.constant 0 : i32
    return %c0_i32, %c0_i32_0 : i32, i32
  }
  func.func @transform_9(%arg0: i32) -> (i32, i32) {
    %c0_i32 = arith.constant 0 : i32
    %c0_i32_0 = arith.constant 0 : i32
    %c0_i32_1 = arith.constant 0 : i32
    return %c0_i32, %c0_i32_0 : i32, i32
  }
  func.func @transform_10(%arg0: i32) -> (i32, i32) {
    %c0_i32 = arith.constant 0 : i32
    %c0_i32_0 = arith.constant 0 : i32
    %c0_i32_1 = arith.constant 0 : i32
    return %c0_i32, %c0_i32_0 : i32, i32
  }
  func.func @transform_11(%arg0: i32) -> (i32, i32) {
    %c0_i32 = arith.constant 0 : i32
    %c0_i32_0 = arith.constant 0 : i32
    %c0_i32_1 = arith.constant 0 : i32
    return %c0_i32, %c0_i32_0 : i32, i32
  }
  func.func @transform_12(%arg0: i32) -> (i32, i32) {
    %c0_i32 = arith.constant 0 : i32
    %c0_i32_0 = arith.constant 0 : i32
    %c0_i32_1 = arith.constant 0 : i32
    return %c0_i32, %c0_i32_0 : i32, i32
  }
  func.func @transform_13(%arg0: i32) -> (i32, i32) {
    %c0_i32 = arith.constant 0 : i32
    %c0_i32_0 = arith.constant 0 : i32
    return %arg0, %c0_i32 : i32, i32
  }
}

</mosaic_0001>

<llo_original>
// kernel: _lambda_.1
$region0: #{_lambda_.1}
  #allocation0 [shape = 'u32[]', space=smem, size = 0x4, offset = 0x4, fixed_abs, tag = 'smem constant byte address 0x4 - core index']
  #allocation1 [shape = 'u32[72,128]{1,0:T(1,128)}', space=vmem, size = 0x9000, scoped, tag = 'internal scratch']
  %s0 = inlined_call_operand.vmem [shape: f32[8,256,128], index: 0, kind: input, shape index: {}]
  %s1 = inlined_call_operand.vmem [shape: f32[5,128,256], index: 1, kind: input, shape index: {}]
  %s2 = inlined_call_operand.vmem [shape: f32[1,256], index: 2, kind: input, shape index: {}]
  %s3 = inlined_call_operand.vmem [shape: f32[5,128,256], index: 3, kind: input, shape index: {}]
  %s4 = inlined_call_operand.vmem [shape: f32[1,256], index: 4, kind: input, shape index: {}]
  %s5 = inlined_call_operand.vmem [shape: f32[2,128,128], index: 5, kind: input, shape index: {}]
  %s6 = inlined_call_operand.vmem [shape: f32[5,16,128], index: 6, kind: input, shape index: {}]
  %s7 = inlined_call_operand.vmem [shape: f32[5,128,128], index: 7, kind: input, shape index: {}]
  %s8 = inlined_call_operand.vmem [shape: f32[1,128], index: 8, kind: input, shape index: {}]
  %s9 = inlined_call_operand.vmem [shape: f32[128,128], index: 9, kind: input, shape index: {}]
  %s10 = inlined_call_operand.vmem [shape: f32[1,128], index: 10, kind: input, shape index: {}]
  %s11 = inlined_call_operand.vmem [shape: f32[128,128], index: 11, kind: input, shape index: {}]
  %s12 = inlined_call_operand.vmem [shape: f32[1,128], index: 12, kind: input, shape index: {}]
  %s13 = inlined_call_operand.vmem [shape: f32[32,128], index: 13, kind: output, shape index: {}]
  %s14 = sld [smem:[#allocation0]]
  $region123: #{_lambda_.1} parent=0
    _
  %s16 = ssub.s32 1, %s14
  %s17 = scalar_select 0, %s16, %s14
  $region1: #{_lambda_.1} parent=0
    #allocation2 [shape = 'u8[1048576]{0}', space=vmem, size = 0x100000, scoped, tag = 'input window, operand 0']
    loop: start=0, step=1, limit=4
    $region2: #{_lambda_.1} parent=1 // loop_pre_header
      _
    $region3: #{_lambda_.1} parent=1 // loop_header
      %s19 = sphi 0, %s23
      %p20 = scmp.ge.s32.totalorder %s19, 4
      %s29 = sphi 0, %s31
      %s32 = sphi 0, %s29
      %s33 = sphi 0, %s32
      %s49 = sphi 0, %s33
      %s53 = sphi 0, %s53
      %s55 = sphi 0, %s53
      %s56 = sphi 0, %s55
      %s70 = sphi 0, %s56
      %s74 = sphi 0, %s74
      %s76 = sphi 0, %s74
      %s77 = sphi 0, %s76
      %s91 = sphi 0, %s77
      %s95 = sphi 0, %s95
      %s97 = sphi 0, %s95
      %s98 = sphi 0, %s97
      %s112 = sphi 0, %s98
      %s116 = sphi 0, %s116
      %s118 = sphi 0, %s116
      %s119 = sphi 0, %s118
      %s133 = sphi 0, %s119
      %s137 = sphi 0, %s137
      %s139 = sphi 0, %s137
      %s140 = sphi 0, %s139
      %s154 = sphi 0, %s140
      %s158 = sphi 0, %s158
      %s160 = sphi 0, %s158
      %s161 = sphi 0, %s160
      %s175 = sphi 0, %s161
      %s179 = sphi 0, %s179
      %s181 = sphi 0, %s179
      %s182 = sphi 0, %s181
      %s196 = sphi 0, %s182
      %s200 = sphi 0, %s200
      %s202 = sphi 0, %s200
      %s203 = sphi 0, %s202
      %s217 = sphi 0, %s203
      %s221 = sphi 0, %s221
      %s223 = sphi 0, %s221
      %s224 = sphi 0, %s223
      %s238 = sphi 0, %s224
      %s242 = sphi 0, %s242
      %s244 = sphi 0, %s242
      %s245 = sphi 0, %s244
      %s259 = sphi 0, %s245
      %s263 = sphi 0, %s263
      %s265 = sphi 0, %s263
      %s266 = sphi 0, %s265
      %s280 = sphi 0, %s266
      %s284 = sphi 0, %s284
      %s286 = sphi 0, %s284
      %s287 = sphi 0, %s286
      %s301 = sphi 0, %s287
      %s307 = sphi 0, %s309
      %s310 = sphi 0, %s307
      %s311 = sphi 0, %s310
      %s327 = sphi 0, %s311
    $region4: #{_lambda_.1} parent=1 // loop_header_branch
      %22 = sbr.rel (%p20) target = $region8
    $region5: #{_lambda_.1} parent=1 // loop_body
      %s24 = ssub.s32 %s19, 1
      %s25 = ssub.s32 %s19, 2
      %s26 = sadd.s32 %s19, 1
      %s27 = ssub.s32 %s19, %s26
      %p28 = scmp.eq.s32.totalorder %s27, 0
      %s30 = sadd.s32 %s29, 1
      %s31 = scalar_select %p28, %s29, %s30
      %p34 = pneg %p28
      %p35 = scmp.eq.s32.totalorder %s19, 1
      %p36 = por %p34, %p35
      %p37 = scmp.ne.s32.totalorder %s29, %s32
      %p38 = scmp.eq.s32.totalorder %s19, 0
      %p39 = por %p37, %p38
      %p40 = scmp.ne.s32.totalorder %s29, %s32
      %p41 = scmp.eq.s32.totalorder %s24, 1
      %p42 = por %p40, %p41
      %p43 = scmp.ne.s32.totalorder %s32, %s33
      %p44 = scmp.eq.s32.totalorder %s24, 0
      %p45 = por %p43, %p44
      %p46 = scmp.ne.s32.totalorder %s32, %s33
      %p47 = scmp.eq.s32.totalorder %s25, 1
      %p48 = por %p46, %p47
      %p50 = scmp.ne.s32.totalorder %s33, %s49
      %p51 = scmp.eq.s32.totalorder %s25, 0
      %p52 = por %p50, %p51
      %s54 = sadd.s32 %s53, 1
      %p57 = scmp.eq.s32.totalorder %s19, 1
      %p58 = scmp.ne.s32.totalorder %s53, %s55
      %p59 = scmp.eq.s32.totalorder %s19, 0
      %p60 = por %p58, %p59
      %p61 = scmp.ne.s32.totalorder %s53, %s55
      %p62 = scmp.eq.s32.totalorder %s24, 1
      %p63 = por %p61, %p62
      %p64 = scmp.ne.s32.totalorder %s55, %s56
      %p65 = scmp.eq.s32.totalorder %s24, 0
      %p66 = por %p64, %p65
      %p67 = scmp.ne.s32.totalorder %s55, %s56
      %p68 = scmp.eq.s32.totalorder %s25, 1
      %p69 = por %p67, %p68
      %p71 = scmp.ne.s32.totalorder %s56, %s70
      %p72 = scmp.eq.s32.totalorder %s25, 0
      %p73 = por %p71, %p72
      %s75 = sadd.s32 %s74, 1
      %p78 = scmp.eq.s32.totalorder %s19, 1
      %p79 = scmp.ne.s32.totalorder %s74, %s76
      %p80 = scmp.eq.s32.totalorder %s19, 0
      %p81 = por %p79, %p80
      %p82 = scmp.ne.s32.totalorder %s74, %s76
      %p83 = scmp.eq.s32.totalorder %s24, 1
      %p84 = por %p82, %p83
      %p85 = scmp.ne.s32.totalorder %s76, %s77
      %p86 = scmp.eq.s32.totalorder %s24, 0
      %p87 = por %p85, %p86
      %p88 = scmp.ne.s32.totalorder %s76, %s77
      %p89 = scmp.eq.s32.totalorder %s25, 1
      %p90 = por %p88, %p89
      %p92 = scmp.ne.s32.totalorder %s77, %s91
      %p93 = scmp.eq.s32.totalorder %s25, 0
      %p94 = por %p92, %p93
      %s96 = sadd.s32 %s95, 1
      %p99 = scmp.eq.s32.totalorder %s19, 1
      %p100 = scmp.ne.s32.totalorder %s95, %s97
      %p101 = scmp.eq.s32.totalorder %s19, 0
      %p102 = por %p100, %p101
      %p103 = scmp.ne.s32.totalorder %s95, %s97
      %p104 = scmp.eq.s32.totalorder %s24, 1
      %p105 = por %p103, %p104
      %p106 = scmp.ne.s32.totalorder %s97, %s98
      %p107 = scmp.eq.s32.totalorder %s24, 0
      %p108 = por %p106, %p107
      %p109 = scmp.ne.s32.totalorder %s97, %s98
      %p110 = scmp.eq.s32.totalorder %s25, 1
      %p111 = por %p109, %p110
      %p113 = scmp.ne.s32.totalorder %s98, %s112
      %p114 = scmp.eq.s32.totalorder %s25, 0
      %p115 = por %p113, %p114
      %s117 = sadd.s32 %s116, 1
      %p120 = scmp.eq.s32.totalorder %s19, 1
      %p121 = scmp.ne.s32.totalorder %s116, %s118
      %p122 = scmp.eq.s32.totalorder %s19, 0
      %p123 = por %p121, %p122
      %p124 = scmp.ne.s32.totalorder %s116, %s118
      %p125 = scmp.eq.s32.totalorder %s24, 1
      %p126 = por %p124, %p125
      %p127 = scmp.ne.s32.totalorder %s118, %s119
      %p128 = scmp.eq.s32.totalorder %s24, 0
      %p129 = por %p127, %p128
      %p130 = scmp.ne.s32.totalorder %s118, %s119
      %p131 = scmp.eq.s32.totalorder %s25, 1
      %p132 = por %p130, %p131
      %p134 = scmp.ne.s32.totalorder %s119, %s133
      %p135 = scmp.eq.s32.totalorder %s25, 0
      %p136 = por %p134, %p135
      %s138 = sadd.s32 %s137, 1
      %p141 = scmp.eq.s32.totalorder %s19, 1
      %p142 = scmp.ne.s32.totalorder %s137, %s139
      %p143 = scmp.eq.s32.totalorder %s19, 0
      %p144 = por %p142, %p143
      %p145 = scmp.ne.s32.totalorder %s137, %s139
      %p146 = scmp.eq.s32.totalorder %s24, 1
      %p147 = por %p145, %p146
      %p148 = scmp.ne.s32.totalorder %s139, %s140
      %p149 = scmp.eq.s32.totalorder %s24, 0
      %p150 = por %p148, %p149
      %p151 = scmp.ne.s32.totalorder %s139, %s140
      %p152 = scmp.eq.s32.totalorder %s25, 1
      %p153 = por %p151, %p152
      %p155 = scmp.ne.s32.totalorder %s140, %s154
      %p156 = scmp.eq.s32.totalorder %s25, 0
      %p157 = por %p155, %p156
      %s159 = sadd.s32 %s158, 1
      %p162 = scmp.eq.s32.totalorder %s19, 1
      %p163 = scmp.ne.s32.totalorder %s158, %s160
      %p164 = scmp.eq.s32.totalorder %s19, 0
      %p165 = por %p163, %p164
      %p166 = scmp.ne.s32.totalorder %s158, %s160
      %p167 = scmp.eq.s32.totalorder %s24, 1
      %p168 = por %p166, %p167
      %p169 = scmp.ne.s32.totalorder %s160, %s161
      %p170 = scmp.eq.s32.totalorder %s24, 0
      %p171 = por %p169, %p170
      %p172 = scmp.ne.s32.totalorder %s160, %s161
      %p173 = scmp.eq.s32.totalorder %s25, 1
      %p174 = por %p172, %p173
      %p176 = scmp.ne.s32.totalorder %s161, %s175
      %p177 = scmp.eq.s32.totalorder %s25, 0
      %p178 = por %p176, %p177
      %s180 = sadd.s32 %s179, 1
      %p183 = scmp.eq.s32.totalorder %s19, 1
      %p184 = scmp.ne.s32.totalorder %s179, %s181
      %p185 = scmp.eq.s32.totalorder %s19, 0
      %p186 = por %p184, %p185
      %p187 = scmp.ne.s32.totalorder %s179, %s181
      %p188 = scmp.eq.s32.totalorder %s24, 1
      %p189 = por %p187, %p188
      %p190 = scmp.ne.s32.totalorder %s181, %s182
      %p191 = scmp.eq.s32.totalorder %s24, 0
      %p192 = por %p190, %p191
      %p193 = scmp.ne.s32.totalorder %s181, %s182
      %p194 = scmp.eq.s32.totalorder %s25, 1
      %p195 = por %p193, %p194
      %p197 = scmp.ne.s32.totalorder %s182, %s196
      %p198 = scmp.eq.s32.totalorder %s25, 0
      %p199 = por %p197, %p198
      %s201 = sadd.s32 %s200, 1
      %p204 = scmp.eq.s32.totalorder %s19, 1
      %p205 = scmp.ne.s32.totalorder %s200, %s202
      %p206 = scmp.eq.s32.totalorder %s19, 0
      %p207 = por %p205, %p206
      %p208 = scmp.ne.s32.totalorder %s200, %s202
      %p209 = scmp.eq.s32.totalorder %s24, 1
      %p210 = por %p208, %p209
      %p211 = scmp.ne.s32.totalorder %s202, %s203
      %p212 = scmp.eq.s32.totalorder %s24, 0
      %p213 = por %p211, %p212
      %p214 = scmp.ne.s32.totalorder %s202, %s203
      %p215 = scmp.eq.s32.totalorder %s25, 1
      %p216 = por %p214, %p215
      %p218 = scmp.ne.s32.totalorder %s203, %s217
      %p219 = scmp.eq.s32.totalorder %s25, 0
      %p220 = por %p218, %p219
      %s222 = sadd.s32 %s221, 1
      %p225 = scmp.eq.s32.totalorder %s19, 1
      %p226 = scmp.ne.s32.totalorder %s221, %s223
      %p227 = scmp.eq.s32.totalorder %s19, 0
      %p228 = por %p226, %p227
      %p229 = scmp.ne.s32.totalorder %s221, %s223
      %p230 = scmp.eq.s32.totalorder %s24, 1
      %p231 = por %p229, %p230
      %p232 = scmp.ne.s32.totalorder %s223, %s224
      %p233 = scmp.eq.s32.totalorder %s24, 0
      %p234 = por %p232, %p233
      %p235 = scmp.ne.s32.totalorder %s223, %s224
      %p236 = scmp.eq.s32.totalorder %s25, 1
      %p237 = por %p235, %p236
      %p239 = scmp.ne.s32.totalorder %s224, %s238
      %p240 = scmp.eq.s32.totalorder %s25, 0
      %p241 = por %p239, %p240
      %s243 = sadd.s32 %s242, 1
      %p246 = scmp.eq.s32.totalorder %s19, 1
      %p247 = scmp.ne.s32.totalorder %s242, %s244
      %p248 = scmp.eq.s32.totalorder %s19, 0
      %p249 = por %p247, %p248
      %p250 = scmp.ne.s32.totalorder %s242, %s244
      %p251 = scmp.eq.s32.totalorder %s24, 1
      %p252 = por %p250, %p251
      %p253 = scmp.ne.s32.totalorder %s244, %s245
      %p254 = scmp.eq.s32.totalorder %s24, 0
      %p255 = por %p253, %p254
      %p256 = scmp.ne.s32.totalorder %s244, %s245
      %p257 = scmp.eq.s32.totalorder %s25, 1
      %p258 = por %p256, %p257
      %p260 = scmp.ne.s32.totalorder %s245, %s259
      %p261 = scmp.eq.s32.totalorder %s25, 0
      %p262 = por %p260, %p261
      %s264 = sadd.s32 %s263, 1
      %p267 = scmp.eq.s32.totalorder %s19, 1
      %p268 = scmp.ne.s32.totalorder %s263, %s265
      %p269 = scmp.eq.s32.totalorder %s19, 0
      %p270 = por %p268, %p269
      %p271 = scmp.ne.s32.totalorder %s263, %s265
      %p272 = scmp.eq.s32.totalorder %s24, 1
      %p273 = por %p271, %p272
      %p274 = scmp.ne.s32.totalorder %s265, %s266
      %p275 = scmp.eq.s32.totalorder %s24, 0
      %p276 = por %p274, %p275
      %p277 = scmp.ne.s32.totalorder %s265, %s266
      %p278 = scmp.eq.s32.totalorder %s25, 1
      %p279 = por %p277, %p278
      %p281 = scmp.ne.s32.totalorder %s266, %s280
      %p282 = scmp.eq.s32.totalorder %s25, 0
      %p283 = por %p281, %p282
      %s285 = sadd.s32 %s284, 1
      %p288 = scmp.eq.s32.totalorder %s19, 1
      %p289 = scmp.ne.s32.totalorder %s284, %s286
      %p290 = scmp.eq.s32.totalorder %s19, 0
      %p291 = por %p289, %p290
      %p292 = scmp.ne.s32.totalorder %s284, %s286
      %p293 = scmp.eq.s32.totalorder %s24, 1
      %p294 = por %p292, %p293
      %p295 = scmp.ne.s32.totalorder %s286, %s287
      %p296 = scmp.eq.s32.totalorder %s24, 0
      %p297 = por %p295, %p296
      %p298 = scmp.ne.s32.totalorder %s286, %s287
      %p299 = scmp.eq.s32.totalorder %s25, 1
      %p300 = por %p298, %p299
      %p302 = scmp.ne.s32.totalorder %s287, %s301
      %p303 = scmp.eq.s32.totalorder %s25, 0
      %p304 = por %p302, %p303
      %s305 = ssub.s32 %s19, %s26
      %p306 = scmp.eq.s32.totalorder %s305, 0
      %s308 = sadd.s32 %s307, 1
      %s309 = scalar_select %p306, %s307, %s308
      %p312 = pneg %p306
      %p313 = scmp.eq.s32.totalorder %s19, 1
      %p314 = por %p312, %p313
      %p315 = scmp.ne.s32.totalorder %s307, %s310
      %p316 = scmp.eq.s32.totalorder %s19, 0
      %p317 = por %p315, %p316
      %p318 = scmp.ne.s32.totalorder %s307, %s310
      %p319 = scmp.eq.s32.totalorder %s24, 1
      %p320 = por %p318, %p319
      %p321 = scmp.ne.s32.totalorder %s310, %s311
      %p322 = scmp.eq.s32.totalorder %s24, 0
      %p323 = por %p321, %p322
      %p324 = scmp.ne.s32.totalorder %s310, %s311
      %p325 = scmp.eq.s32.totalorder %s25, 1
      %p326 = por %p324, %p325
      %p328 = scmp.ne.s32.totalorder %s311, %s327
      %p329 = scmp.eq.s32.totalorder %s25, 0
      %p330 = por %p328, %p329
      %p331 = scmp.le.s32.totalorder 1, %s19
      %p332 = scmp.lt.s32.totalorder %s19, 3
      %p333 = pnand %p331, %p332
      %p334 = pneg %p333
      // Predicated region
      $region9: #{_lambda_.1} parent=5 // pred_check
        _
      $region10: #{_lambda_.1} parent=5 // pred_check_branch
        %336 = sbr.rel (%p333) target = $region12
      $region11: #{_lambda_.1} parent=5 // pred_region
        %s337 = ssub.s32 %s19, 1
        // Predicated region
        $region13: #{_lambda_.1} parent=11 // pred_check
          %p338 = pneg %p66
        $region14: #{_lambda_.1} parent=11 // pred_check_branch
          %340 = sbr.rel (%p338) target = $region16
        $region15: #{_lambda_.1} parent=11 // pred_region
          _
        $region16: #{_lambda_.1} parent=11 // pred_fallthru
          _
        // Predicated region
        $region17: #{_lambda_.1} parent=11 // pred_check
          %p341 = pneg %p87
        $region18: #{_lambda_.1} parent=11 // pred_check_branch
          %343 = sbr.rel (%p341) target = $region20
        $region19: #{_lambda_.1} parent=11 // pred_region
          _
        $region20: #{_lambda_.1} parent=11 // pred_fallthru
          _
        // Predicated region
        $region21: #{_lambda_.1} parent=11 // pred_check
          %p344 = pneg %p108
        $region22: #{_lambda_.1} parent=11 // pred_check_branch
          %346 = sbr.rel (%p344) target = $region24
        $region23: #{_lambda_.1} parent=11 // pred_region
          _
        $region24: #{_lambda_.1} parent=11 // pred_fallthru
          _
        // Predicated region
        $region25: #{_lambda_.1} parent=11 // pred_check
          %p347 = pneg %p129
        $region26: #{_lambda_.1} parent=11 // pred_check_branch
          %349 = sbr.rel (%p347) target = $region28
        $region27: #{_lambda_.1} parent=11 // pred_region
          _
        $region28: #{_lambda_.1} parent=11 // pred_fallthru
          _
        // Predicated region
        $region29: #{_lambda_.1} parent=11 // pred_check
          %p350 = pneg %p150
        $region30: #{_lambda_.1} parent=11 // pred_check_branch
          %352 = sbr.rel (%p350) target = $region32
        $region31: #{_lambda_.1} parent=11 // pred_region
          _
        $region32: #{_lambda_.1} parent=11 // pred_fallthru
          _
        // Predicated region
        $region33: #{_lambda_.1} parent=11 // pred_check
          %p353 = pneg %p171
        $region34: #{_lambda_.1} parent=11 // pred_check_branch
          %355 = sbr.rel (%p353) target = $region36
        $region35: #{_lambda_.1} parent=11 // pred_region
          _
        $region36: #{_lambda_.1} parent=11 // pred_fallthru
          _
        // Predicated region
        $region37: #{_lambda_.1} parent=11 // pred_check
          %p356 = pneg %p192
        $region38: #{_lambda_.1} parent=11 // pred_check_branch
          %358 = sbr.rel (%p356) target = $region40
        $region39: #{_lambda_.1} parent=11 // pred_region
          _
        $region40: #{_lambda_.1} parent=11 // pred_fallthru
          _
        // Predicated region
        $region41: #{_lambda_.1} parent=11 // pred_check
          %p359 = pneg %p213
        $region42: #{_lambda_.1} parent=11 // pred_check_branch
          %361 = sbr.rel (%p359) target = $region44
        $region43: #{_lambda_.1} parent=11 // pred_region
          _
        $region44: #{_lambda_.1} parent=11 // pred_fallthru
          _
        // Predicated region
        $region45: #{_lambda_.1} parent=11 // pred_check
          %p362 = pneg %p234
        $region46: #{_lambda_.1} parent=11 // pred_check_branch
          %364 = sbr.rel (%p362) target = $region48
        $region47: #{_lambda_.1} parent=11 // pred_region
          _
        $region48: #{_lambda_.1} parent=11 // pred_fallthru
          _
        // Predicated region
        $region49: #{_lambda_.1} parent=11 // pred_check
          %p365 = pneg %p255
        $region50: #{_lambda_.1} parent=11 // pred_check_branch
          %367 = sbr.rel (%p365) target = $region52
        $region51: #{_lambda_.1} parent=11 // pred_region
          _
        $region52: #{_lambda_.1} parent=11 // pred_fallthru
          _
        // Predicated region
        $region53: #{_lambda_.1} parent=11 // pred_check
          %p368 = pneg %p276
        $region54: #{_lambda_.1} parent=11 // pred_check_branch
          %370 = sbr.rel (%p368) target = $region56
        $region55: #{_lambda_.1} parent=11 // pred_region
          _
        $region56: #{_lambda_.1} parent=11 // pred_fallthru
          _
        // Predicated region
        $region57: #{_lambda_.1} parent=11 // pred_check
          %p371 = pneg %p297
        $region58: #{_lambda_.1} parent=11 // pred_check_branch
          %373 = sbr.rel (%p371) target = $region60
        $region59: #{_lambda_.1} parent=11 // pred_region
          _
        $region60: #{_lambda_.1} parent=11 // pred_fallthru
          _
      $region12: #{_lambda_.1} parent=5 // pred_fallthru
        _
      %p374 = scmp.lt.s32.totalorder %s19, 2
      // Predicated region
      $region61: #{_lambda_.1} parent=5 // pred_check
        %p375 = pneg %p374
      $region62: #{_lambda_.1} parent=5 // pred_check_branch
        %377 = sbr.rel (%p375) target = $region64
      $region63: #{_lambda_.1} parent=5 // pred_region
        // Predicated region
        $region65: #{_lambda_.1} parent=63 // pred_check
          %p378 = pneg %p39
        $region66: #{_lambda_.1} parent=63 // pred_check_branch
          %380 = sbr.rel (%p378) target = $region68
        $region67: #{_lambda_.1} parent=63 // pred_region
          %s381 = sand.u32 %s29, 1
          %s382 = sand.u32 %s29, 1
          %s383 = smul.addr %s382, 1024
          %s384 = scalar_lea.vmem [#allocation2], %s383
          %s385 = smul.u32 16, %s19
          %s386 = smul.addr %s385, 8
          %s387 = scalar_lea.vmem %s0, %s386
          // Predicated region
          $region69: #{_lambda_.1} parent=67 // pred_check
            _
          $region70: #{_lambda_.1} parent=67 // pred_check_branch
            %389 = sbr.rel (0) target = $region72
          $region71: #{_lambda_.1} parent=67 // pred_region
            // Predicated region
            $region73: #{_lambda_.1} parent=71 // pred_check
              _
            $region74: #{_lambda_.1} parent=71 // pred_check_branch
              %391 = sbr.rel (0) target = $region76
            $region75: #{_lambda_.1} parent=71 // pred_region
              // Predicated region
              $region88: #{_lambda_.1} parent=75 // pred_check
                _
              $region89: #{_lambda_.1} parent=75 // pred_check_branch
                %661 = sbr.rel (0) target = $region91
              $region90: #{_lambda_.1} parent=75 // pred_region
                loop: start=0, step=1, limit=1
                $region92: #{_lambda_.1} parent=90 // loop_pre_header
                  _
                $region93: #{_lambda_.1} parent=90 // loop_header
                  %s663 = sphi 0, %s667
                  %p664 = scmp.ge.s32.totalorder %s663, 1
                  %s668 = sphi %s387, %s387
                  %s669 = sphi %s384, %s384
                $region94: #{_lambda_.1} parent=90 // loop_header_branch
                  %666 = sbr.rel (%p664) target = $region98
                $region95: #{_lambda_.1} parent=90 // loop_body
                  %v670 = vld [vmem:[%s668] sm:$0xff]
                  %671 = vst [vmem:[%s669] sm:$0xff] %v670
                  %v672 = vld [vmem:[%s668 + $0x8] sm:$0xff]
                  %673 = vst [vmem:[%s669 + $0x8] sm:$0xff] %v672
                  %v674 = vld [vmem:[%s668 + $0x10] sm:$0xff]
                  %675 = vst [vmem:[%s669 + $0x10] sm:$0xff] %v674
                  %v676 = vld [vmem:[%s668 + $0x18] sm:$0xff]
                  %677 = vst [vmem:[%s669 + $0x18] sm:$0xff] %v676
                  %v678 = vld [vmem:[%s668 + $0x20] sm:$0xff]
                  %679 = vst [vmem:[%s669 + $0x20] sm:$0xff] %v678
                  %v680 = vld [vmem:[%s668 + $0x28] sm:$0xff]
                  %681 = vst [vmem:[%s669 + $0x28] sm:$0xff] %v680
                  %v682 = vld [vmem:[%s668 + $0x30] sm:$0xff]
                  %683 = vst [vmem:[%s669 + $0x30] sm:$0xff] %v682
                  %v684 = vld [vmem:[%s668 + $0x38] sm:$0xff]
                  %685 = vst [vmem:[%s669 + $0x38] sm:$0xff] %v684
                  %v686 = vld [vmem:[%s668 + $0x40] sm:$0xff]
                  %687 = vst [vmem:[%s669 + $0x40] sm:$0xff] %v686
                  %v688 = vld [vmem:[%s668 + $0x48] sm:$0xff]
                  %689 = vst [vmem:[%s669 + $0x48] sm:$0xff] %v688
                  %v690 = vld [vmem:[%s668 + $0x50] sm:$0xff]
                  %691 = vst [vmem:[%s669 + $0x50] sm:$0xff] %v690
                  %v692 = vld [vmem:[%s668 + $0x58] sm:$0xff]
                  %693 = vst [vmem:[%s669 + $0x58] sm:$0xff] %v692
                  %v694 = vld [vmem:[%s668 + $0x60] sm:$0xff]
                  %695 = vst [vmem:[%s669 + $0x60] sm:$0xff] %v694
                  %v696 = vld [vmem:[%s668 + $0x68] sm:$0xff]
                  %697 = vst [vmem:[%s669 + $0x68] sm:$0xff] %v696
                  %v698 = vld [vmem:[%s668 + $0x70] sm:$0xff]
                  %699 = vst [vmem:[%s669 + $0x70] sm:$0xff] %v698
                  %v700 = vld [vmem:[%s668 + $0x78] sm:$0xff]
                  %701 = vst [vmem:[%s669 + $0x78] sm:$0xff] %v700
                  %v702 = vld [vmem:[%s668 + $0x100] sm:$0xff]
                  %703 = vst [vmem:[%s669 + $0x80] sm:$0xff] %v702
                  %v704 = vld [vmem:[%s668 + $0x108] sm:$0xff]
                  %705 = vst [vmem:[%s669 + $0x88] sm:$0xff] %v704
                  %v706 = vld [vmem:[%s668 + $0x110] sm:$0xff]
                  %707 = vst [vmem:[%s669 + $0x90] sm:$0xff] %v706
                  %v708 = vld [vmem:[%s668 + $0x118] sm:$0xff]
                  %709 = vst [vmem:[%s669 + $0x98] sm:$0xff] %v708
                  %v710 = vld [vmem:[%s668 + $0x120] sm:$0xff]
                  %711 = vst [vmem:[%s669 + $0xa0] sm:$0xff] %v710
                  %v712 = vld [vmem:[%s668 + $0x128] sm:$0xff]
                  %713 = vst [vmem:[%s669 + $0xa8] sm:$0xff] %v712
                  %v714 = vld [vmem:[%s668 + $0x130] sm:$0xff]
                  %715 = vst [vmem:[%s669 + $0xb0] sm:$0xff] %v714
                  %v716 = vld [vmem:[%s668 + $0x138] sm:$0xff]
                  %717 = vst [vmem:[%s669 + $0xb8] sm:$0xff] %v716
                  %v718 = vld [vmem:[%s668 + $0x140] sm:$0xff]
                  %719 = vst [vmem:[%s669 + $0xc0] sm:$0xff] %v718
                  %v720 = vld [vmem:[%s668 + $0x148] sm:$0xff]
                  %721 = vst [vmem:[%s669 + $0xc8] sm:$0xff] %v720
                  %v722 = vld [vmem:[%s668 + $0x150] sm:$0xff]
                  %723 = vst [vmem:[%s669 + $0xd0] sm:$0xff] %v722
                  %v724 = vld [vmem:[%s668 + $0x158] sm:$0xff]
                  %725 = vst [vmem:[%s669 + $0xd8] sm:$0xff] %v724
                  %v726 = vld [vmem:[%s668 + $0x160] sm:$0xff]
                  %727 = vst [vmem:[%s669 + $0xe0] sm:$0xff] %v726
                  %v728 = vld [vmem:[%s668 + $0x168] sm:$0xff]
                  %729 = vst [vmem:[%s669 + $0xe8] sm:$0xff] %v728
                  %v730 = vld [vmem:[%s668 + $0x170] sm:$0xff]
                  %731 = vst [vmem:[%s669 + $0xf0] sm:$0xff] %v730
                  %v732 = vld [vmem:[%s668 + $0x178] sm:$0xff]
                  %733 = vst [vmem:[%s669 + $0xf8] sm:$0xff] %v732
                  %v734 = vld [vmem:[%s668 + $0x200] sm:$0xff]
                  %735 = vst [vmem:[%s669 + $0x100] sm:$0xff] %v734
                  %v736 = vld [vmem:[%s668 + $0x208] sm:$0xff]
                  %737 = vst [vmem:[%s669 + $0x108] sm:$0xff] %v736
                  %v738 = vld [vmem:[%s668 + $0x210] sm:$0xff]
                  %739 = vst [vmem:[%s669 + $0x110] sm:$0xff] %v738
                  %v740 = vld [vmem:[%s668 + $0x218] sm:$0xff]
                  %741 = vst [vmem:[%s669 + $0x118] sm:$0xff] %v740
                  %v742 = vld [vmem:[%s668 + $0x220] sm:$0xff]
                  %743 = vst [vmem:[%s669 + $0x120] sm:$0xff] %v742
                  %v744 = vld [vmem:[%s668 + $0x228] sm:$0xff]
                  %745 = vst [vmem:[%s669 + $0x128] sm:$0xff] %v744
                  %v746 = vld [vmem:[%s668 + $0x230] sm:$0xff]
                  %747 = vst [vmem:[%s669 + $0x130] sm:$0xff] %v746
                  %v748 = vld [vmem:[%s668 + $0x238] sm:$0xff]
                  %749 = vst [vmem:[%s669 + $0x138] sm:$0xff] %v748
                  %v750 = vld [vmem:[%s668 + $0x240] sm:$0xff]
                  %751 = vst [vmem:[%s669 + $0x140] sm:$0xff] %v750
                  %v752 = vld [vmem:[%s668 + $0x248] sm:$0xff]
                  %753 = vst [vmem:[%s669 + $0x148] sm:$0xff] %v752
                  %v754 = vld [vmem:[%s668 + $0x250] sm:$0xff]
                  %755 = vst [vmem:[%s669 + $0x150] sm:$0xff] %v754
                  %v756 = vld [vmem:[%s668 + $0x258] sm:$0xff]
                  %757 = vst [vmem:[%s669 + $0x158] sm:$0xff] %v756
                  %v758 = vld [vmem:[%s668 + $0x260] sm:$0xff]
                  %759 = vst [vmem:[%s669 + $0x160] sm:$0xff] %v758
                  %v760 = vld [vmem:[%s668 + $0x268] sm:$0xff]
                  %761 = vst [vmem:[%s669 + $0x168] sm:$0xff] %v760
                  %v762 = vld [vmem:[%s668 + $0x270] sm:$0xff]
                  %763 = vst [vmem:[%s669 + $0x170] sm:$0xff] %v762
                  %v764 = vld [vmem:[%s668 + $0x278] sm:$0xff]
                  %765 = vst [vmem:[%s669 + $0x178] sm:$0xff] %v764
                  %v766 = vld [vmem:[%s668 + $0x300] sm:$0xff]
                  %767 = vst [vmem:[%s669 + $0x180] sm:$0xff] %v766
                  %v768 = vld [vmem:[%s668 + $0x308] sm:$0xff]
                  %769 = vst [vmem:[%s669 + $0x188] sm:$0xff] %v768
                  %v770 = vld [vmem:[%s668 + $0x310] sm:$0xff]
                  %771 = vst [vmem:[%s669 + $0x190] sm:$0xff] %v770
                  %v772 = vld [vmem:[%s668 + $0x318] sm:$0xff]
                  %773 = vst [vmem:[%s669 + $0x198] sm:$0xff] %v772
                  %v774 = vld [vmem:[%s668 + $0x320] sm:$0xff]
                  %775 = vst [vmem:[%s669 + $0x1a0] sm:$0xff] %v774
                  %v776 = vld [vmem:[%s668 + $0x328] sm:$0xff]
                  %777 = vst [vmem:[%s669 + $0x1a8] sm:$0xff] %v776
                  %v778 = vld [vmem:[%s668 + $0x330] sm:$0xff]
                  %779 = vst [vmem:[%s669 + $0x1b0] sm:$0xff] %v778
                  %v780 = vld [vmem:[%s668 + $0x338] sm:$0xff]
                  %781 = vst [vmem:[%s669 + $0x1b8] sm:$0xff] %v780
                  %v782 = vld [vmem:[%s668 + $0x340] sm:$0xff]
                  %783 = vst [vmem:[%s669 + $0x1c0] sm:$0xff] %v782
                  %v784 = vld [vmem:[%s668 + $0x348] sm:$0xff]
                  %785 = vst [vmem:[%s669 + $0x1c8] sm:$0xff] %v784
                  %v786 = vld [vmem:[%s668 + $0x350] sm:$0xff]
                  %787 = vst [vmem:[%s669 + $0x1d0] sm:$0xff] %v786
                  %v788 = vld [vmem:[%s668 + $0x358] sm:$0xff]
                  %789 = vst [vmem:[%s669 + $0x1d8] sm:$0xff] %v788
                  %v790 = vld [vmem:[%s668 + $0x360] sm:$0xff]
                  %791 = vst [vmem:[%s669 + $0x1e0] sm:$0xff] %v790
                  %v792 = vld [vmem:[%s668 + $0x368] sm:$0xff]
                  %793 = vst [vmem:[%s669 + $0x1e8] sm:$0xff] %v792
                  %v794 = vld [vmem:[%s668 + $0x370] sm:$0xff]
                  %795 = vst [vmem:[%s669 + $0x1f0] sm:$0xff] %v794
                  %v796 = vld [vmem:[%s668 + $0x378] sm:$0xff]
                  %797 = vst [vmem:[%s669 + $0x1f8] sm:$0xff] %v796
                  %v798 = vld [vmem:[%s668 + $0x400] sm:$0xff]
                  %799 = vst [vmem:[%s669 + $0x200] sm:$0xff] %v798
                  %v800 = vld [vmem:[%s668 + $0x408] sm:$0xff]
                  %801 = vst [vmem:[%s669 + $0x208] sm:$0xff] %v800
                  %v802 = vld [vmem:[%s668 + $0x410] sm:$0xff]
                  %803 = vst [vmem:[%s669 + $0x210] sm:$0xff] %v802
                  %v804 = vld [vmem:[%s668 + $0x418] sm:$0xff]
                  %805 = vst [vmem:[%s669 + $0x218] sm:$0xff] %v804
                  %v806 = vld [vmem:[%s668 + $0x420] sm:$0xff]
                  %807 = vst [vmem:[%s669 + $0x220] sm:$0xff] %v806
                  %v808 = vld [vmem:[%s668 + $0x428] sm:$0xff]
                  %809 = vst [vmem:[%s669 + $0x228] sm:$0xff] %v808
                  %v810 = vld [vmem:[%s668 + $0x430] sm:$0xff]
                  %811 = vst [vmem:[%s669 + $0x230] sm:$0xff] %v810
                  %v812 = vld [vmem:[%s668 + $0x438] sm:$0xff]
                  %813 = vst [vmem:[%s669 + $0x238] sm:$0xff] %v812
                  %v814 = vld [vmem:[%s668 + $0x440] sm:$0xff]
                  %815 = vst [vmem:[%s669 + $0x240] sm:$0xff] %v814
                  %v816 = vld [vmem:[%s668 + $0x448] sm:$0xff]
                  %817 = vst [vmem:[%s669 + $0x248] sm:$0xff] %v816
                  %v818 = vld [vmem:[%s668 + $0x450] sm:$0xff]
                  %819 = vst [vmem:[%s669 + $0x250] sm:$0xff] %v818
                  %v820 = vld [vmem:[%s668 + $0x458] sm:$0xff]
                  %821 = vst [vmem:[%s669 + $0x258] sm:$0xff] %v820
                  %v822 = vld [vmem:[%s668 + $0x460] sm:$0xff]
                  %823 = vst [vmem:[%s669 + $0x260] sm:$0xff] %v822
                  %v824 = vld [vmem:[%s668 + $0x468] sm:$0xff]
                  %825 = vst [vmem:[%s669 + $0x268] sm:$0xff] %v824
                  %v826 = vld [vmem:[%s668 + $0x470] sm:$0xff]
                  %827 = vst [vmem:[%s669 + $0x270] sm:$0xff] %v826
                  %v828 = vld [vmem:[%s668 + $0x478] sm:$0xff]
                  %829 = vst [vmem:[%s669 + $0x278] sm:$0xff] %v828
                  %v830 = vld [vmem:[%s668 + $0x500] sm:$0xff]
                  %831 = vst [vmem:[%s669 + $0x280] sm:$0xff] %v830
                  %v832 = vld [vmem:[%s668 + $0x508] sm:$0xff]
                  %833 = vst [vmem:[%s669 + $0x288] sm:$0xff] %v832
                  %v834 = vld [vmem:[%s668 + $0x510] sm:$0xff]
                  %835 = vst [vmem:[%s669 + $0x290] sm:$0xff] %v834
                  %v836 = vld [vmem:[%s668 + $0x518] sm:$0xff]
                  %837 = vst [vmem:[%s669 + $0x298] sm:$0xff] %v836
                  %v838 = vld [vmem:[%s668 + $0x520] sm:$0xff]
                  %839 = vst [vmem:[%s669 + $0x2a0] sm:$0xff] %v838
                  %v840 = vld [vmem:[%s668 + $0x528] sm:$0xff]
                  %841 = vst [vmem:[%s669 + $0x2a8] sm:$0xff] %v840
                  %v842 = vld [vmem:[%s668 + $0x530] sm:$0xff]
                  %843 = vst [vmem:[%s669 + $0x2b0] sm:$0xff] %v842
                  %v844 = vld [vmem:[%s668 + $0x538] sm:$0xff]
                  %845 = vst [vmem:[%s669 + $0x2b8] sm:$0xff] %v844
                  %v846 = vld [vmem:[%s668 + $0x540] sm:$0xff]
                  %847 = vst [vmem:[%s669 + $0x2c0] sm:$0xff] %v846
                  %v848 = vld [vmem:[%s668 + $0x548] sm:$0xff]
                  %849 = vst [vmem:[%s669 + $0x2c8] sm:$0xff] %v848
                  %v850 = vld [vmem:[%s668 + $0x550] sm:$0xff]
                  %851 = vst [vmem:[%s669 + $0x2d0] sm:$0xff] %v850
                  %v852 = vld [vmem:[%s668 + $0x558] sm:$0xff]
                  %853 = vst [vmem:[%s669 + $0x2d8] sm:$0xff] %v852
                  %v854 = vld [vmem:[%s668 + $0x560] sm:$0xff]
                  %855 = vst [vmem:[%s669 + $0x2e0] sm:$0xff] %v854
                  %v856 = vld [vmem:[%s668 + $0x568] sm:$0xff]
                  %857 = vst [vmem:[%s669 + $0x2e8] sm:$0xff] %v856
                  %v858 = vld [vmem:[%s668 + $0x570] sm:$0xff]
                  %859 = vst [vmem:[%s669 + $0x2f0] sm:$0xff] %v858
                  %v860 = vld [vmem:[%s668 + $0x578] sm:$0xff]
                  %861 = vst [vmem:[%s669 + $0x2f8] sm:$0xff] %v860
                  %v862 = vld [vmem:[%s668 + $0x600] sm:$0xff]
                  %863 = vst [vmem:[%s669 + $0x300] sm:$0xff] %v862
                  %v864 = vld [vmem:[%s668 + $0x608] sm:$0xff]
                  %865 = vst [vmem:[%s669 + $0x308] sm:$0xff] %v864
                  %v866 = vld [vmem:[%s668 + $0x610] sm:$0xff]
                  %867 = vst [vmem:[%s669 + $0x310] sm:$0xff] %v866
                  %v868 = vld [vmem:[%s668 + $0x618] sm:$0xff]
                  %869 = vst [vmem:[%s669 + $0x318] sm:$0xff] %v868
                  %v870 = vld [vmem:[%s668 + $0x620] sm:$0xff]
                  %871 = vst [vmem:[%s669 + $0x320] sm:$0xff] %v870
                  %v872 = vld [vmem:[%s668 + $0x628] sm:$0xff]
                  %873 = vst [vmem:[%s669 + $0x328] sm:$0xff] %v872
                  %v874 = vld [vmem:[%s668 + $0x630] sm:$0xff]
                  %875 = vst [vmem:[%s669 + $0x330] sm:$0xff] %v874
                  %v876 = vld [vmem:[%s668 + $0x638] sm:$0xff]
                  %877 = vst [vmem:[%s669 + $0x338] sm:$0xff] %v876
                  %v878 = vld [vmem:[%s668 + $0x640] sm:$0xff]
                  %879 = vst [vmem:[%s669 + $0x340] sm:$0xff] %v878
                  %v880 = vld [vmem:[%s668 + $0x648] sm:$0xff]
                  %881 = vst [vmem:[%s669 + $0x348] sm:$0xff] %v880
                  %v882 = vld [vmem:[%s668 + $0x650] sm:$0xff]
                  %883 = vst [vmem:[%s669 + $0x350] sm:$0xff] %v882
                  %v884 = vld [vmem:[%s668 + $0x658] sm:$0xff]
                  %885 = vst [vmem:[%s669 + $0x358] sm:$0xff] %v884
                  %v886 = vld [vmem:[%s668 + $0x660] sm:$0xff]
                  %887 = vst [vmem:[%s669 + $0x360] sm:$0xff] %v886
                  %v888 = vld [vmem:[%s668 + $0x668] sm:$0xff]
                  %889 = vst [vmem:[%s669 + $0x368] sm:$0xff] %v888
                  %v890 = vld [vmem:[%s668 + $0x670] sm:$0xff]
                  %891 = vst [vmem:[%s669 + $0x370] sm:$0xff] %v890
                  %v892 = vld [vmem:[%s668 + $0x678] sm:$0xff]
                  %893 = vst [vmem:[%s669 + $0x378] sm:$0xff] %v892
                  %v894 = vld [vmem:[%s668 + $0x700] sm:$0xff]
                  %895 = vst [vmem:[%s669 + $0x380] sm:$0xff] %v894
                  %v896 = vld [vmem:[%s668 + $0x708] sm:$0xff]
                  %897 = vst [vmem:[%s669 + $0x388] sm:$0xff] %v896
                  %v898 = vld [vmem:[%s668 + $0x710] sm:$0xff]
                  %899 = vst [vmem:[%s669 + $0x390] sm:$0xff] %v898
                  %v900 = vld [vmem:[%s668 + $0x718] sm:$0xff]
                  %901 = vst [vmem:[%s669 + $0x398] sm:$0xff] %v900
                  %v902 = vld [vmem:[%s668 + $0x720] sm:$0xff]
                  %903 = vst [vmem:[%s669 + $0x3a0] sm:$0xff] %v902
                  %v904 = vld [vmem:[%s668 + $0x728] sm:$0xff]
                  %905 = vst [vmem:[%s669 + $0x3a8] sm:$0xff] %v904
                  %v906 = vld [vmem:[%s668 + $0x730] sm:$0xff]
                  %907 = vst [vmem:[%s669 + $0x3b0] sm:$0xff] %v906
                  %v908 = vld [vmem:[%s668 + $0x738] sm:$0xff]
                  %909 = vst [vmem:[%s669 + $0x3b8] sm:$0xff] %v908
                  %v910 = vld [vmem:[%s668 + $0x740] sm:$0xff]
                  %911 = vst [vmem:[%s669 + $0x3c0] sm:$0xff] %v910
                  %v912 = vld [vmem:[%s668 + $0x748] sm:$0xff]
                  %913 = vst [vmem:[%s669 + $0x3c8] sm:$0xff] %v912
                  %v914 = vld [vmem:[%s668 + $0x750] sm:$0xff]
                  %915 = vst [vmem:[%s669 + $0x3d0] sm:$0xff] %v914
                  %v916 = vld [vmem:[%s668 + $0x758] sm:$0xff]
                  %917 = vst [vmem:[%s669 + $0x3d8] sm:$0xff] %v916
                  %v918 = vld [vmem:[%s668 + $0x760] sm:$0xff]
                  %919 = vst [vmem:[%s669 + $0x3e0] sm:$0xff] %v918
                  %v920 = vld [vmem:[%s668 + $0x768] sm:$0xff]
                  %921 = vst [vmem:[%s669 + $0x3e8] sm:$0xff] %v920
                  %v922 = vld [vmem:[%s668 + $0x770] sm:$0xff]
                  %923 = vst [vmem:[%s669 + $0x3f0] sm:$0xff] %v922
                  %v924 = vld [vmem:[%s668 + $0x778] sm:$0xff]
                  %925 = vst [vmem:[%s669 + $0x3f8] sm:$0xff] %v924
                $region96: #{_lambda_.1} parent=90 // loop_footer
                  %s667 = sadd.s32 1, %s663
                $region97: #{_lambda_.1} parent=90 // loop_footer_branch
                  %662 = sbr.rel target = $region93
                $region98: #{_lambda_.1} parent=90 // loop_exit
                  _
              $region91: #{_lambda_.1} parent=75 // pred_fallthru
                _
              // Predicated region
              $region99: #{_lambda_.1} parent=75 // pred_check
                _
              $region100: #{_lambda_.1} parent=75 // pred_check_branch
                %927 = sbr.rel target = $region102
              $region101: #{_lambda_.1} parent=75 // pred_region
                _
              $region102: #{_lambda_.1} parent=75 // pred_fallthru
                _
            $region76: #{_lambda_.1} parent=71 // pred_fallthru
              _
            // Predicated region
            $region77: #{_lambda_.1} parent=71 // pred_check
              _
            $region78: #{_lambda_.1} parent=71 // pred_check_branch
              %393 = sbr.rel target = $region80
            $region79: #{_lambda_.1} parent=71 // pred_region
              %s395 = ssub.s32 256, 1
              loop: start=0, step=1, limit=1
              $region81: #{_lambda_.1} parent=79 // loop_pre_header
                _
              $region82: #{_lambda_.1} parent=79 // loop_header
                %s397 = sphi 0, %s401
                %p398 = scmp.ge.s32.totalorder %s397, 1
                %s402 = sphi %s387, %s387
                %s403 = sphi %s384, %s384
              $region83: #{_lambda_.1} parent=79 // loop_header_branch
                %400 = sbr.rel (%p398) target = $region87
              $region84: #{_lambda_.1} parent=79 // loop_body
                %v404 = vld [vmem:[%s402] sm:%s395]
                %405 = vst [vmem:[%s403] sm:%s395] %v404
                %v406 = vld [vmem:[%s402 + $0x8] sm:%s395]
                %407 = vst [vmem:[%s403 + $0x8] sm:%s395] %v406
                %v408 = vld [vmem:[%s402 + $0x10] sm:%s395]
                %409 = vst [vmem:[%s403 + $0x10] sm:%s395] %v408
                %v410 = vld [vmem:[%s402 + $0x18] sm:%s395]
                %411 = vst [vmem:[%s403 + $0x18] sm:%s395] %v410
                %v412 = vld [vmem:[%s402 + $0x20] sm:%s395]
                %413 = vst [vmem:[%s403 + $0x20] sm:%s395] %v412
                %v414 = vld [vmem:[%s402 + $0x28] sm:%s395]
                %415 = vst [vmem:[%s403 + $0x28] sm:%s395] %v414
                %v416 = vld [vmem:[%s402 + $0x30] sm:%s395]
                %417 = vst [vmem:[%s403 + $0x30] sm:%s395] %v416
                %v418 = vld [vmem:[%s402 + $0x38] sm:%s395]
                %419 = vst [vmem:[%s403 + $0x38] sm:%s395] %v418
                %v420 = vld [vmem:[%s402 + $0x40] sm:%s395]
                %421 = vst [vmem:[%s403 + $0x40] sm:%s395] %v420
                %v422 = vld [vmem:[%s402 + $0x48] sm:%s395]
                %423 = vst [vmem:[%s403 + $0x48] sm:%s395] %v422
                %v424 = vld [vmem:[%s402 + $0x50] sm:%s395]
                %425 = vst [vmem:[%s403 + $0x50] sm:%s395] %v424
                %v426 = vld [vmem:[%s402 + $0x58] sm:%s395]
                %427 = vst [vmem:[%s403 + $0x58] sm:%s395] %v426
                %v428 = vld [vmem:[%s402 + $0x60] sm:%s395]
                %429 = vst [vmem:[%s403 + $0x60] sm:%s395] %v428
                %v430 = vld [vmem:[%s402 + $0x68] sm:%s395]
                %431 = vst [vmem:[%s403 + $0x68] sm:%s395] %v430
                %v432 = vld [vmem:[%s402 + $0x70] sm:%s395]
                %433 = vst [vmem:[%s403 + $0x70] sm:%s395] %v432
                %v434 = vld [vmem:[%s402 + $0x78] sm:%s395]
                %435 = vst [vmem:[%s403 + $0x78] sm:%s395] %v434
                %v436 = vld [vmem:[%s402 + $0x100] sm:%s395]
                %437 = vst [vmem:[%s403 + $0x80] sm:%s395] %v436
                %v438 = vld [vmem:[%s402 + $0x108] sm:%s395]
                %439 = vst [vmem:[%s403 + $0x88] sm:%s395] %v438
                %v440 = vld [vmem:[%s402 + $0x110] sm:%s395]
                %441 = vst [vmem:[%s403 + $0x90] sm:%s395] %v440
                %v442 = vld [vmem:[%s402 + $0x118] sm:%s395]
                %443 = vst [vmem:[%s403 + $0x98] sm:%s395] %v442
                %v444 = vld [vmem:[%s402 + $0x120] sm:%s395]
                %445 = vst [vmem:[%s403 + $0xa0] sm:%s395] %v444
                %v446 = vld [vmem:[%s402 + $0x128] sm:%s395]
                %447 = vst [vmem:[%s403 + $0xa8] sm:%s395] %v446
                %v448 = vld [vmem:[%s402 + $0x130] sm:%s395]
                %449 = vst [vmem:[%s403 + $0xb0] sm:%s395] %v448
                %v450 = vld [vmem:[%s402 + $0x138] sm:%s395]
                %451 = vst [vmem:[%s403 + $0xb8] sm:%s395] %v450
                %v452 = vld [vmem:[%s402 + $0x140] sm:%s395]
                %453 = vst [vmem:[%s403 + $0xc0] sm:%s395] %v452
                %v454 = vld [vmem:[%s402 + $0x148] sm:%s395]
                %455 = vst [vmem:[%s403 + $0xc8] sm:%s395] %v454
                %v456 = vld [vmem:[%s402 + $0x150] sm:%s395]
                %457 = vst [vmem:[%s403 + $0xd0] sm:%s395] %v456
                %v458 = vld [vmem:[%s402 + $0x158] sm:%s395]
                %459 = vst [vmem:[%s403 + $0xd8] sm:%s395] %v458
                %v460 = vld [vmem:[%s402 + $0x160] sm:%s395]
                %461 = vst [vmem:[%s403 + $0xe0] sm:%s395] %v460
                %v462 = vld [vmem:[%s402 + $0x168] sm:%s395]
                %463 = vst [vmem:[%s403 + $0xe8] sm:%s395] %v462
                %v464 = vld [vmem:[%s402 + $0x170] sm:%s395]
                %465 = vst [vmem:[%s403 + $0xf0] sm:%s395] %v464
                %v466 = vld [vmem:[%s402 + $0x178] sm:%s395]
                %467 = vst [vmem:[%s403 + $0xf8] sm:%s395] %v466
                %v468 = vld [vmem:[%s402 + $0x200] sm:%s395]
                %469 = vst [vmem:[%s403 + $0x100] sm:%s395] %v468
                %v470 = vld [vmem:[%s402 + $0x208] sm:%s395]
                %471 = vst [vmem:[%s403 + $0x108] sm:%s395] %v470
                %v472 = vld [vmem:[%s402 + $0x210] sm:%s395]
                %473 = vst [vmem:[%s403 + $0x110] sm:%s395] %v472
                %v474 = vld [vmem:[%s402 + $0x218] sm:%s395]
                %475 = vst [vmem:[%s403 + $0x118] sm:%s395] %v474
                %v476 = vld [vmem:[%s402 + $0x220] sm:%s395]
                %477 = vst [vmem:[%s403 + $0x120] sm:%s395] %v476
                %v478 = vld [vmem:[%s402 + $0x228] sm:%s395]
                %479 = vst [vmem:[%s403 + $0x128] sm:%s395] %v478
                %v480 = vld [vmem:[%s402 + $0x230] sm:%s395]
                %481 = vst [vmem:[%s403 + $0x130] sm:%s395] %v480
                %v482 = vld [vmem:[%s402 + $0x238] sm:%s395]
                %483 = vst [vmem:[%s403 + $0x138] sm:%s395] %v482
                %v484 = vld [vmem:[%s402 + $0x240] sm:%s395]
                %485 = vst [vmem:[%s403 + $0x140] sm:%s395] %v484
                %v486 = vld [vmem:[%s402 + $0x248] sm:%s395]
                %487 = vst [vmem:[%s403 + $0x148] sm:%s395] %v486
                %v488 = vld [vmem:[%s402 + $0x250] sm:%s395]
                %489 = vst [vmem:[%s403 + $0x150] sm:%s395] %v488
                %v490 = vld [vmem:[%s402 + $0x258] sm:%s395]
                %491 = vst [vmem:[%s403 + $0x158] sm:%s395] %v490
                %v492 = vld [vmem:[%s402 + $0x260] sm:%s395]
                %493 = vst [vmem:[%s403 + $0x160] sm:%s395] %v492
                %v494 = vld [vmem:[%s402 + $0x268] sm:%s395]
                %495 = vst [vmem:[%s403 + $0x168] sm:%s395] %v494
                %v496 = vld [vmem:[%s402 + $0x270] sm:%s395]
                %497 = vst [vmem:[%s403 + $0x170] sm:%s395] %v496
                %v498 = vld [vmem:[%s402 + $0x278] sm:%s395]
                %499 = vst [vmem:[%s403 + $0x178] sm:%s395] %v498
                %v500 = vld [vmem:[%s402 + $0x300] sm:%s395]
                %501 = vst [vmem:[%s403 + $0x180] sm:%s395] %v500
                %v502 = vld [vmem:[%s402 + $0x308] sm:%s395]
                %503 = vst [vmem:[%s403 + $0x188] sm:%s395] %v502
                %v504 = vld [vmem:[%s402 + $0x310] sm:%s395]
                %505 = vst [vmem:[%s403 + $0x190] sm:%s395] %v504
                %v506 = vld [vmem:[%s402 + $0x318] sm:%s395]
                %507 = vst [vmem:[%s403 + $0x198] sm:%s395] %v506
                %v508 = vld [vmem:[%s402 + $0x320] sm:%s395]
                %509 = vst [vmem:[%s403 + $0x1a0] sm:%s395] %v508
                %v510 = vld [vmem:[%s402 + $0x328] sm:%s395]
                %511 = vst [vmem:[%s403 + $0x1a8] sm:%s395] %v510
                %v512 = vld [vmem:[%s402 + $0x330] sm:%s395]
                %513 = vst [vmem:[%s403 + $0x1b0] sm:%s395] %v512
                %v514 = vld [vmem:[%s402 + $0x338] sm:%s395]
                %515 = vst [vmem:[%s403 + $0x1b8] sm:%s395] %v514
                %v516 = vld [vmem:[%s402 + $0x340] sm:%s395]
                %517 = vst [vmem:[%s403 + $0x1c0] sm:%s395] %v516
                %v518 = vld [vmem:[%s402 + $0x348] sm:%s395]
                %519 = vst [vmem:[%s403 + $0x1c8] sm:%s395] %v518
                %v520 = vld [vmem:[%s402 + $0x350] sm:%s395]
                %521 = vst [vmem:[%s403 + $0x1d0] sm:%s395] %v520
                %v522 = vld [vmem:[%s402 + $0x358] sm:%s395]
                %523 = vst [vmem:[%s403 + $0x1d8] sm:%s395] %v522
                %v524 = vld [vmem:[%s402 + $0x360] sm:%s395]
                %525 = vst [vmem:[%s403 + $0x1e0] sm:%s395] %v524
                %v526 = vld [vmem:[%s402 + $0x368] sm:%s395]
                %527 = vst [vmem:[%s403 + $0x1e8] sm:%s395] %v526
                %v528 = vld [vmem:[%s402 + $0x370] sm:%s395]
                %529 = vst [vmem:[%s403 + $0x1f0] sm:%s395] %v528
                %v530 = vld [vmem:[%s402 + $0x378] sm:%s395]
                %531 = vst [vmem:[%s403 + $0x1f8] sm:%s395] %v530
                %v532 = vld [vmem:[%s402 + $0x400] sm:%s395]
                %533 = vst [vmem:[%s403 + $0x200] sm:%s395] %v532
                %v534 = vld [vmem:[%s402 + $0x408] sm:%s395]
                %535 = vst [vmem:[%s403 + $0x208] sm:%s395] %v534
                %v536 = vld [vmem:[%s402 + $0x410] sm:%s395]
                %537 = vst [vmem:[%s403 + $0x210] sm:%s395] %v536
                %v538 = vld [vmem:[%s402 + $0x418] sm:%s395]
                %539 = vst [vmem:[%s403 + $0x218] sm:%s395] %v538
                %v540 = vld [vmem:[%s402 + $0x420] sm:%s395]
                %541 = vst [vmem:[%s403 + $0x220] sm:%s395] %v540
                %v542 = vld [vmem:[%s402 + $0x428] sm:%s395]
                %543 = vst [vmem:[%s403 + $0x228] sm:%s395] %v542
                %v544 = vld [vmem:[%s402 + $0x430] sm:%s395]
                %545 = vst [vmem:[%s403 + $0x230] sm:%s395] %v544
                %v546 = vld [vmem:[%s402 + $0x438] sm:%s395]
                %547 = vst [vmem:[%s403 + $0x238] sm:%s395] %v546
                %v548 = vld [vmem:[%s402 + $0x440] sm:%s395]
                %549 = vst [vmem:[%s403 + $0x240] sm:%s395] %v548
                %v550 = vld [vmem:[%s402 + $0x448] sm:%s395]
                %551 = vst [vmem:[%s403 + $0x248] sm:%s395] %v550
                %v552 = vld [vmem:[%s402 + $0x450] sm:%s395]
                %553 = vst [vmem:[%s403 + $0x250] sm:%s395] %v552
                %v554 = vld [vmem:[%s402 + $0x458] sm:%s395]
                %555 = vst [vmem:[%s403 + $0x258] sm:%s395] %v554
                %v556 = vld [vmem:[%s402 + $0x460] sm:%s395]
                %557 = vst [vmem:[%s403 + $0x260] sm:%s395] %v556
                %v558 = vld [vmem:[%s402 + $0x468] sm:%s395]
                %559 = vst [vmem:[%s403 + $0x268] sm:%s395] %v558
                %v560 = vld [vmem:[%s402 + $0x470] sm:%s395]
                %561 = vst [vmem:[%s403 + $0x270] sm:%s395] %v560
                %v562 = vld [vmem:[%s402 + $0x478] sm:%s395]
                %563 = vst [vmem:[%s403 + $0x278] sm:%s395] %v562
                %v564 = vld [vmem:[%s402 + $0x500] sm:%s395]
                %565 = vst [vmem:[%s403 + $0x280] sm:%s395] %v564
                %v566 = vld [vmem:[%s402 + $0x508] sm:%s395]
                %567 = vst [vmem:[%s403 + $0x288] sm:%s395] %v566
                %v568 = vld [vmem:[%s402 + $0x510] sm:%s395]
                %569 = vst [vmem:[%s403 + $0x290] sm:%s395] %v568
                %v570 = vld [vmem:[%s402 + $0x518] sm:%s395]
                %571 = vst [vmem:[%s403 + $0x298] sm:%s395] %v570
                %v572 = vld [vmem:[%s402 + $0x520] sm:%s395]
                %573 = vst [vmem:[%s403 + $0x2a0] sm:%s395] %v572
                %v574 = vld [vmem:[%s402 + $0x528] sm:%s395]
                %575 = vst [vmem:[%s403 + $0x2a8] sm:%s395] %v574
                %v576 = vld [vmem:[%s402 + $0x530] sm:%s395]
                %577 = vst [vmem:[%s403 + $0x2b0] sm:%s395] %v576
                %v578 = vld [vmem:[%s402 + $0x538] sm:%s395]
                %579 = vst [vmem:[%s403 + $0x2b8] sm:%s395] %v578
                %v580 = vld [vmem:[%s402 + $0x540] sm:%s395]
                %581 = vst [vmem:[%s403 + $0x2c0] sm:%s395] %v580
                %v582 = vld [vmem:[%s402 + $0x548] sm:%s395]
                %583 = vst [vmem:[%s403 + $0x2c8] sm:%s395] %v582
                %v584 = vld [vmem:[%s402 + $0x550] sm:%s395]
                %585 = vst [vmem:[%s403 + $0x2d0] sm:%s395] %v584
                %v586 = vld [vmem:[%s402 + $0x558] sm:%s395]
                %587 = vst [vmem:[%s403 + $0x2d8] sm:%s395] %v586
                %v588 = vld [vmem:[%s402 + $0x560] sm:%s395]
                %589 = vst [vmem:[%s403 + $0x2e0] sm:%s395] %v588
                %v590 = vld [vmem:[%s402 + $0x568] sm:%s395]
                %591 = vst [vmem:[%s403 + $0x2e8] sm:%s395] %v590
                %v592 = vld [vmem:[%s402 + $0x570] sm:%s395]
                %593 = vst [vmem:[%s403 + $0x2f0] sm:%s395] %v592
                %v594 = vld [vmem:[%s402 + $0x578] sm:%s395]
                %595 = vst [vmem:[%s403 + $0x2f8] sm:%s395] %v594
                %v596 = vld [vmem:[%s402 + $0x600] sm:%s395]
                %597 = vst [vmem:[%s403 + $0x300] sm:%s395] %v596
                %v598 = vld [vmem:[%s402 + $0x608] sm:%s395]
                %599 = vst [vmem:[%s403 + $0x308] sm:%s395] %v598
                %v600 = vld [vmem:[%s402 + $0x610] sm:%s395]
                %601 = vst [vmem:[%s403 + $0x310] sm:%s395] %v600
                %v602 = vld [vmem:[%s402 + $0x618] sm:%s395]
                %603 = vst [vmem:[%s403 + $0x318] sm:%s395] %v602
                %v604 = vld [vmem:[%s402 + $0x620] sm:%s395]
                %605 = vst [vmem:[%s403 + $0x320] sm:%s395] %v604
                %v606 = vld [vmem:[%s402 + $0x628] sm:%s395]
                %607 = vst [vmem:[%s403 + $0x328] sm:%s395] %v606
                %v608 = vld [vmem:[%s402 + $0x630] sm:%s395]
                %609 = vst [vmem:[%s403 + $0x330] sm:%s395] %v608
                %v610 = vld [vmem:[%s402 + $0x638] sm:%s395]
                %611 = vst [vmem:[%s403 + $0x338] sm:%s395] %v610
                %v612 = vld [vmem:[%s402 + $0x640] sm:%s395]
                %613 = vst [vmem:[%s403 + $0x340] sm:%s395] %v612
                %v614 = vld [vmem:[%s402 + $0x648] sm:%s395]
                %615 = vst [vmem:[%s403 + $0x348] sm:%s395] %v614
                %v616 = vld [vmem:[%s402 + $0x650] sm:%s395]
                %617 = vst [vmem:[%s403 + $0x350] sm:%s395] %v616
                %v618 = vld [vmem:[%s402 + $0x658] sm:%s395]
                %619 = vst [vmem:[%s403 + $0x358] sm:%s395] %v618
                %v620 = vld [vmem:[%s402 + $0x660] sm:%s395]
                %621 = vst [vmem:[%s403 + $0x360] sm:%s395] %v620
                %v622 = vld [vmem:[%s402 + $0x668] sm:%s395]
                %623 = vst [vmem:[%s403 + $0x368] sm:%s395] %v622
                %v624 = vld [vmem:[%s402 + $0x670] sm:%s395]
                %625 = vst [vmem:[%s403 + $0x370] sm:%s395] %v624
                %v626 = vld [vmem:[%s402 + $0x678] sm:%s395]
                %627 = vst [vmem:[%s403 + $0x378] sm:%s395] %v626
                %v628 = vld [vmem:[%s402 + $0x700] sm:%s395]
                %629 = vst [vmem:[%s403 + $0x380] sm:%s395] %v628
                %v630 = vld [vmem:[%s402 + $0x708] sm:%s395]
                %631 = vst [vmem:[%s403 + $0x388] sm:%s395] %v630
                %v632 = vld [vmem:[%s402 + $0x710] sm:%s395]
                %633 = vst [vmem:[%s403 + $0x390] sm:%s395] %v632
                %v634 = vld [vmem:[%s402 + $0x718] sm:%s395]
                %635 = vst [vmem:[%s403 + $0x398] sm:%s395] %v634
                %v636 = vld [vmem:[%s402 + $0x720] sm:%s395]
                %637 = vst [vmem:[%s403 + $0x3a0] sm:%s395] %v636
                %v638 = vld [vmem:[%s402 + $0x728] sm:%s395]
                %639 = vst [vmem:[%s403 + $0x3a8] sm:%s395] %v638
                %v640 = vld [vmem:[%s402 + $0x730] sm:%s395]
                %641 = vst [vmem:[%s403 + $0x3b0] sm:%s395] %v640
                %v642 = vld [vmem:[%s402 + $0x738] sm:%s395]
                %643 = vst [vmem:[%s403 + $0x3b8] sm:%s395] %v642
                %v644 = vld [vmem:[%s402 + $0x740] sm:%s395]
                %645 = vst [vmem:[%s403 + $0x3c0] sm:%s395] %v644
                %v646 = vld [vmem:[%s402 + $0x748] sm:%s395]
                %647 = vst [vmem:[%s403 + $0x3c8] sm:%s395] %v646
                %v648 = vld [vmem:[%s402 + $0x750] sm:%s395]
                %649 = vst [vmem:[%s403 + $0x3d0] sm:%s395] %v648
                %v650 = vld [vmem:[%s402 + $0x758] sm:%s395]
                %651 = vst [vmem:[%s403 + $0x3d8] sm:%s395] %v650
                %v652 = vld [vmem:[%s402 + $0x760] sm:%s395]
                %653 = vst [vmem:[%s403 + $0x3e0] sm:%s395] %v652
                %v654 = vld [vmem:[%s402 + $0x768] sm:%s395]
                %655 = vst [vmem:[%s403 + $0x3e8] sm:%s395] %v654
                %v656 = vld [vmem:[%s402 + $0x770] sm:%s395]
                %657 = vst [vmem:[%s403 + $0x3f0] sm:%s395] %v656
                %v658 = vld [vmem:[%s402 + $0x778] sm:%s395]
                %659 = vst [vmem:[%s403 + $0x3f8] sm:%s395] %v658
              $region85: #{_lambda_.1} parent=79 // loop_footer
                %s401 = sadd.s32 1, %s397
              $region86: #{_lambda_.1} parent=79 // loop_footer_branch
                %396 = sbr.rel target = $region82
              $region87: #{_lambda_.1} parent=79 // loop_exit
                _
            $region80: #{_lambda_.1} parent=71 // pred_fallthru
              _
          $region72: #{_lambda_.1} parent=67 // pred_fallthru
            _
          %928 = vnop
        $region68: #{_lambda_.1} parent=63 // pred_fallthru
          _
      $region64: #{_lambda_.1} parent=5 // pred_fallthru
        _
      %p929 = scmp.le.s32.totalorder 1, %s19
      %p930 = scmp.lt.s32.totalorder %s19, 3
      %p931 = pnand %p929, %p930
      %p932 = pneg %p931
      // Predicated region
      $region103: #{_lambda_.1} parent=5 // pred_check
        _
      $region104: #{_lambda_.1} parent=5 // pred_check_branch
        %934 = sbr.rel (%p931) target = $region106
      $region105: #{_lambda_.1} parent=5 // pred_region
        %s935 = ssub.s32 %s19, 1
        %s936 = sand.u32 %s32, 1
        %s937 = sand.u32 %s32, 1
        %s938 = smul.addr %s937, 1024
        %s939 = scalar_lea.vmem [#allocation2], %s938
        // Predicated region
        $region107: #{_lambda_.1} parent=105 // pred_check
          %p940 = pneg %p45
        $region108: #{_lambda_.1} parent=105 // pred_check_branch
          %942 = sbr.rel (%p940) target = $region110
        $region109: #{_lambda_.1} parent=105 // pred_region
          _
        $region110: #{_lambda_.1} parent=105 // pred_fallthru
          _
        %s943 = sand.u32 %s32, 1
        %s944 = sand.u32 %s32, 1
        %s945 = smul.addr %s944, 1024
        %s946 = scalar_lea.vmem [#allocation2], %s945
        %p947 = pneg %p45
        %p948 = pneg %p42
        %p949 = pneg %p66
        %p950 = pneg %p63
        %p951 = pneg %p87
        %p952 = pneg %p84
        %p953 = pneg %p108
        %p954 = pneg %p105
        %p955 = pneg %p129
        %p956 = pneg %p126
        %p957 = pneg %p150
        %p958 = pneg %p147
        %p959 = pneg %p171
        %p960 = pneg %p168
        %p961 = pneg %p192
        %p962 = pneg %p189
        %p963 = pneg %p213
        %p964 = pneg %p210
        %p965 = pneg %p234
        %p966 = pneg %p231
        %p967 = pneg %p255
        %p968 = pneg %p252
        %p969 = pneg %p276
        %p970 = pneg %p273
        %p971 = pneg %p297
        %p972 = pneg %p294
        %p973 = pneg %p323
        %p974 = pneg %p320
        %s975 = smul.u32 2, %s24
        %p976 = scmp.lt.s32.totalorder %s975, 3
        %s977 = scalar_select %p976, %s975, 3
        %s978 = smul.addr %s977, 8
        %s979 = scalar_lea.vmem %s13, %s978
        %s980 = smul.u32 16, %s24
        %s981 = smul.u32 2, %s24
        %p982 = scmp.lt.s32.totalorder %s981, 3
        %s983 = scalar_select %p982, %s981, 3
        %s984 = smul.addr %s983, 8
        %s985 = scalar_lea.vmem %s13, %s984
        %s986 = smul.u32 2, %s24
        %v987 = vld [vmem:[%s939] sm:$0xff]
        %v988 = vld [vmem:[%s939 + $0x8] sm:$0xff]
        %v989 = vld [vmem:[%s939 + $0x10] sm:$0xff]
        %v990 = vld [vmem:[%s939 + $0x18] sm:$0xff]
        %v991 = vld [vmem:[%s939 + $0x20] sm:$0xff]
        %v992 = vld [vmem:[%s939 + $0x28] sm:$0xff]
        %v993 = vld [vmem:[%s939 + $0x30] sm:$0xff]
        %v994 = vld [vmem:[%s939 + $0x38] sm:$0xff]
        %v995 = vld [vmem:[%s939 + $0x40] sm:$0xff]
        %v996 = vld [vmem:[%s939 + $0x48] sm:$0xff]
        %v997 = vld [vmem:[%s939 + $0x50] sm:$0xff]
        %v998 = vld [vmem:[%s939 + $0x58] sm:$0xff]
        %v999 = vld [vmem:[%s939 + $0x60] sm:$0xff]
        %v1000 = vld [vmem:[%s939 + $0x68] sm:$0xff]
        %v1001 = vld [vmem:[%s939 + $0x70] sm:$0xff]
        %v1002 = vld [vmem:[%s939 + $0x78] sm:$0xff]
        %s1003 = scalar_lea.vmem %s939, 128 [#allocation2]
        %v1004 = vld [vmem:[%s1003] sm:$0xff]
        %v1005 = vld [vmem:[%s1003 + $0x8] sm:$0xff]
        %v1006 = vld [vmem:[%s1003 + $0x10] sm:$0xff]
        %v1007 = vld [vmem:[%s1003 + $0x18] sm:$0xff]
        %v1008 = vld [vmem:[%s1003 + $0x20] sm:$0xff]
        %v1009 = vld [vmem:[%s1003 + $0x28] sm:$0xff]
        %v1010 = vld [vmem:[%s1003 + $0x30] sm:$0xff]
        %v1011 = vld [vmem:[%s1003 + $0x38] sm:$0xff]
        %v1012 = vld [vmem:[%s1003 + $0x40] sm:$0xff]
        %v1013 = vld [vmem:[%s1003 + $0x48] sm:$0xff]
        %v1014 = vld [vmem:[%s1003 + $0x50] sm:$0xff]
        %v1015 = vld [vmem:[%s1003 + $0x58] sm:$0xff]
        %v1016 = vld [vmem:[%s1003 + $0x60] sm:$0xff]
        %v1017 = vld [vmem:[%s1003 + $0x68] sm:$0xff]
        %v1018 = vld [vmem:[%s1003 + $0x70] sm:$0xff]
        %v1019 = vld [vmem:[%s1003 + $0x78] sm:$0xff]
        %s1020 = scalar_lea.vmem %s939, 256 [#allocation2]
        %v1021 = vld [vmem:[%s1020] sm:$0xff]
        %v1022 = vld [vmem:[%s1020 + $0x8] sm:$0xff]
        %v1023 = vld [vmem:[%s1020 + $0x10] sm:$0xff]
        %v1024 = vld [vmem:[%s1020 + $0x18] sm:$0xff]
        %v1025 = vld [vmem:[%s1020 + $0x20] sm:$0xff]
        %v1026 = vld [vmem:[%s1020 + $0x28] sm:$0xff]
        %v1027 = vld [vmem:[%s1020 + $0x30] sm:$0xff]
        %v1028 = vld [vmem:[%s1020 + $0x38] sm:$0xff]
        %v1029 = vld [vmem:[%s1020 + $0x40] sm:$0xff]
        %v1030 = vld [vmem:[%s1020 + $0x48] sm:$0xff]
        %v1031 = vld [vmem:[%s1020 + $0x50] sm:$0xff]
        %v1032 = vld [vmem:[%s1020 + $0x58] sm:$0xff]
        %v1033 = vld [vmem:[%s1020 + $0x60] sm:$0xff]
        %v1034 = vld [vmem:[%s1020 + $0x68] sm:$0xff]
        %v1035 = vld [vmem:[%s1020 + $0x70] sm:$0xff]
        %v1036 = vld [vmem:[%s1020 + $0x78] sm:$0xff]
        %s1037 = scalar_lea.vmem %s939, 384 [#allocation2]
        %v1038 = vld [vmem:[%s1037] sm:$0xff]
        %v1039 = vld [vmem:[%s1037 + $0x8] sm:$0xff]
        %v1040 = vld [vmem:[%s1037 + $0x10] sm:$0xff]
        %v1041 = vld [vmem:[%s1037 + $0x18] sm:$0xff]
        %v1042 = vld [vmem:[%s1037 + $0x20] sm:$0xff]
        %v1043 = vld [vmem:[%s1037 + $0x28] sm:$0xff]
        %v1044 = vld [vmem:[%s1037 + $0x30] sm:$0xff]
        %v1045 = vld [vmem:[%s1037 + $0x38] sm:$0xff]
        %v1046 = vld [vmem:[%s1037 + $0x40] sm:$0xff]
        %v1047 = vld [vmem:[%s1037 + $0x48] sm:$0xff]
        %v1048 = vld [vmem:[%s1037 + $0x50] sm:$0xff]
        %v1049 = vld [vmem:[%s1037 + $0x58] sm:$0xff]
        %v1050 = vld [vmem:[%s1037 + $0x60] sm:$0xff]
        %v1051 = vld [vmem:[%s1037 + $0x68] sm:$0xff]
        %v1052 = vld [vmem:[%s1037 + $0x70] sm:$0xff]
        %v1053 = vld [vmem:[%s1037 + $0x78] sm:$0xff]
        %s1054 = scalar_lea.vmem %s939, 512 [#allocation2]
        %v1055 = vld [vmem:[%s1054] sm:$0xff]
        %v1056 = vld [vmem:[%s1054 + $0x8] sm:$0xff]
        %v1057 = vld [vmem:[%s1054 + $0x10] sm:$0xff]
        %v1058 = vld [vmem:[%s1054 + $0x18] sm:$0xff]
        %v1059 = vld [vmem:[%s1054 + $0x20] sm:$0xff]
        %v1060 = vld [vmem:[%s1054 + $0x28] sm:$0xff]
        %v1061 = vld [vmem:[%s1054 + $0x30] sm:$0xff]
        %v1062 = vld [vmem:[%s1054 + $0x38] sm:$0xff]
        %v1063 = vld [vmem:[%s1054 + $0x40] sm:$0xff]
        %v1064 = vld [vmem:[%s1054 + $0x48] sm:$0xff]
        %v1065 = vld [vmem:[%s1054 + $0x50] sm:$0xff]
        %v1066 = vld [vmem:[%s1054 + $0x58] sm:$0xff]
        %v1067 = vld [vmem:[%s1054 + $0x60] sm:$0xff]
        %v1068 = vld [vmem:[%s1054 + $0x68] sm:$0xff]
        %v1069 = vld [vmem:[%s1054 + $0x70] sm:$0xff]
        %v1070 = vld [vmem:[%s1054 + $0x78] sm:$0xff]
        %s1071 = scalar_lea.vmem %s939, 640 [#allocation2]
        %v1072 = vld [vmem:[%s1071] sm:$0xff]
        %v1073 = vld [vmem:[%s1071 + $0x8] sm:$0xff]
        %v1074 = vld [vmem:[%s1071 + $0x10] sm:$0xff]
        %v1075 = vld [vmem:[%s1071 + $0x18] sm:$0xff]
        %v1076 = vld [vmem:[%s1071 + $0x20] sm:$0xff]
        %v1077 = vld [vmem:[%s1071 + $0x28] sm:$0xff]
        %v1078 = vld [vmem:[%s1071 + $0x30] sm:$0xff]
        %v1079 = vld [vmem:[%s1071 + $0x38] sm:$0xff]
        %v1080 = vld [vmem:[%s1071 + $0x40] sm:$0xff]
        %v1081 = vld [vmem:[%s1071 + $0x48] sm:$0xff]
        %v1082 = vld [vmem:[%s1071 + $0x50] sm:$0xff]
        %v1083 = vld [vmem:[%s1071 + $0x58] sm:$0xff]
        %v1084 = vld [vmem:[%s1071 + $0x60] sm:$0xff]
        %v1085 = vld [vmem:[%s1071 + $0x68] sm:$0xff]
        %v1086 = vld [vmem:[%s1071 + $0x70] sm:$0xff]
        %v1087 = vld [vmem:[%s1071 + $0x78] sm:$0xff]
        %s1088 = scalar_lea.vmem %s939, 768 [#allocation2]
        %v1089 = vld [vmem:[%s1088] sm:$0xff]
        %v1090 = vld [vmem:[%s1088 + $0x8] sm:$0xff]
        %v1091 = vld [vmem:[%s1088 + $0x10] sm:$0xff]
        %v1092 = vld [vmem:[%s1088 + $0x18] sm:$0xff]
        %v1093 = vld [vmem:[%s1088 + $0x20] sm:$0xff]
        %v1094 = vld [vmem:[%s1088 + $0x28] sm:$0xff]
        %v1095 = vld [vmem:[%s1088 + $0x30] sm:$0xff]
        %v1096 = vld [vmem:[%s1088 + $0x38] sm:$0xff]
        %v1097 = vld [vmem:[%s1088 + $0x40] sm:$0xff]
        %v1098 = vld [vmem:[%s1088 + $0x48] sm:$0xff]
        %v1099 = vld [vmem:[%s1088 + $0x50] sm:$0xff]
        %v1100 = vld [vmem:[%s1088 + $0x58] sm:$0xff]
        %v1101 = vld [vmem:[%s1088 + $0x60] sm:$0xff]
        %v1102 = vld [vmem:[%s1088 + $0x68] sm:$0xff]
        %v1103 = vld [vmem:[%s1088 + $0x70] sm:$0xff]
        %v1104 = vld [vmem:[%s1088 + $0x78] sm:$0xff]
        %s1105 = scalar_lea.vmem %s939, 896 [#allocation2]
        %v1106 = vld [vmem:[%s1105] sm:$0xff]
        %v1107 = vld [vmem:[%s1105 + $0x8] sm:$0xff]
        %v1108 = vld [vmem:[%s1105 + $0x10] sm:$0xff]
        %v1109 = vld [vmem:[%s1105 + $0x18] sm:$0xff]
        %v1110 = vld [vmem:[%s1105 + $0x20] sm:$0xff]
        %v1111 = vld [vmem:[%s1105 + $0x28] sm:$0xff]
        %v1112 = vld [vmem:[%s1105 + $0x30] sm:$0xff]
        %v1113 = vld [vmem:[%s1105 + $0x38] sm:$0xff]
        %v1114 = vld [vmem:[%s1105 + $0x40] sm:$0xff]
        %v1115 = vld [vmem:[%s1105 + $0x48] sm:$0xff]
        %v1116 = vld [vmem:[%s1105 + $0x50] sm:$0xff]
        %v1117 = vld [vmem:[%s1105 + $0x58] sm:$0xff]
        %v1118 = vld [vmem:[%s1105 + $0x60] sm:$0xff]
        %v1119 = vld [vmem:[%s1105 + $0x68] sm:$0xff]
        %v1120 = vld [vmem:[%s1105 + $0x70] sm:$0xff]
        %v1121 = vld [vmem:[%s1105 + $0x78] sm:$0xff]
        %v1122 = vld [vmem:[%s1] sm:$0xff]
        %v1123 = vld [vmem:[%s1 + $0x8] sm:$0xff]
        %v1124 = vld [vmem:[%s1 + $0x10] sm:$0xff]
        %v1125 = vld [vmem:[%s1 + $0x18] sm:$0xff]
        %v1126 = vld [vmem:[%s1 + $0x20] sm:$0xff]
        %v1127 = vld [vmem:[%s1 + $0x28] sm:$0xff]
        %v1128 = vld [vmem:[%s1 + $0x30] sm:$0xff]
        %v1129 = vld [vmem:[%s1 + $0x38] sm:$0xff]
        %v1130 = vld [vmem:[%s1 + $0x40] sm:$0xff]
        %v1131 = vld [vmem:[%s1 + $0x48] sm:$0xff]
        %v1132 = vld [vmem:[%s1 + $0x50] sm:$0xff]
        %v1133 = vld [vmem:[%s1 + $0x58] sm:$0xff]
        %v1134 = vld [vmem:[%s1 + $0x60] sm:$0xff]
        %v1135 = vld [vmem:[%s1 + $0x68] sm:$0xff]
        %v1136 = vld [vmem:[%s1 + $0x70] sm:$0xff]
        %v1137 = vld [vmem:[%s1 + $0x78] sm:$0xff]
        %v1138 = vld [vmem:[%s1 + $0x80] sm:$0xff]
        %v1139 = vld [vmem:[%s1 + $0x88] sm:$0xff]
        %v1140 = vld [vmem:[%s1 + $0x90] sm:$0xff]
        %v1141 = vld [vmem:[%s1 + $0x98] sm:$0xff]
        %v1142 = vld [vmem:[%s1 + $0xa0] sm:$0xff]
        %v1143 = vld [vmem:[%s1 + $0xa8] sm:$0xff]
        %v1144 = vld [vmem:[%s1 + $0xb0] sm:$0xff]
        %v1145 = vld [vmem:[%s1 + $0xb8] sm:$0xff]
        %v1146 = vld [vmem:[%s1 + $0xc0] sm:$0xff]
        %v1147 = vld [vmem:[%s1 + $0xc8] sm:$0xff]
        %v1148 = vld [vmem:[%s1 + $0xd0] sm:$0xff]
        %v1149 = vld [vmem:[%s1 + $0xd8] sm:$0xff]
        %v1150 = vld [vmem:[%s1 + $0xe0] sm:$0xff]
        %v1151 = vld [vmem:[%s1 + $0xe8] sm:$0xff]
        %v1152 = vld [vmem:[%s1 + $0xf0] sm:$0xff]
        %v1153 = vld [vmem:[%s1 + $0xf8] sm:$0xff]
        %s1154 = scalar_lea.vmem %s1, 256
        %v1155 = vld [vmem:[%s1154] sm:$0xff]
        %v1156 = vld [vmem:[%s1154 + $0x8] sm:$0xff]
        %v1157 = vld [vmem:[%s1154 + $0x10] sm:$0xff]
        %v1158 = vld [vmem:[%s1154 + $0x18] sm:$0xff]
        %v1159 = vld [vmem:[%s1154 + $0x20] sm:$0xff]
        %v1160 = vld [vmem:[%s1154 + $0x28] sm:$0xff]
        %v1161 = vld [vmem:[%s1154 + $0x30] sm:$0xff]
        %v1162 = vld [vmem:[%s1154 + $0x38] sm:$0xff]
        %v1163 = vld [vmem:[%s1154 + $0x40] sm:$0xff]
        %v1164 = vld [vmem:[%s1154 + $0x48] sm:$0xff]
        %v1165 = vld [vmem:[%s1154 + $0x50] sm:$0xff]
        %v1166 = vld [vmem:[%s1154 + $0x58] sm:$0xff]
        %v1167 = vld [vmem:[%s1154 + $0x60] sm:$0xff]
        %v1168 = vld [vmem:[%s1154 + $0x68] sm:$0xff]
        %v1169 = vld [vmem:[%s1154 + $0x70] sm:$0xff]
        %v1170 = vld [vmem:[%s1154 + $0x78] sm:$0xff]
        %v1171 = vld [vmem:[%s1154 + $0x80] sm:$0xff]
        %v1172 = vld [vmem:[%s1154 + $0x88] sm:$0xff]
        %v1173 = vld [vmem:[%s1154 + $0x90] sm:$0xff]
        %v1174 = vld [vmem:[%s1154 + $0x98] sm:$0xff]
        %v1175 = vld [vmem:[%s1154 + $0xa0] sm:$0xff]
        %v1176 = vld [vmem:[%s1154 + $0xa8] sm:$0xff]
        %v1177 = vld [vmem:[%s1154 + $0xb0] sm:$0xff]
        %v1178 = vld [vmem:[%s1154 + $0xb8] sm:$0xff]
        %v1179 = vld [vmem:[%s1154 + $0xc0] sm:$0xff]
        %v1180 = vld [vmem:[%s1154 + $0xc8] sm:$0xff]
        %v1181 = vld [vmem:[%s1154 + $0xd0] sm:$0xff]
        %v1182 = vld [vmem:[%s1154 + $0xd8] sm:$0xff]
        %v1183 = vld [vmem:[%s1154 + $0xe0] sm:$0xff]
        %v1184 = vld [vmem:[%s1154 + $0xe8] sm:$0xff]
        %v1185 = vld [vmem:[%s1154 + $0xf0] sm:$0xff]
        %v1186 = vld [vmem:[%s1154 + $0xf8] sm:$0xff]
        %s1187 = scalar_lea.vmem %s1, 512
        %v1188 = vld [vmem:[%s1187] sm:$0xff]
        %v1189 = vld [vmem:[%s1187 + $0x8] sm:$0xff]
        %v1190 = vld [vmem:[%s1187 + $0x10] sm:$0xff]
        %v1191 = vld [vmem:[%s1187 + $0x18] sm:$0xff]
        %v1192 = vld [vmem:[%s1187 + $0x20] sm:$0xff]
        %v1193 = vld [vmem:[%s1187 + $0x28] sm:$0xff]
        %v1194 = vld [vmem:[%s1187 + $0x30] sm:$0xff]
        %v1195 = vld [vmem:[%s1187 + $0x38] sm:$0xff]
        %v1196 = vld [vmem:[%s1187 + $0x40] sm:$0xff]
        %v1197 = vld [vmem:[%s1187 + $0x48] sm:$0xff]
        %v1198 = vld [vmem:[%s1187 + $0x50] sm:$0xff]
        %v1199 = vld [vmem:[%s1187 + $0x58] sm:$0xff]
        %v1200 = vld [vmem:[%s1187 + $0x60] sm:$0xff]
        %v1201 = vld [vmem:[%s1187 + $0x68] sm:$0xff]
        %v1202 = vld [vmem:[%s1187 + $0x70] sm:$0xff]
        %v1203 = vld [vmem:[%s1187 + $0x78] sm:$0xff]
        %v1204 = vld [vmem:[%s1187 + $0x80] sm:$0xff]
        %v1205 = vld [vmem:[%s1187 + $0x88] sm:$0xff]
        %v1206 = vld [vmem:[%s1187 + $0x90] sm:$0xff]
        %v1207 = vld [vmem:[%s1187 + $0x98] sm:$0xff]
        %v1208 = vld [vmem:[%s1187 + $0xa0] sm:$0xff]
        %v1209 = vld [vmem:[%s1187 + $0xa8] sm:$0xff]
        %v1210 = vld [vmem:[%s1187 + $0xb0] sm:$0xff]
        %v1211 = vld [vmem:[%s1187 + $0xb8] sm:$0xff]
        %v1212 = vld [vmem:[%s1187 + $0xc0] sm:$0xff]
        %v1213 = vld [vmem:[%s1187 + $0xc8] sm:$0xff]
        %v1214 = vld [vmem:[%s1187 + $0xd0] sm:$0xff]
        %v1215 = vld [vmem:[%s1187 + $0xd8] sm:$0xff]
        %v1216 = vld [vmem:[%s1187 + $0xe0] sm:$0xff]
        %v1217 = vld [vmem:[%s1187 + $0xe8] sm:$0xff]
        %v1218 = vld [vmem:[%s1187 + $0xf0] sm:$0xff]
        %v1219 = vld [vmem:[%s1187 + $0xf8] sm:$0xff]
        %s1220 = scalar_lea.vmem %s1, 768
        %v1221 = vld [vmem:[%s1220] sm:$0xff]
        %v1222 = vld [vmem:[%s1220 + $0x8] sm:$0xff]
        %v1223 = vld [vmem:[%s1220 + $0x10] sm:$0xff]
        %v1224 = vld [vmem:[%s1220 + $0x18] sm:$0xff]
        %v1225 = vld [vmem:[%s1220 + $0x20] sm:$0xff]
        %v1226 = vld [vmem:[%s1220 + $0x28] sm:$0xff]
        %v1227 = vld [vmem:[%s1220 + $0x30] sm:$0xff]
        %v1228 = vld [vmem:[%s1220 + $0x38] sm:$0xff]
        %v1229 = vld [vmem:[%s1220 + $0x40] sm:$0xff]
        %v1230 = vld [vmem:[%s1220 + $0x48] sm:$0xff]
        %v1231 = vld [vmem:[%s1220 + $0x50] sm:$0xff]
        %v1232 = vld [vmem:[%s1220 + $0x58] sm:$0xff]
        %v1233 = vld [vmem:[%s1220 + $0x60] sm:$0xff]
        %v1234 = vld [vmem:[%s1220 + $0x68] sm:$0xff]
        %v1235 = vld [vmem:[%s1220 + $0x70] sm:$0xff]
        %v1236 = vld [vmem:[%s1220 + $0x78] sm:$0xff]
        %v1237 = vld [vmem:[%s1220 + $0x80] sm:$0xff]
        %v1238 = vld [vmem:[%s1220 + $0x88] sm:$0xff]
        %v1239 = vld [vmem:[%s1220 + $0x90] sm:$0xff]
        %v1240 = vld [vmem:[%s1220 + $0x98] sm:$0xff]
        %v1241 = vld [vmem:[%s1220 + $0xa0] sm:$0xff]
        %v1242 = vld [vmem:[%s1220 + $0xa8] sm:$0xff]
        %v1243 = vld [vmem:[%s1220 + $0xb0] sm:$0xff]
        %v1244 = vld [vmem:[%s1220 + $0xb8] sm:$0xff]
        %v1245 = vld [vmem:[%s1220 + $0xc0] sm:$0xff]
        %v1246 = vld [vmem:[%s1220 + $0xc8] sm:$0xff]
        %v1247 = vld [vmem:[%s1220 + $0xd0] sm:$0xff]
        %v1248 = vld [vmem:[%s1220 + $0xd8] sm:$0xff]
        %v1249 = vld [vmem:[%s1220 + $0xe0] sm:$0xff]
        %v1250 = vld [vmem:[%s1220 + $0xe8] sm:$0xff]
        %v1251 = vld [vmem:[%s1220 + $0xf0] sm:$0xff]
        %v1252 = vld [vmem:[%s1220 + $0xf8] sm:$0xff]
        %s1253 = scalar_lea.vmem %s1, 1024
        %v1254 = vld [vmem:[%s1253] sm:$0xff]
        %v1255 = vld [vmem:[%s1253 + $0x8] sm:$0xff]
        %v1256 = vld [vmem:[%s1253 + $0x10] sm:$0xff]
        %v1257 = vld [vmem:[%s1253 + $0x18] sm:$0xff]
        %v1258 = vld [vmem:[%s1253 + $0x20] sm:$0xff]
        %v1259 = vld [vmem:[%s1253 + $0x28] sm:$0xff]
        %v1260 = vld [vmem:[%s1253 + $0x30] sm:$0xff]
        %v1261 = vld [vmem:[%s1253 + $0x38] sm:$0xff]
        %v1262 = vld [vmem:[%s1253 + $0x40] sm:$0xff]
        %v1263 = vld [vmem:[%s1253 + $0x48] sm:$0xff]
        %v1264 = vld [vmem:[%s1253 + $0x50] sm:$0xff]
        %v1265 = vld [vmem:[%s1253 + $0x58] sm:$0xff]
        %v1266 = vld [vmem:[%s1253 + $0x60] sm:$0xff]
        %v1267 = vld [vmem:[%s1253 + $0x68] sm:$0xff]
        %v1268 = vld [vmem:[%s1253 + $0x70] sm:$0xff]
        %v1269 = vld [vmem:[%s1253 + $0x78] sm:$0xff]
        %v1270 = vld [vmem:[%s1253 + $0x80] sm:$0xff]
        %v1271 = vld [vmem:[%s1253 + $0x88] sm:$0xff]
        %v1272 = vld [vmem:[%s1253 + $0x90] sm:$0xff]
        %v1273 = vld [vmem:[%s1253 + $0x98] sm:$0xff]
        %v1274 = vld [vmem:[%s1253 + $0xa0] sm:$0xff]
        %v1275 = vld [vmem:[%s1253 + $0xa8] sm:$0xff]
        %v1276 = vld [vmem:[%s1253 + $0xb0] sm:$0xff]
        %v1277 = vld [vmem:[%s1253 + $0xb8] sm:$0xff]
        %v1278 = vld [vmem:[%s1253 + $0xc0] sm:$0xff]
        %v1279 = vld [vmem:[%s1253 + $0xc8] sm:$0xff]
        %v1280 = vld [vmem:[%s1253 + $0xd0] sm:$0xff]
        %v1281 = vld [vmem:[%s1253 + $0xd8] sm:$0xff]
        %v1282 = vld [vmem:[%s1253 + $0xe0] sm:$0xff]
        %v1283 = vld [vmem:[%s1253 + $0xe8] sm:$0xff]
        %v1284 = vld [vmem:[%s1253 + $0xf0] sm:$0xff]
        %v1285 = vld [vmem:[%s1253 + $0xf8] sm:$0xff]
        %v1286 = vld [vmem:[%s3] sm:$0xff]
        %v1287 = vld [vmem:[%s3 + $0x8] sm:$0xff]
        %v1288 = vld [vmem:[%s3 + $0x10] sm:$0xff]
        %v1289 = vld [vmem:[%s3 + $0x18] sm:$0xff]
        %v1290 = vld [vmem:[%s3 + $0x20] sm:$0xff]
        %v1291 = vld [vmem:[%s3 + $0x28] sm:$0xff]
        %v1292 = vld [vmem:[%s3 + $0x30] sm:$0xff]
        %v1293 = vld [vmem:[%s3 + $0x38] sm:$0xff]
        %v1294 = vld [vmem:[%s3 + $0x40] sm:$0xff]
        %v1295 = vld [vmem:[%s3 + $0x48] sm:$0xff]
        %v1296 = vld [vmem:[%s3 + $0x50] sm:$0xff]
        %v1297 = vld [vmem:[%s3 + $0x58] sm:$0xff]
        %v1298 = vld [vmem:[%s3 + $0x60] sm:$0xff]
        %v1299 = vld [vmem:[%s3 + $0x68] sm:$0xff]
        %v1300 = vld [vmem:[%s3 + $0x70] sm:$0xff]
        %v1301 = vld [vmem:[%s3 + $0x78] sm:$0xff]
        %v1302 = vld [vmem:[%s3 + $0x80] sm:$0xff]
        %v1303 = vld [vmem:[%s3 + $0x88] sm:$0xff]
        %v1304 = vld [vmem:[%s3 + $0x90] sm:$0xff]
        %v1305 = vld [vmem:[%s3 + $0x98] sm:$0xff]
        %v1306 = vld [vmem:[%s3 + $0xa0] sm:$0xff]
        %v1307 = vld [vmem:[%s3 + $0xa8] sm:$0xff]
        %v1308 = vld [vmem:[%s3 + $0xb0] sm:$0xff]
        %v1309 = vld [vmem:[%s3 + $0xb8] sm:$0xff]
        %v1310 = vld [vmem:[%s3 + $0xc0] sm:$0xff]
        %v1311 = vld [vmem:[%s3 + $0xc8] sm:$0xff]
        %v1312 = vld [vmem:[%s3 + $0xd0] sm:$0xff]
        %v1313 = vld [vmem:[%s3 + $0xd8] sm:$0xff]
        %v1314 = vld [vmem:[%s3 + $0xe0] sm:$0xff]
        %v1315 = vld [vmem:[%s3 + $0xe8] sm:$0xff]
        %v1316 = vld [vmem:[%s3 + $0xf0] sm:$0xff]
        %v1317 = vld [vmem:[%s3 + $0xf8] sm:$0xff]
        %s1318 = scalar_lea.vmem %s3, 256
        %v1319 = vld [vmem:[%s1318] sm:$0xff]
        %v1320 = vld [vmem:[%s1318 + $0x8] sm:$0xff]
        %v1321 = vld [vmem:[%s1318 + $0x10] sm:$0xff]
        %v1322 = vld [vmem:[%s1318 + $0x18] sm:$0xff]
        %v1323 = vld [vmem:[%s1318 + $0x20] sm:$0xff]
        %v1324 = vld [vmem:[%s1318 + $0x28] sm:$0xff]
        %v1325 = vld [vmem:[%s1318 + $0x30] sm:$0xff]
        %v1326 = vld [vmem:[%s1318 + $0x38] sm:$0xff]
        %v1327 = vld [vmem:[%s1318 + $0x40] sm:$0xff]
        %v1328 = vld [vmem:[%s1318 + $0x48] sm:$0xff]
        %v1329 = vld [vmem:[%s1318 + $0x50] sm:$0xff]
        %v1330 = vld [vmem:[%s1318 + $0x58] sm:$0xff]
        %v1331 = vld [vmem:[%s1318 + $0x60] sm:$0xff]
        %v1332 = vld [vmem:[%s1318 + $0x68] sm:$0xff]
        %v1333 = vld [vmem:[%s1318 + $0x70] sm:$0xff]
        %v1334 = vld [vmem:[%s1318 + $0x78] sm:$0xff]
        %v1335 = vld [vmem:[%s1318 + $0x80] sm:$0xff]
        %v1336 = vld [vmem:[%s1318 + $0x88] sm:$0xff]
        %v1337 = vld [vmem:[%s1318 + $0x90] sm:$0xff]
        %v1338 = vld [vmem:[%s1318 + $0x98] sm:$0xff]
        %v1339 = vld [vmem:[%s1318 + $0xa0] sm:$0xff]
        %v1340 = vld [vmem:[%s1318 + $0xa8] sm:$0xff]
        %v1341 = vld [vmem:[%s1318 + $0xb0] sm:$0xff]
        %v1342 = vld [vmem:[%s1318 + $0xb8] sm:$0xff]
        %v1343 = vld [vmem:[%s1318 + $0xc0] sm:$0xff]
        %v1344 = vld [vmem:[%s1318 + $0xc8] sm:$0xff]
        %v1345 = vld [vmem:[%s1318 + $0xd0] sm:$0xff]
        %v1346 = vld [vmem:[%s1318 + $0xd8] sm:$0xff]
        %v1347 = vld [vmem:[%s1318 + $0xe0] sm:$0xff]
        %v1348 = vld [vmem:[%s1318 + $0xe8] sm:$0xff]
        %v1349 = vld [vmem:[%s1318 + $0xf0] sm:$0xff]
        %v1350 = vld [vmem:[%s1318 + $0xf8] sm:$0xff]
        %s1351 = scalar_lea.vmem %s3, 512
        %v1352 = vld [vmem:[%s1351] sm:$0xff]
        %v1353 = vld [vmem:[%s1351 + $0x8] sm:$0xff]
        %v1354 = vld [vmem:[%s1351 + $0x10] sm:$0xff]
        %v1355 = vld [vmem:[%s1351 + $0x18] sm:$0xff]
        %v1356 = vld [vmem:[%s1351 + $0x20] sm:$0xff]
        %v1357 = vld [vmem:[%s1351 + $0x28] sm:$0xff]
        %v1358 = vld [vmem:[%s1351 + $0x30] sm:$0xff]
        %v1359 = vld [vmem:[%s1351 + $0x38] sm:$0xff]
        %v1360 = vld [vmem:[%s1351 + $0x40] sm:$0xff]
        %v1361 = vld [vmem:[%s1351 + $0x48] sm:$0xff]
        %v1362 = vld [vmem:[%s1351 + $0x50] sm:$0xff]
        %v1363 = vld [vmem:[%s1351 + $0x58] sm:$0xff]
        %v1364 = vld [vmem:[%s1351 + $0x60] sm:$0xff]
        %v1365 = vld [vmem:[%s1351 + $0x68] sm:$0xff]
        %v1366 = vld [vmem:[%s1351 + $0x70] sm:$0xff]
        %v1367 = vld [vmem:[%s1351 + $0x78] sm:$0xff]
        %v1368 = vld [vmem:[%s1351 + $0x80] sm:$0xff]
        %v1369 = vld [vmem:[%s1351 + $0x88] sm:$0xff]
        %v1370 = vld [vmem:[%s1351 + $0x90] sm:$0xff]
        %v1371 = vld [vmem:[%s1351 + $0x98] sm:$0xff]
        %v1372 = vld [vmem:[%s1351 + $0xa0] sm:$0xff]
        %v1373 = vld [vmem:[%s1351 + $0xa8] sm:$0xff]
        %v1374 = vld [vmem:[%s1351 + $0xb0] sm:$0xff]
        %v1375 = vld [vmem:[%s1351 + $0xb8] sm:$0xff]
        %v1376 = vld [vmem:[%s1351 + $0xc0] sm:$0xff]
        %v1377 = vld [vmem:[%s1351 + $0xc8] sm:$0xff]
        %v1378 = vld [vmem:[%s1351 + $0xd0] sm:$0xff]
        %v1379 = vld [vmem:[%s1351 + $0xd8] sm:$0xff]
        %v1380 = vld [vmem:[%s1351 + $0xe0] sm:$0xff]
        %v1381 = vld [vmem:[%s1351 + $0xe8] sm:$0xff]
        %v1382 = vld [vmem:[%s1351 + $0xf0] sm:$0xff]
        %v1383 = vld [vmem:[%s1351 + $0xf8] sm:$0xff]
        %s1384 = scalar_lea.vmem %s3, 768
        %v1385 = vld [vmem:[%s1384] sm:$0xff]
        %v1386 = vld [vmem:[%s1384 + $0x8] sm:$0xff]
        %v1387 = vld [vmem:[%s1384 + $0x10] sm:$0xff]
        %v1388 = vld [vmem:[%s1384 + $0x18] sm:$0xff]
        %v1389 = vld [vmem:[%s1384 + $0x20] sm:$0xff]
        %v1390 = vld [vmem:[%s1384 + $0x28] sm:$0xff]
        %v1391 = vld [vmem:[%s1384 + $0x30] sm:$0xff]
        %v1392 = vld [vmem:[%s1384 + $0x38] sm:$0xff]
        %v1393 = vld [vmem:[%s1384 + $0x40] sm:$0xff]
        %v1394 = vld [vmem:[%s1384 + $0x48] sm:$0xff]
        %v1395 = vld [vmem:[%s1384 + $0x50] sm:$0xff]
        %v1396 = vld [vmem:[%s1384 + $0x58] sm:$0xff]
        %v1397 = vld [vmem:[%s1384 + $0x60] sm:$0xff]
        %v1398 = vld [vmem:[%s1384 + $0x68] sm:$0xff]
        %v1399 = vld [vmem:[%s1384 + $0x70] sm:$0xff]
        %v1400 = vld [vmem:[%s1384 + $0x78] sm:$0xff]
        %v1401 = vld [vmem:[%s1384 + $0x80] sm:$0xff]
        %v1402 = vld [vmem:[%s1384 + $0x88] sm:$0xff]
        %v1403 = vld [vmem:[%s1384 + $0x90] sm:$0xff]
        %v1404 = vld [vmem:[%s1384 + $0x98] sm:$0xff]
        %v1405 = vld [vmem:[%s1384 + $0xa0] sm:$0xff]
        %v1406 = vld [vmem:[%s1384 + $0xa8] sm:$0xff]
        %v1407 = vld [vmem:[%s1384 + $0xb0] sm:$0xff]
        %v1408 = vld [vmem:[%s1384 + $0xb8] sm:$0xff]
        %v1409 = vld [vmem:[%s1384 + $0xc0] sm:$0xff]
        %v1410 = vld [vmem:[%s1384 + $0xc8] sm:$0xff]
        %v1411 = vld [vmem:[%s1384 + $0xd0] sm:$0xff]
        %v1412 = vld [vmem:[%s1384 + $0xd8] sm:$0xff]
        %v1413 = vld [vmem:[%s1384 + $0xe0] sm:$0xff]
        %v1414 = vld [vmem:[%s1384 + $0xe8] sm:$0xff]
        %v1415 = vld [vmem:[%s1384 + $0xf0] sm:$0xff]
        %v1416 = vld [vmem:[%s1384 + $0xf8] sm:$0xff]
        %s1417 = scalar_lea.vmem %s3, 1024
        %v1418 = vld [vmem:[%s1417] sm:$0xff]
        %v1419 = vld [vmem:[%s1417 + $0x8] sm:$0xff]
        %v1420 = vld [vmem:[%s1417 + $0x10] sm:$0xff]
        %v1421 = vld [vmem:[%s1417 + $0x18] sm:$0xff]
        %v1422 = vld [vmem:[%s1417 + $0x20] sm:$0xff]
        %v1423 = vld [vmem:[%s1417 + $0x28] sm:$0xff]
        %v1424 = vld [vmem:[%s1417 + $0x30] sm:$0xff]
        %v1425 = vld [vmem:[%s1417 + $0x38] sm:$0xff]
        %v1426 = vld [vmem:[%s1417 + $0x40] sm:$0xff]
        %v1427 = vld [vmem:[%s1417 + $0x48] sm:$0xff]
        %v1428 = vld [vmem:[%s1417 + $0x50] sm:$0xff]
        %v1429 = vld [vmem:[%s1417 + $0x58] sm:$0xff]
        %v1430 = vld [vmem:[%s1417 + $0x60] sm:$0xff]
        %v1431 = vld [vmem:[%s1417 + $0x68] sm:$0xff]
        %v1432 = vld [vmem:[%s1417 + $0x70] sm:$0xff]
        %v1433 = vld [vmem:[%s1417 + $0x78] sm:$0xff]
        %v1434 = vld [vmem:[%s1417 + $0x80] sm:$0xff]
        %v1435 = vld [vmem:[%s1417 + $0x88] sm:$0xff]
        %v1436 = vld [vmem:[%s1417 + $0x90] sm:$0xff]
        %v1437 = vld [vmem:[%s1417 + $0x98] sm:$0xff]
        %v1438 = vld [vmem:[%s1417 + $0xa0] sm:$0xff]
        %v1439 = vld [vmem:[%s1417 + $0xa8] sm:$0xff]
        %v1440 = vld [vmem:[%s1417 + $0xb0] sm:$0xff]
        %v1441 = vld [vmem:[%s1417 + $0xb8] sm:$0xff]
        %v1442 = vld [vmem:[%s1417 + $0xc0] sm:$0xff]
        %v1443 = vld [vmem:[%s1417 + $0xc8] sm:$0xff]
        %v1444 = vld [vmem:[%s1417 + $0xd0] sm:$0xff]
        %v1445 = vld [vmem:[%s1417 + $0xd8] sm:$0xff]
        %v1446 = vld [vmem:[%s1417 + $0xe0] sm:$0xff]
        %v1447 = vld [vmem:[%s1417 + $0xe8] sm:$0xff]
        %v1448 = vld [vmem:[%s1417 + $0xf0] sm:$0xff]
        %v1449 = vld [vmem:[%s1417 + $0xf8] sm:$0xff]
        %v1450 = vld [vmem:[%s2] sm:$0x3]
        %v1451 = vld [vmem:[%s4] sm:$0x3]
        %1452 = vmatpush.msra.mxu0 %v1185
        %1453 = vmatpush.msra.mxu0 %v1183
        %1454 = vmatpush.msra.mxu0 %v1181
        %1455 = vmatpush.msra.mxu0 %v1179
        %1456 = vmatpush.msra.mxu0 %v1177
        %1457 = vmatpush.msra.mxu0 %v1175
        %1458 = vmatpush.msra.mxu0 %v1173
        %1459 = vmatpush.msra.mxu0 %v1171
        %1460 = vmatpush.msra.mxu0 %v1169
        %1461 = vmatpush.msra.mxu0 %v1167
        %1462 = vmatpush.msra.mxu0 %v1165
        %1463 = vmatpush.msra.mxu0 %v1163
        %1464 = vmatpush.msra.mxu0 %v1161
        %1465 = vmatpush.msra.mxu0 %v1159
        %1466 = vmatpush.msra.mxu0 %v1157
        %1467 = vmatpush.msra.mxu0 %v1155
        %1468 = vmatmul.f32.gmra.mxu0 %v1004
        %v1469 = vpop.f32.mrf.mxu0
        %v1470 = vadd.f32 0.0, %v1469
        %1471 = vmatmul.f32.gmra.mxu0 %v1005
        %v1472 = vpop.f32.mrf.mxu0
        %v1473 = vadd.f32 0.0, %v1472
        %1474 = vmatmul.f32.gmra.mxu0 %v1006
        %v1475 = vpop.f32.mrf.mxu0
        %v1476 = vadd.f32 0.0, %v1475
        %1477 = vmatmul.f32.gmra.mxu0 %v1007
        %v1478 = vpop.f32.mrf.mxu0
        %v1479 = vadd.f32 0.0, %v1478
        %1480 = vmatmul.f32.gmra.mxu0 %v1008
        %v1481 = vpop.f32.mrf.mxu0
        %v1482 = vadd.f32 0.0, %v1481
        %1483 = vmatmul.f32.gmra.mxu0 %v1009
        %v1484 = vpop.f32.mrf.mxu0
        %v1485 = vadd.f32 0.0, %v1484
        %1486 = vmatmul.f32.gmra.mxu0 %v1010
        %v1487 = vpop.f32.mrf.mxu0
        %v1488 = vadd.f32 0.0, %v1487
        %1489 = vmatmul.f32.gmra.mxu0 %v1011
        %v1490 = vpop.f32.mrf.mxu0
        %v1491 = vadd.f32 0.0, %v1490
        %1492 = vmatmul.f32.gmra.mxu0 %v1012
        %v1493 = vpop.f32.mrf.mxu0
        %v1494 = vadd.f32 0.0, %v1493
        %1495 = vmatmul.f32.gmra.mxu0 %v1013
        %v1496 = vpop.f32.mrf.mxu0
        %v1497 = vadd.f32 0.0, %v1496
        %1498 = vmatmul.f32.gmra.mxu0 %v1014
        %v1499 = vpop.f32.mrf.mxu0
        %v1500 = vadd.f32 0.0, %v1499
        %1501 = vmatmul.f32.gmra.mxu0 %v1015
        %v1502 = vpop.f32.mrf.mxu0
        %v1503 = vadd.f32 0.0, %v1502
        %1504 = vmatmul.f32.gmra.mxu0 %v1016
        %v1505 = vpop.f32.mrf.mxu0
        %v1506 = vadd.f32 0.0, %v1505
        %1507 = vmatmul.f32.gmra.mxu0 %v1017
        %v1508 = vpop.f32.mrf.mxu0
        %v1509 = vadd.f32 0.0, %v1508
        %1510 = vmatmul.f32.gmra.mxu0 %v1018
        %v1511 = vpop.f32.mrf.mxu0
        %v1512 = vadd.f32 0.0, %v1511
        %1513 = vmatmul.f32.gmra.mxu0 %v1019
        %v1514 = vpop.f32.mrf.mxu0
        %v1515 = vadd.f32 0.0, %v1514
        %1516 = vdwg.mxu0
        %1517 = vmatpush.msra.mxu0 %v1186
        %1518 = vmatpush.msra.mxu0 %v1184
        %1519 = vmatpush.msra.mxu0 %v1182
        %1520 = vmatpush.msra.mxu0 %v1180
        %1521 = vmatpush.msra.mxu0 %v1178
        %1522 = vmatpush.msra.mxu0 %v1176
        %1523 = vmatpush.msra.mxu0 %v1174
        %1524 = vmatpush.msra.mxu0 %v1172
        %1525 = vmatpush.msra.mxu0 %v1170
        %1526 = vmatpush.msra.mxu0 %v1168
        %1527 = vmatpush.msra.mxu0 %v1166
        %1528 = vmatpush.msra.mxu0 %v1164
        %1529 = vmatpush.msra.mxu0 %v1162
        %1530 = vmatpush.msra.mxu0 %v1160
        %1531 = vmatpush.msra.mxu0 %v1158
        %1532 = vmatpush.msra.mxu0 %v1156
        %1533 = vmatmul.f32.gmra.mxu0 %v1004
        %v1534 = vpop.f32.mrf.mxu0
        %v1535 = vadd.f32 0.0, %v1534
        %1536 = vmatmul.f32.gmra.mxu0 %v1005
        %v1537 = vpop.f32.mrf.mxu0
        %v1538 = vadd.f32 0.0, %v1537
        %1539 = vmatmul.f32.gmra.mxu0 %v1006
        %v1540 = vpop.f32.mrf.mxu0
        %v1541 = vadd.f32 0.0, %v1540
        %1542 = vmatmul.f32.gmra.mxu0 %v1007
        %v1543 = vpop.f32.mrf.mxu0
        %v1544 = vadd.f32 0.0, %v1543
        %1545 = vmatmul.f32.gmra.mxu0 %v1008
        %v1546 = vpop.f32.mrf.mxu0
        %v1547 = vadd.f32 0.0, %v1546
        %1548 = vmatmul.f32.gmra.mxu0 %v1009
        %v1549 = vpop.f32.mrf.mxu0
        %v1550 = vadd.f32 0.0, %v1549
        %1551 = vmatmul.f32.gmra.mxu0 %v1010
        %v1552 = vpop.f32.mrf.mxu0
        %v1553 = vadd.f32 0.0, %v1552
        %1554 = vmatmul.f32.gmra.mxu0 %v1011
        %v1555 = vpop.f32.mrf.mxu0
        %v1556 = vadd.f32 0.0, %v1555
        %1557 = vmatmul.f32.gmra.mxu0 %v1012
        %v1558 = vpop.f32.mrf.mxu0
        %v1559 = vadd.f32 0.0, %v1558
        %1560 = vmatmul.f32.gmra.mxu0 %v1013
        %v1561 = vpop.f32.mrf.mxu0
        %v1562 = vadd.f32 0.0, %v1561
        %1563 = vmatmul.f32.gmra.mxu0 %v1014
        %v1564 = vpop.f32.mrf.mxu0
        %v1565 = vadd.f32 0.0, %v1564
        %1566 = vmatmul.f32.gmra.mxu0 %v1015
        %v1567 = vpop.f32.mrf.mxu0
        %v1568 = vadd.f32 0.0, %v1567
        %1569 = vmatmul.f32.gmra.mxu0 %v1016
        %v1570 = vpop.f32.mrf.mxu0
        %v1571 = vadd.f32 0.0, %v1570
        %1572 = vmatmul.f32.gmra.mxu0 %v1017
        %v1573 = vpop.f32.mrf.mxu0
        %v1574 = vadd.f32 0.0, %v1573
        %1575 = vmatmul.f32.gmra.mxu0 %v1018
        %v1576 = vpop.f32.mrf.mxu0
        %v1577 = vadd.f32 0.0, %v1576
        %1578 = vmatmul.f32.gmra.mxu0 %v1019
        %v1579 = vpop.f32.mrf.mxu0
        %v1580 = vadd.f32 0.0, %v1579
        %1581 = vdwg.mxu0
        %1582 = vmatpush.msra.mxu0 %v1152
        %1583 = vmatpush.msra.mxu0 %v1150
        %1584 = vmatpush.msra.mxu0 %v1148
        %1585 = vmatpush.msra.mxu0 %v1146
        %1586 = vmatpush.msra.mxu0 %v1144
        %1587 = vmatpush.msra.mxu0 %v1142
        %1588 = vmatpush.msra.mxu0 %v1140
        %1589 = vmatpush.msra.mxu0 %v1138
        %1590 = vmatpush.msra.mxu0 %v1136
        %1591 = vmatpush.msra.mxu0 %v1134
        %1592 = vmatpush.msra.mxu0 %v1132
        %1593 = vmatpush.msra.mxu0 %v1130
        %1594 = vmatpush.msra.mxu0 %v1128
        %1595 = vmatpush.msra.mxu0 %v1126
        %1596 = vmatpush.msra.mxu0 %v1124
        %1597 = vmatpush.msra.mxu0 %v1122
        %1598 = vmatmul.f32.gmra.mxu0 %v987
        %v1599 = vpop.f32.mrf.mxu0
        %v1600 = vadd.f32 %v1470, %v1599
        %1601 = vmatmul.f32.gmra.mxu0 %v988
        %v1602 = vpop.f32.mrf.mxu0
        %v1603 = vadd.f32 %v1473, %v1602
        %1604 = vmatmul.f32.gmra.mxu0 %v989
        %v1605 = vpop.f32.mrf.mxu0
        %v1606 = vadd.f32 %v1476, %v1605
        %1607 = vmatmul.f32.gmra.mxu0 %v990
        %v1608 = vpop.f32.mrf.mxu0
        %v1609 = vadd.f32 %v1479, %v1608
        %1610 = vmatmul.f32.gmra.mxu0 %v991
        %v1611 = vpop.f32.mrf.mxu0
        %v1612 = vadd.f32 %v1482, %v1611
        %1613 = vmatmul.f32.gmra.mxu0 %v992
        %v1614 = vpop.f32.mrf.mxu0
        %v1615 = vadd.f32 %v1485, %v1614
        %1616 = vmatmul.f32.gmra.mxu0 %v993
        %v1617 = vpop.f32.mrf.mxu0
        %v1618 = vadd.f32 %v1488, %v1617
        %1619 = vmatmul.f32.gmra.mxu0 %v994
        %v1620 = vpop.f32.mrf.mxu0
        %v1621 = vadd.f32 %v1491, %v1620
        %1622 = vmatmul.f32.gmra.mxu0 %v995
        %v1623 = vpop.f32.mrf.mxu0
        %v1624 = vadd.f32 %v1494, %v1623
        %1625 = vmatmul.f32.gmra.mxu0 %v996
        %v1626 = vpop.f32.mrf.mxu0
        %v1627 = vadd.f32 %v1497, %v1626
        %1628 = vmatmul.f32.gmra.mxu0 %v997
        %v1629 = vpop.f32.mrf.mxu0
        %v1630 = vadd.f32 %v1500, %v1629
        %1631 = vmatmul.f32.gmra.mxu0 %v998
        %v1632 = vpop.f32.mrf.mxu0
        %v1633 = vadd.f32 %v1503, %v1632
        %1634 = vmatmul.f32.gmra.mxu0 %v999
        %v1635 = vpop.f32.mrf.mxu0
        %v1636 = vadd.f32 %v1506, %v1635
        %1637 = vmatmul.f32.gmra.mxu0 %v1000
        %v1638 = vpop.f32.mrf.mxu0
        %v1639 = vadd.f32 %v1509, %v1638
        %1640 = vmatmul.f32.gmra.mxu0 %v1001
        %v1641 = vpop.f32.mrf.mxu0
        %v1642 = vadd.f32 %v1512, %v1641
        %1643 = vmatmul.f32.gmra.mxu0 %v1002
        %v1644 = vpop.f32.mrf.mxu0
        %v1645 = vadd.f32 %v1515, %v1644
        %1646 = vdwg.mxu0
        %1647 = vmatpush.msra.mxu0 %v1153
        %1648 = vmatpush.msra.mxu0 %v1151
        %1649 = vmatpush.msra.mxu0 %v1149
        %1650 = vmatpush.msra.mxu0 %v1147
        %1651 = vmatpush.msra.mxu0 %v1145
        %1652 = vmatpush.msra.mxu0 %v1143
        %1653 = vmatpush.msra.mxu0 %v1141
        %1654 = vmatpush.msra.mxu0 %v1139
        %1655 = vmatpush.msra.mxu0 %v1137
        %1656 = vmatpush.msra.mxu0 %v1135
        %1657 = vmatpush.msra.mxu0 %v1133
        %1658 = vmatpush.msra.mxu0 %v1131
        %1659 = vmatpush.msra.mxu0 %v1129
        %1660 = vmatpush.msra.mxu0 %v1127
        %1661 = vmatpush.msra.mxu0 %v1125
        %1662 = vmatpush.msra.mxu0 %v1123
        %1663 = vmatmul.f32.gmra.mxu0 %v987
        %v1664 = vpop.f32.mrf.mxu0
        %v1665 = vadd.f32 %v1535, %v1664
        %1666 = vmatmul.f32.gmra.mxu0 %v988
        %v1667 = vpop.f32.mrf.mxu0
        %v1668 = vadd.f32 %v1538, %v1667
        %1669 = vmatmul.f32.gmra.mxu0 %v989
        %v1670 = vpop.f32.mrf.mxu0
        %v1671 = vadd.f32 %v1541, %v1670
        %1672 = vmatmul.f32.gmra.mxu0 %v990
        %v1673 = vpop.f32.mrf.mxu0
        %v1674 = vadd.f32 %v1544, %v1673
        %1675 = vmatmul.f32.gmra.mxu0 %v991
        %v1676 = vpop.f32.mrf.mxu0
        %v1677 = vadd.f32 %v1547, %v1676
        %1678 = vmatmul.f32.gmra.mxu0 %v992
        %v1679 = vpop.f32.mrf.mxu0
        %v1680 = vadd.f32 %v1550, %v1679
        %1681 = vmatmul.f32.gmra.mxu0 %v993
        %v1682 = vpop.f32.mrf.mxu0
        %v1683 = vadd.f32 %v1553, %v1682
        %1684 = vmatmul.f32.gmra.mxu0 %v994
        %v1685 = vpop.f32.mrf.mxu0
        %v1686 = vadd.f32 %v1556, %v1685
        %1687 = vmatmul.f32.gmra.mxu0 %v995
        %v1688 = vpop.f32.mrf.mxu0
        %v1689 = vadd.f32 %v1559, %v1688
        %1690 = vmatmul.f32.gmra.mxu0 %v996
        %v1691 = vpop.f32.mrf.mxu0
        %v1692 = vadd.f32 %v1562, %v1691
        %1693 = vmatmul.f32.gmra.mxu0 %v997
        %v1694 = vpop.f32.mrf.mxu0
        %v1695 = vadd.f32 %v1565, %v1694
        %1696 = vmatmul.f32.gmra.mxu0 %v998
        %v1697 = vpop.f32.mrf.mxu0
        %v1698 = vadd.f32 %v1568, %v1697
        %1699 = vmatmul.f32.gmra.mxu0 %v999
        %v1700 = vpop.f32.mrf.mxu0
        %v1701 = vadd.f32 %v1571, %v1700
        %1702 = vmatmul.f32.gmra.mxu0 %v1000
        %v1703 = vpop.f32.mrf.mxu0
        %v1704 = vadd.f32 %v1574, %v1703
        %1705 = vmatmul.f32.gmra.mxu0 %v1001
        %v1706 = vpop.f32.mrf.mxu0
        %v1707 = vadd.f32 %v1577, %v1706
        %1708 = vmatmul.f32.gmra.mxu0 %v1002
        %v1709 = vpop.f32.mrf.mxu0
        %v1710 = vadd.f32 %v1580, %v1709
        %1711 = vdwg.mxu0
        %1712 = vmatpush.msra.mxu0 %v1218
        %1713 = vmatpush.msra.mxu0 %v1216
        %1714 = vmatpush.msra.mxu0 %v1214
        %1715 = vmatpush.msra.mxu0 %v1212
        %1716 = vmatpush.msra.mxu0 %v1210
        %1717 = vmatpush.msra.mxu0 %v1208
        %1718 = vmatpush.msra.mxu0 %v1206
        %1719 = vmatpush.msra.mxu0 %v1204
        %1720 = vmatpush.msra.mxu0 %v1202
        %1721 = vmatpush.msra.mxu0 %v1200
        %1722 = vmatpush.msra.mxu0 %v1198
        %1723 = vmatpush.msra.mxu0 %v1196
        %1724 = vmatpush.msra.mxu0 %v1194
        %1725 = vmatpush.msra.mxu0 %v1192
        %1726 = vmatpush.msra.mxu0 %v1190
        %1727 = vmatpush.msra.mxu0 %v1188
        %1728 = vmatmul.f32.gmra.mxu0 %v1021
        %v1729 = vpop.f32.mrf.mxu0
        %v1730 = vadd.f32 0.0, %v1729
        %1731 = vmatmul.f32.gmra.mxu0 %v1022
        %v1732 = vpop.f32.mrf.mxu0
        %v1733 = vadd.f32 0.0, %v1732
        %1734 = vmatmul.f32.gmra.mxu0 %v1023
        %v1735 = vpop.f32.mrf.mxu0
        %v1736 = vadd.f32 0.0, %v1735
        %1737 = vmatmul.f32.gmra.mxu0 %v1024
        %v1738 = vpop.f32.mrf.mxu0
        %v1739 = vadd.f32 0.0, %v1738
        %1740 = vmatmul.f32.gmra.mxu0 %v1025
        %v1741 = vpop.f32.mrf.mxu0
        %v1742 = vadd.f32 0.0, %v1741
        %1743 = vmatmul.f32.gmra.mxu0 %v1026
        %v1744 = vpop.f32.mrf.mxu0
        %v1745 = vadd.f32 0.0, %v1744
        %1746 = vmatmul.f32.gmra.mxu0 %v1027
        %v1747 = vpop.f32.mrf.mxu0
        %v1748 = vadd.f32 0.0, %v1747
        %1749 = vmatmul.f32.gmra.mxu0 %v1028
        %v1750 = vpop.f32.mrf.mxu0
        %v1751 = vadd.f32 0.0, %v1750
        %1752 = vmatmul.f32.gmra.mxu0 %v1029
        %v1753 = vpop.f32.mrf.mxu0
        %v1754 = vadd.f32 0.0, %v1753
        %1755 = vmatmul.f32.gmra.mxu0 %v1030
        %v1756 = vpop.f32.mrf.mxu0
        %v1757 = vadd.f32 0.0, %v1756
        %1758 = vmatmul.f32.gmra.mxu0 %v1031
        %v1759 = vpop.f32.mrf.mxu0
        %v1760 = vadd.f32 0.0, %v1759
        %1761 = vmatmul.f32.gmra.mxu0 %v1032
        %v1762 = vpop.f32.mrf.mxu0
        %v1763 = vadd.f32 0.0, %v1762
        %1764 = vmatmul.f32.gmra.mxu0 %v1033
        %v1765 = vpop.f32.mrf.mxu0
        %v1766 = vadd.f32 0.0, %v1765
        %1767 = vmatmul.f32.gmra.mxu0 %v1034
        %v1768 = vpop.f32.mrf.mxu0
        %v1769 = vadd.f32 0.0, %v1768
        %1770 = vmatmul.f32.gmra.mxu0 %v1035
        %v1771 = vpop.f32.mrf.mxu0
        %v1772 = vadd.f32 0.0, %v1771
        %1773 = vmatmul.f32.gmra.mxu0 %v1036
        %v1774 = vpop.f32.mrf.mxu0
        %v1775 = vadd.f32 0.0, %v1774
        %1776 = vdwg.mxu0
        %1777 = vmatpush.msra.mxu0 %v1219
        %1778 = vmatpush.msra.mxu0 %v1217
        %1779 = vmatpush.msra.mxu0 %v1215
        %1780 = vmatpush.msra.mxu0 %v1213
        %1781 = vmatpush.msra.mxu0 %v1211
        %1782 = vmatpush.msra.mxu0 %v1209
        %1783 = vmatpush.msra.mxu0 %v1207
        %1784 = vmatpush.msra.mxu0 %v1205
        %1785 = vmatpush.msra.mxu0 %v1203
        %1786 = vmatpush.msra.mxu0 %v1201
        %1787 = vmatpush.msra.mxu0 %v1199
        %1788 = vmatpush.msra.mxu0 %v1197
        %1789 = vmatpush.msra.mxu0 %v1195
        %1790 = vmatpush.msra.mxu0 %v1193
        %1791 = vmatpush.msra.mxu0 %v1191
        %1792 = vmatpush.msra.mxu0 %v1189
        %1793 = vmatmul.f32.gmra.mxu0 %v1021
        %v1794 = vpop.f32.mrf.mxu0
        %v1795 = vadd.f32 0.0, %v1794
        %1796 = vmatmul.f32.gmra.mxu0 %v1022
        %v1797 = vpop.f32.mrf.mxu0
        %v1798 = vadd.f32 0.0, %v1797
        %1799 = vmatmul.f32.gmra.mxu0 %v1023
        %v1800 = vpop.f32.mrf.mxu0
        %v1801 = vadd.f32 0.0, %v1800
        %1802 = vmatmul.f32.gmra.mxu0 %v1024
        %v1803 = vpop.f32.mrf.mxu0
        %v1804 = vadd.f32 0.0, %v1803
        %1805 = vmatmul.f32.gmra.mxu0 %v1025
        %v1806 = vpop.f32.mrf.mxu0
        %v1807 = vadd.f32 0.0, %v1806
        %1808 = vmatmul.f32.gmra.mxu0 %v1026
        %v1809 = vpop.f32.mrf.mxu0
        %v1810 = vadd.f32 0.0, %v1809
        %1811 = vmatmul.f32.gmra.mxu0 %v1027
        %v1812 = vpop.f32.mrf.mxu0
        %v1813 = vadd.f32 0.0, %v1812
        %1814 = vmatmul.f32.gmra.mxu0 %v1028
        %v1815 = vpop.f32.mrf.mxu0
        %v1816 = vadd.f32 0.0, %v1815
        %1817 = vmatmul.f32.gmra.mxu0 %v1029
        %v1818 = vpop.f32.mrf.mxu0
        %v1819 = vadd.f32 0.0, %v1818
        %1820 = vmatmul.f32.gmra.mxu0 %v1030
        %v1821 = vpop.f32.mrf.mxu0
        %v1822 = vadd.f32 0.0, %v1821
        %1823 = vmatmul.f32.gmra.mxu0 %v1031
        %v1824 = vpop.f32.mrf.mxu0
        %v1825 = vadd.f32 0.0, %v1824
        %1826 = vmatmul.f32.gmra.mxu0 %v1032
        %v1827 = vpop.f32.mrf.mxu0
        %v1828 = vadd.f32 0.0, %v1827
        %1829 = vmatmul.f32.gmra.mxu0 %v1033
        %v1830 = vpop.f32.mrf.mxu0
        %v1831 = vadd.f32 0.0, %v1830
        %1832 = vmatmul.f32.gmra.mxu0 %v1034
        %v1833 = vpop.f32.mrf.mxu0
        %v1834 = vadd.f32 0.0, %v1833
        %1835 = vmatmul.f32.gmra.mxu0 %v1035
        %v1836 = vpop.f32.mrf.mxu0
        %v1837 = vadd.f32 0.0, %v1836
        %1838 = vmatmul.f32.gmra.mxu0 %v1036
        %v1839 = vpop.f32.mrf.mxu0
        %v1840 = vadd.f32 0.0, %v1839
        %1841 = vdwg.mxu0
        %v1842 = vadd.f32 %v1600, %v1730
        %v1843 = vadd.f32 %v1665, %v1795
        %v1844 = vadd.f32 %v1603, %v1733
        %v1845 = vadd.f32 %v1668, %v1798
        %v1846 = vadd.f32 %v1606, %v1736
        %v1847 = vadd.f32 %v1671, %v1801
        %v1848 = vadd.f32 %v1609, %v1739
        %v1849 = vadd.f32 %v1674, %v1804
        %v1850 = vadd.f32 %v1612, %v1742
        %v1851 = vadd.f32 %v1677, %v1807
        %v1852 = vadd.f32 %v1615, %v1745
        %v1853 = vadd.f32 %v1680, %v1810
        %v1854 = vadd.f32 %v1618, %v1748
        %v1855 = vadd.f32 %v1683, %v1813
        %v1856 = vadd.f32 %v1621, %v1751
        %v1857 = vadd.f32 %v1686, %v1816
        %v1858 = vadd.f32 %v1624, %v1754
        %v1859 = vadd.f32 %v1689, %v1819
        %v1860 = vadd.f32 %v1627, %v1757
        %v1861 = vadd.f32 %v1692, %v1822
        %v1862 = vadd.f32 %v1630, %v1760
        %v1863 = vadd.f32 %v1695, %v1825
        %v1864 = vadd.f32 %v1633, %v1763
        %v1865 = vadd.f32 %v1698, %v1828
        %v1866 = vadd.f32 %v1636, %v1766
        %v1867 = vadd.f32 %v1701, %v1831
        %v1868 = vadd.f32 %v1639, %v1769
        %v1869 = vadd.f32 %v1704, %v1834
        %v1870 = vadd.f32 %v1642, %v1772
        %v1871 = vadd.f32 %v1707, %v1837
        %v1872 = vadd.f32 %v1645, %v1775
        %v1873 = vadd.f32 %v1710, %v1840
        %1874 = vmatpush.msra.mxu0 %v1251
        %1875 = vmatpush.msra.mxu0 %v1249
        %1876 = vmatpush.msra.mxu0 %v1247
        %1877 = vmatpush.msra.mxu0 %v1245
        %1878 = vmatpush.msra.mxu0 %v1243
        %1879 = vmatpush.msra.mxu0 %v1241
        %1880 = vmatpush.msra.mxu0 %v1239
        %1881 = vmatpush.msra.mxu0 %v1237
        %1882 = vmatpush.msra.mxu0 %v1235
        %1883 = vmatpush.msra.mxu0 %v1233
        %1884 = vmatpush.msra.mxu0 %v1231
        %1885 = vmatpush.msra.mxu0 %v1229
        %1886 = vmatpush.msra.mxu0 %v1227
        %1887 = vmatpush.msra.mxu0 %v1225
        %1888 = vmatpush.msra.mxu0 %v1223
        %1889 = vmatpush.msra.mxu0 %v1221
        %1890 = vmatmul.f32.gmra.mxu0 %v1038
        %v1891 = vpop.f32.mrf.mxu0
        %v1892 = vadd.f32 0.0, %v1891
        %1893 = vmatmul.f32.gmra.mxu0 %v1039
        %v1894 = vpop.f32.mrf.mxu0
        %v1895 = vadd.f32 0.0, %v1894
        %1896 = vmatmul.f32.gmra.mxu0 %v1040
        %v1897 = vpop.f32.mrf.mxu0
        %v1898 = vadd.f32 0.0, %v1897
        %1899 = vmatmul.f32.gmra.mxu0 %v1041
        %v1900 = vpop.f32.mrf.mxu0
        %v1901 = vadd.f32 0.0, %v1900
        %1902 = vmatmul.f32.gmra.mxu0 %v1042
        %v1903 = vpop.f32.mrf.mxu0
        %v1904 = vadd.f32 0.0, %v1903
        %1905 = vmatmul.f32.gmra.mxu0 %v1043
        %v1906 = vpop.f32.mrf.mxu0
        %v1907 = vadd.f32 0.0, %v1906
        %1908 = vmatmul.f32.gmra.mxu0 %v1044
        %v1909 = vpop.f32.mrf.mxu0
        %v1910 = vadd.f32 0.0, %v1909
        %1911 = vmatmul.f32.gmra.mxu0 %v1045
        %v1912 = vpop.f32.mrf.mxu0
        %v1913 = vadd.f32 0.0, %v1912
        %1914 = vmatmul.f32.gmra.mxu0 %v1046
        %v1915 = vpop.f32.mrf.mxu0
        %v1916 = vadd.f32 0.0, %v1915
        %1917 = vmatmul.f32.gmra.mxu0 %v1047
        %v1918 = vpop.f32.mrf.mxu0
        %v1919 = vadd.f32 0.0, %v1918
        %1920 = vmatmul.f32.gmra.mxu0 %v1048
        %v1921 = vpop.f32.mrf.mxu0
        %v1922 = vadd.f32 0.0, %v1921
        %1923 = vmatmul.f32.gmra.mxu0 %v1049
        %v1924 = vpop.f32.mrf.mxu0
        %v1925 = vadd.f32 0.0, %v1924
        %1926 = vmatmul.f32.gmra.mxu0 %v1050
        %v1927 = vpop.f32.mrf.mxu0
        %v1928 = vadd.f32 0.0, %v1927
        %1929 = vmatmul.f32.gmra.mxu0 %v1051
        %v1930 = vpop.f32.mrf.mxu0
        %v1931 = vadd.f32 0.0, %v1930
        %1932 = vmatmul.f32.gmra.mxu0 %v1052
        %v1933 = vpop.f32.mrf.mxu0
        %v1934 = vadd.f32 0.0, %v1933
        %1935 = vmatmul.f32.gmra.mxu0 %v1053
        %v1936 = vpop.f32.mrf.mxu0
        %v1937 = vadd.f32 0.0, %v1936
        %1938 = vdwg.mxu0
        %1939 = vmatpush.msra.mxu0 %v1252
        %1940 = vmatpush.msra.mxu0 %v1250
        %1941 = vmatpush.msra.mxu0 %v1248
        %1942 = vmatpush.msra.mxu0 %v1246
        %1943 = vmatpush.msra.mxu0 %v1244
        %1944 = vmatpush.msra.mxu0 %v1242
        %1945 = vmatpush.msra.mxu0 %v1240
        %1946 = vmatpush.msra.mxu0 %v1238
        %1947 = vmatpush.msra.mxu0 %v1236
        %1948 = vmatpush.msra.mxu0 %v1234
        %1949 = vmatpush.msra.mxu0 %v1232
        %1950 = vmatpush.msra.mxu0 %v1230
        %1951 = vmatpush.msra.mxu0 %v1228
        %1952 = vmatpush.msra.mxu0 %v1226
        %1953 = vmatpush.msra.mxu0 %v1224
        %1954 = vmatpush.msra.mxu0 %v1222
        %1955 = vmatmul.f32.gmra.mxu0 %v1038
        %v1956 = vpop.f32.mrf.mxu0
        %v1957 = vadd.f32 0.0, %v1956
        %1958 = vmatmul.f32.gmra.mxu0 %v1039
        %v1959 = vpop.f32.mrf.mxu0
        %v1960 = vadd.f32 0.0, %v1959
        %1961 = vmatmul.f32.gmra.mxu0 %v1040
        %v1962 = vpop.f32.mrf.mxu0
        %v1963 = vadd.f32 0.0, %v1962
        %1964 = vmatmul.f32.gmra.mxu0 %v1041
        %v1965 = vpop.f32.mrf.mxu0
        %v1966 = vadd.f32 0.0, %v1965
        %1967 = vmatmul.f32.gmra.mxu0 %v1042
        %v1968 = vpop.f32.mrf.mxu0
        %v1969 = vadd.f32 0.0, %v1968
        %1970 = vmatmul.f32.gmra.mxu0 %v1043
        %v1971 = vpop.f32.mrf.mxu0
        %v1972 = vadd.f32 0.0, %v1971
        %1973 = vmatmul.f32.gmra.mxu0 %v1044
        %v1974 = vpop.f32.mrf.mxu0
        %v1975 = vadd.f32 0.0, %v1974
        %1976 = vmatmul.f32.gmra.mxu0 %v1045
        %v1977 = vpop.f32.mrf.mxu0
        %v1978 = vadd.f32 0.0, %v1977
        %1979 = vmatmul.f32.gmra.mxu0 %v1046
        %v1980 = vpop.f32.mrf.mxu0
        %v1981 = vadd.f32 0.0, %v1980
        %1982 = vmatmul.f32.gmra.mxu0 %v1047
        %v1983 = vpop.f32.mrf.mxu0
        %v1984 = vadd.f32 0.0, %v1983
        %1985 = vmatmul.f32.gmra.mxu0 %v1048
        %v1986 = vpop.f32.mrf.mxu0
        %v1987 = vadd.f32 0.0, %v1986
        %1988 = vmatmul.f32.gmra.mxu0 %v1049
        %v1989 = vpop.f32.mrf.mxu0
        %v1990 = vadd.f32 0.0, %v1989
        %1991 = vmatmul.f32.gmra.mxu0 %v1050
        %v1992 = vpop.f32.mrf.mxu0
        %v1993 = vadd.f32 0.0, %v1992
        %1994 = vmatmul.f32.gmra.mxu0 %v1051
        %v1995 = vpop.f32.mrf.mxu0
        %v1996 = vadd.f32 0.0, %v1995
        %1997 = vmatmul.f32.gmra.mxu0 %v1052
        %v1998 = vpop.f32.mrf.mxu0
        %v1999 = vadd.f32 0.0, %v1998
        %2000 = vmatmul.f32.gmra.mxu0 %v1053
        %v2001 = vpop.f32.mrf.mxu0
        %v2002 = vadd.f32 0.0, %v2001
        %2003 = vdwg.mxu0
        %v2004 = vadd.f32 %v1842, %v1892
        %v2005 = vadd.f32 %v1843, %v1957
        %v2006 = vadd.f32 %v1844, %v1895
        %v2007 = vadd.f32 %v1845, %v1960
        %v2008 = vadd.f32 %v1846, %v1898
        %v2009 = vadd.f32 %v1847, %v1963
        %v2010 = vadd.f32 %v1848, %v1901
        %v2011 = vadd.f32 %v1849, %v1966
        %v2012 = vadd.f32 %v1850, %v1904
        %v2013 = vadd.f32 %v1851, %v1969
        %v2014 = vadd.f32 %v1852, %v1907
        %v2015 = vadd.f32 %v1853, %v1972
        %v2016 = vadd.f32 %v1854, %v1910
        %v2017 = vadd.f32 %v1855, %v1975
        %v2018 = vadd.f32 %v1856, %v1913
        %v2019 = vadd.f32 %v1857, %v1978
        %v2020 = vadd.f32 %v1858, %v1916
        %v2021 = vadd.f32 %v1859, %v1981
        %v2022 = vadd.f32 %v1860, %v1919
        %v2023 = vadd.f32 %v1861, %v1984
        %v2024 = vadd.f32 %v1862, %v1922
        %v2025 = vadd.f32 %v1863, %v1987
        %v2026 = vadd.f32 %v1864, %v1925
        %v2027 = vadd.f32 %v1865, %v1990
        %v2028 = vadd.f32 %v1866, %v1928
        %v2029 = vadd.f32 %v1867, %v1993
        %v2030 = vadd.f32 %v1868, %v1931
        %v2031 = vadd.f32 %v1869, %v1996
        %v2032 = vadd.f32 %v1870, %v1934
        %v2033 = vadd.f32 %v1871, %v1999
        %v2034 = vadd.f32 %v1872, %v1937
        %v2035 = vadd.f32 %v1873, %v2002
        %2036 = vmatpush.msra.mxu0 %v1284
        %2037 = vmatpush.msra.mxu0 %v1282
        %2038 = vmatpush.msra.mxu0 %v1280
        %2039 = vmatpush.msra.mxu0 %v1278
        %2040 = vmatpush.msra.mxu0 %v1276
        %2041 = vmatpush.msra.mxu0 %v1274
        %2042 = vmatpush.msra.mxu0 %v1272
        %2043 = vmatpush.msra.mxu0 %v1270
        %2044 = vmatpush.msra.mxu0 %v1268
        %2045 = vmatpush.msra.mxu0 %v1266
        %2046 = vmatpush.msra.mxu0 %v1264
        %2047 = vmatpush.msra.mxu0 %v1262
        %2048 = vmatpush.msra.mxu0 %v1260
        %2049 = vmatpush.msra.mxu0 %v1258
        %2050 = vmatpush.msra.mxu0 %v1256
        %2051 = vmatpush.msra.mxu0 %v1254
        %2052 = vmatmul.f32.gmra.mxu0 %v1055
        %v2053 = vpop.f32.mrf.mxu0
        %v2054 = vadd.f32 0.0, %v2053
        %2055 = vmatmul.f32.gmra.mxu0 %v1056
        %v2056 = vpop.f32.mrf.mxu0
        %v2057 = vadd.f32 0.0, %v2056
        %2058 = vmatmul.f32.gmra.mxu0 %v1057
        %v2059 = vpop.f32.mrf.mxu0
        %v2060 = vadd.f32 0.0, %v2059
        %2061 = vmatmul.f32.gmra.mxu0 %v1058
        %v2062 = vpop.f32.mrf.mxu0
        %v2063 = vadd.f32 0.0, %v2062
        %2064 = vmatmul.f32.gmra.mxu0 %v1059
        %v2065 = vpop.f32.mrf.mxu0
        %v2066 = vadd.f32 0.0, %v2065
        %2067 = vmatmul.f32.gmra.mxu0 %v1060
        %v2068 = vpop.f32.mrf.mxu0
        %v2069 = vadd.f32 0.0, %v2068
        %2070 = vmatmul.f32.gmra.mxu0 %v1061
        %v2071 = vpop.f32.mrf.mxu0
        %v2072 = vadd.f32 0.0, %v2071
        %2073 = vmatmul.f32.gmra.mxu0 %v1062
        %v2074 = vpop.f32.mrf.mxu0
        %v2075 = vadd.f32 0.0, %v2074
        %2076 = vmatmul.f32.gmra.mxu0 %v1063
        %v2077 = vpop.f32.mrf.mxu0
        %v2078 = vadd.f32 0.0, %v2077
        %2079 = vmatmul.f32.gmra.mxu0 %v1064
        %v2080 = vpop.f32.mrf.mxu0
        %v2081 = vadd.f32 0.0, %v2080
        %2082 = vmatmul.f32.gmra.mxu0 %v1065
        %v2083 = vpop.f32.mrf.mxu0
        %v2084 = vadd.f32 0.0, %v2083
        %2085 = vmatmul.f32.gmra.mxu0 %v1066
        %v2086 = vpop.f32.mrf.mxu0
        %v2087 = vadd.f32 0.0, %v2086
        %2088 = vmatmul.f32.gmra.mxu0 %v1067
        %v2089 = vpop.f32.mrf.mxu0
        %v2090 = vadd.f32 0.0, %v2089
        %2091 = vmatmul.f32.gmra.mxu0 %v1068
        %v2092 = vpop.f32.mrf.mxu0
        %v2093 = vadd.f32 0.0, %v2092
        %2094 = vmatmul.f32.gmra.mxu0 %v1069
        %v2095 = vpop.f32.mrf.mxu0
        %v2096 = vadd.f32 0.0, %v2095
        %2097 = vmatmul.f32.gmra.mxu0 %v1070
        %v2098 = vpop.f32.mrf.mxu0
        %v2099 = vadd.f32 0.0, %v2098
        %2100 = vdwg.mxu0
        %2101 = vmatpush.msra.mxu0 %v1285
        %2102 = vmatpush.msra.mxu0 %v1283
        %2103 = vmatpush.msra.mxu0 %v1281
        %2104 = vmatpush.msra.mxu0 %v1279
        %2105 = vmatpush.msra.mxu0 %v1277
        %2106 = vmatpush.msra.mxu0 %v1275
        %2107 = vmatpush.msra.mxu0 %v1273
        %2108 = vmatpush.msra.mxu0 %v1271
        %2109 = vmatpush.msra.mxu0 %v1269
        %2110 = vmatpush.msra.mxu0 %v1267
        %2111 = vmatpush.msra.mxu0 %v1265
        %2112 = vmatpush.msra.mxu0 %v1263
        %2113 = vmatpush.msra.mxu0 %v1261
        %2114 = vmatpush.msra.mxu0 %v1259
        %2115 = vmatpush.msra.mxu0 %v1257
        %2116 = vmatpush.msra.mxu0 %v1255
        %2117 = vmatmul.f32.gmra.mxu0 %v1055
        %v2118 = vpop.f32.mrf.mxu0
        %v2119 = vadd.f32 0.0, %v2118
        %2120 = vmatmul.f32.gmra.mxu0 %v1056
        %v2121 = vpop.f32.mrf.mxu0
        %v2122 = vadd.f32 0.0, %v2121
        %2123 = vmatmul.f32.gmra.mxu0 %v1057
        %v2124 = vpop.f32.mrf.mxu0
        %v2125 = vadd.f32 0.0, %v2124
        %2126 = vmatmul.f32.gmra.mxu0 %v1058
        %v2127 = vpop.f32.mrf.mxu0
        %v2128 = vadd.f32 0.0, %v2127
        %2129 = vmatmul.f32.gmra.mxu0 %v1059
        %v2130 = vpop.f32.mrf.mxu0
        %v2131 = vadd.f32 0.0, %v2130
        %2132 = vmatmul.f32.gmra.mxu0 %v1060
        %v2133 = vpop.f32.mrf.mxu0
        %v2134 = vadd.f32 0.0, %v2133
        %2135 = vmatmul.f32.gmra.mxu0 %v1061
        %v2136 = vpop.f32.mrf.mxu0
        %v2137 = vadd.f32 0.0, %v2136
        %2138 = vmatmul.f32.gmra.mxu0 %v1062
        %v2139 = vpop.f32.mrf.mxu0
        %v2140 = vadd.f32 0.0, %v2139
        %2141 = vmatmul.f32.gmra.mxu0 %v1063
        %v2142 = vpop.f32.mrf.mxu0
        %v2143 = vadd.f32 0.0, %v2142
        %2144 = vmatmul.f32.gmra.mxu0 %v1064
        %v2145 = vpop.f32.mrf.mxu0
        %v2146 = vadd.f32 0.0, %v2145
        %2147 = vmatmul.f32.gmra.mxu0 %v1065
        %v2148 = vpop.f32.mrf.mxu0
        %v2149 = vadd.f32 0.0, %v2148
        %2150 = vmatmul.f32.gmra.mxu0 %v1066
        %v2151 = vpop.f32.mrf.mxu0
        %v2152 = vadd.f32 0.0, %v2151
        %2153 = vmatmul.f32.gmra.mxu0 %v1067
        %v2154 = vpop.f32.mrf.mxu0
        %v2155 = vadd.f32 0.0, %v2154
        %2156 = vmatmul.f32.gmra.mxu0 %v1068
        %v2157 = vpop.f32.mrf.mxu0
        %v2158 = vadd.f32 0.0, %v2157
        %2159 = vmatmul.f32.gmra.mxu0 %v1069
        %v2160 = vpop.f32.mrf.mxu0
        %v2161 = vadd.f32 0.0, %v2160
        %2162 = vmatmul.f32.gmra.mxu0 %v1070
        %v2163 = vpop.f32.mrf.mxu0
        %v2164 = vadd.f32 0.0, %v2163
        %2165 = vdwg.mxu0
        %v2166 = vadd.f32 %v2004, %v2054
        %v2167 = vadd.f32 %v2005, %v2119
        %v2168 = vadd.f32 %v2006, %v2057
        %v2169 = vadd.f32 %v2007, %v2122
        %v2170 = vadd.f32 %v2008, %v2060
        %v2171 = vadd.f32 %v2009, %v2125
        %v2172 = vadd.f32 %v2010, %v2063
        %v2173 = vadd.f32 %v2011, %v2128
        %v2174 = vadd.f32 %v2012, %v2066
        %v2175 = vadd.f32 %v2013, %v2131
        %v2176 = vadd.f32 %v2014, %v2069
        %v2177 = vadd.f32 %v2015, %v2134
        %v2178 = vadd.f32 %v2016, %v2072
        %v2179 = vadd.f32 %v2017, %v2137
        %v2180 = vadd.f32 %v2018, %v2075
        %v2181 = vadd.f32 %v2019, %v2140
        %v2182 = vadd.f32 %v2020, %v2078
        %v2183 = vadd.f32 %v2021, %v2143
        %v2184 = vadd.f32 %v2022, %v2081
        %v2185 = vadd.f32 %v2023, %v2146
        %v2186 = vadd.f32 %v2024, %v2084
        %v2187 = vadd.f32 %v2025, %v2149
        %v2188 = vadd.f32 %v2026, %v2087
        %v2189 = vadd.f32 %v2027, %v2152
        %v2190 = vadd.f32 %v2028, %v2090
        %v2191 = vadd.f32 %v2029, %v2155
        %v2192 = vadd.f32 %v2030, %v2093
        %v2193 = vadd.f32 %v2031, %v2158
        %v2194 = vadd.f32 %v2032, %v2096
        %v2195 = vadd.f32 %v2033, %v2161
        %v2196 = vadd.f32 %v2034, %v2099
        %v2197 = vadd.f32 %v2035, %v2164
        %v2199 = vperm.slane %v1450, 0
        %v2200 = vperm.slane %v1450, 1
        %v2203 = vadd.f32 %v2166, %v2199
        %v2204 = vadd.f32 %v2167, %v2200
        %v2205 = vadd.f32 %v2168, %v2199
        %v2206 = vadd.f32 %v2169, %v2200
        %v2207 = vadd.f32 %v2170, %v2199
        %v2208 = vadd.f32 %v2171, %v2200
        %v2209 = vadd.f32 %v2172, %v2199
        %v2210 = vadd.f32 %v2173, %v2200
        %v2211 = vadd.f32 %v2174, %v2199
        %v2212 = vadd.f32 %v2175, %v2200
        %v2213 = vadd.f32 %v2176, %v2199
        %v2214 = vadd.f32 %v2177, %v2200
        %v2215 = vadd.f32 %v2178, %v2199
        %v2216 = vadd.f32 %v2179, %v2200
        %v2217 = vadd.f32 %v2180, %v2199
        %v2218 = vadd.f32 %v2181, %v2200
        %v2219 = vadd.f32 %v2182, %v2199
        %v2220 = vadd.f32 %v2183, %v2200
        %v2221 = vadd.f32 %v2184, %v2199
        %v2222 = vadd.f32 %v2185, %v2200
        %v2223 = vadd.f32 %v2186, %v2199
        %v2224 = vadd.f32 %v2187, %v2200
        %v2225 = vadd.f32 %v2188, %v2199
        %v2226 = vadd.f32 %v2189, %v2200
        %v2227 = vadd.f32 %v2190, %v2199
        %v2228 = vadd.f32 %v2191, %v2200
        %v2229 = vadd.f32 %v2192, %v2199
        %v2230 = vadd.f32 %v2193, %v2200
        %v2231 = vadd.f32 %v2194, %v2199
        %v2232 = vadd.f32 %v2195, %v2200
        %v2233 = vadd.f32 %v2196, %v2199
        %v2234 = vadd.f32 %v2197, %v2200
        %v2235 = vmax.f32 %v2203, 0.0
        %v2236 = vmax.f32 %v2204, 0.0
        %v2237 = vmax.f32 %v2205, 0.0
        %v2238 = vmax.f32 %v2206, 0.0
        %v2239 = vmax.f32 %v2207, 0.0
        %v2240 = vmax.f32 %v2208, 0.0
        %v2241 = vmax.f32 %v2209, 0.0
        %v2242 = vmax.f32 %v2210, 0.0
        %v2243 = vmax.f32 %v2211, 0.0
        %v2244 = vmax.f32 %v2212, 0.0
        %v2245 = vmax.f32 %v2213, 0.0
        %v2246 = vmax.f32 %v2214, 0.0
        %v2247 = vmax.f32 %v2215, 0.0
        %v2248 = vmax.f32 %v2216, 0.0
        %v2249 = vmax.f32 %v2217, 0.0
        %v2250 = vmax.f32 %v2218, 0.0
        %v2251 = vmax.f32 %v2219, 0.0
        %v2252 = vmax.f32 %v2220, 0.0
        %v2253 = vmax.f32 %v2221, 0.0
        %v2254 = vmax.f32 %v2222, 0.0
        %v2255 = vmax.f32 %v2223, 0.0
        %v2256 = vmax.f32 %v2224, 0.0
        %v2257 = vmax.f32 %v2225, 0.0
        %v2258 = vmax.f32 %v2226, 0.0
        %v2259 = vmax.f32 %v2227, 0.0
        %v2260 = vmax.f32 %v2228, 0.0
        %v2261 = vmax.f32 %v2229, 0.0
        %v2262 = vmax.f32 %v2230, 0.0
        %v2263 = vmax.f32 %v2231, 0.0
        %v2264 = vmax.f32 %v2232, 0.0
        %v2265 = vmax.f32 %v2233, 0.0
        %v2266 = vmax.f32 %v2234, 0.0
        %v2267 = vmax.f32 %v2235, %v2236
        %v2268 = vmax.f32 %v2237, %v2238
        %v2269 = vmax.f32 %v2239, %v2240
        %v2270 = vmax.f32 %v2241, %v2242
        %v2271 = vmax.f32 %v2243, %v2244
        %v2272 = vmax.f32 %v2245, %v2246
        %v2273 = vmax.f32 %v2247, %v2248
        %v2274 = vmax.f32 %v2249, %v2250
        %v2275 = vmax.f32 %v2251, %v2252
        %v2276 = vmax.f32 %v2253, %v2254
        %v2277 = vmax.f32 %v2255, %v2256
        %v2278 = vmax.f32 %v2257, %v2258
        %v2279 = vmax.f32 %v2259, %v2260
        %v2280 = vmax.f32 %v2261, %v2262
        %v2281 = vmax.f32 %v2263, %v2264
        %v2282 = vmax.f32 %v2265, %v2266
        %2283 = vmatpush.msra.mxu0 %v1185
        %2284 = vmatpush.msra.mxu0 %v1183
        %2285 = vmatpush.msra.mxu0 %v1181
        %2286 = vmatpush.msra.mxu0 %v1179
        %2287 = vmatpush.msra.mxu0 %v1177
        %2288 = vmatpush.msra.mxu0 %v1175
        %2289 = vmatpush.msra.mxu0 %v1173
        %2290 = vmatpush.msra.mxu0 %v1171
        %2291 = vmatpush.msra.mxu0 %v1169
        %2292 = vmatpush.msra.mxu0 %v1167
        %2293 = vmatpush.msra.mxu0 %v1165
        %2294 = vmatpush.msra.mxu0 %v1163
        %2295 = vmatpush.msra.mxu0 %v1161
        %2296 = vmatpush.msra.mxu0 %v1159
        %2297 = vmatpush.msra.mxu0 %v1157
        %2298 = vmatpush.msra.mxu0 %v1155
        %2299 = vmatmul.f32.gmra.mxu0 %v1021
        %v2300 = vpop.f32.mrf.mxu0
        %v2301 = vadd.f32 0.0, %v2300
        %2302 = vmatmul.f32.gmra.mxu0 %v1022
        %v2303 = vpop.f32.mrf.mxu0
        %v2304 = vadd.f32 0.0, %v2303
        %2305 = vmatmul.f32.gmra.mxu0 %v1023
        %v2306 = vpop.f32.mrf.mxu0
        %v2307 = vadd.f32 0.0, %v2306
        %2308 = vmatmul.f32.gmra.mxu0 %v1024
        %v2309 = vpop.f32.mrf.mxu0
        %v2310 = vadd.f32 0.0, %v2309
        %2311 = vmatmul.f32.gmra.mxu0 %v1025
        %v2312 = vpop.f32.mrf.mxu0
        %v2313 = vadd.f32 0.0, %v2312
        %2314 = vmatmul.f32.gmra.mxu0 %v1026
        %v2315 = vpop.f32.mrf.mxu0
        %v2316 = vadd.f32 0.0, %v2315
        %2317 = vmatmul.f32.gmra.mxu0 %v1027
        %v2318 = vpop.f32.mrf.mxu0
        %v2319 = vadd.f32 0.0, %v2318
        %2320 = vmatmul.f32.gmra.mxu0 %v1028
        %v2321 = vpop.f32.mrf.mxu0
        %v2322 = vadd.f32 0.0, %v2321
        %2323 = vmatmul.f32.gmra.mxu0 %v1029
        %v2324 = vpop.f32.mrf.mxu0
        %v2325 = vadd.f32 0.0, %v2324
        %2326 = vmatmul.f32.gmra.mxu0 %v1030
        %v2327 = vpop.f32.mrf.mxu0
        %v2328 = vadd.f32 0.0, %v2327
        %2329 = vmatmul.f32.gmra.mxu0 %v1031
        %v2330 = vpop.f32.mrf.mxu0
        %v2331 = vadd.f32 0.0, %v2330
        %2332 = vmatmul.f32.gmra.mxu0 %v1032
        %v2333 = vpop.f32.mrf.mxu0
        %v2334 = vadd.f32 0.0, %v2333
        %2335 = vmatmul.f32.gmra.mxu0 %v1033
        %v2336 = vpop.f32.mrf.mxu0
        %v2337 = vadd.f32 0.0, %v2336
        %2338 = vmatmul.f32.gmra.mxu0 %v1034
        %v2339 = vpop.f32.mrf.mxu0
        %v2340 = vadd.f32 0.0, %v2339
        %2341 = vmatmul.f32.gmra.mxu0 %v1035
        %v2342 = vpop.f32.mrf.mxu0
        %v2343 = vadd.f32 0.0, %v2342
        %2344 = vmatmul.f32.gmra.mxu0 %v1036
        %v2345 = vpop.f32.mrf.mxu0
        %v2346 = vadd.f32 0.0, %v2345
        %2347 = vdwg.mxu0
        %2348 = vmatpush.msra.mxu0 %v1186
        %2349 = vmatpush.msra.mxu0 %v1184
        %2350 = vmatpush.msra.mxu0 %v1182
        %2351 = vmatpush.msra.mxu0 %v1180
        %2352 = vmatpush.msra.mxu0 %v1178
        %2353 = vmatpush.msra.mxu0 %v1176
        %2354 = vmatpush.msra.mxu0 %v1174
        %2355 = vmatpush.msra.mxu0 %v1172
        %2356 = vmatpush.msra.mxu0 %v1170
        %2357 = vmatpush.msra.mxu0 %v1168
        %2358 = vmatpush.msra.mxu0 %v1166
        %2359 = vmatpush.msra.mxu0 %v1164
        %2360 = vmatpush.msra.mxu0 %v1162
        %2361 = vmatpush.msra.mxu0 %v1160
        %2362 = vmatpush.msra.mxu0 %v1158
        %2363 = vmatpush.msra.mxu0 %v1156
        %2364 = vmatmul.f32.gmra.mxu0 %v1021
        %v2365 = vpop.f32.mrf.mxu0
        %v2366 = vadd.f32 0.0, %v2365
        %2367 = vmatmul.f32.gmra.mxu0 %v1022
        %v2368 = vpop.f32.mrf.mxu0
        %v2369 = vadd.f32 0.0, %v2368
        %2370 = vmatmul.f32.gmra.mxu0 %v1023
        %v2371 = vpop.f32.mrf.mxu0
        %v2372 = vadd.f32 0.0, %v2371
        %2373 = vmatmul.f32.gmra.mxu0 %v1024
        %v2374 = vpop.f32.mrf.mxu0
        %v2375 = vadd.f32 0.0, %v2374
        %2376 = vmatmul.f32.gmra.mxu0 %v1025
        %v2377 = vpop.f32.mrf.mxu0
        %v2378 = vadd.f32 0.0, %v2377
        %2379 = vmatmul.f32.gmra.mxu0 %v1026
        %v2380 = vpop.f32.mrf.mxu0
        %v2381 = vadd.f32 0.0, %v2380
        %2382 = vmatmul.f32.gmra.mxu0 %v1027
        %v2383 = vpop.f32.mrf.mxu0
        %v2384 = vadd.f32 0.0, %v2383
        %2385 = vmatmul.f32.gmra.mxu0 %v1028
        %v2386 = vpop.f32.mrf.mxu0
        %v2387 = vadd.f32 0.0, %v2386
        %2388 = vmatmul.f32.gmra.mxu0 %v1029
        %v2389 = vpop.f32.mrf.mxu0
        %v2390 = vadd.f32 0.0, %v2389
        %2391 = vmatmul.f32.gmra.mxu0 %v1030
        %v2392 = vpop.f32.mrf.mxu0
        %v2393 = vadd.f32 0.0, %v2392
        %2394 = vmatmul.f32.gmra.mxu0 %v1031
        %v2395 = vpop.f32.mrf.mxu0
        %v2396 = vadd.f32 0.0, %v2395
        %2397 = vmatmul.f32.gmra.mxu0 %v1032
        %v2398 = vpop.f32.mrf.mxu0
        %v2399 = vadd.f32 0.0, %v2398
        %2400 = vmatmul.f32.gmra.mxu0 %v1033
        %v2401 = vpop.f32.mrf.mxu0
        %v2402 = vadd.f32 0.0, %v2401
        %2403 = vmatmul.f32.gmra.mxu0 %v1034
        %v2404 = vpop.f32.mrf.mxu0
        %v2405 = vadd.f32 0.0, %v2404
        %2406 = vmatmul.f32.gmra.mxu0 %v1035
        %v2407 = vpop.f32.mrf.mxu0
        %v2408 = vadd.f32 0.0, %v2407
        %2409 = vmatmul.f32.gmra.mxu0 %v1036
        %v2410 = vpop.f32.mrf.mxu0
        %v2411 = vadd.f32 0.0, %v2410
        %2412 = vdwg.mxu0
        %2413 = vmatpush.msra.mxu0 %v1152
        %2414 = vmatpush.msra.mxu0 %v1150
        %2415 = vmatpush.msra.mxu0 %v1148
        %2416 = vmatpush.msra.mxu0 %v1146
        %2417 = vmatpush.msra.mxu0 %v1144
        %2418 = vmatpush.msra.mxu0 %v1142
        %2419 = vmatpush.msra.mxu0 %v1140
        %2420 = vmatpush.msra.mxu0 %v1138
        %2421 = vmatpush.msra.mxu0 %v1136
        %2422 = vmatpush.msra.mxu0 %v1134
        %2423 = vmatpush.msra.mxu0 %v1132
        %2424 = vmatpush.msra.mxu0 %v1130
        %2425 = vmatpush.msra.mxu0 %v1128
        %2426 = vmatpush.msra.mxu0 %v1126
        %2427 = vmatpush.msra.mxu0 %v1124
        %2428 = vmatpush.msra.mxu0 %v1122
        %2429 = vmatmul.f32.gmra.mxu0 %v1004
        %v2430 = vpop.f32.mrf.mxu0
        %v2431 = vadd.f32 %v2301, %v2430
        %2432 = vmatmul.f32.gmra.mxu0 %v1005
        %v2433 = vpop.f32.mrf.mxu0
        %v2434 = vadd.f32 %v2304, %v2433
        %2435 = vmatmul.f32.gmra.mxu0 %v1006
        %v2436 = vpop.f32.mrf.mxu0
        %v2437 = vadd.f32 %v2307, %v2436
        %2438 = vmatmul.f32.gmra.mxu0 %v1007
        %v2439 = vpop.f32.mrf.mxu0
        %v2440 = vadd.f32 %v2310, %v2439
        %2441 = vmatmul.f32.gmra.mxu0 %v1008
        %v2442 = vpop.f32.mrf.mxu0
        %v2443 = vadd.f32 %v2313, %v2442
        %2444 = vmatmul.f32.gmra.mxu0 %v1009
        %v2445 = vpop.f32.mrf.mxu0
        %v2446 = vadd.f32 %v2316, %v2445
        %2447 = vmatmul.f32.gmra.mxu0 %v1010
        %v2448 = vpop.f32.mrf.mxu0
        %v2449 = vadd.f32 %v2319, %v2448
        %2450 = vmatmul.f32.gmra.mxu0 %v1011
        %v2451 = vpop.f32.mrf.mxu0
        %v2452 = vadd.f32 %v2322, %v2451
        %2453 = vmatmul.f32.gmra.mxu0 %v1012
        %v2454 = vpop.f32.mrf.mxu0
        %v2455 = vadd.f32 %v2325, %v2454
        %2456 = vmatmul.f32.gmra.mxu0 %v1013
        %v2457 = vpop.f32.mrf.mxu0
        %v2458 = vadd.f32 %v2328, %v2457
        %2459 = vmatmul.f32.gmra.mxu0 %v1014
        %v2460 = vpop.f32.mrf.mxu0
        %v2461 = vadd.f32 %v2331, %v2460
        %2462 = vmatmul.f32.gmra.mxu0 %v1015
        %v2463 = vpop.f32.mrf.mxu0
        %v2464 = vadd.f32 %v2334, %v2463
        %2465 = vmatmul.f32.gmra.mxu0 %v1016
        %v2466 = vpop.f32.mrf.mxu0
        %v2467 = vadd.f32 %v2337, %v2466
        %2468 = vmatmul.f32.gmra.mxu0 %v1017
        %v2469 = vpop.f32.mrf.mxu0
        %v2470 = vadd.f32 %v2340, %v2469
        %2471 = vmatmul.f32.gmra.mxu0 %v1018
        %v2472 = vpop.f32.mrf.mxu0
        %v2473 = vadd.f32 %v2343, %v2472
        %2474 = vmatmul.f32.gmra.mxu0 %v1019
        %v2475 = vpop.f32.mrf.mxu0
        %v2476 = vadd.f32 %v2346, %v2475
        %2477 = vdwg.mxu0
        %2478 = vmatpush.msra.mxu0 %v1153
        %2479 = vmatpush.msra.mxu0 %v1151
        %2480 = vmatpush.msra.mxu0 %v1149
        %2481 = vmatpush.msra.mxu0 %v1147
        %2482 = vmatpush.msra.mxu0 %v1145
        %2483 = vmatpush.msra.mxu0 %v1143
        %2484 = vmatpush.msra.mxu0 %v1141
        %2485 = vmatpush.msra.mxu0 %v1139
        %2486 = vmatpush.msra.mxu0 %v1137
        %2487 = vmatpush.msra.mxu0 %v1135
        %2488 = vmatpush.msra.mxu0 %v1133
        %2489 = vmatpush.msra.mxu0 %v1131
        %2490 = vmatpush.msra.mxu0 %v1129
        %2491 = vmatpush.msra.mxu0 %v1127
        %2492 = vmatpush.msra.mxu0 %v1125
        %2493 = vmatpush.msra.mxu0 %v1123
        %2494 = vmatmul.f32.gmra.mxu0 %v1004
        %v2495 = vpop.f32.mrf.mxu0
        %v2496 = vadd.f32 %v2366, %v2495
        %2497 = vmatmul.f32.gmra.mxu0 %v1005
        %v2498 = vpop.f32.mrf.mxu0
        %v2499 = vadd.f32 %v2369, %v2498
        %2500 = vmatmul.f32.gmra.mxu0 %v1006
        %v2501 = vpop.f32.mrf.mxu0
        %v2502 = vadd.f32 %v2372, %v2501
        %2503 = vmatmul.f32.gmra.mxu0 %v1007
        %v2504 = vpop.f32.mrf.mxu0
        %v2505 = vadd.f32 %v2375, %v2504
        %2506 = vmatmul.f32.gmra.mxu0 %v1008
        %v2507 = vpop.f32.mrf.mxu0
        %v2508 = vadd.f32 %v2378, %v2507
        %2509 = vmatmul.f32.gmra.mxu0 %v1009
        %v2510 = vpop.f32.mrf.mxu0
        %v2511 = vadd.f32 %v2381, %v2510
        %2512 = vmatmul.f32.gmra.mxu0 %v1010
        %v2513 = vpop.f32.mrf.mxu0
        %v2514 = vadd.f32 %v2384, %v2513
        %2515 = vmatmul.f32.gmra.mxu0 %v1011
        %v2516 = vpop.f32.mrf.mxu0
        %v2517 = vadd.f32 %v2387, %v2516
        %2518 = vmatmul.f32.gmra.mxu0 %v1012
        %v2519 = vpop.f32.mrf.mxu0
        %v2520 = vadd.f32 %v2390, %v2519
        %2521 = vmatmul.f32.gmra.mxu0 %v1013
        %v2522 = vpop.f32.mrf.mxu0
        %v2523 = vadd.f32 %v2393, %v2522
        %2524 = vmatmul.f32.gmra.mxu0 %v1014
        %v2525 = vpop.f32.mrf.mxu0
        %v2526 = vadd.f32 %v2396, %v2525
        %2527 = vmatmul.f32.gmra.mxu0 %v1015
        %v2528 = vpop.f32.mrf.mxu0
        %v2529 = vadd.f32 %v2399, %v2528
        %2530 = vmatmul.f32.gmra.mxu0 %v1016
        %v2531 = vpop.f32.mrf.mxu0
        %v2532 = vadd.f32 %v2402, %v2531
        %2533 = vmatmul.f32.gmra.mxu0 %v1017
        %v2534 = vpop.f32.mrf.mxu0
        %v2535 = vadd.f32 %v2405, %v2534
        %2536 = vmatmul.f32.gmra.mxu0 %v1018
        %v2537 = vpop.f32.mrf.mxu0
        %v2538 = vadd.f32 %v2408, %v2537
        %2539 = vmatmul.f32.gmra.mxu0 %v1019
        %v2540 = vpop.f32.mrf.mxu0
        %v2541 = vadd.f32 %v2411, %v2540
        %2542 = vdwg.mxu0
        %2543 = vmatpush.msra.mxu0 %v1218
        %2544 = vmatpush.msra.mxu0 %v1216
        %2545 = vmatpush.msra.mxu0 %v1214
        %2546 = vmatpush.msra.mxu0 %v1212
        %2547 = vmatpush.msra.mxu0 %v1210
        %2548 = vmatpush.msra.mxu0 %v1208
        %2549 = vmatpush.msra.mxu0 %v1206
        %2550 = vmatpush.msra.mxu0 %v1204
        %2551 = vmatpush.msra.mxu0 %v1202
        %2552 = vmatpush.msra.mxu0 %v1200
        %2553 = vmatpush.msra.mxu0 %v1198
        %2554 = vmatpush.msra.mxu0 %v1196
        %2555 = vmatpush.msra.mxu0 %v1194
        %2556 = vmatpush.msra.mxu0 %v1192
        %2557 = vmatpush.msra.mxu0 %v1190
        %2558 = vmatpush.msra.mxu0 %v1188
        %2559 = vmatmul.f32.gmra.mxu0 %v1038
        %v2560 = vpop.f32.mrf.mxu0
        %v2561 = vadd.f32 0.0, %v2560
        %2562 = vmatmul.f32.gmra.mxu0 %v1039
        %v2563 = vpop.f32.mrf.mxu0
        %v2564 = vadd.f32 0.0, %v2563
        %2565 = vmatmul.f32.gmra.mxu0 %v1040
        %v2566 = vpop.f32.mrf.mxu0
        %v2567 = vadd.f32 0.0, %v2566
        %2568 = vmatmul.f32.gmra.mxu0 %v1041
        %v2569 = vpop.f32.mrf.mxu0
        %v2570 = vadd.f32 0.0, %v2569
        %2571 = vmatmul.f32.gmra.mxu0 %v1042
        %v2572 = vpop.f32.mrf.mxu0
        %v2573 = vadd.f32 0.0, %v2572
        %2574 = vmatmul.f32.gmra.mxu0 %v1043
        %v2575 = vpop.f32.mrf.mxu0
        %v2576 = vadd.f32 0.0, %v2575
        %2577 = vmatmul.f32.gmra.mxu0 %v1044
        %v2578 = vpop.f32.mrf.mxu0
        %v2579 = vadd.f32 0.0, %v2578
        %2580 = vmatmul.f32.gmra.mxu0 %v1045
        %v2581 = vpop.f32.mrf.mxu0
        %v2582 = vadd.f32 0.0, %v2581
        %2583 = vmatmul.f32.gmra.mxu0 %v1046
        %v2584 = vpop.f32.mrf.mxu0
        %v2585 = vadd.f32 0.0, %v2584
        %2586 = vmatmul.f32.gmra.mxu0 %v1047
        %v2587 = vpop.f32.mrf.mxu0
        %v2588 = vadd.f32 0.0, %v2587
        %2589 = vmatmul.f32.gmra.mxu0 %v1048
        %v2590 = vpop.f32.mrf.mxu0
        %v2591 = vadd.f32 0.0, %v2590
        %2592 = vmatmul.f32.gmra.mxu0 %v1049
        %v2593 = vpop.f32.mrf.mxu0
        %v2594 = vadd.f32 0.0, %v2593
        %2595 = vmatmul.f32.gmra.mxu0 %v1050
        %v2596 = vpop.f32.mrf.mxu0
        %v2597 = vadd.f32 0.0, %v2596
        %2598 = vmatmul.f32.gmra.mxu0 %v1051
        %v2599 = vpop.f32.mrf.mxu0
        %v2600 = vadd.f32 0.0, %v2599
        %2601 = vmatmul.f32.gmra.mxu0 %v1052
        %v2602 = vpop.f32.mrf.mxu0
        %v2603 = vadd.f32 0.0, %v2602
        %2604 = vmatmul.f32.gmra.mxu0 %v1053
        %v2605 = vpop.f32.mrf.mxu0
        %v2606 = vadd.f32 0.0, %v2605
        %2607 = vdwg.mxu0
        %2608 = vmatpush.msra.mxu0 %v1219
        %2609 = vmatpush.msra.mxu0 %v1217
        %2610 = vmatpush.msra.mxu0 %v1215
        %2611 = vmatpush.msra.mxu0 %v1213
        %2612 = vmatpush.msra.mxu0 %v1211
        %2613 = vmatpush.msra.mxu0 %v1209
        %2614 = vmatpush.msra.mxu0 %v1207
        %2615 = vmatpush.msra.mxu0 %v1205
        %2616 = vmatpush.msra.mxu0 %v1203
        %2617 = vmatpush.msra.mxu0 %v1201
        %2618 = vmatpush.msra.mxu0 %v1199
        %2619 = vmatpush.msra.mxu0 %v1197
        %2620 = vmatpush.msra.mxu0 %v1195
        %2621 = vmatpush.msra.mxu0 %v1193
        %2622 = vmatpush.msra.mxu0 %v1191
        %2623 = vmatpush.msra.mxu0 %v1189
        %2624 = vmatmul.f32.gmra.mxu0 %v1038
        %v2625 = vpop.f32.mrf.mxu0
        %v2626 = vadd.f32 0.0, %v2625
        %2627 = vmatmul.f32.gmra.mxu0 %v1039
        %v2628 = vpop.f32.mrf.mxu0
        %v2629 = vadd.f32 0.0, %v2628
        %2630 = vmatmul.f32.gmra.mxu0 %v1040
        %v2631 = vpop.f32.mrf.mxu0
        %v2632 = vadd.f32 0.0, %v2631
        %2633 = vmatmul.f32.gmra.mxu0 %v1041
        %v2634 = vpop.f32.mrf.mxu0
        %v2635 = vadd.f32 0.0, %v2634
        %2636 = vmatmul.f32.gmra.mxu0 %v1042
        %v2637 = vpop.f32.mrf.mxu0
        %v2638 = vadd.f32 0.0, %v2637
        %2639 = vmatmul.f32.gmra.mxu0 %v1043
        %v2640 = vpop.f32.mrf.mxu0
        %v2641 = vadd.f32 0.0, %v2640
        %2642 = vmatmul.f32.gmra.mxu0 %v1044
        %v2643 = vpop.f32.mrf.mxu0
        %v2644 = vadd.f32 0.0, %v2643
        %2645 = vmatmul.f32.gmra.mxu0 %v1045
        %v2646 = vpop.f32.mrf.mxu0
        %v2647 = vadd.f32 0.0, %v2646
        %2648 = vmatmul.f32.gmra.mxu0 %v1046
        %v2649 = vpop.f32.mrf.mxu0
        %v2650 = vadd.f32 0.0, %v2649
        %2651 = vmatmul.f32.gmra.mxu0 %v1047
        %v2652 = vpop.f32.mrf.mxu0
        %v2653 = vadd.f32 0.0, %v2652
        %2654 = vmatmul.f32.gmra.mxu0 %v1048
        %v2655 = vpop.f32.mrf.mxu0
        %v2656 = vadd.f32 0.0, %v2655
        %2657 = vmatmul.f32.gmra.mxu0 %v1049
        %v2658 = vpop.f32.mrf.mxu0
        %v2659 = vadd.f32 0.0, %v2658
        %2660 = vmatmul.f32.gmra.mxu0 %v1050
        %v2661 = vpop.f32.mrf.mxu0
        %v2662 = vadd.f32 0.0, %v2661
        %2663 = vmatmul.f32.gmra.mxu0 %v1051
        %v2664 = vpop.f32.mrf.mxu0
        %v2665 = vadd.f32 0.0, %v2664
        %2666 = vmatmul.f32.gmra.mxu0 %v1052
        %v2667 = vpop.f32.mrf.mxu0
        %v2668 = vadd.f32 0.0, %v2667
        %2669 = vmatmul.f32.gmra.mxu0 %v1053
        %v2670 = vpop.f32.mrf.mxu0
        %v2671 = vadd.f32 0.0, %v2670
        %2672 = vdwg.mxu0
        %v2673 = vadd.f32 %v2431, %v2561
        %v2674 = vadd.f32 %v2496, %v2626
        %v2675 = vadd.f32 %v2434, %v2564
        %v2676 = vadd.f32 %v2499, %v2629
        %v2677 = vadd.f32 %v2437, %v2567
        %v2678 = vadd.f32 %v2502, %v2632
        %v2679 = vadd.f32 %v2440, %v2570
        %v2680 = vadd.f32 %v2505, %v2635
        %v2681 = vadd.f32 %v2443, %v2573
        %v2682 = vadd.f32 %v2508, %v2638
        %v2683 = vadd.f32 %v2446, %v2576
        %v2684 = vadd.f32 %v2511, %v2641
        %v2685 = vadd.f32 %v2449, %v2579
        %v2686 = vadd.f32 %v2514, %v2644
        %v2687 = vadd.f32 %v2452, %v2582
        %v2688 = vadd.f32 %v2517, %v2647
        %v2689 = vadd.f32 %v2455, %v2585
        %v2690 = vadd.f32 %v2520, %v2650
        %v2691 = vadd.f32 %v2458, %v2588
        %v2692 = vadd.f32 %v2523, %v2653
        %v2693 = vadd.f32 %v2461, %v2591
        %v2694 = vadd.f32 %v2526, %v2656
        %v2695 = vadd.f32 %v2464, %v2594
        %v2696 = vadd.f32 %v2529, %v2659
        %v2697 = vadd.f32 %v2467, %v2597
        %v2698 = vadd.f32 %v2532, %v2662
        %v2699 = vadd.f32 %v2470, %v2600
        %v2700 = vadd.f32 %v2535, %v2665
        %v2701 = vadd.f32 %v2473, %v2603
        %v2702 = vadd.f32 %v2538, %v2668
        %v2703 = vadd.f32 %v2476, %v2606
        %v2704 = vadd.f32 %v2541, %v2671
        %2705 = vmatpush.msra.mxu0 %v1251
        %2706 = vmatpush.msra.mxu0 %v1249
        %2707 = vmatpush.msra.mxu0 %v1247
        %2708 = vmatpush.msra.mxu0 %v1245
        %2709 = vmatpush.msra.mxu0 %v1243
        %2710 = vmatpush.msra.mxu0 %v1241
        %2711 = vmatpush.msra.mxu0 %v1239
        %2712 = vmatpush.msra.mxu0 %v1237
        %2713 = vmatpush.msra.mxu0 %v1235
        %2714 = vmatpush.msra.mxu0 %v1233
        %2715 = vmatpush.msra.mxu0 %v1231
        %2716 = vmatpush.msra.mxu0 %v1229
        %2717 = vmatpush.msra.mxu0 %v1227
        %2718 = vmatpush.msra.mxu0 %v1225
        %2719 = vmatpush.msra.mxu0 %v1223
        %2720 = vmatpush.msra.mxu0 %v1221
        %2721 = vmatmul.f32.gmra.mxu0 %v1055
        %v2722 = vpop.f32.mrf.mxu0
        %v2723 = vadd.f32 0.0, %v2722
        %2724 = vmatmul.f32.gmra.mxu0 %v1056
        %v2725 = vpop.f32.mrf.mxu0
        %v2726 = vadd.f32 0.0, %v2725
        %2727 = vmatmul.f32.gmra.mxu0 %v1057
        %v2728 = vpop.f32.mrf.mxu0
        %v2729 = vadd.f32 0.0, %v2728
        %2730 = vmatmul.f32.gmra.mxu0 %v1058
        %v2731 = vpop.f32.mrf.mxu0
        %v2732 = vadd.f32 0.0, %v2731
        %2733 = vmatmul.f32.gmra.mxu0 %v1059
        %v2734 = vpop.f32.mrf.mxu0
        %v2735 = vadd.f32 0.0, %v2734
        %2736 = vmatmul.f32.gmra.mxu0 %v1060
        %v2737 = vpop.f32.mrf.mxu0
        %v2738 = vadd.f32 0.0, %v2737
        %2739 = vmatmul.f32.gmra.mxu0 %v1061
        %v2740 = vpop.f32.mrf.mxu0
        %v2741 = vadd.f32 0.0, %v2740
        %2742 = vmatmul.f32.gmra.mxu0 %v1062
        %v2743 = vpop.f32.mrf.mxu0
        %v2744 = vadd.f32 0.0, %v2743
        %2745 = vmatmul.f32.gmra.mxu0 %v1063
        %v2746 = vpop.f32.mrf.mxu0
        %v2747 = vadd.f32 0.0, %v2746
        %2748 = vmatmul.f32.gmra.mxu0 %v1064
        %v2749 = vpop.f32.mrf.mxu0
        %v2750 = vadd.f32 0.0, %v2749
        %2751 = vmatmul.f32.gmra.mxu0 %v1065
        %v2752 = vpop.f32.mrf.mxu0
        %v2753 = vadd.f32 0.0, %v2752
        %2754 = vmatmul.f32.gmra.mxu0 %v1066
        %v2755 = vpop.f32.mrf.mxu0
        %v2756 = vadd.f32 0.0, %v2755
        %2757 = vmatmul.f32.gmra.mxu0 %v1067
        %v2758 = vpop.f32.mrf.mxu0
        %v2759 = vadd.f32 0.0, %v2758
        %2760 = vmatmul.f32.gmra.mxu0 %v1068
        %v2761 = vpop.f32.mrf.mxu0
        %v2762 = vadd.f32 0.0, %v2761
        %2763 = vmatmul.f32.gmra.mxu0 %v1069
        %v2764 = vpop.f32.mrf.mxu0
        %v2765 = vadd.f32 0.0, %v2764
        %2766 = vmatmul.f32.gmra.mxu0 %v1070
        %v2767 = vpop.f32.mrf.mxu0
        %v2768 = vadd.f32 0.0, %v2767
        %2769 = vdwg.mxu0
        %2770 = vmatpush.msra.mxu0 %v1252
        %2771 = vmatpush.msra.mxu0 %v1250
        %2772 = vmatpush.msra.mxu0 %v1248
        %2773 = vmatpush.msra.mxu0 %v1246
        %2774 = vmatpush.msra.mxu0 %v1244
        %2775 = vmatpush.msra.mxu0 %v1242
        %2776 = vmatpush.msra.mxu0 %v1240
        %2777 = vmatpush.msra.mxu0 %v1238
        %2778 = vmatpush.msra.mxu0 %v1236
        %2779 = vmatpush.msra.mxu0 %v1234
        %2780 = vmatpush.msra.mxu0 %v1232
        %2781 = vmatpush.msra.mxu0 %v1230
        %2782 = vmatpush.msra.mxu0 %v1228
        %2783 = vmatpush.msra.mxu0 %v1226
        %2784 = vmatpush.msra.mxu0 %v1224
        %2785 = vmatpush.msra.mxu0 %v1222
        %2786 = vmatmul.f32.gmra.mxu0 %v1055
        %v2787 = vpop.f32.mrf.mxu0
        %v2788 = vadd.f32 0.0, %v2787
        %2789 = vmatmul.f32.gmra.mxu0 %v1056
        %v2790 = vpop.f32.mrf.mxu0
        %v2791 = vadd.f32 0.0, %v2790
        %2792 = vmatmul.f32.gmra.mxu0 %v1057
        %v2793 = vpop.f32.mrf.mxu0
        %v2794 = vadd.f32 0.0, %v2793
        %2795 = vmatmul.f32.gmra.mxu0 %v1058
        %v2796 = vpop.f32.mrf.mxu0
        %v2797 = vadd.f32 0.0, %v2796
        %2798 = vmatmul.f32.gmra.mxu0 %v1059
        %v2799 = vpop.f32.mrf.mxu0
        %v2800 = vadd.f32 0.0, %v2799
        %2801 = vmatmul.f32.gmra.mxu0 %v1060
        %v2802 = vpop.f32.mrf.mxu0
        %v2803 = vadd.f32 0.0, %v2802
        %2804 = vmatmul.f32.gmra.mxu0 %v1061
        %v2805 = vpop.f32.mrf.mxu0
        %v2806 = vadd.f32 0.0, %v2805
        %2807 = vmatmul.f32.gmra.mxu0 %v1062
        %v2808 = vpop.f32.mrf.mxu0
        %v2809 = vadd.f32 0.0, %v2808
        %2810 = vmatmul.f32.gmra.mxu0 %v1063
        %v2811 = vpop.f32.mrf.mxu0
        %v2812 = vadd.f32 0.0, %v2811
        %2813 = vmatmul.f32.gmra.mxu0 %v1064
        %v2814 = vpop.f32.mrf.mxu0
        %v2815 = vadd.f32 0.0, %v2814
        %2816 = vmatmul.f32.gmra.mxu0 %v1065
        %v2817 = vpop.f32.mrf.mxu0
        %v2818 = vadd.f32 0.0, %v2817
        %2819 = vmatmul.f32.gmra.mxu0 %v1066
        %v2820 = vpop.f32.mrf.mxu0
        %v2821 = vadd.f32 0.0, %v2820
        %2822 = vmatmul.f32.gmra.mxu0 %v1067
        %v2823 = vpop.f32.mrf.mxu0
        %v2824 = vadd.f32 0.0, %v2823
        %2825 = vmatmul.f32.gmra.mxu0 %v1068
        %v2826 = vpop.f32.mrf.mxu0
        %v2827 = vadd.f32 0.0, %v2826
        %2828 = vmatmul.f32.gmra.mxu0 %v1069
        %v2829 = vpop.f32.mrf.mxu0
        %v2830 = vadd.f32 0.0, %v2829
        %2831 = vmatmul.f32.gmra.mxu0 %v1070
        %v2832 = vpop.f32.mrf.mxu0
        %v2833 = vadd.f32 0.0, %v2832
        %2834 = vdwg.mxu0
        %v2835 = vadd.f32 %v2673, %v2723
        %v2836 = vadd.f32 %v2674, %v2788
        %v2837 = vadd.f32 %v2675, %v2726
        %v2838 = vadd.f32 %v2676, %v2791
        %v2839 = vadd.f32 %v2677, %v2729
        %v2840 = vadd.f32 %v2678, %v2794
        %v2841 = vadd.f32 %v2679, %v2732
        %v2842 = vadd.f32 %v2680, %v2797
        %v2843 = vadd.f32 %v2681, %v2735
        %v2844 = vadd.f32 %v2682, %v2800
        %v2845 = vadd.f32 %v2683, %v2738
        %v2846 = vadd.f32 %v2684, %v2803
        %v2847 = vadd.f32 %v2685, %v2741
        %v2848 = vadd.f32 %v2686, %v2806
        %v2849 = vadd.f32 %v2687, %v2744
        %v2850 = vadd.f32 %v2688, %v2809
        %v2851 = vadd.f32 %v2689, %v2747
        %v2852 = vadd.f32 %v2690, %v2812
        %v2853 = vadd.f32 %v2691, %v2750
        %v2854 = vadd.f32 %v2692, %v2815
        %v2855 = vadd.f32 %v2693, %v2753
        %v2856 = vadd.f32 %v2694, %v2818
        %v2857 = vadd.f32 %v2695, %v2756
        %v2858 = vadd.f32 %v2696, %v2821
        %v2859 = vadd.f32 %v2697, %v2759
        %v2860 = vadd.f32 %v2698, %v2824
        %v2861 = vadd.f32 %v2699, %v2762
        %v2862 = vadd.f32 %v2700, %v2827
        %v2863 = vadd.f32 %v2701, %v2765
        %v2864 = vadd.f32 %v2702, %v2830
        %v2865 = vadd.f32 %v2703, %v2768
        %v2866 = vadd.f32 %v2704, %v2833
        %2867 = vmatpush.msra.mxu0 %v1284
        %2868 = vmatpush.msra.mxu0 %v1282
        %2869 = vmatpush.msra.mxu0 %v1280
        %2870 = vmatpush.msra.mxu0 %v1278
        %2871 = vmatpush.msra.mxu0 %v1276
        %2872 = vmatpush.msra.mxu0 %v1274
        %2873 = vmatpush.msra.mxu0 %v1272
        %2874 = vmatpush.msra.mxu0 %v1270
        %2875 = vmatpush.msra.mxu0 %v1268
        %2876 = vmatpush.msra.mxu0 %v1266
        %2877 = vmatpush.msra.mxu0 %v1264
        %2878 = vmatpush.msra.mxu0 %v1262
        %2879 = vmatpush.msra.mxu0 %v1260
        %2880 = vmatpush.msra.mxu0 %v1258
        %2881 = vmatpush.msra.mxu0 %v1256
        %2882 = vmatpush.msra.mxu0 %v1254
        %2883 = vmatmul.f32.gmra.mxu0 %v1072
        %v2884 = vpop.f32.mrf.mxu0
        %v2885 = vadd.f32 0.0, %v2884
        %2886 = vmatmul.f32.gmra.mxu0 %v1073
        %v2887 = vpop.f32.mrf.mxu0
        %v2888 = vadd.f32 0.0, %v2887
        %2889 = vmatmul.f32.gmra.mxu0 %v1074
        %v2890 = vpop.f32.mrf.mxu0
        %v2891 = vadd.f32 0.0, %v2890
        %2892 = vmatmul.f32.gmra.mxu0 %v1075
        %v2893 = vpop.f32.mrf.mxu0
        %v2894 = vadd.f32 0.0, %v2893
        %2895 = vmatmul.f32.gmra.mxu0 %v1076
        %v2896 = vpop.f32.mrf.mxu0
        %v2897 = vadd.f32 0.0, %v2896
        %2898 = vmatmul.f32.gmra.mxu0 %v1077
        %v2899 = vpop.f32.mrf.mxu0
        %v2900 = vadd.f32 0.0, %v2899
        %2901 = vmatmul.f32.gmra.mxu0 %v1078
        %v2902 = vpop.f32.mrf.mxu0
        %v2903 = vadd.f32 0.0, %v2902
        %2904 = vmatmul.f32.gmra.mxu0 %v1079
        %v2905 = vpop.f32.mrf.mxu0
        %v2906 = vadd.f32 0.0, %v2905
        %2907 = vmatmul.f32.gmra.mxu0 %v1080
        %v2908 = vpop.f32.mrf.mxu0
        %v2909 = vadd.f32 0.0, %v2908
        %2910 = vmatmul.f32.gmra.mxu0 %v1081
        %v2911 = vpop.f32.mrf.mxu0
        %v2912 = vadd.f32 0.0, %v2911
        %2913 = vmatmul.f32.gmra.mxu0 %v1082
        %v2914 = vpop.f32.mrf.mxu0
        %v2915 = vadd.f32 0.0, %v2914
        %2916 = vmatmul.f32.gmra.mxu0 %v1083
        %v2917 = vpop.f32.mrf.mxu0
        %v2918 = vadd.f32 0.0, %v2917
        %2919 = vmatmul.f32.gmra.mxu0 %v1084
        %v2920 = vpop.f32.mrf.mxu0
        %v2921 = vadd.f32 0.0, %v2920
        %2922 = vmatmul.f32.gmra.mxu0 %v1085
        %v2923 = vpop.f32.mrf.mxu0
        %v2924 = vadd.f32 0.0, %v2923
        %2925 = vmatmul.f32.gmra.mxu0 %v1086
        %v2926 = vpop.f32.mrf.mxu0
        %v2927 = vadd.f32 0.0, %v2926
        %2928 = vmatmul.f32.gmra.mxu0 %v1087
        %v2929 = vpop.f32.mrf.mxu0
        %v2930 = vadd.f32 0.0, %v2929
        %2931 = vdwg.mxu0
        %2932 = vmatpush.msra.mxu0 %v1285
        %2933 = vmatpush.msra.mxu0 %v1283
        %2934 = vmatpush.msra.mxu0 %v1281
        %2935 = vmatpush.msra.mxu0 %v1279
        %2936 = vmatpush.msra.mxu0 %v1277
        %2937 = vmatpush.msra.mxu0 %v1275
        %2938 = vmatpush.msra.mxu0 %v1273
        %2939 = vmatpush.msra.mxu0 %v1271
        %2940 = vmatpush.msra.mxu0 %v1269
        %2941 = vmatpush.msra.mxu0 %v1267
        %2942 = vmatpush.msra.mxu0 %v1265
        %2943 = vmatpush.msra.mxu0 %v1263
        %2944 = vmatpush.msra.mxu0 %v1261
        %2945 = vmatpush.msra.mxu0 %v1259
        %2946 = vmatpush.msra.mxu0 %v1257
        %2947 = vmatpush.msra.mxu0 %v1255
        %2948 = vmatmul.f32.gmra.mxu0 %v1072
        %v2949 = vpop.f32.mrf.mxu0
        %v2950 = vadd.f32 0.0, %v2949
        %2951 = vmatmul.f32.gmra.mxu0 %v1073
        %v2952 = vpop.f32.mrf.mxu0
        %v2953 = vadd.f32 0.0, %v2952
        %2954 = vmatmul.f32.gmra.mxu0 %v1074
        %v2955 = vpop.f32.mrf.mxu0
        %v2956 = vadd.f32 0.0, %v2955
        %2957 = vmatmul.f32.gmra.mxu0 %v1075
        %v2958 = vpop.f32.mrf.mxu0
        %v2959 = vadd.f32 0.0, %v2958
        %2960 = vmatmul.f32.gmra.mxu0 %v1076
        %v2961 = vpop.f32.mrf.mxu0
        %v2962 = vadd.f32 0.0, %v2961
        %2963 = vmatmul.f32.gmra.mxu0 %v1077
        %v2964 = vpop.f32.mrf.mxu0
        %v2965 = vadd.f32 0.0, %v2964
        %2966 = vmatmul.f32.gmra.mxu0 %v1078
        %v2967 = vpop.f32.mrf.mxu0
        %v2968 = vadd.f32 0.0, %v2967
        %2969 = vmatmul.f32.gmra.mxu0 %v1079
        %v2970 = vpop.f32.mrf.mxu0
        %v2971 = vadd.f32 0.0, %v2970
        %2972 = vmatmul.f32.gmra.mxu0 %v1080
        %v2973 = vpop.f32.mrf.mxu0
        %v2974 = vadd.f32 0.0, %v2973
        %2975 = vmatmul.f32.gmra.mxu0 %v1081
        %v2976 = vpop.f32.mrf.mxu0
        %v2977 = vadd.f32 0.0, %v2976
        %2978 = vmatmul.f32.gmra.mxu0 %v1082
        %v2979 = vpop.f32.mrf.mxu0
        %v2980 = vadd.f32 0.0, %v2979
        %2981 = vmatmul.f32.gmra.mxu0 %v1083
        %v2982 = vpop.f32.mrf.mxu0
        %v2983 = vadd.f32 0.0, %v2982
        %2984 = vmatmul.f32.gmra.mxu0 %v1084
        %v2985 = vpop.f32.mrf.mxu0
        %v2986 = vadd.f32 0.0, %v2985
        %2987 = vmatmul.f32.gmra.mxu0 %v1085
        %v2988 = vpop.f32.mrf.mxu0
        %v2989 = vadd.f32 0.0, %v2988
        %2990 = vmatmul.f32.gmra.mxu0 %v1086
        %v2991 = vpop.f32.mrf.mxu0
        %v2992 = vadd.f32 0.0, %v2991
        %2993 = vmatmul.f32.gmra.mxu0 %v1087
        %v2994 = vpop.f32.mrf.mxu0
        %v2995 = vadd.f32 0.0, %v2994
        %2996 = vdwg.mxu0
        %v2997 = vadd.f32 %v2835, %v2885
        %v2998 = vadd.f32 %v2836, %v2950
        %v2999 = vadd.f32 %v2837, %v2888
        %v3000 = vadd.f32 %v2838, %v2953
        %v3001 = vadd.f32 %v2839, %v2891
        %v3002 = vadd.f32 %v2840, %v2956
        %v3003 = vadd.f32 %v2841, %v2894
        %v3004 = vadd.f32 %v2842, %v2959
        %v3005 = vadd.f32 %v2843, %v2897
        %v3006 = vadd.f32 %v2844, %v2962
        %v3007 = vadd.f32 %v2845, %v2900
        %v3008 = vadd.f32 %v2846, %v2965
        %v3009 = vadd.f32 %v2847, %v2903
        %v3010 = vadd.f32 %v2848, %v2968
        %v3011 = vadd.f32 %v2849, %v2906
        %v3012 = vadd.f32 %v2850, %v2971
        %v3013 = vadd.f32 %v2851, %v2909
        %v3014 = vadd.f32 %v2852, %v2974
        %v3015 = vadd.f32 %v2853, %v2912
        %v3016 = vadd.f32 %v2854, %v2977
        %v3017 = vadd.f32 %v2855, %v2915
        %v3018 = vadd.f32 %v2856, %v2980
        %v3019 = vadd.f32 %v2857, %v2918
        %v3020 = vadd.f32 %v2858, %v2983
        %v3021 = vadd.f32 %v2859, %v2921
        %v3022 = vadd.f32 %v2860, %v2986
        %v3023 = vadd.f32 %v2861, %v2924
        %v3024 = vadd.f32 %v2862, %v2989
        %v3025 = vadd.f32 %v2863, %v2927
        %v3026 = vadd.f32 %v2864, %v2992
        %v3027 = vadd.f32 %v2865, %v2930
        %v3028 = vadd.f32 %v2866, %v2995
        %v3029 = vadd.f32 %v2997, %v2199
        %v3030 = vadd.f32 %v2998, %v2200
        %v3031 = vadd.f32 %v2999, %v2199
        %v3032 = vadd.f32 %v3000, %v2200
        %v3033 = vadd.f32 %v3001, %v2199
        %v3034 = vadd.f32 %v3002, %v2200
        %v3035 = vadd.f32 %v3003, %v2199
        %v3036 = vadd.f32 %v3004, %v2200
        %v3037 = vadd.f32 %v3005, %v2199
        %v3038 = vadd.f32 %v3006, %v2200
        %v3039 = vadd.f32 %v3007, %v2199
        %v3040 = vadd.f32 %v3008, %v2200
        %v3041 = vadd.f32 %v3009, %v2199
        %v3042 = vadd.f32 %v3010, %v2200
        %v3043 = vadd.f32 %v3011, %v2199
        %v3044 = vadd.f32 %v3012, %v2200
        %v3045 = vadd.f32 %v3013, %v2199
        %v3046 = vadd.f32 %v3014, %v2200
        %v3047 = vadd.f32 %v3015, %v2199
        %v3048 = vadd.f32 %v3016, %v2200
        %v3049 = vadd.f32 %v3017, %v2199
        %v3050 = vadd.f32 %v3018, %v2200
        %v3051 = vadd.f32 %v3019, %v2199
        %v3052 = vadd.f32 %v3020, %v2200
        %v3053 = vadd.f32 %v3021, %v2199
        %v3054 = vadd.f32 %v3022, %v2200
        %v3055 = vadd.f32 %v3023, %v2199
        %v3056 = vadd.f32 %v3024, %v2200
        %v3057 = vadd.f32 %v3025, %v2199
        %v3058 = vadd.f32 %v3026, %v2200
        %v3059 = vadd.f32 %v3027, %v2199
        %v3060 = vadd.f32 %v3028, %v2200
        %v3061 = vmax.f32 %v3029, 0.0
        %v3062 = vmax.f32 %v3030, 0.0
        %v3063 = vmax.f32 %v3031, 0.0
        %v3064 = vmax.f32 %v3032, 0.0
        %v3065 = vmax.f32 %v3033, 0.0
        %v3066 = vmax.f32 %v3034, 0.0
        %v3067 = vmax.f32 %v3035, 0.0
        %v3068 = vmax.f32 %v3036, 0.0
        %v3069 = vmax.f32 %v3037, 0.0
        %v3070 = vmax.f32 %v3038, 0.0
        %v3071 = vmax.f32 %v3039, 0.0
        %v3072 = vmax.f32 %v3040, 0.0
        %v3073 = vmax.f32 %v3041, 0.0
        %v3074 = vmax.f32 %v3042, 0.0
        %v3075 = vmax.f32 %v3043, 0.0
        %v3076 = vmax.f32 %v3044, 0.0
        %v3077 = vmax.f32 %v3045, 0.0
        %v3078 = vmax.f32 %v3046, 0.0
        %v3079 = vmax.f32 %v3047, 0.0
        %v3080 = vmax.f32 %v3048, 0.0
        %v3081 = vmax.f32 %v3049, 0.0
        %v3082 = vmax.f32 %v3050, 0.0
        %v3083 = vmax.f32 %v3051, 0.0
        %v3084 = vmax.f32 %v3052, 0.0
        %v3085 = vmax.f32 %v3053, 0.0
        %v3086 = vmax.f32 %v3054, 0.0
        %v3087 = vmax.f32 %v3055, 0.0
        %v3088 = vmax.f32 %v3056, 0.0
        %v3089 = vmax.f32 %v3057, 0.0
        %v3090 = vmax.f32 %v3058, 0.0
        %v3091 = vmax.f32 %v3059, 0.0
        %v3092 = vmax.f32 %v3060, 0.0
        %v3093 = vmax.f32 %v3061, %v3062
        %v3094 = vmax.f32 %v3063, %v3064
        %v3095 = vmax.f32 %v3065, %v3066
        %v3096 = vmax.f32 %v3067, %v3068
        %v3097 = vmax.f32 %v3069, %v3070
        %v3098 = vmax.f32 %v3071, %v3072
        %v3099 = vmax.f32 %v3073, %v3074
        %v3100 = vmax.f32 %v3075, %v3076
        %v3101 = vmax.f32 %v3077, %v3078
        %v3102 = vmax.f32 %v3079, %v3080
        %v3103 = vmax.f32 %v3081, %v3082
        %v3104 = vmax.f32 %v3083, %v3084
        %v3105 = vmax.f32 %v3085, %v3086
        %v3106 = vmax.f32 %v3087, %v3088
        %v3107 = vmax.f32 %v3089, %v3090
        %v3108 = vmax.f32 %v3091, %v3092
        %v3109 = vmax.f32 %v2267, %v3093
        %v3110 = vmax.f32 %v2268, %v3094
        %v3111 = vmax.f32 %v2269, %v3095
        %v3112 = vmax.f32 %v2270, %v3096
        %v3113 = vmax.f32 %v2271, %v3097
        %v3114 = vmax.f32 %v2272, %v3098
        %v3115 = vmax.f32 %v2273, %v3099
        %v3116 = vmax.f32 %v2274, %v3100
        %v3117 = vmax.f32 %v2275, %v3101
        %v3118 = vmax.f32 %v2276, %v3102
        %v3119 = vmax.f32 %v2277, %v3103
        %v3120 = vmax.f32 %v2278, %v3104
        %v3121 = vmax.f32 %v2279, %v3105
        %v3122 = vmax.f32 %v2280, %v3106
        %v3123 = vmax.f32 %v2281, %v3107
        %v3124 = vmax.f32 %v2282, %v3108
        %3125 = vmatpush.msra.mxu0 %v1185
        %3126 = vmatpush.msra.mxu0 %v1183
        %3127 = vmatpush.msra.mxu0 %v1181
        %3128 = vmatpush.msra.mxu0 %v1179
        %3129 = vmatpush.msra.mxu0 %v1177
        %3130 = vmatpush.msra.mxu0 %v1175
        %3131 = vmatpush.msra.mxu0 %v1173
        %3132 = vmatpush.msra.mxu0 %v1171
        %3133 = vmatpush.msra.mxu0 %v1169
        %3134 = vmatpush.msra.mxu0 %v1167
        %3135 = vmatpush.msra.mxu0 %v1165
        %3136 = vmatpush.msra.mxu0 %v1163
        %3137 = vmatpush.msra.mxu0 %v1161
        %3138 = vmatpush.msra.mxu0 %v1159
        %3139 = vmatpush.msra.mxu0 %v1157
        %3140 = vmatpush.msra.mxu0 %v1155
        %3141 = vmatmul.f32.gmra.mxu0 %v1038
        %v3142 = vpop.f32.mrf.mxu0
        %v3143 = vadd.f32 0.0, %v3142
        %3144 = vmatmul.f32.gmra.mxu0 %v1039
        %v3145 = vpop.f32.mrf.mxu0
        %v3146 = vadd.f32 0.0, %v3145
        %3147 = vmatmul.f32.gmra.mxu0 %v1040
        %v3148 = vpop.f32.mrf.mxu0
        %v3149 = vadd.f32 0.0, %v3148
        %3150 = vmatmul.f32.gmra.mxu0 %v1041
        %v3151 = vpop.f32.mrf.mxu0
        %v3152 = vadd.f32 0.0, %v3151
        %3153 = vmatmul.f32.gmra.mxu0 %v1042
        %v3154 = vpop.f32.mrf.mxu0
        %v3155 = vadd.f32 0.0, %v3154
        %3156 = vmatmul.f32.gmra.mxu0 %v1043
        %v3157 = vpop.f32.mrf.mxu0
        %v3158 = vadd.f32 0.0, %v3157
        %3159 = vmatmul.f32.gmra.mxu0 %v1044
        %v3160 = vpop.f32.mrf.mxu0
        %v3161 = vadd.f32 0.0, %v3160
        %3162 = vmatmul.f32.gmra.mxu0 %v1045
        %v3163 = vpop.f32.mrf.mxu0
        %v3164 = vadd.f32 0.0, %v3163
        %3165 = vmatmul.f32.gmra.mxu0 %v1046
        %v3166 = vpop.f32.mrf.mxu0
        %v3167 = vadd.f32 0.0, %v3166
        %3168 = vmatmul.f32.gmra.mxu0 %v1047
        %v3169 = vpop.f32.mrf.mxu0
        %v3170 = vadd.f32 0.0, %v3169
        %3171 = vmatmul.f32.gmra.mxu0 %v1048
        %v3172 = vpop.f32.mrf.mxu0
        %v3173 = vadd.f32 0.0, %v3172
        %3174 = vmatmul.f32.gmra.mxu0 %v1049
        %v3175 = vpop.f32.mrf.mxu0
        %v3176 = vadd.f32 0.0, %v3175
        %3177 = vmatmul.f32.gmra.mxu0 %v1050
        %v3178 = vpop.f32.mrf.mxu0
        %v3179 = vadd.f32 0.0, %v3178
        %3180 = vmatmul.f32.gmra.mxu0 %v1051
        %v3181 = vpop.f32.mrf.mxu0
        %v3182 = vadd.f32 0.0, %v3181
        %3183 = vmatmul.f32.gmra.mxu0 %v1052
        %v3184 = vpop.f32.mrf.mxu0
        %v3185 = vadd.f32 0.0, %v3184
        %3186 = vmatmul.f32.gmra.mxu0 %v1053
        %v3187 = vpop.f32.mrf.mxu0
        %v3188 = vadd.f32 0.0, %v3187
        %3189 = vdwg.mxu0
        %3190 = vmatpush.msra.mxu0 %v1186
        %3191 = vmatpush.msra.mxu0 %v1184
        %3192 = vmatpush.msra.mxu0 %v1182
        %3193 = vmatpush.msra.mxu0 %v1180
        %3194 = vmatpush.msra.mxu0 %v1178
        %3195 = vmatpush.msra.mxu0 %v1176
        %3196 = vmatpush.msra.mxu0 %v1174
        %3197 = vmatpush.msra.mxu0 %v1172
        %3198 = vmatpush.msra.mxu0 %v1170
        %3199 = vmatpush.msra.mxu0 %v1168
        %3200 = vmatpush.msra.mxu0 %v1166
        %3201 = vmatpush.msra.mxu0 %v1164
        %3202 = vmatpush.msra.mxu0 %v1162
        %3203 = vmatpush.msra.mxu0 %v1160
        %3204 = vmatpush.msra.mxu0 %v1158
        %3205 = vmatpush.msra.mxu0 %v1156
        %3206 = vmatmul.f32.gmra.mxu0 %v1038
        %v3207 = vpop.f32.mrf.mxu0
        %v3208 = vadd.f32 0.0, %v3207
        %3209 = vmatmul.f32.gmra.mxu0 %v1039
        %v3210 = vpop.f32.mrf.mxu0
        %v3211 = vadd.f32 0.0, %v3210
        %3212 = vmatmul.f32.gmra.mxu0 %v1040
        %v3213 = vpop.f32.mrf.mxu0
        %v3214 = vadd.f32 0.0, %v3213
        %3215 = vmatmul.f32.gmra.mxu0 %v1041
        %v3216 = vpop.f32.mrf.mxu0
        %v3217 = vadd.f32 0.0, %v3216
        %3218 = vmatmul.f32.gmra.mxu0 %v1042
        %v3219 = vpop.f32.mrf.mxu0
        %v3220 = vadd.f32 0.0, %v3219
        %3221 = vmatmul.f32.gmra.mxu0 %v1043
        %v3222 = vpop.f32.mrf.mxu0
        %v3223 = vadd.f32 0.0, %v3222
        %3224 = vmatmul.f32.gmra.mxu0 %v1044
        %v3225 = vpop.f32.mrf.mxu0
        %v3226 = vadd.f32 0.0, %v3225
        %3227 = vmatmul.f32.gmra.mxu0 %v1045
        %v3228 = vpop.f32.mrf.mxu0
        %v3229 = vadd.f32 0.0, %v3228
        %3230 = vmatmul.f32.gmra.mxu0 %v1046
        %v3231 = vpop.f32.mrf.mxu0
        %v3232 = vadd.f32 0.0, %v3231
        %3233 = vmatmul.f32.gmra.mxu0 %v1047
        %v3234 = vpop.f32.mrf.mxu0
        %v3235 = vadd.f32 0.0, %v3234
        %3236 = vmatmul.f32.gmra.mxu0 %v1048
        %v3237 = vpop.f32.mrf.mxu0
        %v3238 = vadd.f32 0.0, %v3237
        %3239 = vmatmul.f32.gmra.mxu0 %v1049
        %v3240 = vpop.f32.mrf.mxu0
        %v3241 = vadd.f32 0.0, %v3240
        %3242 = vmatmul.f32.gmra.mxu0 %v1050
        %v3243 = vpop.f32.mrf.mxu0
        %v3244 = vadd.f32 0.0, %v3243
        %3245 = vmatmul.f32.gmra.mxu0 %v1051
        %v3246 = vpop.f32.mrf.mxu0
        %v3247 = vadd.f32 0.0, %v3246
        %3248 = vmatmul.f32.gmra.mxu0 %v1052
        %v3249 = vpop.f32.mrf.mxu0
        %v3250 = vadd.f32 0.0, %v3249
        %3251 = vmatmul.f32.gmra.mxu0 %v1053
        %v3252 = vpop.f32.mrf.mxu0
        %v3253 = vadd.f32 0.0, %v3252
        %3254 = vdwg.mxu0
        %3255 = vmatpush.msra.mxu0 %v1152
        %3256 = vmatpush.msra.mxu0 %v1150
        %3257 = vmatpush.msra.mxu0 %v1148
        %3258 = vmatpush.msra.mxu0 %v1146
        %3259 = vmatpush.msra.mxu0 %v1144
        %3260 = vmatpush.msra.mxu0 %v1142
        %3261 = vmatpush.msra.mxu0 %v1140
        %3262 = vmatpush.msra.mxu0 %v1138
        %3263 = vmatpush.msra.mxu0 %v1136
        %3264 = vmatpush.msra.mxu0 %v1134
        %3265 = vmatpush.msra.mxu0 %v1132
        %3266 = vmatpush.msra.mxu0 %v1130
        %3267 = vmatpush.msra.mxu0 %v1128
        %3268 = vmatpush.msra.mxu0 %v1126
        %3269 = vmatpush.msra.mxu0 %v1124
        %3270 = vmatpush.msra.mxu0 %v1122
        %3271 = vmatmul.f32.gmra.mxu0 %v1021
        %v3272 = vpop.f32.mrf.mxu0
        %v3273 = vadd.f32 %v3143, %v3272
        %3274 = vmatmul.f32.gmra.mxu0 %v1022
        %v3275 = vpop.f32.mrf.mxu0
        %v3276 = vadd.f32 %v3146, %v3275
        %3277 = vmatmul.f32.gmra.mxu0 %v1023
        %v3278 = vpop.f32.mrf.mxu0
        %v3279 = vadd.f32 %v3149, %v3278
        %3280 = vmatmul.f32.gmra.mxu0 %v1024
        %v3281 = vpop.f32.mrf.mxu0
        %v3282 = vadd.f32 %v3152, %v3281
        %3283 = vmatmul.f32.gmra.mxu0 %v1025
        %v3284 = vpop.f32.mrf.mxu0
        %v3285 = vadd.f32 %v3155, %v3284
        %3286 = vmatmul.f32.gmra.mxu0 %v1026
        %v3287 = vpop.f32.mrf.mxu0
        %v3288 = vadd.f32 %v3158, %v3287
        %3289 = vmatmul.f32.gmra.mxu0 %v1027
        %v3290 = vpop.f32.mrf.mxu0
        %v3291 = vadd.f32 %v3161, %v3290
        %3292 = vmatmul.f32.gmra.mxu0 %v1028
        %v3293 = vpop.f32.mrf.mxu0
        %v3294 = vadd.f32 %v3164, %v3293
        %3295 = vmatmul.f32.gmra.mxu0 %v1029
        %v3296 = vpop.f32.mrf.mxu0
        %v3297 = vadd.f32 %v3167, %v3296
        %3298 = vmatmul.f32.gmra.mxu0 %v1030
        %v3299 = vpop.f32.mrf.mxu0
        %v3300 = vadd.f32 %v3170, %v3299
        %3301 = vmatmul.f32.gmra.mxu0 %v1031
        %v3302 = vpop.f32.mrf.mxu0
        %v3303 = vadd.f32 %v3173, %v3302
        %3304 = vmatmul.f32.gmra.mxu0 %v1032
        %v3305 = vpop.f32.mrf.mxu0
        %v3306 = vadd.f32 %v3176, %v3305
        %3307 = vmatmul.f32.gmra.mxu0 %v1033
        %v3308 = vpop.f32.mrf.mxu0
        %v3309 = vadd.f32 %v3179, %v3308
        %3310 = vmatmul.f32.gmra.mxu0 %v1034
        %v3311 = vpop.f32.mrf.mxu0
        %v3312 = vadd.f32 %v3182, %v3311
        %3313 = vmatmul.f32.gmra.mxu0 %v1035
        %v3314 = vpop.f32.mrf.mxu0
        %v3315 = vadd.f32 %v3185, %v3314
        %3316 = vmatmul.f32.gmra.mxu0 %v1036
        %v3317 = vpop.f32.mrf.mxu0
        %v3318 = vadd.f32 %v3188, %v3317
        %3319 = vdwg.mxu0
        %3320 = vmatpush.msra.mxu0 %v1153
        %3321 = vmatpush.msra.mxu0 %v1151
        %3322 = vmatpush.msra.mxu0 %v1149
        %3323 = vmatpush.msra.mxu0 %v1147
        %3324 = vmatpush.msra.mxu0 %v1145
        %3325 = vmatpush.msra.mxu0 %v1143
        %3326 = vmatpush.msra.mxu0 %v1141
        %3327 = vmatpush.msra.mxu0 %v1139
        %3328 = vmatpush.msra.mxu0 %v1137
        %3329 = vmatpush.msra.mxu0 %v1135
        %3330 = vmatpush.msra.mxu0 %v1133
        %3331 = vmatpush.msra.mxu0 %v1131
        %3332 = vmatpush.msra.mxu0 %v1129
        %3333 = vmatpush.msra.mxu0 %v1127
        %3334 = vmatpush.msra.mxu0 %v1125
        %3335 = vmatpush.msra.mxu0 %v1123
        %3336 = vmatmul.f32.gmra.mxu0 %v1021
        %v3337 = vpop.f32.mrf.mxu0
        %v3338 = vadd.f32 %v3208, %v3337
        %3339 = vmatmul.f32.gmra.mxu0 %v1022
        %v3340 = vpop.f32.mrf.mxu0
        %v3341 = vadd.f32 %v3211, %v3340
        %3342 = vmatmul.f32.gmra.mxu0 %v1023
        %v3343 = vpop.f32.mrf.mxu0
        %v3344 = vadd.f32 %v3214, %v3343
        %3345 = vmatmul.f32.gmra.mxu0 %v1024
        %v3346 = vpop.f32.mrf.mxu0
        %v3347 = vadd.f32 %v3217, %v3346
        %3348 = vmatmul.f32.gmra.mxu0 %v1025
        %v3349 = vpop.f32.mrf.mxu0
        %v3350 = vadd.f32 %v3220, %v3349
        %3351 = vmatmul.f32.gmra.mxu0 %v1026
        %v3352 = vpop.f32.mrf.mxu0
        %v3353 = vadd.f32 %v3223, %v3352
        %3354 = vmatmul.f32.gmra.mxu0 %v1027
        %v3355 = vpop.f32.mrf.mxu0
        %v3356 = vadd.f32 %v3226, %v3355
        %3357 = vmatmul.f32.gmra.mxu0 %v1028
        %v3358 = vpop.f32.mrf.mxu0
        %v3359 = vadd.f32 %v3229, %v3358
        %3360 = vmatmul.f32.gmra.mxu0 %v1029
        %v3361 = vpop.f32.mrf.mxu0
        %v3362 = vadd.f32 %v3232, %v3361
        %3363 = vmatmul.f32.gmra.mxu0 %v1030
        %v3364 = vpop.f32.mrf.mxu0
        %v3365 = vadd.f32 %v3235, %v3364
        %3366 = vmatmul.f32.gmra.mxu0 %v1031
        %v3367 = vpop.f32.mrf.mxu0
        %v3368 = vadd.f32 %v3238, %v3367
        %3369 = vmatmul.f32.gmra.mxu0 %v1032
        %v3370 = vpop.f32.mrf.mxu0
        %v3371 = vadd.f32 %v3241, %v3370
        %3372 = vmatmul.f32.gmra.mxu0 %v1033
        %v3373 = vpop.f32.mrf.mxu0
        %v3374 = vadd.f32 %v3244, %v3373
        %3375 = vmatmul.f32.gmra.mxu0 %v1034
        %v3376 = vpop.f32.mrf.mxu0
        %v3377 = vadd.f32 %v3247, %v3376
        %3378 = vmatmul.f32.gmra.mxu0 %v1035
        %v3379 = vpop.f32.mrf.mxu0
        %v3380 = vadd.f32 %v3250, %v3379
        %3381 = vmatmul.f32.gmra.mxu0 %v1036
        %v3382 = vpop.f32.mrf.mxu0
        %v3383 = vadd.f32 %v3253, %v3382
        %3384 = vdwg.mxu0
        %3385 = vmatpush.msra.mxu0 %v1218
        %3386 = vmatpush.msra.mxu0 %v1216
        %3387 = vmatpush.msra.mxu0 %v1214
        %3388 = vmatpush.msra.mxu0 %v1212
        %3389 = vmatpush.msra.mxu0 %v1210
        %3390 = vmatpush.msra.mxu0 %v1208
        %3391 = vmatpush.msra.mxu0 %v1206
        %3392 = vmatpush.msra.mxu0 %v1204
        %3393 = vmatpush.msra.mxu0 %v1202
        %3394 = vmatpush.msra.mxu0 %v1200
        %3395 = vmatpush.msra.mxu0 %v1198
        %3396 = vmatpush.msra.mxu0 %v1196
        %3397 = vmatpush.msra.mxu0 %v1194
        %3398 = vmatpush.msra.mxu0 %v1192
        %3399 = vmatpush.msra.mxu0 %v1190
        %3400 = vmatpush.msra.mxu0 %v1188
        %3401 = vmatmul.f32.gmra.mxu0 %v1055
        %v3402 = vpop.f32.mrf.mxu0
        %v3403 = vadd.f32 0.0, %v3402
        %3404 = vmatmul.f32.gmra.mxu0 %v1056
        %v3405 = vpop.f32.mrf.mxu0
        %v3406 = vadd.f32 0.0, %v3405
        %3407 = vmatmul.f32.gmra.mxu0 %v1057
        %v3408 = vpop.f32.mrf.mxu0
        %v3409 = vadd.f32 0.0, %v3408
        %3410 = vmatmul.f32.gmra.mxu0 %v1058
        %v3411 = vpop.f32.mrf.mxu0
        %v3412 = vadd.f32 0.0, %v3411
        %3413 = vmatmul.f32.gmra.mxu0 %v1059
        %v3414 = vpop.f32.mrf.mxu0
        %v3415 = vadd.f32 0.0, %v3414
        %3416 = vmatmul.f32.gmra.mxu0 %v1060
        %v3417 = vpop.f32.mrf.mxu0
        %v3418 = vadd.f32 0.0, %v3417
        %3419 = vmatmul.f32.gmra.mxu0 %v1061
        %v3420 = vpop.f32.mrf.mxu0
        %v3421 = vadd.f32 0.0, %v3420
        %3422 = vmatmul.f32.gmra.mxu0 %v1062
        %v3423 = vpop.f32.mrf.mxu0
        %v3424 = vadd.f32 0.0, %v3423
        %3425 = vmatmul.f32.gmra.mxu0 %v1063
        %v3426 = vpop.f32.mrf.mxu0
        %v3427 = vadd.f32 0.0, %v3426
        %3428 = vmatmul.f32.gmra.mxu0 %v1064
        %v3429 = vpop.f32.mrf.mxu0
        %v3430 = vadd.f32 0.0, %v3429
        %3431 = vmatmul.f32.gmra.mxu0 %v1065
        %v3432 = vpop.f32.mrf.mxu0
        %v3433 = vadd.f32 0.0, %v3432
        %3434 = vmatmul.f32.gmra.mxu0 %v1066
        %v3435 = vpop.f32.mrf.mxu0
        %v3436 = vadd.f32 0.0, %v3435
        %3437 = vmatmul.f32.gmra.mxu0 %v1067
        %v3438 = vpop.f32.mrf.mxu0
        %v3439 = vadd.f32 0.0, %v3438
        %3440 = vmatmul.f32.gmra.mxu0 %v1068
        %v3441 = vpop.f32.mrf.mxu0
        %v3442 = vadd.f32 0.0, %v3441
        %3443 = vmatmul.f32.gmra.mxu0 %v1069
        %v3444 = vpop.f32.mrf.mxu0
        %v3445 = vadd.f32 0.0, %v3444
        %3446 = vmatmul.f32.gmra.mxu0 %v1070
        %v3447 = vpop.f32.mrf.mxu0
        %v3448 = vadd.f32 0.0, %v3447
        %3449 = vdwg.mxu0
        %3450 = vmatpush.msra.mxu0 %v1219
        %3451 = vmatpush.msra.mxu0 %v1217
        %3452 = vmatpush.msra.mxu0 %v1215
        %3453 = vmatpush.msra.mxu0 %v1213
        %3454 = vmatpush.msra.mxu0 %v1211
        %3455 = vmatpush.msra.mxu0 %v1209
        %3456 = vmatpush.msra.mxu0 %v1207
        %3457 = vmatpush.msra.mxu0 %v1205
        %3458 = vmatpush.msra.mxu0 %v1203
        %3459 = vmatpush.msra.mxu0 %v1201
        %3460 = vmatpush.msra.mxu0 %v1199
        %3461 = vmatpush.msra.mxu0 %v1197
        %3462 = vmatpush.msra.mxu0 %v1195
        %3463 = vmatpush.msra.mxu0 %v1193
        %3464 = vmatpush.msra.mxu0 %v1191
        %3465 = vmatpush.msra.mxu0 %v1189
        %3466 = vmatmul.f32.gmra.mxu0 %v1055
        %v3467 = vpop.f32.mrf.mxu0
        %v3468 = vadd.f32 0.0, %v3467
        %3469 = vmatmul.f32.gmra.mxu0 %v1056
        %v3470 = vpop.f32.mrf.mxu0
        %v3471 = vadd.f32 0.0, %v3470
        %3472 = vmatmul.f32.gmra.mxu0 %v1057
        %v3473 = vpop.f32.mrf.mxu0
        %v3474 = vadd.f32 0.0, %v3473
        %3475 = vmatmul.f32.gmra.mxu0 %v1058
        %v3476 = vpop.f32.mrf.mxu0
        %v3477 = vadd.f32 0.0, %v3476
        %3478 = vmatmul.f32.gmra.mxu0 %v1059
        %v3479 = vpop.f32.mrf.mxu0
        %v3480 = vadd.f32 0.0, %v3479
        %3481 = vmatmul.f32.gmra.mxu0 %v1060
        %v3482 = vpop.f32.mrf.mxu0
        %v3483 = vadd.f32 0.0, %v3482
        %3484 = vmatmul.f32.gmra.mxu0 %v1061
        %v3485 = vpop.f32.mrf.mxu0
        %v3486 = vadd.f32 0.0, %v3485
        %3487 = vmatmul.f32.gmra.mxu0 %v1062
        %v3488 = vpop.f32.mrf.mxu0
        %v3489 = vadd.f32 0.0, %v3488
        %3490 = vmatmul.f32.gmra.mxu0 %v1063
        %v3491 = vpop.f32.mrf.mxu0
        %v3492 = vadd.f32 0.0, %v3491
        %3493 = vmatmul.f32.gmra.mxu0 %v1064
        %v3494 = vpop.f32.mrf.mxu0
        %v3495 = vadd.f32 0.0, %v3494
        %3496 = vmatmul.f32.gmra.mxu0 %v1065
        %v3497 = vpop.f32.mrf.mxu0
        %v3498 = vadd.f32 0.0, %v3497
        %3499 = vmatmul.f32.gmra.mxu0 %v1066
        %v3500 = vpop.f32.mrf.mxu0
        %v3501 = vadd.f32 0.0, %v3500
        %3502 = vmatmul.f32.gmra.mxu0 %v1067
        %v3503 = vpop.f32.mrf.mxu0
        %v3504 = vadd.f32 0.0, %v3503
        %3505 = vmatmul.f32.gmra.mxu0 %v1068
        %v3506 = vpop.f32.mrf.mxu0
        %v3507 = vadd.f32 0.0, %v3506
        %3508 = vmatmul.f32.gmra.mxu0 %v1069
        %v3509 = vpop.f32.mrf.mxu0
        %v3510 = vadd.f32 0.0, %v3509
        %3511 = vmatmul.f32.gmra.mxu0 %v1070
        %v3512 = vpop.f32.mrf.mxu0
        %v3513 = vadd.f32 0.0, %v3512
        %3514 = vdwg.mxu0
        %v3515 = vadd.f32 %v3273, %v3403
        %v3516 = vadd.f32 %v3338, %v3468
        %v3517 = vadd.f32 %v3276, %v3406
        %v3518 = vadd.f32 %v3341, %v3471
        %v3519 = vadd.f32 %v3279, %v3409
        %v3520 = vadd.f32 %v3344, %v3474
        %v3521 = vadd.f32 %v3282, %v3412
        %v3522 = vadd.f32 %v3347, %v3477
        %v3523 = vadd.f32 %v3285, %v3415
        %v3524 = vadd.f32 %v3350, %v3480
        %v3525 = vadd.f32 %v3288, %v3418
        %v3526 = vadd.f32 %v3353, %v3483
        %v3527 = vadd.f32 %v3291, %v3421
        %v3528 = vadd.f32 %v3356, %v3486
        %v3529 = vadd.f32 %v3294, %v3424
        %v3530 = vadd.f32 %v3359, %v3489
        %v3531 = vadd.f32 %v3297, %v3427
        %v3532 = vadd.f32 %v3362, %v3492
        %v3533 = vadd.f32 %v3300, %v3430
        %v3534 = vadd.f32 %v3365, %v3495
        %v3535 = vadd.f32 %v3303, %v3433
        %v3536 = vadd.f32 %v3368, %v3498
        %v3537 = vadd.f32 %v3306, %v3436
        %v3538 = vadd.f32 %v3371, %v3501
        %v3539 = vadd.f32 %v3309, %v3439
        %v3540 = vadd.f32 %v3374, %v3504
        %v3541 = vadd.f32 %v3312, %v3442
        %v3542 = vadd.f32 %v3377, %v3507
        %v3543 = vadd.f32 %v3315, %v3445
        %v3544 = vadd.f32 %v3380, %v3510
        %v3545 = vadd.f32 %v3318, %v3448
        %v3546 = vadd.f32 %v3383, %v3513
        %3547 = vmatpush.msra.mxu0 %v1251
        %3548 = vmatpush.msra.mxu0 %v1249
        %3549 = vmatpush.msra.mxu0 %v1247
        %3550 = vmatpush.msra.mxu0 %v1245
        %3551 = vmatpush.msra.mxu0 %v1243
        %3552 = vmatpush.msra.mxu0 %v1241
        %3553 = vmatpush.msra.mxu0 %v1239
        %3554 = vmatpush.msra.mxu0 %v1237
        %3555 = vmatpush.msra.mxu0 %v1235
        %3556 = vmatpush.msra.mxu0 %v1233
        %3557 = vmatpush.msra.mxu0 %v1231
        %3558 = vmatpush.msra.mxu0 %v1229
        %3559 = vmatpush.msra.mxu0 %v1227
        %3560 = vmatpush.msra.mxu0 %v1225
        %3561 = vmatpush.msra.mxu0 %v1223
        %3562 = vmatpush.msra.mxu0 %v1221
        %3563 = vmatmul.f32.gmra.mxu0 %v1072
        %v3564 = vpop.f32.mrf.mxu0
        %v3565 = vadd.f32 0.0, %v3564
        %3566 = vmatmul.f32.gmra.mxu0 %v1073
        %v3567 = vpop.f32.mrf.mxu0
        %v3568 = vadd.f32 0.0, %v3567
        %3569 = vmatmul.f32.gmra.mxu0 %v1074
        %v3570 = vpop.f32.mrf.mxu0
        %v3571 = vadd.f32 0.0, %v3570
        %3572 = vmatmul.f32.gmra.mxu0 %v1075
        %v3573 = vpop.f32.mrf.mxu0
        %v3574 = vadd.f32 0.0, %v3573
        %3575 = vmatmul.f32.gmra.mxu0 %v1076
        %v3576 = vpop.f32.mrf.mxu0
        %v3577 = vadd.f32 0.0, %v3576
        %3578 = vmatmul.f32.gmra.mxu0 %v1077
        %v3579 = vpop.f32.mrf.mxu0
        %v3580 = vadd.f32 0.0, %v3579
        %3581 = vmatmul.f32.gmra.mxu0 %v1078
        %v3582 = vpop.f32.mrf.mxu0
        %v3583 = vadd.f32 0.0, %v3582
        %3584 = vmatmul.f32.gmra.mxu0 %v1079
        %v3585 = vpop.f32.mrf.mxu0
        %v3586 = vadd.f32 0.0, %v3585
        %3587 = vmatmul.f32.gmra.mxu0 %v1080
        %v3588 = vpop.f32.mrf.mxu0
        %v3589 = vadd.f32 0.0, %v3588
        %3590 = vmatmul.f32.gmra.mxu0 %v1081
        %v3591 = vpop.f32.mrf.mxu0
        %v3592 = vadd.f32 0.0, %v3591
        %3593 = vmatmul.f32.gmra.mxu0 %v1082
        %v3594 = vpop.f32.mrf.mxu0
        %v3595 = vadd.f32 0.0, %v3594
        %3596 = vmatmul.f32.gmra.mxu0 %v1083
        %v3597 = vpop.f32.mrf.mxu0
        %v3598 = vadd.f32 0.0, %v3597
        %3599 = vmatmul.f32.gmra.mxu0 %v1084
        %v3600 = vpop.f32.mrf.mxu0
        %v3601 = vadd.f32 0.0, %v3600
        %3602 = vmatmul.f32.gmra.mxu0 %v1085
        %v3603 = vpop.f32.mrf.mxu0
        %v3604 = vadd.f32 0.0, %v3603
        %3605 = vmatmul.f32.gmra.mxu0 %v1086
        %v3606 = vpop.f32.mrf.mxu0
        %v3607 = vadd.f32 0.0, %v3606
        %3608 = vmatmul.f32.gmra.mxu0 %v1087
        %v3609 = vpop.f32.mrf.mxu0
        %v3610 = vadd.f32 0.0, %v3609
        %3611 = vdwg.mxu0
        %3612 = vmatpush.msra.mxu0 %v1252
        %3613 = vmatpush.msra.mxu0 %v1250
        %3614 = vmatpush.msra.mxu0 %v1248
        %3615 = vmatpush.msra.mxu0 %v1246
        %3616 = vmatpush.msra.mxu0 %v1244
        %3617 = vmatpush.msra.mxu0 %v1242
        %3618 = vmatpush.msra.mxu0 %v1240
        %3619 = vmatpush.msra.mxu0 %v1238
        %3620 = vmatpush.msra.mxu0 %v1236
        %3621 = vmatpush.msra.mxu0 %v1234
        %3622 = vmatpush.msra.mxu0 %v1232
        %3623 = vmatpush.msra.mxu0 %v1230
        %3624 = vmatpush.msra.mxu0 %v1228
        %3625 = vmatpush.msra.mxu0 %v1226
        %3626 = vmatpush.msra.mxu0 %v1224
        %3627 = vmatpush.msra.mxu0 %v1222
        %3628 = vmatmul.f32.gmra.mxu0 %v1072
        %v3629 = vpop.f32.mrf.mxu0
        %v3630 = vadd.f32 0.0, %v3629
        %3631 = vmatmul.f32.gmra.mxu0 %v1073
        %v3632 = vpop.f32.mrf.mxu0
        %v3633 = vadd.f32 0.0, %v3632
        %3634 = vmatmul.f32.gmra.mxu0 %v1074
        %v3635 = vpop.f32.mrf.mxu0
        %v3636 = vadd.f32 0.0, %v3635
        %3637 = vmatmul.f32.gmra.mxu0 %v1075
        %v3638 = vpop.f32.mrf.mxu0
        %v3639 = vadd.f32 0.0, %v3638
        %3640 = vmatmul.f32.gmra.mxu0 %v1076
        %v3641 = vpop.f32.mrf.mxu0
        %v3642 = vadd.f32 0.0, %v3641
        %3643 = vmatmul.f32.gmra.mxu0 %v1077
        %v3644 = vpop.f32.mrf.mxu0
        %v3645 = vadd.f32 0.0, %v3644
        %3646 = vmatmul.f32.gmra.mxu0 %v1078
        %v3647 = vpop.f32.mrf.mxu0
        %v3648 = vadd.f32 0.0, %v3647
        %3649 = vmatmul.f32.gmra.mxu0 %v1079
        %v3650 = vpop.f32.mrf.mxu0
        %v3651 = vadd.f32 0.0, %v3650
        %3652 = vmatmul.f32.gmra.mxu0 %v1080
        %v3653 = vpop.f32.mrf.mxu0
        %v3654 = vadd.f32 0.0, %v3653
        %3655 = vmatmul.f32.gmra.mxu0 %v1081
        %v3656 = vpop.f32.mrf.mxu0
        %v3657 = vadd.f32 0.0, %v3656
        %3658 = vmatmul.f32.gmra.mxu0 %v1082
        %v3659 = vpop.f32.mrf.mxu0
        %v3660 = vadd.f32 0.0, %v3659
        %3661 = vmatmul.f32.gmra.mxu0 %v1083
        %v3662 = vpop.f32.mrf.mxu0
        %v3663 = vadd.f32 0.0, %v3662
        %3664 = vmatmul.f32.gmra.mxu0 %v1084
        %v3665 = vpop.f32.mrf.mxu0
        %v3666 = vadd.f32 0.0, %v3665
        %3667 = vmatmul.f32.gmra.mxu0 %v1085
        %v3668 = vpop.f32.mrf.mxu0
        %v3669 = vadd.f32 0.0, %v3668
        %3670 = vmatmul.f32.gmra.mxu0 %v1086
        %v3671 = vpop.f32.mrf.mxu0
        %v3672 = vadd.f32 0.0, %v3671
        %3673 = vmatmul.f32.gmra.mxu0 %v1087
        %v3674 = vpop.f32.mrf.mxu0
        %v3675 = vadd.f32 0.0, %v3674
        %3676 = vdwg.mxu0
        %v3677 = vadd.f32 %v3515, %v3565
        %v3678 = vadd.f32 %v3516, %v3630
        %v3679 = vadd.f32 %v3517, %v3568
        %v3680 = vadd.f32 %v3518, %v3633
        %v3681 = vadd.f32 %v3519, %v3571
        %v3682 = vadd.f32 %v3520, %v3636
        %v3683 = vadd.f32 %v3521, %v3574
        %v3684 = vadd.f32 %v3522, %v3639
        %v3685 = vadd.f32 %v3523, %v3577
        %v3686 = vadd.f32 %v3524, %v3642
        %v3687 = vadd.f32 %v3525, %v3580
        %v3688 = vadd.f32 %v3526, %v3645
        %v3689 = vadd.f32 %v3527, %v3583
        %v3690 = vadd.f32 %v3528, %v3648
        %v3691 = vadd.f32 %v3529, %v3586
        %v3692 = vadd.f32 %v3530, %v3651
        %v3693 = vadd.f32 %v3531, %v3589
        %v3694 = vadd.f32 %v3532, %v3654
        %v3695 = vadd.f32 %v3533, %v3592
        %v3696 = vadd.f32 %v3534, %v3657
        %v3697 = vadd.f32 %v3535, %v3595
        %v3698 = vadd.f32 %v3536, %v3660
        %v3699 = vadd.f32 %v3537, %v3598
        %v3700 = vadd.f32 %v3538, %v3663
        %v3701 = vadd.f32 %v3539, %v3601
        %v3702 = vadd.f32 %v3540, %v3666
        %v3703 = vadd.f32 %v3541, %v3604
        %v3704 = vadd.f32 %v3542, %v3669
        %v3705 = vadd.f32 %v3543, %v3607
        %v3706 = vadd.f32 %v3544, %v3672
        %v3707 = vadd.f32 %v3545, %v3610
        %v3708 = vadd.f32 %v3546, %v3675
        %3709 = vmatpush.msra.mxu0 %v1284
        %3710 = vmatpush.msra.mxu0 %v1282
        %3711 = vmatpush.msra.mxu0 %v1280
        %3712 = vmatpush.msra.mxu0 %v1278
        %3713 = vmatpush.msra.mxu0 %v1276
        %3714 = vmatpush.msra.mxu0 %v1274
        %3715 = vmatpush.msra.mxu0 %v1272
        %3716 = vmatpush.msra.mxu0 %v1270
        %3717 = vmatpush.msra.mxu0 %v1268
        %3718 = vmatpush.msra.mxu0 %v1266
        %3719 = vmatpush.msra.mxu0 %v1264
        %3720 = vmatpush.msra.mxu0 %v1262
        %3721 = vmatpush.msra.mxu0 %v1260
        %3722 = vmatpush.msra.mxu0 %v1258
        %3723 = vmatpush.msra.mxu0 %v1256
        %3724 = vmatpush.msra.mxu0 %v1254
        %3725 = vmatmul.f32.gmra.mxu0 %v1089
        %v3726 = vpop.f32.mrf.mxu0
        %v3727 = vadd.f32 0.0, %v3726
        %3728 = vmatmul.f32.gmra.mxu0 %v1090
        %v3729 = vpop.f32.mrf.mxu0
        %v3730 = vadd.f32 0.0, %v3729
        %3731 = vmatmul.f32.gmra.mxu0 %v1091
        %v3732 = vpop.f32.mrf.mxu0
        %v3733 = vadd.f32 0.0, %v3732
        %3734 = vmatmul.f32.gmra.mxu0 %v1092
        %v3735 = vpop.f32.mrf.mxu0
        %v3736 = vadd.f32 0.0, %v3735
        %3737 = vmatmul.f32.gmra.mxu0 %v1093
        %v3738 = vpop.f32.mrf.mxu0
        %v3739 = vadd.f32 0.0, %v3738
        %3740 = vmatmul.f32.gmra.mxu0 %v1094
        %v3741 = vpop.f32.mrf.mxu0
        %v3742 = vadd.f32 0.0, %v3741
        %3743 = vmatmul.f32.gmra.mxu0 %v1095
        %v3744 = vpop.f32.mrf.mxu0
        %v3745 = vadd.f32 0.0, %v3744
        %3746 = vmatmul.f32.gmra.mxu0 %v1096
        %v3747 = vpop.f32.mrf.mxu0
        %v3748 = vadd.f32 0.0, %v3747
        %3749 = vmatmul.f32.gmra.mxu0 %v1097
        %v3750 = vpop.f32.mrf.mxu0
        %v3751 = vadd.f32 0.0, %v3750
        %3752 = vmatmul.f32.gmra.mxu0 %v1098
        %v3753 = vpop.f32.mrf.mxu0
        %v3754 = vadd.f32 0.0, %v3753
        %3755 = vmatmul.f32.gmra.mxu0 %v1099
        %v3756 = vpop.f32.mrf.mxu0
        %v3757 = vadd.f32 0.0, %v3756
        %3758 = vmatmul.f32.gmra.mxu0 %v1100
        %v3759 = vpop.f32.mrf.mxu0
        %v3760 = vadd.f32 0.0, %v3759
        %3761 = vmatmul.f32.gmra.mxu0 %v1101
        %v3762 = vpop.f32.mrf.mxu0
        %v3763 = vadd.f32 0.0, %v3762
        %3764 = vmatmul.f32.gmra.mxu0 %v1102
        %v3765 = vpop.f32.mrf.mxu0
        %v3766 = vadd.f32 0.0, %v3765
        %3767 = vmatmul.f32.gmra.mxu0 %v1103
        %v3768 = vpop.f32.mrf.mxu0
        %v3769 = vadd.f32 0.0, %v3768
        %3770 = vmatmul.f32.gmra.mxu0 %v1104
        %v3771 = vpop.f32.mrf.mxu0
        %v3772 = vadd.f32 0.0, %v3771
        %3773 = vdwg.mxu0
        %3774 = vmatpush.msra.mxu0 %v1285
        %3775 = vmatpush.msra.mxu0 %v1283
        %3776 = vmatpush.msra.mxu0 %v1281
        %3777 = vmatpush.msra.mxu0 %v1279
        %3778 = vmatpush.msra.mxu0 %v1277
        %3779 = vmatpush.msra.mxu0 %v1275
        %3780 = vmatpush.msra.mxu0 %v1273
        %3781 = vmatpush.msra.mxu0 %v1271
        %3782 = vmatpush.msra.mxu0 %v1269
        %3783 = vmatpush.msra.mxu0 %v1267
        %3784 = vmatpush.msra.mxu0 %v1265
        %3785 = vmatpush.msra.mxu0 %v1263
        %3786 = vmatpush.msra.mxu0 %v1261
        %3787 = vmatpush.msra.mxu0 %v1259
        %3788 = vmatpush.msra.mxu0 %v1257
        %3789 = vmatpush.msra.mxu0 %v1255
        %3790 = vmatmul.f32.gmra.mxu0 %v1089
        %v3791 = vpop.f32.mrf.mxu0
        %v3792 = vadd.f32 0.0, %v3791
        %3793 = vmatmul.f32.gmra.mxu0 %v1090
        %v3794 = vpop.f32.mrf.mxu0
        %v3795 = vadd.f32 0.0, %v3794
        %3796 = vmatmul.f32.gmra.mxu0 %v1091
        %v3797 = vpop.f32.mrf.mxu0
        %v3798 = vadd.f32 0.0, %v3797
        %3799 = vmatmul.f32.gmra.mxu0 %v1092
        %v3800 = vpop.f32.mrf.mxu0
        %v3801 = vadd.f32 0.0, %v3800
        %3802 = vmatmul.f32.gmra.mxu0 %v1093
        %v3803 = vpop.f32.mrf.mxu0
        %v3804 = vadd.f32 0.0, %v3803
        %3805 = vmatmul.f32.gmra.mxu0 %v1094
        %v3806 = vpop.f32.mrf.mxu0
        %v3807 = vadd.f32 0.0, %v3806
        %3808 = vmatmul.f32.gmra.mxu0 %v1095
        %v3809 = vpop.f32.mrf.mxu0
        %v3810 = vadd.f32 0.0, %v3809
        %3811 = vmatmul.f32.gmra.mxu0 %v1096
        %v3812 = vpop.f32.mrf.mxu0
        %v3813 = vadd.f32 0.0, %v3812
        %3814 = vmatmul.f32.gmra.mxu0 %v1097
        %v3815 = vpop.f32.mrf.mxu0
        %v3816 = vadd.f32 0.0, %v3815
        %3817 = vmatmul.f32.gmra.mxu0 %v1098
        %v3818 = vpop.f32.mrf.mxu0
        %v3819 = vadd.f32 0.0, %v3818
        %3820 = vmatmul.f32.gmra.mxu0 %v1099
        %v3821 = vpop.f32.mrf.mxu0
        %v3822 = vadd.f32 0.0, %v3821
        %3823 = vmatmul.f32.gmra.mxu0 %v1100
        %v3824 = vpop.f32.mrf.mxu0
        %v3825 = vadd.f32 0.0, %v3824
        %3826 = vmatmul.f32.gmra.mxu0 %v1101
        %v3827 = vpop.f32.mrf.mxu0
        %v3828 = vadd.f32 0.0, %v3827
        %3829 = vmatmul.f32.gmra.mxu0 %v1102
        %v3830 = vpop.f32.mrf.mxu0
        %v3831 = vadd.f32 0.0, %v3830
        %3832 = vmatmul.f32.gmra.mxu0 %v1103
        %v3833 = vpop.f32.mrf.mxu0
        %v3834 = vadd.f32 0.0, %v3833
        %3835 = vmatmul.f32.gmra.mxu0 %v1104
        %v3836 = vpop.f32.mrf.mxu0
        %v3837 = vadd.f32 0.0, %v3836
        %3838 = vdwg.mxu0
        %v3839 = vadd.f32 %v3677, %v3727
        %v3840 = vadd.f32 %v3678, %v3792
        %v3841 = vadd.f32 %v3679, %v3730
        %v3842 = vadd.f32 %v3680, %v3795
        %v3843 = vadd.f32 %v3681, %v3733
        %v3844 = vadd.f32 %v3682, %v3798
        %v3845 = vadd.f32 %v3683, %v3736
        %v3846 = vadd.f32 %v3684, %v3801
        %v3847 = vadd.f32 %v3685, %v3739
        %v3848 = vadd.f32 %v3686, %v3804
        %v3849 = vadd.f32 %v3687, %v3742
        %v3850 = vadd.f32 %v3688, %v3807
        %v3851 = vadd.f32 %v3689, %v3745
        %v3852 = vadd.f32 %v3690, %v3810
        %v3853 = vadd.f32 %v3691, %v3748
        %v3854 = vadd.f32 %v3692, %v3813
        %v3855 = vadd.f32 %v3693, %v3751
        %v3856 = vadd.f32 %v3694, %v3816
        %v3857 = vadd.f32 %v3695, %v3754
        %v3858 = vadd.f32 %v3696, %v3819
        %v3859 = vadd.f32 %v3697, %v3757
        %v3860 = vadd.f32 %v3698, %v3822
        %v3861 = vadd.f32 %v3699, %v3760
        %v3862 = vadd.f32 %v3700, %v3825
        %v3863 = vadd.f32 %v3701, %v3763
        %v3864 = vadd.f32 %v3702, %v3828
        %v3865 = vadd.f32 %v3703, %v3766
        %v3866 = vadd.f32 %v3704, %v3831
        %v3867 = vadd.f32 %v3705, %v3769
        %v3868 = vadd.f32 %v3706, %v3834
        %v3869 = vadd.f32 %v3707, %v3772
        %v3870 = vadd.f32 %v3708, %v3837
        %v3871 = vadd.f32 %v3839, %v2199
        %v3872 = vadd.f32 %v3840, %v2200
        %v3873 = vadd.f32 %v3841, %v2199
        %v3874 = vadd.f32 %v3842, %v2200
        %v3875 = vadd.f32 %v3843, %v2199
        %v3876 = vadd.f32 %v3844, %v2200
        %v3877 = vadd.f32 %v3845, %v2199
        %v3878 = vadd.f32 %v3846, %v2200
        %v3879 = vadd.f32 %v3847, %v2199
        %v3880 = vadd.f32 %v3848, %v2200
        %v3881 = vadd.f32 %v3849, %v2199
        %v3882 = vadd.f32 %v3850, %v2200
        %v3883 = vadd.f32 %v3851, %v2199
        %v3884 = vadd.f32 %v3852, %v2200
        %v3885 = vadd.f32 %v3853, %v2199
        %v3886 = vadd.f32 %v3854, %v2200
        %v3887 = vadd.f32 %v3855, %v2199
        %v3888 = vadd.f32 %v3856, %v2200
        %v3889 = vadd.f32 %v3857, %v2199
        %v3890 = vadd.f32 %v3858, %v2200
        %v3891 = vadd.f32 %v3859, %v2199
        %v3892 = vadd.f32 %v3860, %v2200
        %v3893 = vadd.f32 %v3861, %v2199
        %v3894 = vadd.f32 %v3862, %v2200
        %v3895 = vadd.f32 %v3863, %v2199
        %v3896 = vadd.f32 %v3864, %v2200
        %v3897 = vadd.f32 %v3865, %v2199
        %v3898 = vadd.f32 %v3866, %v2200
        %v3899 = vadd.f32 %v3867, %v2199
        %v3900 = vadd.f32 %v3868, %v2200
        %v3901 = vadd.f32 %v3869, %v2199
        %v3902 = vadd.f32 %v3870, %v2200
        %v3903 = vmax.f32 %v3871, 0.0
        %v3904 = vmax.f32 %v3872, 0.0
        %v3905 = vmax.f32 %v3873, 0.0
        %v3906 = vmax.f32 %v3874, 0.0
        %v3907 = vmax.f32 %v3875, 0.0
        %v3908 = vmax.f32 %v3876, 0.0
        %v3909 = vmax.f32 %v3877, 0.0
        %v3910 = vmax.f32 %v3878, 0.0
        %v3911 = vmax.f32 %v3879, 0.0
        %v3912 = vmax.f32 %v3880, 0.0
        %v3913 = vmax.f32 %v3881, 0.0
        %v3914 = vmax.f32 %v3882, 0.0
        %v3915 = vmax.f32 %v3883, 0.0
        %v3916 = vmax.f32 %v3884, 0.0
        %v3917 = vmax.f32 %v3885, 0.0
        %v3918 = vmax.f32 %v3886, 0.0
        %v3919 = vmax.f32 %v3887, 0.0
        %v3920 = vmax.f32 %v3888, 0.0
        %v3921 = vmax.f32 %v3889, 0.0
        %v3922 = vmax.f32 %v3890, 0.0
        %v3923 = vmax.f32 %v3891, 0.0
        %v3924 = vmax.f32 %v3892, 0.0
        %v3925 = vmax.f32 %v3893, 0.0
        %v3926 = vmax.f32 %v3894, 0.0
        %v3927 = vmax.f32 %v3895, 0.0
        %v3928 = vmax.f32 %v3896, 0.0
        %v3929 = vmax.f32 %v3897, 0.0
        %v3930 = vmax.f32 %v3898, 0.0
        %v3931 = vmax.f32 %v3899, 0.0
        %v3932 = vmax.f32 %v3900, 0.0
        %v3933 = vmax.f32 %v3901, 0.0
        %v3934 = vmax.f32 %v3902, 0.0
        %v3935 = vmax.f32 %v3903, %v3904
        %v3936 = vmax.f32 %v3905, %v3906
        %v3937 = vmax.f32 %v3907, %v3908
        %v3938 = vmax.f32 %v3909, %v3910
        %v3939 = vmax.f32 %v3911, %v3912
        %v3940 = vmax.f32 %v3913, %v3914
        %v3941 = vmax.f32 %v3915, %v3916
        %v3942 = vmax.f32 %v3917, %v3918
        %v3943 = vmax.f32 %v3919, %v3920
        %v3944 = vmax.f32 %v3921, %v3922
        %v3945 = vmax.f32 %v3923, %v3924
        %v3946 = vmax.f32 %v3925, %v3926
        %v3947 = vmax.f32 %v3927, %v3928
        %v3948 = vmax.f32 %v3929, %v3930
        %v3949 = vmax.f32 %v3931, %v3932
        %v3950 = vmax.f32 %v3933, %v3934
        %3951 = vmatpush.msra.mxu0 %v1185
        %3952 = vmatpush.msra.mxu0 %v1183
        %3953 = vmatpush.msra.mxu0 %v1181
        %3954 = vmatpush.msra.mxu0 %v1179
        %3955 = vmatpush.msra.mxu0 %v1177
        %3956 = vmatpush.msra.mxu0 %v1175
        %3957 = vmatpush.msra.mxu0 %v1173
        %3958 = vmatpush.msra.mxu0 %v1171
        %3959 = vmatpush.msra.mxu0 %v1169
        %3960 = vmatpush.msra.mxu0 %v1167
        %3961 = vmatpush.msra.mxu0 %v1165
        %3962 = vmatpush.msra.mxu0 %v1163
        %3963 = vmatpush.msra.mxu0 %v1161
        %3964 = vmatpush.msra.mxu0 %v1159
        %3965 = vmatpush.msra.mxu0 %v1157
        %3966 = vmatpush.msra.mxu0 %v1155
        %3967 = vmatmul.f32.gmra.mxu0 %v1055
        %v3968 = vpop.f32.mrf.mxu0
        %v3969 = vadd.f32 0.0, %v3968
        %3970 = vmatmul.f32.gmra.mxu0 %v1056
        %v3971 = vpop.f32.mrf.mxu0
        %v3972 = vadd.f32 0.0, %v3971
        %3973 = vmatmul.f32.gmra.mxu0 %v1057
        %v3974 = vpop.f32.mrf.mxu0
        %v3975 = vadd.f32 0.0, %v3974
        %3976 = vmatmul.f32.gmra.mxu0 %v1058
        %v3977 = vpop.f32.mrf.mxu0
        %v3978 = vadd.f32 0.0, %v3977
        %3979 = vmatmul.f32.gmra.mxu0 %v1059
        %v3980 = vpop.f32.mrf.mxu0
        %v3981 = vadd.f32 0.0, %v3980
        %3982 = vmatmul.f32.gmra.mxu0 %v1060
        %v3983 = vpop.f32.mrf.mxu0
        %v3984 = vadd.f32 0.0, %v3983
        %3985 = vmatmul.f32.gmra.mxu0 %v1061
        %v3986 = vpop.f32.mrf.mxu0
        %v3987 = vadd.f32 0.0, %v3986
        %3988 = vmatmul.f32.gmra.mxu0 %v1062
        %v3989 = vpop.f32.mrf.mxu0
        %v3990 = vadd.f32 0.0, %v3989
        %3991 = vmatmul.f32.gmra.mxu0 %v1063
        %v3992 = vpop.f32.mrf.mxu0
        %v3993 = vadd.f32 0.0, %v3992
        %3994 = vmatmul.f32.gmra.mxu0 %v1064
        %v3995 = vpop.f32.mrf.mxu0
        %v3996 = vadd.f32 0.0, %v3995
        %3997 = vmatmul.f32.gmra.mxu0 %v1065
        %v3998 = vpop.f32.mrf.mxu0
        %v3999 = vadd.f32 0.0, %v3998
        %4000 = vmatmul.f32.gmra.mxu0 %v1066
        %v4001 = vpop.f32.mrf.mxu0
        %v4002 = vadd.f32 0.0, %v4001
        %4003 = vmatmul.f32.gmra.mxu0 %v1067
        %v4004 = vpop.f32.mrf.mxu0
        %v4005 = vadd.f32 0.0, %v4004
        %4006 = vmatmul.f32.gmra.mxu0 %v1068
        %v4007 = vpop.f32.mrf.mxu0
        %v4008 = vadd.f32 0.0, %v4007
        %4009 = vmatmul.f32.gmra.mxu0 %v1069
        %v4010 = vpop.f32.mrf.mxu0
        %v4011 = vadd.f32 0.0, %v4010
        %4012 = vmatmul.f32.gmra.mxu0 %v1070
        %v4013 = vpop.f32.mrf.mxu0
        %v4014 = vadd.f32 0.0, %v4013
        %4015 = vdwg.mxu0
        %4016 = vmatpush.msra.mxu0 %v1186
        %4017 = vmatpush.msra.mxu0 %v1184
        %4018 = vmatpush.msra.mxu0 %v1182
        %4019 = vmatpush.msra.mxu0 %v1180
        %4020 = vmatpush.msra.mxu0 %v1178
        %4021 = vmatpush.msra.mxu0 %v1176
        %4022 = vmatpush.msra.mxu0 %v1174
        %4023 = vmatpush.msra.mxu0 %v1172
        %4024 = vmatpush.msra.mxu0 %v1170
        %4025 = vmatpush.msra.mxu0 %v1168
        %4026 = vmatpush.msra.mxu0 %v1166
        %4027 = vmatpush.msra.mxu0 %v1164
        %4028 = vmatpush.msra.mxu0 %v1162
        %4029 = vmatpush.msra.mxu0 %v1160
        %4030 = vmatpush.msra.mxu0 %v1158
        %4031 = vmatpush.msra.mxu0 %v1156
        %4032 = vmatmul.f32.gmra.mxu0 %v1055
        %v4033 = vpop.f32.mrf.mxu0
        %v4034 = vadd.f32 0.0, %v4033
        %4035 = vmatmul.f32.gmra.mxu0 %v1056
        %v4036 = vpop.f32.mrf.mxu0
        %v4037 = vadd.f32 0.0, %v4036
        %4038 = vmatmul.f32.gmra.mxu0 %v1057
        %v4039 = vpop.f32.mrf.mxu0
        %v4040 = vadd.f32 0.0, %v4039
        %4041 = vmatmul.f32.gmra.mxu0 %v1058
        %v4042 = vpop.f32.mrf.mxu0
        %v4043 = vadd.f32 0.0, %v4042
        %4044 = vmatmul.f32.gmra.mxu0 %v1059
        %v4045 = vpop.f32.mrf.mxu0
        %v4046 = vadd.f32 0.0, %v4045
        %4047 = vmatmul.f32.gmra.mxu0 %v1060
        %v4048 = vpop.f32.mrf.mxu0
        %v4049 = vadd.f32 0.0, %v4048
        %4050 = vmatmul.f32.gmra.mxu0 %v1061
        %v4051 = vpop.f32.mrf.mxu0
        %v4052 = vadd.f32 0.0, %v4051
        %4053 = vmatmul.f32.gmra.mxu0 %v1062
        %v4054 = vpop.f32.mrf.mxu0
        %v4055 = vadd.f32 0.0, %v4054
        %4056 = vmatmul.f32.gmra.mxu0 %v1063
        %v4057 = vpop.f32.mrf.mxu0
        %v4058 = vadd.f32 0.0, %v4057
        %4059 = vmatmul.f32.gmra.mxu0 %v1064
        %v4060 = vpop.f32.mrf.mxu0
        %v4061 = vadd.f32 0.0, %v4060
        %4062 = vmatmul.f32.gmra.mxu0 %v1065
        %v4063 = vpop.f32.mrf.mxu0
        %v4064 = vadd.f32 0.0, %v4063
        %4065 = vmatmul.f32.gmra.mxu0 %v1066
        %v4066 = vpop.f32.mrf.mxu0
        %v4067 = vadd.f32 0.0, %v4066
        %4068 = vmatmul.f32.gmra.mxu0 %v1067
        %v4069 = vpop.f32.mrf.mxu0
        %v4070 = vadd.f32 0.0, %v4069
        %4071 = vmatmul.f32.gmra.mxu0 %v1068
        %v4072 = vpop.f32.mrf.mxu0
        %v4073 = vadd.f32 0.0, %v4072
        %4074 = vmatmul.f32.gmra.mxu0 %v1069
        %v4075 = vpop.f32.mrf.mxu0
        %v4076 = vadd.f32 0.0, %v4075
        %4077 = vmatmul.f32.gmra.mxu0 %v1070
        %v4078 = vpop.f32.mrf.mxu0
        %v4079 = vadd.f32 0.0, %v4078
        %4080 = vdwg.mxu0
        %4081 = vmatpush.msra.mxu0 %v1152
        %4082 = vmatpush.msra.mxu0 %v1150
        %4083 = vmatpush.msra.mxu0 %v1148
        %4084 = vmatpush.msra.mxu0 %v1146
        %4085 = vmatpush.msra.mxu0 %v1144
        %4086 = vmatpush.msra.mxu0 %v1142
        %4087 = vmatpush.msra.mxu0 %v1140
        %4088 = vmatpush.msra.mxu0 %v1138
        %4089 = vmatpush.msra.mxu0 %v1136
        %4090 = vmatpush.msra.mxu0 %v1134
        %4091 = vmatpush.msra.mxu0 %v1132
        %4092 = vmatpush.msra.mxu0 %v1130
        %4093 = vmatpush.msra.mxu0 %v1128
        %4094 = vmatpush.msra.mxu0 %v1126
        %4095 = vmatpush.msra.mxu0 %v1124
        %4096 = vmatpush.msra.mxu0 %v1122
        %4097 = vmatmul.f32.gmra.mxu0 %v1038
        %v4098 = vpop.f32.mrf.mxu0
        %v4099 = vadd.f32 %v3969, %v4098
        %4100 = vmatmul.f32.gmra.mxu0 %v1039
        %v4101 = vpop.f32.mrf.mxu0
        %v4102 = vadd.f32 %v3972, %v4101
        %4103 = vmatmul.f32.gmra.mxu0 %v1040
        %v4104 = vpop.f32.mrf.mxu0
        %v4105 = vadd.f32 %v3975, %v4104
        %4106 = vmatmul.f32.gmra.mxu0 %v1041
        %v4107 = vpop.f32.mrf.mxu0
        %v4108 = vadd.f32 %v3978, %v4107
        %4109 = vmatmul.f32.gmra.mxu0 %v1042
        %v4110 = vpop.f32.mrf.mxu0
        %v4111 = vadd.f32 %v3981, %v4110
        %4112 = vmatmul.f32.gmra.mxu0 %v1043
        %v4113 = vpop.f32.mrf.mxu0
        %v4114 = vadd.f32 %v3984, %v4113
        %4115 = vmatmul.f32.gmra.mxu0 %v1044
        %v4116 = vpop.f32.mrf.mxu0
        %v4117 = vadd.f32 %v3987, %v4116
        %4118 = vmatmul.f32.gmra.mxu0 %v1045
        %v4119 = vpop.f32.mrf.mxu0
        %v4120 = vadd.f32 %v3990, %v4119
        %4121 = vmatmul.f32.gmra.mxu0 %v1046
        %v4122 = vpop.f32.mrf.mxu0
        %v4123 = vadd.f32 %v3993, %v4122
        %4124 = vmatmul.f32.gmra.mxu0 %v1047
        %v4125 = vpop.f32.mrf.mxu0
        %v4126 = vadd.f32 %v3996, %v4125
        %4127 = vmatmul.f32.gmra.mxu0 %v1048
        %v4128 = vpop.f32.mrf.mxu0
        %v4129 = vadd.f32 %v3999, %v4128
        %4130 = vmatmul.f32.gmra.mxu0 %v1049
        %v4131 = vpop.f32.mrf.mxu0
        %v4132 = vadd.f32 %v4002, %v4131
        %4133 = vmatmul.f32.gmra.mxu0 %v1050
        %v4134 = vpop.f32.mrf.mxu0
        %v4135 = vadd.f32 %v4005, %v4134
        %4136 = vmatmul.f32.gmra.mxu0 %v1051
        %v4137 = vpop.f32.mrf.mxu0
        %v4138 = vadd.f32 %v4008, %v4137
        %4139 = vmatmul.f32.gmra.mxu0 %v1052
        %v4140 = vpop.f32.mrf.mxu0
        %v4141 = vadd.f32 %v4011, %v4140
        %4142 = vmatmul.f32.gmra.mxu0 %v1053
        %v4143 = vpop.f32.mrf.mxu0
        %v4144 = vadd.f32 %v4014, %v4143
        %4145 = vdwg.mxu0
        %4146 = vmatpush.msra.mxu0 %v1153
        %4147 = vmatpush.msra.mxu0 %v1151
        %4148 = vmatpush.msra.mxu0 %v1149
        %4149 = vmatpush.msra.mxu0 %v1147
        %4150 = vmatpush.msra.mxu0 %v1145
        %4151 = vmatpush.msra.mxu0 %v1143
        %4152 = vmatpush.msra.mxu0 %v1141
        %4153 = vmatpush.msra.mxu0 %v1139
        %4154 = vmatpush.msra.mxu0 %v1137
        %4155 = vmatpush.msra.mxu0 %v1135
        %4156 = vmatpush.msra.mxu0 %v1133
        %4157 = vmatpush.msra.mxu0 %v1131
        %4158 = vmatpush.msra.mxu0 %v1129
        %4159 = vmatpush.msra.mxu0 %v1127
        %4160 = vmatpush.msra.mxu0 %v1125
        %4161 = vmatpush.msra.mxu0 %v1123
        %4162 = vmatmul.f32.gmra.mxu0 %v1038
        %v4163 = vpop.f32.mrf.mxu0
        %v4164 = vadd.f32 %v4034, %v4163
        %4165 = vmatmul.f32.gmra.mxu0 %v1039
        %v4166 = vpop.f32.mrf.mxu0
        %v4167 = vadd.f32 %v4037, %v4166
        %4168 = vmatmul.f32.gmra.mxu0 %v1040
        %v4169 = vpop.f32.mrf.mxu0
        %v4170 = vadd.f32 %v4040, %v4169
        %4171 = vmatmul.f32.gmra.mxu0 %v1041
        %v4172 = vpop.f32.mrf.mxu0
        %v4173 = vadd.f32 %v4043, %v4172
        %4174 = vmatmul.f32.gmra.mxu0 %v1042
        %v4175 = vpop.f32.mrf.mxu0
        %v4176 = vadd.f32 %v4046, %v4175
        %4177 = vmatmul.f32.gmra.mxu0 %v1043
        %v4178 = vpop.f32.mrf.mxu0
        %v4179 = vadd.f32 %v4049, %v4178
        %4180 = vmatmul.f32.gmra.mxu0 %v1044
        %v4181 = vpop.f32.mrf.mxu0
        %v4182 = vadd.f32 %v4052, %v4181
        %4183 = vmatmul.f32.gmra.mxu0 %v1045
        %v4184 = vpop.f32.mrf.mxu0
        %v4185 = vadd.f32 %v4055, %v4184
        %4186 = vmatmul.f32.gmra.mxu0 %v1046
        %v4187 = vpop.f32.mrf.mxu0
        %v4188 = vadd.f32 %v4058, %v4187
        %4189 = vmatmul.f32.gmra.mxu0 %v1047
        %v4190 = vpop.f32.mrf.mxu0
        %v4191 = vadd.f32 %v4061, %v4190
        %4192 = vmatmul.f32.gmra.mxu0 %v1048
        %v4193 = vpop.f32.mrf.mxu0
        %v4194 = vadd.f32 %v4064, %v4193
        %4195 = vmatmul.f32.gmra.mxu0 %v1049
        %v4196 = vpop.f32.mrf.mxu0
        %v4197 = vadd.f32 %v4067, %v4196
        %4198 = vmatmul.f32.gmra.mxu0 %v1050
        %v4199 = vpop.f32.mrf.mxu0
        %v4200 = vadd.f32 %v4070, %v4199
        %4201 = vmatmul.f32.gmra.mxu0 %v1051
        %v4202 = vpop.f32.mrf.mxu0
        %v4203 = vadd.f32 %v4073, %v4202
        %4204 = vmatmul.f32.gmra.mxu0 %v1052
        %v4205 = vpop.f32.mrf.mxu0
        %v4206 = vadd.f32 %v4076, %v4205
        %4207 = vmatmul.f32.gmra.mxu0 %v1053
        %v4208 = vpop.f32.mrf.mxu0
        %v4209 = vadd.f32 %v4079, %v4208
        %4210 = vdwg.mxu0
        %4211 = vmatpush.msra.mxu0 %v1218
        %4212 = vmatpush.msra.mxu0 %v1216
        %4213 = vmatpush.msra.mxu0 %v1214
        %4214 = vmatpush.msra.mxu0 %v1212
        %4215 = vmatpush.msra.mxu0 %v1210
        %4216 = vmatpush.msra.mxu0 %v1208
        %4217 = vmatpush.msra.mxu0 %v1206
        %4218 = vmatpush.msra.mxu0 %v1204
        %4219 = vmatpush.msra.mxu0 %v1202
        %4220 = vmatpush.msra.mxu0 %v1200
        %4221 = vmatpush.msra.mxu0 %v1198
        %4222 = vmatpush.msra.mxu0 %v1196
        %4223 = vmatpush.msra.mxu0 %v1194
        %4224 = vmatpush.msra.mxu0 %v1192
        %4225 = vmatpush.msra.mxu0 %v1190
        %4226 = vmatpush.msra.mxu0 %v1188
        %4227 = vmatmul.f32.gmra.mxu0 %v1072
        %v4228 = vpop.f32.mrf.mxu0
        %v4229 = vadd.f32 0.0, %v4228
        %4230 = vmatmul.f32.gmra.mxu0 %v1073
        %v4231 = vpop.f32.mrf.mxu0
        %v4232 = vadd.f32 0.0, %v4231
        %4233 = vmatmul.f32.gmra.mxu0 %v1074
        %v4234 = vpop.f32.mrf.mxu0
        %v4235 = vadd.f32 0.0, %v4234
        %4236 = vmatmul.f32.gmra.mxu0 %v1075
        %v4237 = vpop.f32.mrf.mxu0
        %v4238 = vadd.f32 0.0, %v4237
        %4239 = vmatmul.f32.gmra.mxu0 %v1076
        %v4240 = vpop.f32.mrf.mxu0
        %v4241 = vadd.f32 0.0, %v4240
        %4242 = vmatmul.f32.gmra.mxu0 %v1077
        %v4243 = vpop.f32.mrf.mxu0
        %v4244 = vadd.f32 0.0, %v4243
        %4245 = vmatmul.f32.gmra.mxu0 %v1078
        %v4246 = vpop.f32.mrf.mxu0
        %v4247 = vadd.f32 0.0, %v4246
        %4248 = vmatmul.f32.gmra.mxu0 %v1079
        %v4249 = vpop.f32.mrf.mxu0
        %v4250 = vadd.f32 0.0, %v4249
        %4251 = vmatmul.f32.gmra.mxu0 %v1080
        %v4252 = vpop.f32.mrf.mxu0
        %v4253 = vadd.f32 0.0, %v4252
        %4254 = vmatmul.f32.gmra.mxu0 %v1081
        %v4255 = vpop.f32.mrf.mxu0
        %v4256 = vadd.f32 0.0, %v4255
        %4257 = vmatmul.f32.gmra.mxu0 %v1082
        %v4258 = vpop.f32.mrf.mxu0
        %v4259 = vadd.f32 0.0, %v4258
        %4260 = vmatmul.f32.gmra.mxu0 %v1083
        %v4261 = vpop.f32.mrf.mxu0
        %v4262 = vadd.f32 0.0, %v4261
        %4263 = vmatmul.f32.gmra.mxu0 %v1084
        %v4264 = vpop.f32.mrf.mxu0
        %v4265 = vadd.f32 0.0, %v4264
        %4266 = vmatmul.f32.gmra.mxu0 %v1085
        %v4267 = vpop.f32.mrf.mxu0
        %v4268 = vadd.f32 0.0, %v4267
        %4269 = vmatmul.f32.gmra.mxu0 %v1086
        %v4270 = vpop.f32.mrf.mxu0
        %v4271 = vadd.f32 0.0, %v4270
        %4272 = vmatmul.f32.gmra.mxu0 %v1087
        %v4273 = vpop.f32.mrf.mxu0
        %v4274 = vadd.f32 0.0, %v4273
        %4275 = vdwg.mxu0
        %4276 = vmatpush.msra.mxu0 %v1219
        %4277 = vmatpush.msra.mxu0 %v1217
        %4278 = vmatpush.msra.mxu0 %v1215
        %4279 = vmatpush.msra.mxu0 %v1213
        %4280 = vmatpush.msra.mxu0 %v1211
        %4281 = vmatpush.msra.mxu0 %v1209
        %4282 = vmatpush.msra.mxu0 %v1207
        %4283 = vmatpush.msra.mxu0 %v1205
        %4284 = vmatpush.msra.mxu0 %v1203
        %4285 = vmatpush.msra.mxu0 %v1201
        %4286 = vmatpush.msra.mxu0 %v1199
        %4287 = vmatpush.msra.mxu0 %v1197
        %4288 = vmatpush.msra.mxu0 %v1195
        %4289 = vmatpush.msra.mxu0 %v1193
        %4290 = vmatpush.msra.mxu0 %v1191
        %4291 = vmatpush.msra.mxu0 %v1189
        %4292 = vmatmul.f32.gmra.mxu0 %v1072
        %v4293 = vpop.f32.mrf.mxu0
        %v4294 = vadd.f32 0.0, %v4293
        %4295 = vmatmul.f32.gmra.mxu0 %v1073
        %v4296 = vpop.f32.mrf.mxu0
        %v4297 = vadd.f32 0.0, %v4296
        %4298 = vmatmul.f32.gmra.mxu0 %v1074
        %v4299 = vpop.f32.mrf.mxu0
        %v4300 = vadd.f32 0.0, %v4299
        %4301 = vmatmul.f32.gmra.mxu0 %v1075
        %v4302 = vpop.f32.mrf.mxu0
        %v4303 = vadd.f32 0.0, %v4302
        %4304 = vmatmul.f32.gmra.mxu0 %v1076
        %v4305 = vpop.f32.mrf.mxu0
        %v4306 = vadd.f32 0.0, %v4305
        %4307 = vmatmul.f32.gmra.mxu0 %v1077
        %v4308 = vpop.f32.mrf.mxu0
        %v4309 = vadd.f32 0.0, %v4308
        %4310 = vmatmul.f32.gmra.mxu0 %v1078
        %v4311 = vpop.f32.mrf.mxu0
        %v4312 = vadd.f32 0.0, %v4311
        %4313 = vmatmul.f32.gmra.mxu0 %v1079
        %v4314 = vpop.f32.mrf.mxu0
        %v4315 = vadd.f32 0.0, %v4314
        %4316 = vmatmul.f32.gmra.mxu0 %v1080
        %v4317 = vpop.f32.mrf.mxu0
        %v4318 = vadd.f32 0.0, %v4317
        %4319 = vmatmul.f32.gmra.mxu0 %v1081
        %v4320 = vpop.f32.mrf.mxu0
        %v4321 = vadd.f32 0.0, %v4320
        %4322 = vmatmul.f32.gmra.mxu0 %v1082
        %v4323 = vpop.f32.mrf.mxu0
        %v4324 = vadd.f32 0.0, %v4323
        %4325 = vmatmul.f32.gmra.mxu0 %v1083
        %v4326 = vpop.f32.mrf.mxu0
        %v4327 = vadd.f32 0.0, %v4326
        %4328 = vmatmul.f32.gmra.mxu0 %v1084
        %v4329 = vpop.f32.mrf.mxu0
        %v4330 = vadd.f32 0.0, %v4329
        %4331 = vmatmul.f32.gmra.mxu0 %v1085
        %v4332 = vpop.f32.mrf.mxu0
        %v4333 = vadd.f32 0.0, %v4332
        %4334 = vmatmul.f32.gmra.mxu0 %v1086
        %v4335 = vpop.f32.mrf.mxu0
        %v4336 = vadd.f32 0.0, %v4335
        %4337 = vmatmul.f32.gmra.mxu0 %v1087
        %v4338 = vpop.f32.mrf.mxu0
        %v4339 = vadd.f32 0.0, %v4338
        %4340 = vdwg.mxu0
        %v4341 = vadd.f32 %v4099, %v4229
        %v4342 = vadd.f32 %v4164, %v4294
        %v4343 = vadd.f32 %v4102, %v4232
        %v4344 = vadd.f32 %v4167, %v4297
        %v4345 = vadd.f32 %v4105, %v4235
        %v4346 = vadd.f32 %v4170, %v4300
        %v4347 = vadd.f32 %v4108, %v4238
        %v4348 = vadd.f32 %v4173, %v4303
        %v4349 = vadd.f32 %v4111, %v4241
        %v4350 = vadd.f32 %v4176, %v4306
        %v4351 = vadd.f32 %v4114, %v4244
        %v4352 = vadd.f32 %v4179, %v4309
        %v4353 = vadd.f32 %v4117, %v4247
        %v4354 = vadd.f32 %v4182, %v4312
        %v4355 = vadd.f32 %v4120, %v4250
        %v4356 = vadd.f32 %v4185, %v4315
        %v4357 = vadd.f32 %v4123, %v4253
        %v4358 = vadd.f32 %v4188, %v4318
        %v4359 = vadd.f32 %v4126, %v4256
        %v4360 = vadd.f32 %v4191, %v4321
        %v4361 = vadd.f32 %v4129, %v4259
        %v4362 = vadd.f32 %v4194, %v4324
        %v4363 = vadd.f32 %v4132, %v4262
        %v4364 = vadd.f32 %v4197, %v4327
        %v4365 = vadd.f32 %v4135, %v4265
        %v4366 = vadd.f32 %v4200, %v4330
        %v4367 = vadd.f32 %v4138, %v4268
        %v4368 = vadd.f32 %v4203, %v4333
        %v4369 = vadd.f32 %v4141, %v4271
        %v4370 = vadd.f32 %v4206, %v4336
        %v4371 = vadd.f32 %v4144, %v4274
        %v4372 = vadd.f32 %v4209, %v4339
        %4373 = vmatpush.msra.mxu0 %v1251
        %4374 = vmatpush.msra.mxu0 %v1249
        %4375 = vmatpush.msra.mxu0 %v1247
        %4376 = vmatpush.msra.mxu0 %v1245
        %4377 = vmatpush.msra.mxu0 %v1243
        %4378 = vmatpush.msra.mxu0 %v1241
        %4379 = vmatpush.msra.mxu0 %v1239
        %4380 = vmatpush.msra.mxu0 %v1237
        %4381 = vmatpush.msra.mxu0 %v1235
        %4382 = vmatpush.msra.mxu0 %v1233
        %4383 = vmatpush.msra.mxu0 %v1231
        %4384 = vmatpush.msra.mxu0 %v1229
        %4385 = vmatpush.msra.mxu0 %v1227
        %4386 = vmatpush.msra.mxu0 %v1225
        %4387 = vmatpush.msra.mxu0 %v1223
        %4388 = vmatpush.msra.mxu0 %v1221
        %4389 = vmatmul.f32.gmra.mxu0 %v1089
        %v4390 = vpop.f32.mrf.mxu0
        %v4391 = vadd.f32 0.0, %v4390
        %4392 = vmatmul.f32.gmra.mxu0 %v1090
        %v4393 = vpop.f32.mrf.mxu0
        %v4394 = vadd.f32 0.0, %v4393
        %4395 = vmatmul.f32.gmra.mxu0 %v1091
        %v4396 = vpop.f32.mrf.mxu0
        %v4397 = vadd.f32 0.0, %v4396
        %4398 = vmatmul.f32.gmra.mxu0 %v1092
        %v4399 = vpop.f32.mrf.mxu0
        %v4400 = vadd.f32 0.0, %v4399
        %4401 = vmatmul.f32.gmra.mxu0 %v1093
        %v4402 = vpop.f32.mrf.mxu0
        %v4403 = vadd.f32 0.0, %v4402
        %4404 = vmatmul.f32.gmra.mxu0 %v1094
        %v4405 = vpop.f32.mrf.mxu0
        %v4406 = vadd.f32 0.0, %v4405
        %4407 = vmatmul.f32.gmra.mxu0 %v1095
        %v4408 = vpop.f32.mrf.mxu0
        %v4409 = vadd.f32 0.0, %v4408
        %4410 = vmatmul.f32.gmra.mxu0 %v1096
        %v4411 = vpop.f32.mrf.mxu0
        %v4412 = vadd.f32 0.0, %v4411
        %4413 = vmatmul.f32.gmra.mxu0 %v1097
        %v4414 = vpop.f32.mrf.mxu0
        %v4415 = vadd.f32 0.0, %v4414
        %4416 = vmatmul.f32.gmra.mxu0 %v1098
        %v4417 = vpop.f32.mrf.mxu0
        %v4418 = vadd.f32 0.0, %v4417
        %4419 = vmatmul.f32.gmra.mxu0 %v1099
        %v4420 = vpop.f32.mrf.mxu0
        %v4421 = vadd.f32 0.0, %v4420
        %4422 = vmatmul.f32.gmra.mxu0 %v1100
        %v4423 = vpop.f32.mrf.mxu0
        %v4424 = vadd.f32 0.0, %v4423
        %4425 = vmatmul.f32.gmra.mxu0 %v1101
        %v4426 = vpop.f32.mrf.mxu0
        %v4427 = vadd.f32 0.0, %v4426
        %4428 = vmatmul.f32.gmra.mxu0 %v1102
        %v4429 = vpop.f32.mrf.mxu0
        %v4430 = vadd.f32 0.0, %v4429
        %4431 = vmatmul.f32.gmra.mxu0 %v1103
        %v4432 = vpop.f32.mrf.mxu0
        %v4433 = vadd.f32 0.0, %v4432
        %4434 = vmatmul.f32.gmra.mxu0 %v1104
        %v4435 = vpop.f32.mrf.mxu0
        %v4436 = vadd.f32 0.0, %v4435
        %4437 = vdwg.mxu0
        %4438 = vmatpush.msra.mxu0 %v1252
        %4439 = vmatpush.msra.mxu0 %v1250
        %4440 = vmatpush.msra.mxu0 %v1248
        %4441 = vmatpush.msra.mxu0 %v1246
        %4442 = vmatpush.msra.mxu0 %v1244
        %4443 = vmatpush.msra.mxu0 %v1242
        %4444 = vmatpush.msra.mxu0 %v1240
        %4445 = vmatpush.msra.mxu0 %v1238
        %4446 = vmatpush.msra.mxu0 %v1236
        %4447 = vmatpush.msra.mxu0 %v1234
        %4448 = vmatpush.msra.mxu0 %v1232
        %4449 = vmatpush.msra.mxu0 %v1230
        %4450 = vmatpush.msra.mxu0 %v1228
        %4451 = vmatpush.msra.mxu0 %v1226
        %4452 = vmatpush.msra.mxu0 %v1224
        %4453 = vmatpush.msra.mxu0 %v1222
        %4454 = vmatmul.f32.gmra.mxu0 %v1089
        %v4455 = vpop.f32.mrf.mxu0
        %v4456 = vadd.f32 0.0, %v4455
        %4457 = vmatmul.f32.gmra.mxu0 %v1090
        %v4458 = vpop.f32.mrf.mxu0
        %v4459 = vadd.f32 0.0, %v4458
        %4460 = vmatmul.f32.gmra.mxu0 %v1091
        %v4461 = vpop.f32.mrf.mxu0
        %v4462 = vadd.f32 0.0, %v4461
        %4463 = vmatmul.f32.gmra.mxu0 %v1092
        %v4464 = vpop.f32.mrf.mxu0
        %v4465 = vadd.f32 0.0, %v4464
        %4466 = vmatmul.f32.gmra.mxu0 %v1093
        %v4467 = vpop.f32.mrf.mxu0
        %v4468 = vadd.f32 0.0, %v4467
        %4469 = vmatmul.f32.gmra.mxu0 %v1094
        %v4470 = vpop.f32.mrf.mxu0
        %v4471 = vadd.f32 0.0, %v4470
        %4472 = vmatmul.f32.gmra.mxu0 %v1095
        %v4473 = vpop.f32.mrf.mxu0
        %v4474 = vadd.f32 0.0, %v4473
        %4475 = vmatmul.f32.gmra.mxu0 %v1096
        %v4476 = vpop.f32.mrf.mxu0
        %v4477 = vadd.f32 0.0, %v4476
        %4478 = vmatmul.f32.gmra.mxu0 %v1097
        %v4479 = vpop.f32.mrf.mxu0
        %v4480 = vadd.f32 0.0, %v4479
        %4481 = vmatmul.f32.gmra.mxu0 %v1098
        %v4482 = vpop.f32.mrf.mxu0
        %v4483 = vadd.f32 0.0, %v4482
        %4484 = vmatmul.f32.gmra.mxu0 %v1099
        %v4485 = vpop.f32.mrf.mxu0
        %v4486 = vadd.f32 0.0, %v4485
        %4487 = vmatmul.f32.gmra.mxu0 %v1100
        %v4488 = vpop.f32.mrf.mxu0
        %v4489 = vadd.f32 0.0, %v4488
        %4490 = vmatmul.f32.gmra.mxu0 %v1101
        %v4491 = vpop.f32.mrf.mxu0
        %v4492 = vadd.f32 0.0, %v4491
        %4493 = vmatmul.f32.gmra.mxu0 %v1102
        %v4494 = vpop.f32.mrf.mxu0
        %v4495 = vadd.f32 0.0, %v4494
        %4496 = vmatmul.f32.gmra.mxu0 %v1103
        %v4497 = vpop.f32.mrf.mxu0
        %v4498 = vadd.f32 0.0, %v4497
        %4499 = vmatmul.f32.gmra.mxu0 %v1104
        %v4500 = vpop.f32.mrf.mxu0
        %v4501 = vadd.f32 0.0, %v4500
        %4502 = vdwg.mxu0
        %v4503 = vadd.f32 %v4341, %v4391
        %v4504 = vadd.f32 %v4342, %v4456
        %v4505 = vadd.f32 %v4343, %v4394
        %v4506 = vadd.f32 %v4344, %v4459
        %v4507 = vadd.f32 %v4345, %v4397
        %v4508 = vadd.f32 %v4346, %v4462
        %v4509 = vadd.f32 %v4347, %v4400
        %v4510 = vadd.f32 %v4348, %v4465
        %v4511 = vadd.f32 %v4349, %v4403
        %v4512 = vadd.f32 %v4350, %v4468
        %v4513 = vadd.f32 %v4351, %v4406
        %v4514 = vadd.f32 %v4352, %v4471
        %v4515 = vadd.f32 %v4353, %v4409
        %v4516 = vadd.f32 %v4354, %v4474
        %v4517 = vadd.f32 %v4355, %v4412
        %v4518 = vadd.f32 %v4356, %v4477
        %v4519 = vadd.f32 %v4357, %v4415
        %v4520 = vadd.f32 %v4358, %v4480
        %v4521 = vadd.f32 %v4359, %v4418
        %v4522 = vadd.f32 %v4360, %v4483
        %v4523 = vadd.f32 %v4361, %v4421
        %v4524 = vadd.f32 %v4362, %v4486
        %v4525 = vadd.f32 %v4363, %v4424
        %v4526 = vadd.f32 %v4364, %v4489
        %v4527 = vadd.f32 %v4365, %v4427
        %v4528 = vadd.f32 %v4366, %v4492
        %v4529 = vadd.f32 %v4367, %v4430
        %v4530 = vadd.f32 %v4368, %v4495
        %v4531 = vadd.f32 %v4369, %v4433
        %v4532 = vadd.f32 %v4370, %v4498
        %v4533 = vadd.f32 %v4371, %v4436
        %v4534 = vadd.f32 %v4372, %v4501
        %4535 = vmatpush.msra.mxu0 %v1284
        %4536 = vmatpush.msra.mxu0 %v1282
        %4537 = vmatpush.msra.mxu0 %v1280
        %4538 = vmatpush.msra.mxu0 %v1278
        %4539 = vmatpush.msra.mxu0 %v1276
        %4540 = vmatpush.msra.mxu0 %v1274
        %4541 = vmatpush.msra.mxu0 %v1272
        %4542 = vmatpush.msra.mxu0 %v1270
        %4543 = vmatpush.msra.mxu0 %v1268
        %4544 = vmatpush.msra.mxu0 %v1266
        %4545 = vmatpush.msra.mxu0 %v1264
        %4546 = vmatpush.msra.mxu0 %v1262
        %4547 = vmatpush.msra.mxu0 %v1260
        %4548 = vmatpush.msra.mxu0 %v1258
        %4549 = vmatpush.msra.mxu0 %v1256
        %4550 = vmatpush.msra.mxu0 %v1254
        %4551 = vmatmul.f32.gmra.mxu0 %v1106
        %v4552 = vpop.f32.mrf.mxu0
        %v4553 = vadd.f32 0.0, %v4552
        %4554 = vmatmul.f32.gmra.mxu0 %v1107
        %v4555 = vpop.f32.mrf.mxu0
        %v4556 = vadd.f32 0.0, %v4555
        %4557 = vmatmul.f32.gmra.mxu0 %v1108
        %v4558 = vpop.f32.mrf.mxu0
        %v4559 = vadd.f32 0.0, %v4558
        %4560 = vmatmul.f32.gmra.mxu0 %v1109
        %v4561 = vpop.f32.mrf.mxu0
        %v4562 = vadd.f32 0.0, %v4561
        %4563 = vmatmul.f32.gmra.mxu0 %v1110
        %v4564 = vpop.f32.mrf.mxu0
        %v4565 = vadd.f32 0.0, %v4564
        %4566 = vmatmul.f32.gmra.mxu0 %v1111
        %v4567 = vpop.f32.mrf.mxu0
        %v4568 = vadd.f32 0.0, %v4567
        %4569 = vmatmul.f32.gmra.mxu0 %v1112
        %v4570 = vpop.f32.mrf.mxu0
        %v4571 = vadd.f32 0.0, %v4570
        %4572 = vmatmul.f32.gmra.mxu0 %v1113
        %v4573 = vpop.f32.mrf.mxu0
        %v4574 = vadd.f32 0.0, %v4573
        %4575 = vmatmul.f32.gmra.mxu0 %v1114
        %v4576 = vpop.f32.mrf.mxu0
        %v4577 = vadd.f32 0.0, %v4576
        %4578 = vmatmul.f32.gmra.mxu0 %v1115
        %v4579 = vpop.f32.mrf.mxu0
        %v4580 = vadd.f32 0.0, %v4579
        %4581 = vmatmul.f32.gmra.mxu0 %v1116
        %v4582 = vpop.f32.mrf.mxu0
        %v4583 = vadd.f32 0.0, %v4582
        %4584 = vmatmul.f32.gmra.mxu0 %v1117
        %v4585 = vpop.f32.mrf.mxu0
        %v4586 = vadd.f32 0.0, %v4585
        %4587 = vmatmul.f32.gmra.mxu0 %v1118
        %v4588 = vpop.f32.mrf.mxu0
        %v4589 = vadd.f32 0.0, %v4588
        %4590 = vmatmul.f32.gmra.mxu0 %v1119
        %v4591 = vpop.f32.mrf.mxu0
        %v4592 = vadd.f32 0.0, %v4591
        %4593 = vmatmul.f32.gmra.mxu0 %v1120
        %v4594 = vpop.f32.mrf.mxu0
        %v4595 = vadd.f32 0.0, %v4594
        %4596 = vmatmul.f32.gmra.mxu0 %v1121
        %v4597 = vpop.f32.mrf.mxu0
        %v4598 = vadd.f32 0.0, %v4597
        %4599 = vdwg.mxu0
        %4600 = vmatpush.msra.mxu0 %v1285
        %4601 = vmatpush.msra.mxu0 %v1283
        %4602 = vmatpush.msra.mxu0 %v1281
        %4603 = vmatpush.msra.mxu0 %v1279
        %4604 = vmatpush.msra.mxu0 %v1277
        %4605 = vmatpush.msra.mxu0 %v1275
        %4606 = vmatpush.msra.mxu0 %v1273
        %4607 = vmatpush.msra.mxu0 %v1271
        %4608 = vmatpush.msra.mxu0 %v1269
        %4609 = vmatpush.msra.mxu0 %v1267
        %4610 = vmatpush.msra.mxu0 %v1265
        %4611 = vmatpush.msra.mxu0 %v1263
        %4612 = vmatpush.msra.mxu0 %v1261
        %4613 = vmatpush.msra.mxu0 %v1259
        %4614 = vmatpush.msra.mxu0 %v1257
        %4615 = vmatpush.msra.mxu0 %v1255
        %4616 = vmatmul.f32.gmra.mxu0 %v1106
        %v4617 = vpop.f32.mrf.mxu0
        %v4618 = vadd.f32 0.0, %v4617
        %4619 = vmatmul.f32.gmra.mxu0 %v1107
        %v4620 = vpop.f32.mrf.mxu0
        %v4621 = vadd.f32 0.0, %v4620
        %4622 = vmatmul.f32.gmra.mxu0 %v1108
        %v4623 = vpop.f32.mrf.mxu0
        %v4624 = vadd.f32 0.0, %v4623
        %4625 = vmatmul.f32.gmra.mxu0 %v1109
        %v4626 = vpop.f32.mrf.mxu0
        %v4627 = vadd.f32 0.0, %v4626
        %4628 = vmatmul.f32.gmra.mxu0 %v1110
        %v4629 = vpop.f32.mrf.mxu0
        %v4630 = vadd.f32 0.0, %v4629
        %4631 = vmatmul.f32.gmra.mxu0 %v1111
        %v4632 = vpop.f32.mrf.mxu0
        %v4633 = vadd.f32 0.0, %v4632
        %4634 = vmatmul.f32.gmra.mxu0 %v1112
        %v4635 = vpop.f32.mrf.mxu0
        %v4636 = vadd.f32 0.0, %v4635
        %4637 = vmatmul.f32.gmra.mxu0 %v1113
        %v4638 = vpop.f32.mrf.mxu0
        %v4639 = vadd.f32 0.0, %v4638
        %4640 = vmatmul.f32.gmra.mxu0 %v1114
        %v4641 = vpop.f32.mrf.mxu0
        %v4642 = vadd.f32 0.0, %v4641
        %4643 = vmatmul.f32.gmra.mxu0 %v1115
        %v4644 = vpop.f32.mrf.mxu0
        %v4645 = vadd.f32 0.0, %v4644
        %4646 = vmatmul.f32.gmra.mxu0 %v1116
        %v4647 = vpop.f32.mrf.mxu0
        %v4648 = vadd.f32 0.0, %v4647
        %4649 = vmatmul.f32.gmra.mxu0 %v1117
        %v4650 = vpop.f32.mrf.mxu0
        %v4651 = vadd.f32 0.0, %v4650
        %4652 = vmatmul.f32.gmra.mxu0 %v1118
        %v4653 = vpop.f32.mrf.mxu0
        %v4654 = vadd.f32 0.0, %v4653
        %4655 = vmatmul.f32.gmra.mxu0 %v1119
        %v4656 = vpop.f32.mrf.mxu0
        %v4657 = vadd.f32 0.0, %v4656
        %4658 = vmatmul.f32.gmra.mxu0 %v1120
        %v4659 = vpop.f32.mrf.mxu0
        %v4660 = vadd.f32 0.0, %v4659
        %4661 = vmatmul.f32.gmra.mxu0 %v1121
        %v4662 = vpop.f32.mrf.mxu0
        %v4663 = vadd.f32 0.0, %v4662
        %4664 = vdwg.mxu0
        %v4665 = vadd.f32 %v4503, %v4553
        %v4666 = vadd.f32 %v4504, %v4618
        %v4667 = vadd.f32 %v4505, %v4556
        %v4668 = vadd.f32 %v4506, %v4621
        %v4669 = vadd.f32 %v4507, %v4559
        %v4670 = vadd.f32 %v4508, %v4624
        %v4671 = vadd.f32 %v4509, %v4562
        %v4672 = vadd.f32 %v4510, %v4627
        %v4673 = vadd.f32 %v4511, %v4565
        %v4674 = vadd.f32 %v4512, %v4630
        %v4675 = vadd.f32 %v4513, %v4568
        %v4676 = vadd.f32 %v4514, %v4633
        %v4677 = vadd.f32 %v4515, %v4571
        %v4678 = vadd.f32 %v4516, %v4636
        %v4679 = vadd.f32 %v4517, %v4574
        %v4680 = vadd.f32 %v4518, %v4639
        %v4681 = vadd.f32 %v4519, %v4577
        %v4682 = vadd.f32 %v4520, %v4642
        %v4683 = vadd.f32 %v4521, %v4580
        %v4684 = vadd.f32 %v4522, %v4645
        %v4685 = vadd.f32 %v4523, %v4583
        %v4686 = vadd.f32 %v4524, %v4648
        %v4687 = vadd.f32 %v4525, %v4586
        %v4688 = vadd.f32 %v4526, %v4651
        %v4689 = vadd.f32 %v4527, %v4589
        %v4690 = vadd.f32 %v4528, %v4654
        %v4691 = vadd.f32 %v4529, %v4592
        %v4692 = vadd.f32 %v4530, %v4657
        %v4693 = vadd.f32 %v4531, %v4595
        %v4694 = vadd.f32 %v4532, %v4660
        %v4695 = vadd.f32 %v4533, %v4598
        %v4696 = vadd.f32 %v4534, %v4663
        %v4697 = vadd.f32 %v4665, %v2199
        %v4698 = vadd.f32 %v4666, %v2200
        %v4699 = vadd.f32 %v4667, %v2199
        %v4700 = vadd.f32 %v4668, %v2200
        %v4701 = vadd.f32 %v4669, %v2199
        %v4702 = vadd.f32 %v4670, %v2200
        %v4703 = vadd.f32 %v4671, %v2199
        %v4704 = vadd.f32 %v4672, %v2200
        %v4705 = vadd.f32 %v4673, %v2199
        %v4706 = vadd.f32 %v4674, %v2200
        %v4707 = vadd.f32 %v4675, %v2199
        %v4708 = vadd.f32 %v4676, %v2200
        %v4709 = vadd.f32 %v4677, %v2199
        %v4710 = vadd.f32 %v4678, %v2200
        %v4711 = vadd.f32 %v4679, %v2199
        %v4712 = vadd.f32 %v4680, %v2200
        %v4713 = vadd.f32 %v4681, %v2199
        %v4714 = vadd.f32 %v4682, %v2200
        %v4715 = vadd.f32 %v4683, %v2199
        %v4716 = vadd.f32 %v4684, %v2200
        %v4717 = vadd.f32 %v4685, %v2199
        %v4718 = vadd.f32 %v4686, %v2200
        %v4719 = vadd.f32 %v4687, %v2199
        %v4720 = vadd.f32 %v4688, %v2200
        %v4721 = vadd.f32 %v4689, %v2199
        %v4722 = vadd.f32 %v4690, %v2200
        %v4723 = vadd.f32 %v4691, %v2199
        %v4724 = vadd.f32 %v4692, %v2200
        %v4725 = vadd.f32 %v4693, %v2199
        %v4726 = vadd.f32 %v4694, %v2200
        %v4727 = vadd.f32 %v4695, %v2199
        %v4728 = vadd.f32 %v4696, %v2200
        %v4729 = vmax.f32 %v4697, 0.0
        %v4730 = vmax.f32 %v4698, 0.0
        %v4731 = vmax.f32 %v4699, 0.0
        %v4732 = vmax.f32 %v4700, 0.0
        %v4733 = vmax.f32 %v4701, 0.0
        %v4734 = vmax.f32 %v4702, 0.0
        %v4735 = vmax.f32 %v4703, 0.0
        %v4736 = vmax.f32 %v4704, 0.0
        %v4737 = vmax.f32 %v4705, 0.0
        %v4738 = vmax.f32 %v4706, 0.0
        %v4739 = vmax.f32 %v4707, 0.0
        %v4740 = vmax.f32 %v4708, 0.0
        %v4741 = vmax.f32 %v4709, 0.0
        %v4742 = vmax.f32 %v4710, 0.0
        %v4743 = vmax.f32 %v4711, 0.0
        %v4744 = vmax.f32 %v4712, 0.0
        %v4745 = vmax.f32 %v4713, 0.0
        %v4746 = vmax.f32 %v4714, 0.0
        %v4747 = vmax.f32 %v4715, 0.0
        %v4748 = vmax.f32 %v4716, 0.0
        %v4749 = vmax.f32 %v4717, 0.0
        %v4750 = vmax.f32 %v4718, 0.0
        %v4751 = vmax.f32 %v4719, 0.0
        %v4752 = vmax.f32 %v4720, 0.0
        %v4753 = vmax.f32 %v4721, 0.0
        %v4754 = vmax.f32 %v4722, 0.0
        %v4755 = vmax.f32 %v4723, 0.0
        %v4756 = vmax.f32 %v4724, 0.0
        %v4757 = vmax.f32 %v4725, 0.0
        %v4758 = vmax.f32 %v4726, 0.0
        %v4759 = vmax.f32 %v4727, 0.0
        %v4760 = vmax.f32 %v4728, 0.0
        %v4761 = vmax.f32 %v4729, %v4730
        %v4762 = vmax.f32 %v4731, %v4732
        %v4763 = vmax.f32 %v4733, %v4734
        %v4764 = vmax.f32 %v4735, %v4736
        %v4765 = vmax.f32 %v4737, %v4738
        %v4766 = vmax.f32 %v4739, %v4740
        %v4767 = vmax.f32 %v4741, %v4742
        %v4768 = vmax.f32 %v4743, %v4744
        %v4769 = vmax.f32 %v4745, %v4746
        %v4770 = vmax.f32 %v4747, %v4748
        %v4771 = vmax.f32 %v4749, %v4750
        %v4772 = vmax.f32 %v4751, %v4752
        %v4773 = vmax.f32 %v4753, %v4754
        %v4774 = vmax.f32 %v4755, %v4756
        %v4775 = vmax.f32 %v4757, %v4758
        %v4776 = vmax.f32 %v4759, %v4760
        %v4777 = vmax.f32 %v3935, %v4761
        %v4778 = vmax.f32 %v3936, %v4762
        %v4779 = vmax.f32 %v3937, %v4763
        %v4780 = vmax.f32 %v3938, %v4764
        %v4781 = vmax.f32 %v3939, %v4765
        %v4782 = vmax.f32 %v3940, %v4766
        %v4783 = vmax.f32 %v3941, %v4767
        %v4784 = vmax.f32 %v3942, %v4768
        %v4785 = vmax.f32 %v3943, %v4769
        %v4786 = vmax.f32 %v3944, %v4770
        %v4787 = vmax.f32 %v3945, %v4771
        %v4788 = vmax.f32 %v3946, %v4772
        %v4789 = vmax.f32 %v3947, %v4773
        %v4790 = vmax.f32 %v3948, %v4774
        %v4791 = vmax.f32 %v3949, %v4775
        %v4792 = vmax.f32 %v3950, %v4776
        %v4793 = vld [vmem:[%s5] sm:$0xff]
        %v4794 = vld [vmem:[%s5 + $0x8] sm:$0xff]
        %v4795 = vld [vmem:[%s5 + $0x10] sm:$0xff]
        %v4796 = vld [vmem:[%s5 + $0x18] sm:$0xff]
        %v4797 = vld [vmem:[%s5 + $0x20] sm:$0xff]
        %v4798 = vld [vmem:[%s5 + $0x28] sm:$0xff]
        %v4799 = vld [vmem:[%s5 + $0x30] sm:$0xff]
        %v4800 = vld [vmem:[%s5 + $0x38] sm:$0xff]
        %v4801 = vld [vmem:[%s5 + $0x40] sm:$0xff]
        %v4802 = vld [vmem:[%s5 + $0x48] sm:$0xff]
        %v4803 = vld [vmem:[%s5 + $0x50] sm:$0xff]
        %v4804 = vld [vmem:[%s5 + $0x58] sm:$0xff]
        %v4805 = vld [vmem:[%s5 + $0x60] sm:$0xff]
        %v4806 = vld [vmem:[%s5 + $0x68] sm:$0xff]
        %v4807 = vld [vmem:[%s5 + $0x70] sm:$0xff]
        %v4808 = vld [vmem:[%s5 + $0x78] sm:$0xff]
        %4809 = vmatpush.msra.mxu0 %v3124
        %4810 = vmatpush.msra.mxu0 %v3123
        %4811 = vmatpush.msra.mxu0 %v3122
        %4812 = vmatpush.msra.mxu0 %v3121
        %4813 = vmatpush.msra.mxu0 %v3120
        %4814 = vmatpush.msra.mxu0 %v3119
        %4815 = vmatpush.msra.mxu0 %v3118
        %4816 = vmatpush.msra.mxu0 %v3117
        %4817 = vmatpush.msra.mxu0 %v3116
        %4818 = vmatpush.msra.mxu0 %v3115
        %4819 = vmatpush.msra.mxu0 %v3114
        %4820 = vmatpush.msra.mxu0 %v3113
        %4821 = vmatpush.msra.mxu0 %v3112
        %4822 = vmatpush.msra.mxu0 %v3111
        %4823 = vmatpush.msra.mxu0 %v3110
        %4824 = vmatpush.msra.mxu0 %v3109
        %4825 = vmatmul.f32.gmra.mxu0 %v4793
        %v4826 = vpop.f32.mrf.mxu0
        %v4827 = vadd.f32 0.0, %v4826
        %4828 = vmatmul.f32.gmra.mxu0 %v4794
        %v4829 = vpop.f32.mrf.mxu0
        %v4830 = vadd.f32 0.0, %v4829
        %4831 = vmatmul.f32.gmra.mxu0 %v4795
        %v4832 = vpop.f32.mrf.mxu0
        %v4833 = vadd.f32 0.0, %v4832
        %4834 = vmatmul.f32.gmra.mxu0 %v4796
        %v4835 = vpop.f32.mrf.mxu0
        %v4836 = vadd.f32 0.0, %v4835
        %4837 = vmatmul.f32.gmra.mxu0 %v4797
        %v4838 = vpop.f32.mrf.mxu0
        %v4839 = vadd.f32 0.0, %v4838
        %4840 = vmatmul.f32.gmra.mxu0 %v4798
        %v4841 = vpop.f32.mrf.mxu0
        %v4842 = vadd.f32 0.0, %v4841
        %4843 = vmatmul.f32.gmra.mxu0 %v4799
        %v4844 = vpop.f32.mrf.mxu0
        %v4845 = vadd.f32 0.0, %v4844
        %4846 = vmatmul.f32.gmra.mxu0 %v4800
        %v4847 = vpop.f32.mrf.mxu0
        %v4848 = vadd.f32 0.0, %v4847
        %4849 = vmatmul.f32.gmra.mxu0 %v4801
        %v4850 = vpop.f32.mrf.mxu0
        %v4851 = vadd.f32 0.0, %v4850
        %4852 = vmatmul.f32.gmra.mxu0 %v4802
        %v4853 = vpop.f32.mrf.mxu0
        %v4854 = vadd.f32 0.0, %v4853
        %4855 = vmatmul.f32.gmra.mxu0 %v4803
        %v4856 = vpop.f32.mrf.mxu0
        %v4857 = vadd.f32 0.0, %v4856
        %4858 = vmatmul.f32.gmra.mxu0 %v4804
        %v4859 = vpop.f32.mrf.mxu0
        %v4860 = vadd.f32 0.0, %v4859
        %4861 = vmatmul.f32.gmra.mxu0 %v4805
        %v4862 = vpop.f32.mrf.mxu0
        %v4863 = vadd.f32 0.0, %v4862
        %4864 = vmatmul.f32.gmra.mxu0 %v4806
        %v4865 = vpop.f32.mrf.mxu0
        %v4866 = vadd.f32 0.0, %v4865
        %4867 = vmatmul.f32.gmra.mxu0 %v4807
        %v4868 = vpop.f32.mrf.mxu0
        %v4869 = vadd.f32 0.0, %v4868
        %4870 = vmatmul.f32.gmra.mxu0 %v4808
        %v4871 = vpop.f32.mrf.mxu0
        %v4872 = vadd.f32 0.0, %v4871
        %4873 = vdwg.mxu0
        %4874 = vmatpush.msra.mxu0 %v4792
        %4875 = vmatpush.msra.mxu0 %v4791
        %4876 = vmatpush.msra.mxu0 %v4790
        %4877 = vmatpush.msra.mxu0 %v4789
        %4878 = vmatpush.msra.mxu0 %v4788
        %4879 = vmatpush.msra.mxu0 %v4787
        %4880 = vmatpush.msra.mxu0 %v4786
        %4881 = vmatpush.msra.mxu0 %v4785
        %4882 = vmatpush.msra.mxu0 %v4784
        %4883 = vmatpush.msra.mxu0 %v4783
        %4884 = vmatpush.msra.mxu0 %v4782
        %4885 = vmatpush.msra.mxu0 %v4781
        %4886 = vmatpush.msra.mxu0 %v4780
        %4887 = vmatpush.msra.mxu0 %v4779
        %4888 = vmatpush.msra.mxu0 %v4778
        %4889 = vmatpush.msra.mxu0 %v4777
        %4890 = vmatmul.f32.gmra.mxu0 %v4793
        %v4891 = vpop.f32.mrf.mxu0
        %v4892 = vadd.f32 0.0, %v4891
        %4893 = vmatmul.f32.gmra.mxu0 %v4794
        %v4894 = vpop.f32.mrf.mxu0
        %v4895 = vadd.f32 0.0, %v4894
        %4896 = vmatmul.f32.gmra.mxu0 %v4795
        %v4897 = vpop.f32.mrf.mxu0
        %v4898 = vadd.f32 0.0, %v4897
        %4899 = vmatmul.f32.gmra.mxu0 %v4796
        %v4900 = vpop.f32.mrf.mxu0
        %v4901 = vadd.f32 0.0, %v4900
        %4902 = vmatmul.f32.gmra.mxu0 %v4797
        %v4903 = vpop.f32.mrf.mxu0
        %v4904 = vadd.f32 0.0, %v4903
        %4905 = vmatmul.f32.gmra.mxu0 %v4798
        %v4906 = vpop.f32.mrf.mxu0
        %v4907 = vadd.f32 0.0, %v4906
        %4908 = vmatmul.f32.gmra.mxu0 %v4799
        %v4909 = vpop.f32.mrf.mxu0
        %v4910 = vadd.f32 0.0, %v4909
        %4911 = vmatmul.f32.gmra.mxu0 %v4800
        %v4912 = vpop.f32.mrf.mxu0
        %v4913 = vadd.f32 0.0, %v4912
        %4914 = vmatmul.f32.gmra.mxu0 %v4801
        %v4915 = vpop.f32.mrf.mxu0
        %v4916 = vadd.f32 0.0, %v4915
        %4917 = vmatmul.f32.gmra.mxu0 %v4802
        %v4918 = vpop.f32.mrf.mxu0
        %v4919 = vadd.f32 0.0, %v4918
        %4920 = vmatmul.f32.gmra.mxu0 %v4803
        %v4921 = vpop.f32.mrf.mxu0
        %v4922 = vadd.f32 0.0, %v4921
        %4923 = vmatmul.f32.gmra.mxu0 %v4804
        %v4924 = vpop.f32.mrf.mxu0
        %v4925 = vadd.f32 0.0, %v4924
        %4926 = vmatmul.f32.gmra.mxu0 %v4805
        %v4927 = vpop.f32.mrf.mxu0
        %v4928 = vadd.f32 0.0, %v4927
        %4929 = vmatmul.f32.gmra.mxu0 %v4806
        %v4930 = vpop.f32.mrf.mxu0
        %v4931 = vadd.f32 0.0, %v4930
        %4932 = vmatmul.f32.gmra.mxu0 %v4807
        %v4933 = vpop.f32.mrf.mxu0
        %v4934 = vadd.f32 0.0, %v4933
        %4935 = vmatmul.f32.gmra.mxu0 %v4808
        %v4936 = vpop.f32.mrf.mxu0
        %v4937 = vadd.f32 0.0, %v4936
        %4938 = vdwg.mxu0
        %s4939 = scalar_lea.vmem %s5, 128
        %v4940 = vld [vmem:[%s4939] sm:$0xff]
        %v4941 = vld [vmem:[%s4939 + $0x8] sm:$0xff]
        %v4942 = vld [vmem:[%s4939 + $0x10] sm:$0xff]
        %v4943 = vld [vmem:[%s4939 + $0x18] sm:$0xff]
        %v4944 = vld [vmem:[%s4939 + $0x20] sm:$0xff]
        %v4945 = vld [vmem:[%s4939 + $0x28] sm:$0xff]
        %v4946 = vld [vmem:[%s4939 + $0x30] sm:$0xff]
        %v4947 = vld [vmem:[%s4939 + $0x38] sm:$0xff]
        %v4948 = vld [vmem:[%s4939 + $0x40] sm:$0xff]
        %v4949 = vld [vmem:[%s4939 + $0x48] sm:$0xff]
        %v4950 = vld [vmem:[%s4939 + $0x50] sm:$0xff]
        %v4951 = vld [vmem:[%s4939 + $0x58] sm:$0xff]
        %v4952 = vld [vmem:[%s4939 + $0x60] sm:$0xff]
        %v4953 = vld [vmem:[%s4939 + $0x68] sm:$0xff]
        %v4954 = vld [vmem:[%s4939 + $0x70] sm:$0xff]
        %v4955 = vld [vmem:[%s4939 + $0x78] sm:$0xff]
        %4956 = vmatpush.msra.mxu0 %v3124
        %4957 = vmatpush.msra.mxu0 %v3123
        %4958 = vmatpush.msra.mxu0 %v3122
        %4959 = vmatpush.msra.mxu0 %v3121
        %4960 = vmatpush.msra.mxu0 %v3120
        %4961 = vmatpush.msra.mxu0 %v3119
        %4962 = vmatpush.msra.mxu0 %v3118
        %4963 = vmatpush.msra.mxu0 %v3117
        %4964 = vmatpush.msra.mxu0 %v3116
        %4965 = vmatpush.msra.mxu0 %v3115
        %4966 = vmatpush.msra.mxu0 %v3114
        %4967 = vmatpush.msra.mxu0 %v3113
        %4968 = vmatpush.msra.mxu0 %v3112
        %4969 = vmatpush.msra.mxu0 %v3111
        %4970 = vmatpush.msra.mxu0 %v3110
        %4971 = vmatpush.msra.mxu0 %v3109
        %4972 = vmatmul.f32.gmra.mxu0 %v4940
        %v4973 = vpop.f32.mrf.mxu0
        %v4974 = vadd.f32 0.0, %v4973
        %4975 = vmatmul.f32.gmra.mxu0 %v4941
        %v4976 = vpop.f32.mrf.mxu0
        %v4977 = vadd.f32 0.0, %v4976
        %4978 = vmatmul.f32.gmra.mxu0 %v4942
        %v4979 = vpop.f32.mrf.mxu0
        %v4980 = vadd.f32 0.0, %v4979
        %4981 = vmatmul.f32.gmra.mxu0 %v4943
        %v4982 = vpop.f32.mrf.mxu0
        %v4983 = vadd.f32 0.0, %v4982
        %4984 = vmatmul.f32.gmra.mxu0 %v4944
        %v4985 = vpop.f32.mrf.mxu0
        %v4986 = vadd.f32 0.0, %v4985
        %4987 = vmatmul.f32.gmra.mxu0 %v4945
        %v4988 = vpop.f32.mrf.mxu0
        %v4989 = vadd.f32 0.0, %v4988
        %4990 = vmatmul.f32.gmra.mxu0 %v4946
        %v4991 = vpop.f32.mrf.mxu0
        %v4992 = vadd.f32 0.0, %v4991
        %4993 = vmatmul.f32.gmra.mxu0 %v4947
        %v4994 = vpop.f32.mrf.mxu0
        %v4995 = vadd.f32 0.0, %v4994
        %4996 = vmatmul.f32.gmra.mxu0 %v4948
        %v4997 = vpop.f32.mrf.mxu0
        %v4998 = vadd.f32 0.0, %v4997
        %4999 = vmatmul.f32.gmra.mxu0 %v4949
        %v5000 = vpop.f32.mrf.mxu0
        %v5001 = vadd.f32 0.0, %v5000
        %5002 = vmatmul.f32.gmra.mxu0 %v4950
        %v5003 = vpop.f32.mrf.mxu0
        %v5004 = vadd.f32 0.0, %v5003
        %5005 = vmatmul.f32.gmra.mxu0 %v4951
        %v5006 = vpop.f32.mrf.mxu0
        %v5007 = vadd.f32 0.0, %v5006
        %5008 = vmatmul.f32.gmra.mxu0 %v4952
        %v5009 = vpop.f32.mrf.mxu0
        %v5010 = vadd.f32 0.0, %v5009
        %5011 = vmatmul.f32.gmra.mxu0 %v4953
        %v5012 = vpop.f32.mrf.mxu0
        %v5013 = vadd.f32 0.0, %v5012
        %5014 = vmatmul.f32.gmra.mxu0 %v4954
        %v5015 = vpop.f32.mrf.mxu0
        %v5016 = vadd.f32 0.0, %v5015
        %5017 = vmatmul.f32.gmra.mxu0 %v4955
        %v5018 = vpop.f32.mrf.mxu0
        %v5019 = vadd.f32 0.0, %v5018
        %5020 = vdwg.mxu0
        %5021 = vmatpush.msra.mxu0 %v4792
        %5022 = vmatpush.msra.mxu0 %v4791
        %5023 = vmatpush.msra.mxu0 %v4790
        %5024 = vmatpush.msra.mxu0 %v4789
        %5025 = vmatpush.msra.mxu0 %v4788
        %5026 = vmatpush.msra.mxu0 %v4787
        %5027 = vmatpush.msra.mxu0 %v4786
        %5028 = vmatpush.msra.mxu0 %v4785
        %5029 = vmatpush.msra.mxu0 %v4784
        %5030 = vmatpush.msra.mxu0 %v4783
        %5031 = vmatpush.msra.mxu0 %v4782
        %5032 = vmatpush.msra.mxu0 %v4781
        %5033 = vmatpush.msra.mxu0 %v4780
        %5034 = vmatpush.msra.mxu0 %v4779
        %5035 = vmatpush.msra.mxu0 %v4778
        %5036 = vmatpush.msra.mxu0 %v4777
        %5037 = vmatmul.f32.gmra.mxu0 %v4940
        %v5038 = vpop.f32.mrf.mxu0
        %v5039 = vadd.f32 0.0, %v5038
        %5040 = vmatmul.f32.gmra.mxu0 %v4941
        %v5041 = vpop.f32.mrf.mxu0
        %v5042 = vadd.f32 0.0, %v5041
        %5043 = vmatmul.f32.gmra.mxu0 %v4942
        %v5044 = vpop.f32.mrf.mxu0
        %v5045 = vadd.f32 0.0, %v5044
        %5046 = vmatmul.f32.gmra.mxu0 %v4943
        %v5047 = vpop.f32.mrf.mxu0
        %v5048 = vadd.f32 0.0, %v5047
        %5049 = vmatmul.f32.gmra.mxu0 %v4944
        %v5050 = vpop.f32.mrf.mxu0
        %v5051 = vadd.f32 0.0, %v5050
        %5052 = vmatmul.f32.gmra.mxu0 %v4945
        %v5053 = vpop.f32.mrf.mxu0
        %v5054 = vadd.f32 0.0, %v5053
        %5055 = vmatmul.f32.gmra.mxu0 %v4946
        %v5056 = vpop.f32.mrf.mxu0
        %v5057 = vadd.f32 0.0, %v5056
        %5058 = vmatmul.f32.gmra.mxu0 %v4947
        %v5059 = vpop.f32.mrf.mxu0
        %v5060 = vadd.f32 0.0, %v5059
        %5061 = vmatmul.f32.gmra.mxu0 %v4948
        %v5062 = vpop.f32.mrf.mxu0
        %v5063 = vadd.f32 0.0, %v5062
        %5064 = vmatmul.f32.gmra.mxu0 %v4949
        %v5065 = vpop.f32.mrf.mxu0
        %v5066 = vadd.f32 0.0, %v5065
        %5067 = vmatmul.f32.gmra.mxu0 %v4950
        %v5068 = vpop.f32.mrf.mxu0
        %v5069 = vadd.f32 0.0, %v5068
        %5070 = vmatmul.f32.gmra.mxu0 %v4951
        %v5071 = vpop.f32.mrf.mxu0
        %v5072 = vadd.f32 0.0, %v5071
        %5073 = vmatmul.f32.gmra.mxu0 %v4952
        %v5074 = vpop.f32.mrf.mxu0
        %v5075 = vadd.f32 0.0, %v5074
        %5076 = vmatmul.f32.gmra.mxu0 %v4953
        %v5077 = vpop.f32.mrf.mxu0
        %v5078 = vadd.f32 0.0, %v5077
        %5079 = vmatmul.f32.gmra.mxu0 %v4954
        %v5080 = vpop.f32.mrf.mxu0
        %v5081 = vadd.f32 0.0, %v5080
        %5082 = vmatmul.f32.gmra.mxu0 %v4955
        %v5083 = vpop.f32.mrf.mxu0
        %v5084 = vadd.f32 0.0, %v5083
        %5085 = vdwg.mxu0
        %5086 = vmatpush.msra.mxu0 %v1349
        %5087 = vmatpush.msra.mxu0 %v1347
        %5088 = vmatpush.msra.mxu0 %v1345
        %5089 = vmatpush.msra.mxu0 %v1343
        %5090 = vmatpush.msra.mxu0 %v1341
        %5091 = vmatpush.msra.mxu0 %v1339
        %5092 = vmatpush.msra.mxu0 %v1337
        %5093 = vmatpush.msra.mxu0 %v1335
        %5094 = vmatpush.msra.mxu0 %v1333
        %5095 = vmatpush.msra.mxu0 %v1331
        %5096 = vmatpush.msra.mxu0 %v1329
        %5097 = vmatpush.msra.mxu0 %v1327
        %5098 = vmatpush.msra.mxu0 %v1325
        %5099 = vmatpush.msra.mxu0 %v1323
        %5100 = vmatpush.msra.mxu0 %v1321
        %5101 = vmatpush.msra.mxu0 %v1319
        %5102 = vmatmul.f32.gmra.mxu0 %v4777
        %v5103 = vpop.f32.mrf.mxu0
        %v5104 = vadd.f32 0.0, %v5103
        %5105 = vmatmul.f32.gmra.mxu0 %v4778
        %v5106 = vpop.f32.mrf.mxu0
        %v5107 = vadd.f32 0.0, %v5106
        %5108 = vmatmul.f32.gmra.mxu0 %v4779
        %v5109 = vpop.f32.mrf.mxu0
        %v5110 = vadd.f32 0.0, %v5109
        %5111 = vmatmul.f32.gmra.mxu0 %v4780
        %v5112 = vpop.f32.mrf.mxu0
        %v5113 = vadd.f32 0.0, %v5112
        %5114 = vmatmul.f32.gmra.mxu0 %v4781
        %v5115 = vpop.f32.mrf.mxu0
        %v5116 = vadd.f32 0.0, %v5115
        %5117 = vmatmul.f32.gmra.mxu0 %v4782
        %v5118 = vpop.f32.mrf.mxu0
        %v5119 = vadd.f32 0.0, %v5118
        %5120 = vmatmul.f32.gmra.mxu0 %v4783
        %v5121 = vpop.f32.mrf.mxu0
        %v5122 = vadd.f32 0.0, %v5121
        %5123 = vmatmul.f32.gmra.mxu0 %v4784
        %v5124 = vpop.f32.mrf.mxu0
        %v5125 = vadd.f32 0.0, %v5124
        %5126 = vmatmul.f32.gmra.mxu0 %v4785
        %v5127 = vpop.f32.mrf.mxu0
        %v5128 = vadd.f32 0.0, %v5127
        %5129 = vmatmul.f32.gmra.mxu0 %v4786
        %v5130 = vpop.f32.mrf.mxu0
        %v5131 = vadd.f32 0.0, %v5130
        %5132 = vmatmul.f32.gmra.mxu0 %v4787
        %v5133 = vpop.f32.mrf.mxu0
        %v5134 = vadd.f32 0.0, %v5133
        %5135 = vmatmul.f32.gmra.mxu0 %v4788
        %v5136 = vpop.f32.mrf.mxu0
        %v5137 = vadd.f32 0.0, %v5136
        %5138 = vmatmul.f32.gmra.mxu0 %v4789
        %v5139 = vpop.f32.mrf.mxu0
        %v5140 = vadd.f32 0.0, %v5139
        %5141 = vmatmul.f32.gmra.mxu0 %v4790
        %v5142 = vpop.f32.mrf.mxu0
        %v5143 = vadd.f32 0.0, %v5142
        %5144 = vmatmul.f32.gmra.mxu0 %v4791
        %v5145 = vpop.f32.mrf.mxu0
        %v5146 = vadd.f32 0.0, %v5145
        %5147 = vmatmul.f32.gmra.mxu0 %v4792
        %v5148 = vpop.f32.mrf.mxu0
        %v5149 = vadd.f32 0.0, %v5148
        %5150 = vdwg.mxu0
        %5151 = vmatpush.msra.mxu0 %v1350
        %5152 = vmatpush.msra.mxu0 %v1348
        %5153 = vmatpush.msra.mxu0 %v1346
        %5154 = vmatpush.msra.mxu0 %v1344
        %5155 = vmatpush.msra.mxu0 %v1342
        %5156 = vmatpush.msra.mxu0 %v1340
        %5157 = vmatpush.msra.mxu0 %v1338
        %5158 = vmatpush.msra.mxu0 %v1336
        %5159 = vmatpush.msra.mxu0 %v1334
        %5160 = vmatpush.msra.mxu0 %v1332
        %5161 = vmatpush.msra.mxu0 %v1330
        %5162 = vmatpush.msra.mxu0 %v1328
        %5163 = vmatpush.msra.mxu0 %v1326
        %5164 = vmatpush.msra.mxu0 %v1324
        %5165 = vmatpush.msra.mxu0 %v1322
        %5166 = vmatpush.msra.mxu0 %v1320
        %5167 = vmatmul.f32.gmra.mxu0 %v4777
        %v5168 = vpop.f32.mrf.mxu0
        %v5169 = vadd.f32 0.0, %v5168
        %5170 = vmatmul.f32.gmra.mxu0 %v4778
        %v5171 = vpop.f32.mrf.mxu0
        %v5172 = vadd.f32 0.0, %v5171
        %5173 = vmatmul.f32.gmra.mxu0 %v4779
        %v5174 = vpop.f32.mrf.mxu0
        %v5175 = vadd.f32 0.0, %v5174
        %5176 = vmatmul.f32.gmra.mxu0 %v4780
        %v5177 = vpop.f32.mrf.mxu0
        %v5178 = vadd.f32 0.0, %v5177
        %5179 = vmatmul.f32.gmra.mxu0 %v4781
        %v5180 = vpop.f32.mrf.mxu0
        %v5181 = vadd.f32 0.0, %v5180
        %5182 = vmatmul.f32.gmra.mxu0 %v4782
        %v5183 = vpop.f32.mrf.mxu0
        %v5184 = vadd.f32 0.0, %v5183
        %5185 = vmatmul.f32.gmra.mxu0 %v4783
        %v5186 = vpop.f32.mrf.mxu0
        %v5187 = vadd.f32 0.0, %v5186
        %5188 = vmatmul.f32.gmra.mxu0 %v4784
        %v5189 = vpop.f32.mrf.mxu0
        %v5190 = vadd.f32 0.0, %v5189
        %5191 = vmatmul.f32.gmra.mxu0 %v4785
        %v5192 = vpop.f32.mrf.mxu0
        %v5193 = vadd.f32 0.0, %v5192
        %5194 = vmatmul.f32.gmra.mxu0 %v4786
        %v5195 = vpop.f32.mrf.mxu0
        %v5196 = vadd.f32 0.0, %v5195
        %5197 = vmatmul.f32.gmra.mxu0 %v4787
        %v5198 = vpop.f32.mrf.mxu0
        %v5199 = vadd.f32 0.0, %v5198
        %5200 = vmatmul.f32.gmra.mxu0 %v4788
        %v5201 = vpop.f32.mrf.mxu0
        %v5202 = vadd.f32 0.0, %v5201
        %5203 = vmatmul.f32.gmra.mxu0 %v4789
        %v5204 = vpop.f32.mrf.mxu0
        %v5205 = vadd.f32 0.0, %v5204
        %5206 = vmatmul.f32.gmra.mxu0 %v4790
        %v5207 = vpop.f32.mrf.mxu0
        %v5208 = vadd.f32 0.0, %v5207
        %5209 = vmatmul.f32.gmra.mxu0 %v4791
        %v5210 = vpop.f32.mrf.mxu0
        %v5211 = vadd.f32 0.0, %v5210
        %5212 = vmatmul.f32.gmra.mxu0 %v4792
        %v5213 = vpop.f32.mrf.mxu0
        %v5214 = vadd.f32 0.0, %v5213
        %5215 = vdwg.mxu0
        %5216 = vmatpush.msra.mxu0 %v1316
        %5217 = vmatpush.msra.mxu0 %v1314
        %5218 = vmatpush.msra.mxu0 %v1312
        %5219 = vmatpush.msra.mxu0 %v1310
        %5220 = vmatpush.msra.mxu0 %v1308
        %5221 = vmatpush.msra.mxu0 %v1306
        %5222 = vmatpush.msra.mxu0 %v1304
        %5223 = vmatpush.msra.mxu0 %v1302
        %5224 = vmatpush.msra.mxu0 %v1300
        %5225 = vmatpush.msra.mxu0 %v1298
        %5226 = vmatpush.msra.mxu0 %v1296
        %5227 = vmatpush.msra.mxu0 %v1294
        %5228 = vmatpush.msra.mxu0 %v1292
        %5229 = vmatpush.msra.mxu0 %v1290
        %5230 = vmatpush.msra.mxu0 %v1288
        %5231 = vmatpush.msra.mxu0 %v1286
        %5232 = vmatmul.f32.gmra.mxu0 %v3109
        %v5233 = vpop.f32.mrf.mxu0
        %v5234 = vadd.f32 %v5104, %v5233
        %5235 = vmatmul.f32.gmra.mxu0 %v3110
        %v5236 = vpop.f32.mrf.mxu0
        %v5237 = vadd.f32 %v5107, %v5236
        %5238 = vmatmul.f32.gmra.mxu0 %v3111
        %v5239 = vpop.f32.mrf.mxu0
        %v5240 = vadd.f32 %v5110, %v5239
        %5241 = vmatmul.f32.gmra.mxu0 %v3112
        %v5242 = vpop.f32.mrf.mxu0
        %v5243 = vadd.f32 %v5113, %v5242
        %5244 = vmatmul.f32.gmra.mxu0 %v3113
        %v5245 = vpop.f32.mrf.mxu0
        %v5246 = vadd.f32 %v5116, %v5245
        %5247 = vmatmul.f32.gmra.mxu0 %v3114
        %v5248 = vpop.f32.mrf.mxu0
        %v5249 = vadd.f32 %v5119, %v5248
        %5250 = vmatmul.f32.gmra.mxu0 %v3115
        %v5251 = vpop.f32.mrf.mxu0
        %v5252 = vadd.f32 %v5122, %v5251
        %5253 = vmatmul.f32.gmra.mxu0 %v3116
        %v5254 = vpop.f32.mrf.mxu0
        %v5255 = vadd.f32 %v5125, %v5254
        %5256 = vmatmul.f32.gmra.mxu0 %v3117
        %v5257 = vpop.f32.mrf.mxu0
        %v5258 = vadd.f32 %v5128, %v5257
        %5259 = vmatmul.f32.gmra.mxu0 %v3118
        %v5260 = vpop.f32.mrf.mxu0
        %v5261 = vadd.f32 %v5131, %v5260
        %5262 = vmatmul.f32.gmra.mxu0 %v3119
        %v5263 = vpop.f32.mrf.mxu0
        %v5264 = vadd.f32 %v5134, %v5263
        %5265 = vmatmul.f32.gmra.mxu0 %v3120
        %v5266 = vpop.f32.mrf.mxu0
        %v5267 = vadd.f32 %v5137, %v5266
        %5268 = vmatmul.f32.gmra.mxu0 %v3121
        %v5269 = vpop.f32.mrf.mxu0
        %v5270 = vadd.f32 %v5140, %v5269
        %5271 = vmatmul.f32.gmra.mxu0 %v3122
        %v5272 = vpop.f32.mrf.mxu0
        %v5273 = vadd.f32 %v5143, %v5272
        %5274 = vmatmul.f32.gmra.mxu0 %v3123
        %v5275 = vpop.f32.mrf.mxu0
        %v5276 = vadd.f32 %v5146, %v5275
        %5277 = vmatmul.f32.gmra.mxu0 %v3124
        %v5278 = vpop.f32.mrf.mxu0
        %v5279 = vadd.f32 %v5149, %v5278
        %5280 = vdwg.mxu0
        %5281 = vmatpush.msra.mxu0 %v1317
        %5282 = vmatpush.msra.mxu0 %v1315
        %5283 = vmatpush.msra.mxu0 %v1313
        %5284 = vmatpush.msra.mxu0 %v1311
        %5285 = vmatpush.msra.mxu0 %v1309
        %5286 = vmatpush.msra.mxu0 %v1307
        %5287 = vmatpush.msra.mxu0 %v1305
        %5288 = vmatpush.msra.mxu0 %v1303
        %5289 = vmatpush.msra.mxu0 %v1301
        %5290 = vmatpush.msra.mxu0 %v1299
        %5291 = vmatpush.msra.mxu0 %v1297
        %5292 = vmatpush.msra.mxu0 %v1295
        %5293 = vmatpush.msra.mxu0 %v1293
        %5294 = vmatpush.msra.mxu0 %v1291
        %5295 = vmatpush.msra.mxu0 %v1289
        %5296 = vmatpush.msra.mxu0 %v1287
        %5297 = vmatmul.f32.gmra.mxu0 %v3109
        %v5298 = vpop.f32.mrf.mxu0
        %v5299 = vadd.f32 %v5169, %v5298
        %5300 = vmatmul.f32.gmra.mxu0 %v3110
        %v5301 = vpop.f32.mrf.mxu0
        %v5302 = vadd.f32 %v5172, %v5301
        %5303 = vmatmul.f32.gmra.mxu0 %v3111
        %v5304 = vpop.f32.mrf.mxu0
        %v5305 = vadd.f32 %v5175, %v5304
        %5306 = vmatmul.f32.gmra.mxu0 %v3112
        %v5307 = vpop.f32.mrf.mxu0
        %v5308 = vadd.f32 %v5178, %v5307
        %5309 = vmatmul.f32.gmra.mxu0 %v3113
        %v5310 = vpop.f32.mrf.mxu0
        %v5311 = vadd.f32 %v5181, %v5310
        %5312 = vmatmul.f32.gmra.mxu0 %v3114
        %v5313 = vpop.f32.mrf.mxu0
        %v5314 = vadd.f32 %v5184, %v5313
        %5315 = vmatmul.f32.gmra.mxu0 %v3115
        %v5316 = vpop.f32.mrf.mxu0
        %v5317 = vadd.f32 %v5187, %v5316
        %5318 = vmatmul.f32.gmra.mxu0 %v3116
        %v5319 = vpop.f32.mrf.mxu0
        %v5320 = vadd.f32 %v5190, %v5319
        %5321 = vmatmul.f32.gmra.mxu0 %v3117
        %v5322 = vpop.f32.mrf.mxu0
        %v5323 = vadd.f32 %v5193, %v5322
        %5324 = vmatmul.f32.gmra.mxu0 %v3118
        %v5325 = vpop.f32.mrf.mxu0
        %v5326 = vadd.f32 %v5196, %v5325
        %5327 = vmatmul.f32.gmra.mxu0 %v3119
        %v5328 = vpop.f32.mrf.mxu0
        %v5329 = vadd.f32 %v5199, %v5328
        %5330 = vmatmul.f32.gmra.mxu0 %v3120
        %v5331 = vpop.f32.mrf.mxu0
        %v5332 = vadd.f32 %v5202, %v5331
        %5333 = vmatmul.f32.gmra.mxu0 %v3121
        %v5334 = vpop.f32.mrf.mxu0
        %v5335 = vadd.f32 %v5205, %v5334
        %5336 = vmatmul.f32.gmra.mxu0 %v3122
        %v5337 = vpop.f32.mrf.mxu0
        %v5338 = vadd.f32 %v5208, %v5337
        %5339 = vmatmul.f32.gmra.mxu0 %v3123
        %v5340 = vpop.f32.mrf.mxu0
        %v5341 = vadd.f32 %v5211, %v5340
        %5342 = vmatmul.f32.gmra.mxu0 %v3124
        %v5343 = vpop.f32.mrf.mxu0
        %v5344 = vadd.f32 %v5214, %v5343
        %5345 = vdwg.mxu0
        %5346 = vmatpush.msra.mxu0 %v1382
        %5347 = vmatpush.msra.mxu0 %v1380
        %5348 = vmatpush.msra.mxu0 %v1378
        %5349 = vmatpush.msra.mxu0 %v1376
        %5350 = vmatpush.msra.mxu0 %v1374
        %5351 = vmatpush.msra.mxu0 %v1372
        %5352 = vmatpush.msra.mxu0 %v1370
        %5353 = vmatpush.msra.mxu0 %v1368
        %5354 = vmatpush.msra.mxu0 %v1366
        %5355 = vmatpush.msra.mxu0 %v1364
        %5356 = vmatpush.msra.mxu0 %v1362
        %5357 = vmatpush.msra.mxu0 %v1360
        %5358 = vmatpush.msra.mxu0 %v1358
        %5359 = vmatpush.msra.mxu0 %v1356
        %5360 = vmatpush.msra.mxu0 %v1354
        %5361 = vmatpush.msra.mxu0 %v1352
        %5362 = vmatmul.f32.gmra.mxu0 %v4827
        %v5363 = vpop.f32.mrf.mxu0
        %v5364 = vadd.f32 0.0, %v5363
        %5365 = vmatmul.f32.gmra.mxu0 %v4830
        %v5366 = vpop.f32.mrf.mxu0
        %v5367 = vadd.f32 0.0, %v5366
        %5368 = vmatmul.f32.gmra.mxu0 %v4833
        %v5369 = vpop.f32.mrf.mxu0
        %v5370 = vadd.f32 0.0, %v5369
        %5371 = vmatmul.f32.gmra.mxu0 %v4836
        %v5372 = vpop.f32.mrf.mxu0
        %v5373 = vadd.f32 0.0, %v5372
        %5374 = vmatmul.f32.gmra.mxu0 %v4839
        %v5375 = vpop.f32.mrf.mxu0
        %v5376 = vadd.f32 0.0, %v5375
        %5377 = vmatmul.f32.gmra.mxu0 %v4842
        %v5378 = vpop.f32.mrf.mxu0
        %v5379 = vadd.f32 0.0, %v5378
        %5380 = vmatmul.f32.gmra.mxu0 %v4845
        %v5381 = vpop.f32.mrf.mxu0
        %v5382 = vadd.f32 0.0, %v5381
        %5383 = vmatmul.f32.gmra.mxu0 %v4848
        %v5384 = vpop.f32.mrf.mxu0
        %v5385 = vadd.f32 0.0, %v5384
        %5386 = vmatmul.f32.gmra.mxu0 %v4851
        %v5387 = vpop.f32.mrf.mxu0
        %v5388 = vadd.f32 0.0, %v5387
        %5389 = vmatmul.f32.gmra.mxu0 %v4854
        %v5390 = vpop.f32.mrf.mxu0
        %v5391 = vadd.f32 0.0, %v5390
        %5392 = vmatmul.f32.gmra.mxu0 %v4857
        %v5393 = vpop.f32.mrf.mxu0
        %v5394 = vadd.f32 0.0, %v5393
        %5395 = vmatmul.f32.gmra.mxu0 %v4860
        %v5396 = vpop.f32.mrf.mxu0
        %v5397 = vadd.f32 0.0, %v5396
        %5398 = vmatmul.f32.gmra.mxu0 %v4863
        %v5399 = vpop.f32.mrf.mxu0
        %v5400 = vadd.f32 0.0, %v5399
        %5401 = vmatmul.f32.gmra.mxu0 %v4866
        %v5402 = vpop.f32.mrf.mxu0
        %v5403 = vadd.f32 0.0, %v5402
        %5404 = vmatmul.f32.gmra.mxu0 %v4869
        %v5405 = vpop.f32.mrf.mxu0
        %v5406 = vadd.f32 0.0, %v5405
        %5407 = vmatmul.f32.gmra.mxu0 %v4872
        %v5408 = vpop.f32.mrf.mxu0
        %v5409 = vadd.f32 0.0, %v5408
        %5410 = vdwg.mxu0
        %5411 = vmatpush.msra.mxu0 %v1383
        %5412 = vmatpush.msra.mxu0 %v1381
        %5413 = vmatpush.msra.mxu0 %v1379
        %5414 = vmatpush.msra.mxu0 %v1377
        %5415 = vmatpush.msra.mxu0 %v1375
        %5416 = vmatpush.msra.mxu0 %v1373
        %5417 = vmatpush.msra.mxu0 %v1371
        %5418 = vmatpush.msra.mxu0 %v1369
        %5419 = vmatpush.msra.mxu0 %v1367
        %5420 = vmatpush.msra.mxu0 %v1365
        %5421 = vmatpush.msra.mxu0 %v1363
        %5422 = vmatpush.msra.mxu0 %v1361
        %5423 = vmatpush.msra.mxu0 %v1359
        %5424 = vmatpush.msra.mxu0 %v1357
        %5425 = vmatpush.msra.mxu0 %v1355
        %5426 = vmatpush.msra.mxu0 %v1353
        %5427 = vmatmul.f32.gmra.mxu0 %v4827
        %v5428 = vpop.f32.mrf.mxu0
        %v5429 = vadd.f32 0.0, %v5428
        %5430 = vmatmul.f32.gmra.mxu0 %v4830
        %v5431 = vpop.f32.mrf.mxu0
        %v5432 = vadd.f32 0.0, %v5431
        %5433 = vmatmul.f32.gmra.mxu0 %v4833
        %v5434 = vpop.f32.mrf.mxu0
        %v5435 = vadd.f32 0.0, %v5434
        %5436 = vmatmul.f32.gmra.mxu0 %v4836
        %v5437 = vpop.f32.mrf.mxu0
        %v5438 = vadd.f32 0.0, %v5437
        %5439 = vmatmul.f32.gmra.mxu0 %v4839
        %v5440 = vpop.f32.mrf.mxu0
        %v5441 = vadd.f32 0.0, %v5440
        %5442 = vmatmul.f32.gmra.mxu0 %v4842
        %v5443 = vpop.f32.mrf.mxu0
        %v5444 = vadd.f32 0.0, %v5443
        %5445 = vmatmul.f32.gmra.mxu0 %v4845
        %v5446 = vpop.f32.mrf.mxu0
        %v5447 = vadd.f32 0.0, %v5446
        %5448 = vmatmul.f32.gmra.mxu0 %v4848
        %v5449 = vpop.f32.mrf.mxu0
        %v5450 = vadd.f32 0.0, %v5449
        %5451 = vmatmul.f32.gmra.mxu0 %v4851
        %v5452 = vpop.f32.mrf.mxu0
        %v5453 = vadd.f32 0.0, %v5452
        %5454 = vmatmul.f32.gmra.mxu0 %v4854
        %v5455 = vpop.f32.mrf.mxu0
        %v5456 = vadd.f32 0.0, %v5455
        %5457 = vmatmul.f32.gmra.mxu0 %v4857
        %v5458 = vpop.f32.mrf.mxu0
        %v5459 = vadd.f32 0.0, %v5458
        %5460 = vmatmul.f32.gmra.mxu0 %v4860
        %v5461 = vpop.f32.mrf.mxu0
        %v5462 = vadd.f32 0.0, %v5461
        %5463 = vmatmul.f32.gmra.mxu0 %v4863
        %v5464 = vpop.f32.mrf.mxu0
        %v5465 = vadd.f32 0.0, %v5464
        %5466 = vmatmul.f32.gmra.mxu0 %v4866
        %v5467 = vpop.f32.mrf.mxu0
        %v5468 = vadd.f32 0.0, %v5467
        %5469 = vmatmul.f32.gmra.mxu0 %v4869
        %v5470 = vpop.f32.mrf.mxu0
        %v5471 = vadd.f32 0.0, %v5470
        %5472 = vmatmul.f32.gmra.mxu0 %v4872
        %v5473 = vpop.f32.mrf.mxu0
        %v5474 = vadd.f32 0.0, %v5473
        %5475 = vdwg.mxu0
        %v5476 = vadd.f32 %v5234, %v5364
        %v5477 = vadd.f32 %v5299, %v5429
        %v5478 = vadd.f32 %v5237, %v5367
        %v5479 = vadd.f32 %v5302, %v5432
        %v5480 = vadd.f32 %v5240, %v5370
        %v5481 = vadd.f32 %v5305, %v5435
        %v5482 = vadd.f32 %v5243, %v5373
        %v5483 = vadd.f32 %v5308, %v5438
        %v5484 = vadd.f32 %v5246, %v5376
        %v5485 = vadd.f32 %v5311, %v5441
        %v5486 = vadd.f32 %v5249, %v5379
        %v5487 = vadd.f32 %v5314, %v5444
        %v5488 = vadd.f32 %v5252, %v5382
        %v5489 = vadd.f32 %v5317, %v5447
        %v5490 = vadd.f32 %v5255, %v5385
        %v5491 = vadd.f32 %v5320, %v5450
        %v5492 = vadd.f32 %v5258, %v5388
        %v5493 = vadd.f32 %v5323, %v5453
        %v5494 = vadd.f32 %v5261, %v5391
        %v5495 = vadd.f32 %v5326, %v5456
        %v5496 = vadd.f32 %v5264, %v5394
        %v5497 = vadd.f32 %v5329, %v5459
        %v5498 = vadd.f32 %v5267, %v5397
        %v5499 = vadd.f32 %v5332, %v5462
        %v5500 = vadd.f32 %v5270, %v5400
        %v5501 = vadd.f32 %v5335, %v5465
        %v5502 = vadd.f32 %v5273, %v5403
        %v5503 = vadd.f32 %v5338, %v5468
        %v5504 = vadd.f32 %v5276, %v5406
        %v5505 = vadd.f32 %v5341, %v5471
        %v5506 = vadd.f32 %v5279, %v5409
        %v5507 = vadd.f32 %v5344, %v5474
        %5508 = vmatpush.msra.mxu0 %v1415
        %5509 = vmatpush.msra.mxu0 %v1413
        %5510 = vmatpush.msra.mxu0 %v1411
        %5511 = vmatpush.msra.mxu0 %v1409
        %5512 = vmatpush.msra.mxu0 %v1407
        %5513 = vmatpush.msra.mxu0 %v1405
        %5514 = vmatpush.msra.mxu0 %v1403
        %5515 = vmatpush.msra.mxu0 %v1401
        %5516 = vmatpush.msra.mxu0 %v1399
        %5517 = vmatpush.msra.mxu0 %v1397
        %5518 = vmatpush.msra.mxu0 %v1395
        %5519 = vmatpush.msra.mxu0 %v1393
        %5520 = vmatpush.msra.mxu0 %v1391
        %5521 = vmatpush.msra.mxu0 %v1389
        %5522 = vmatpush.msra.mxu0 %v1387
        %5523 = vmatpush.msra.mxu0 %v1385
        %5524 = vmatmul.f32.gmra.mxu0 %v4892
        %v5525 = vpop.f32.mrf.mxu0
        %v5526 = vadd.f32 0.0, %v5525
        %5527 = vmatmul.f32.gmra.mxu0 %v4895
        %v5528 = vpop.f32.mrf.mxu0
        %v5529 = vadd.f32 0.0, %v5528
        %5530 = vmatmul.f32.gmra.mxu0 %v4898
        %v5531 = vpop.f32.mrf.mxu0
        %v5532 = vadd.f32 0.0, %v5531
        %5533 = vmatmul.f32.gmra.mxu0 %v4901
        %v5534 = vpop.f32.mrf.mxu0
        %v5535 = vadd.f32 0.0, %v5534
        %5536 = vmatmul.f32.gmra.mxu0 %v4904
        %v5537 = vpop.f32.mrf.mxu0
        %v5538 = vadd.f32 0.0, %v5537
        %5539 = vmatmul.f32.gmra.mxu0 %v4907
        %v5540 = vpop.f32.mrf.mxu0
        %v5541 = vadd.f32 0.0, %v5540
        %5542 = vmatmul.f32.gmra.mxu0 %v4910
        %v5543 = vpop.f32.mrf.mxu0
        %v5544 = vadd.f32 0.0, %v5543
        %5545 = vmatmul.f32.gmra.mxu0 %v4913
        %v5546 = vpop.f32.mrf.mxu0
        %v5547 = vadd.f32 0.0, %v5546
        %5548 = vmatmul.f32.gmra.mxu0 %v4916
        %v5549 = vpop.f32.mrf.mxu0
        %v5550 = vadd.f32 0.0, %v5549
        %5551 = vmatmul.f32.gmra.mxu0 %v4919
        %v5552 = vpop.f32.mrf.mxu0
        %v5553 = vadd.f32 0.0, %v5552
        %5554 = vmatmul.f32.gmra.mxu0 %v4922
        %v5555 = vpop.f32.mrf.mxu0
        %v5556 = vadd.f32 0.0, %v5555
        %5557 = vmatmul.f32.gmra.mxu0 %v4925
        %v5558 = vpop.f32.mrf.mxu0
        %v5559 = vadd.f32 0.0, %v5558
        %5560 = vmatmul.f32.gmra.mxu0 %v4928
        %v5561 = vpop.f32.mrf.mxu0
        %v5562 = vadd.f32 0.0, %v5561
        %5563 = vmatmul.f32.gmra.mxu0 %v4931
        %v5564 = vpop.f32.mrf.mxu0
        %v5565 = vadd.f32 0.0, %v5564
        %5566 = vmatmul.f32.gmra.mxu0 %v4934
        %v5567 = vpop.f32.mrf.mxu0
        %v5568 = vadd.f32 0.0, %v5567
        %5569 = vmatmul.f32.gmra.mxu0 %v4937
        %v5570 = vpop.f32.mrf.mxu0
        %v5571 = vadd.f32 0.0, %v5570
        %5572 = vdwg.mxu0
        %5573 = vmatpush.msra.mxu0 %v1416
        %5574 = vmatpush.msra.mxu0 %v1414
        %5575 = vmatpush.msra.mxu0 %v1412
        %5576 = vmatpush.msra.mxu0 %v1410
        %5577 = vmatpush.msra.mxu0 %v1408
        %5578 = vmatpush.msra.mxu0 %v1406
        %5579 = vmatpush.msra.mxu0 %v1404
        %5580 = vmatpush.msra.mxu0 %v1402
        %5581 = vmatpush.msra.mxu0 %v1400
        %5582 = vmatpush.msra.mxu0 %v1398
        %5583 = vmatpush.msra.mxu0 %v1396
        %5584 = vmatpush.msra.mxu0 %v1394
        %5585 = vmatpush.msra.mxu0 %v1392
        %5586 = vmatpush.msra.mxu0 %v1390
        %5587 = vmatpush.msra.mxu0 %v1388
        %5588 = vmatpush.msra.mxu0 %v1386
        %5589 = vmatmul.f32.gmra.mxu0 %v4892
        %v5590 = vpop.f32.mrf.mxu0
        %v5591 = vadd.f32 0.0, %v5590
        %5592 = vmatmul.f32.gmra.mxu0 %v4895
        %v5593 = vpop.f32.mrf.mxu0
        %v5594 = vadd.f32 0.0, %v5593
        %5595 = vmatmul.f32.gmra.mxu0 %v4898
        %v5596 = vpop.f32.mrf.mxu0
        %v5597 = vadd.f32 0.0, %v5596
        %5598 = vmatmul.f32.gmra.mxu0 %v4901
        %v5599 = vpop.f32.mrf.mxu0
        %v5600 = vadd.f32 0.0, %v5599
        %5601 = vmatmul.f32.gmra.mxu0 %v4904
        %v5602 = vpop.f32.mrf.mxu0
        %v5603 = vadd.f32 0.0, %v5602
        %5604 = vmatmul.f32.gmra.mxu0 %v4907
        %v5605 = vpop.f32.mrf.mxu0
        %v5606 = vadd.f32 0.0, %v5605
        %5607 = vmatmul.f32.gmra.mxu0 %v4910
        %v5608 = vpop.f32.mrf.mxu0
        %v5609 = vadd.f32 0.0, %v5608
        %5610 = vmatmul.f32.gmra.mxu0 %v4913
        %v5611 = vpop.f32.mrf.mxu0
        %v5612 = vadd.f32 0.0, %v5611
        %5613 = vmatmul.f32.gmra.mxu0 %v4916
        %v5614 = vpop.f32.mrf.mxu0
        %v5615 = vadd.f32 0.0, %v5614
        %5616 = vmatmul.f32.gmra.mxu0 %v4919
        %v5617 = vpop.f32.mrf.mxu0
        %v5618 = vadd.f32 0.0, %v5617
        %5619 = vmatmul.f32.gmra.mxu0 %v4922
        %v5620 = vpop.f32.mrf.mxu0
        %v5621 = vadd.f32 0.0, %v5620
        %5622 = vmatmul.f32.gmra.mxu0 %v4925
        %v5623 = vpop.f32.mrf.mxu0
        %v5624 = vadd.f32 0.0, %v5623
        %5625 = vmatmul.f32.gmra.mxu0 %v4928
        %v5626 = vpop.f32.mrf.mxu0
        %v5627 = vadd.f32 0.0, %v5626
        %5628 = vmatmul.f32.gmra.mxu0 %v4931
        %v5629 = vpop.f32.mrf.mxu0
        %v5630 = vadd.f32 0.0, %v5629
        %5631 = vmatmul.f32.gmra.mxu0 %v4934
        %v5632 = vpop.f32.mrf.mxu0
        %v5633 = vadd.f32 0.0, %v5632
        %5634 = vmatmul.f32.gmra.mxu0 %v4937
        %v5635 = vpop.f32.mrf.mxu0
        %v5636 = vadd.f32 0.0, %v5635
        %5637 = vdwg.mxu0
        %v5638 = vadd.f32 %v5476, %v5526
        %v5639 = vadd.f32 %v5477, %v5591
        %v5640 = vadd.f32 %v5478, %v5529
        %v5641 = vadd.f32 %v5479, %v5594
        %v5642 = vadd.f32 %v5480, %v5532
        %v5643 = vadd.f32 %v5481, %v5597
        %v5644 = vadd.f32 %v5482, %v5535
        %v5645 = vadd.f32 %v5483, %v5600
        %v5646 = vadd.f32 %v5484, %v5538
        %v5647 = vadd.f32 %v5485, %v5603
        %v5648 = vadd.f32 %v5486, %v5541
        %v5649 = vadd.f32 %v5487, %v5606
        %v5650 = vadd.f32 %v5488, %v5544
        %v5651 = vadd.f32 %v5489, %v5609
        %v5652 = vadd.f32 %v5490, %v5547
        %v5653 = vadd.f32 %v5491, %v5612
        %v5654 = vadd.f32 %v5492, %v5550
        %v5655 = vadd.f32 %v5493, %v5615
        %v5656 = vadd.f32 %v5494, %v5553
        %v5657 = vadd.f32 %v5495, %v5618
        %v5658 = vadd.f32 %v5496, %v5556
        %v5659 = vadd.f32 %v5497, %v5621
        %v5660 = vadd.f32 %v5498, %v5559
        %v5661 = vadd.f32 %v5499, %v5624
        %v5662 = vadd.f32 %v5500, %v5562
        %v5663 = vadd.f32 %v5501, %v5627
        %v5664 = vadd.f32 %v5502, %v5565
        %v5665 = vadd.f32 %v5503, %v5630
        %v5666 = vadd.f32 %v5504, %v5568
        %v5667 = vadd.f32 %v5505, %v5633
        %v5668 = vadd.f32 %v5506, %v5571
        %v5669 = vadd.f32 %v5507, %v5636
        %5670 = vmatpush.msra.mxu0 %v1448
        %5671 = vmatpush.msra.mxu0 %v1446
        %5672 = vmatpush.msra.mxu0 %v1444
        %5673 = vmatpush.msra.mxu0 %v1442
        %5674 = vmatpush.msra.mxu0 %v1440
        %5675 = vmatpush.msra.mxu0 %v1438
        %5676 = vmatpush.msra.mxu0 %v1436
        %5677 = vmatpush.msra.mxu0 %v1434
        %5678 = vmatpush.msra.mxu0 %v1432
        %5679 = vmatpush.msra.mxu0 %v1430
        %5680 = vmatpush.msra.mxu0 %v1428
        %5681 = vmatpush.msra.mxu0 %v1426
        %5682 = vmatpush.msra.mxu0 %v1424
        %5683 = vmatpush.msra.mxu0 %v1422
        %5684 = vmatpush.msra.mxu0 %v1420
        %5685 = vmatpush.msra.mxu0 %v1418
        %5686 = vmatmul.f32.gmra.mxu0 %v4974
        %v5687 = vpop.f32.mrf.mxu0
        %v5688 = vadd.f32 0.0, %v5687
        %5689 = vmatmul.f32.gmra.mxu0 %v4977
        %v5690 = vpop.f32.mrf.mxu0
        %v5691 = vadd.f32 0.0, %v5690
        %5692 = vmatmul.f32.gmra.mxu0 %v4980
        %v5693 = vpop.f32.mrf.mxu0
        %v5694 = vadd.f32 0.0, %v5693
        %5695 = vmatmul.f32.gmra.mxu0 %v4983
        %v5696 = vpop.f32.mrf.mxu0
        %v5697 = vadd.f32 0.0, %v5696
        %5698 = vmatmul.f32.gmra.mxu0 %v4986
        %v5699 = vpop.f32.mrf.mxu0
        %v5700 = vadd.f32 0.0, %v5699
        %5701 = vmatmul.f32.gmra.mxu0 %v4989
        %v5702 = vpop.f32.mrf.mxu0
        %v5703 = vadd.f32 0.0, %v5702
        %5704 = vmatmul.f32.gmra.mxu0 %v4992
        %v5705 = vpop.f32.mrf.mxu0
        %v5706 = vadd.f32 0.0, %v5705
        %5707 = vmatmul.f32.gmra.mxu0 %v4995
        %v5708 = vpop.f32.mrf.mxu0
        %v5709 = vadd.f32 0.0, %v5708
        %5710 = vmatmul.f32.gmra.mxu0 %v4998
        %v5711 = vpop.f32.mrf.mxu0
        %v5712 = vadd.f32 0.0, %v5711
        %5713 = vmatmul.f32.gmra.mxu0 %v5001
        %v5714 = vpop.f32.mrf.mxu0
        %v5715 = vadd.f32 0.0, %v5714
        %5716 = vmatmul.f32.gmra.mxu0 %v5004
        %v5717 = vpop.f32.mrf.mxu0
        %v5718 = vadd.f32 0.0, %v5717
        %5719 = vmatmul.f32.gmra.mxu0 %v5007
        %v5720 = vpop.f32.mrf.mxu0
        %v5721 = vadd.f32 0.0, %v5720
        %5722 = vmatmul.f32.gmra.mxu0 %v5010
        %v5723 = vpop.f32.mrf.mxu0
        %v5724 = vadd.f32 0.0, %v5723
        %5725 = vmatmul.f32.gmra.mxu0 %v5013
        %v5726 = vpop.f32.mrf.mxu0
        %v5727 = vadd.f32 0.0, %v5726
        %5728 = vmatmul.f32.gmra.mxu0 %v5016
        %v5729 = vpop.f32.mrf.mxu0
        %v5730 = vadd.f32 0.0, %v5729
        %5731 = vmatmul.f32.gmra.mxu0 %v5019
        %v5732 = vpop.f32.mrf.mxu0
        %v5733 = vadd.f32 0.0, %v5732
        %5734 = vdwg.mxu0
        %5735 = vmatpush.msra.mxu0 %v1449
        %5736 = vmatpush.msra.mxu0 %v1447
        %5737 = vmatpush.msra.mxu0 %v1445
        %5738 = vmatpush.msra.mxu0 %v1443
        %5739 = vmatpush.msra.mxu0 %v1441
        %5740 = vmatpush.msra.mxu0 %v1439
        %5741 = vmatpush.msra.mxu0 %v1437
        %5742 = vmatpush.msra.mxu0 %v1435
        %5743 = vmatpush.msra.mxu0 %v1433
        %5744 = vmatpush.msra.mxu0 %v1431
        %5745 = vmatpush.msra.mxu0 %v1429
        %5746 = vmatpush.msra.mxu0 %v1427
        %5747 = vmatpush.msra.mxu0 %v1425
        %5748 = vmatpush.msra.mxu0 %v1423
        %5749 = vmatpush.msra.mxu0 %v1421
        %5750 = vmatpush.msra.mxu0 %v1419
        %5751 = vmatmul.f32.gmra.mxu0 %v4974
        %v5752 = vpop.f32.mrf.mxu0
        %v5753 = vadd.f32 0.0, %v5752
        %5754 = vmatmul.f32.gmra.mxu0 %v4977
        %v5755 = vpop.f32.mrf.mxu0
        %v5756 = vadd.f32 0.0, %v5755
        %5757 = vmatmul.f32.gmra.mxu0 %v4980
        %v5758 = vpop.f32.mrf.mxu0
        %v5759 = vadd.f32 0.0, %v5758
        %5760 = vmatmul.f32.gmra.mxu0 %v4983
        %v5761 = vpop.f32.mrf.mxu0
        %v5762 = vadd.f32 0.0, %v5761
        %5763 = vmatmul.f32.gmra.mxu0 %v4986
        %v5764 = vpop.f32.mrf.mxu0
        %v5765 = vadd.f32 0.0, %v5764
        %5766 = vmatmul.f32.gmra.mxu0 %v4989
        %v5767 = vpop.f32.mrf.mxu0
        %v5768 = vadd.f32 0.0, %v5767
        %5769 = vmatmul.f32.gmra.mxu0 %v4992
        %v5770 = vpop.f32.mrf.mxu0
        %v5771 = vadd.f32 0.0, %v5770
        %5772 = vmatmul.f32.gmra.mxu0 %v4995
        %v5773 = vpop.f32.mrf.mxu0
        %v5774 = vadd.f32 0.0, %v5773
        %5775 = vmatmul.f32.gmra.mxu0 %v4998
        %v5776 = vpop.f32.mrf.mxu0
        %v5777 = vadd.f32 0.0, %v5776
        %5778 = vmatmul.f32.gmra.mxu0 %v5001
        %v5779 = vpop.f32.mrf.mxu0
        %v5780 = vadd.f32 0.0, %v5779
        %5781 = vmatmul.f32.gmra.mxu0 %v5004
        %v5782 = vpop.f32.mrf.mxu0
        %v5783 = vadd.f32 0.0, %v5782
        %5784 = vmatmul.f32.gmra.mxu0 %v5007
        %v5785 = vpop.f32.mrf.mxu0
        %v5786 = vadd.f32 0.0, %v5785
        %5787 = vmatmul.f32.gmra.mxu0 %v5010
        %v5788 = vpop.f32.mrf.mxu0
        %v5789 = vadd.f32 0.0, %v5788
        %5790 = vmatmul.f32.gmra.mxu0 %v5013
        %v5791 = vpop.f32.mrf.mxu0
        %v5792 = vadd.f32 0.0, %v5791
        %5793 = vmatmul.f32.gmra.mxu0 %v5016
        %v5794 = vpop.f32.mrf.mxu0
        %v5795 = vadd.f32 0.0, %v5794
        %5796 = vmatmul.f32.gmra.mxu0 %v5019
        %v5797 = vpop.f32.mrf.mxu0
        %v5798 = vadd.f32 0.0, %v5797
        %5799 = vdwg.mxu0
        %v5800 = vadd.f32 %v5638, %v5688
        %v5801 = vadd.f32 %v5639, %v5753
        %v5802 = vadd.f32 %v5640, %v5691
        %v5803 = vadd.f32 %v5641, %v5756
        %v5804 = vadd.f32 %v5642, %v5694
        %v5805 = vadd.f32 %v5643, %v5759
        %v5806 = vadd.f32 %v5644, %v5697
        %v5807 = vadd.f32 %v5645, %v5762
        %v5808 = vadd.f32 %v5646, %v5700
        %v5809 = vadd.f32 %v5647, %v5765
        %v5810 = vadd.f32 %v5648, %v5703
        %v5811 = vadd.f32 %v5649, %v5768
        %v5812 = vadd.f32 %v5650, %v5706
        %v5813 = vadd.f32 %v5651, %v5771
        %v5814 = vadd.f32 %v5652, %v5709
        %v5815 = vadd.f32 %v5653, %v5774
        %v5816 = vadd.f32 %v5654, %v5712
        %v5817 = vadd.f32 %v5655, %v5777
        %v5818 = vadd.f32 %v5656, %v5715
        %v5819 = vadd.f32 %v5657, %v5780
        %v5820 = vadd.f32 %v5658, %v5718
        %v5821 = vadd.f32 %v5659, %v5783
        %v5822 = vadd.f32 %v5660, %v5721
        %v5823 = vadd.f32 %v5661, %v5786
        %v5824 = vadd.f32 %v5662, %v5724
        %v5825 = vadd.f32 %v5663, %v5789
        %v5826 = vadd.f32 %v5664, %v5727
        %v5827 = vadd.f32 %v5665, %v5792
        %v5828 = vadd.f32 %v5666, %v5730
        %v5829 = vadd.f32 %v5667, %v5795
        %v5830 = vadd.f32 %v5668, %v5733
        %v5831 = vadd.f32 %v5669, %v5798
        %v5833 = vperm.slane %v1451, 0
        %v5834 = vperm.slane %v1451, 1
        %v5837 = vadd.f32 %v5800, %v5833
        %v5838 = vadd.f32 %v5801, %v5834
        %v5839 = vadd.f32 %v5802, %v5833
        %v5840 = vadd.f32 %v5803, %v5834
        %v5841 = vadd.f32 %v5804, %v5833
        %v5842 = vadd.f32 %v5805, %v5834
        %v5843 = vadd.f32 %v5806, %v5833
        %v5844 = vadd.f32 %v5807, %v5834
        %v5845 = vadd.f32 %v5808, %v5833
        %v5846 = vadd.f32 %v5809, %v5834
        %v5847 = vadd.f32 %v5810, %v5833
        %v5848 = vadd.f32 %v5811, %v5834
        %v5849 = vadd.f32 %v5812, %v5833
        %v5850 = vadd.f32 %v5813, %v5834
        %v5851 = vadd.f32 %v5814, %v5833
        %v5852 = vadd.f32 %v5815, %v5834
        %v5853 = vadd.f32 %v5816, %v5833
        %v5854 = vadd.f32 %v5817, %v5834
        %v5855 = vadd.f32 %v5818, %v5833
        %v5856 = vadd.f32 %v5819, %v5834
        %v5857 = vadd.f32 %v5820, %v5833
        %v5858 = vadd.f32 %v5821, %v5834
        %v5859 = vadd.f32 %v5822, %v5833
        %v5860 = vadd.f32 %v5823, %v5834
        %v5861 = vadd.f32 %v5824, %v5833
        %v5862 = vadd.f32 %v5825, %v5834
        %v5863 = vadd.f32 %v5826, %v5833
        %v5864 = vadd.f32 %v5827, %v5834
        %v5865 = vadd.f32 %v5828, %v5833
        %v5866 = vadd.f32 %v5829, %v5834
        %v5867 = vadd.f32 %v5830, %v5833
        %v5868 = vadd.f32 %v5831, %v5834
        %v5869 = vmax.f32 %v5837, 0.0
        %v5870 = vmax.f32 %v5838, 0.0
        %v5871 = vmax.f32 %v5839, 0.0
        %v5872 = vmax.f32 %v5840, 0.0
        %v5873 = vmax.f32 %v5841, 0.0
        %v5874 = vmax.f32 %v5842, 0.0
        %v5875 = vmax.f32 %v5843, 0.0
        %v5876 = vmax.f32 %v5844, 0.0
        %v5877 = vmax.f32 %v5845, 0.0
        %v5878 = vmax.f32 %v5846, 0.0
        %v5879 = vmax.f32 %v5847, 0.0
        %v5880 = vmax.f32 %v5848, 0.0
        %v5881 = vmax.f32 %v5849, 0.0
        %v5882 = vmax.f32 %v5850, 0.0
        %v5883 = vmax.f32 %v5851, 0.0
        %v5884 = vmax.f32 %v5852, 0.0
        %v5885 = vmax.f32 %v5853, 0.0
        %v5886 = vmax.f32 %v5854, 0.0
        %v5887 = vmax.f32 %v5855, 0.0
        %v5888 = vmax.f32 %v5856, 0.0
        %v5889 = vmax.f32 %v5857, 0.0
        %v5890 = vmax.f32 %v5858, 0.0
        %v5891 = vmax.f32 %v5859, 0.0
        %v5892 = vmax.f32 %v5860, 0.0
        %v5893 = vmax.f32 %v5861, 0.0
        %v5894 = vmax.f32 %v5862, 0.0
        %v5895 = vmax.f32 %v5863, 0.0
        %v5896 = vmax.f32 %v5864, 0.0
        %v5897 = vmax.f32 %v5865, 0.0
        %v5898 = vmax.f32 %v5866, 0.0
        %v5899 = vmax.f32 %v5867, 0.0
        %v5900 = vmax.f32 %v5868, 0.0
        %v5901 = vmax.f32 %v5869, %v5870
        %v5902 = vmax.f32 %v5871, %v5872
        %v5903 = vmax.f32 %v5873, %v5874
        %v5904 = vmax.f32 %v5875, %v5876
        %v5905 = vmax.f32 %v5877, %v5878
        %v5906 = vmax.f32 %v5879, %v5880
        %v5907 = vmax.f32 %v5881, %v5882
        %v5908 = vmax.f32 %v5883, %v5884
        %v5909 = vmax.f32 %v5885, %v5886
        %v5910 = vmax.f32 %v5887, %v5888
        %v5911 = vmax.f32 %v5889, %v5890
        %v5912 = vmax.f32 %v5891, %v5892
        %v5913 = vmax.f32 %v5893, %v5894
        %v5914 = vmax.f32 %v5895, %v5896
        %v5915 = vmax.f32 %v5897, %v5898
        %v5916 = vmax.f32 %v5899, %v5900
        %5917 = vmatpush.msra.mxu0 %v1349
        %5918 = vmatpush.msra.mxu0 %v1347
        %5919 = vmatpush.msra.mxu0 %v1345
        %5920 = vmatpush.msra.mxu0 %v1343
        %5921 = vmatpush.msra.mxu0 %v1341
        %5922 = vmatpush.msra.mxu0 %v1339
        %5923 = vmatpush.msra.mxu0 %v1337
        %5924 = vmatpush.msra.mxu0 %v1335
        %5925 = vmatpush.msra.mxu0 %v1333
        %5926 = vmatpush.msra.mxu0 %v1331
        %5927 = vmatpush.msra.mxu0 %v1329
        %5928 = vmatpush.msra.mxu0 %v1327
        %5929 = vmatpush.msra.mxu0 %v1325
        %5930 = vmatpush.msra.mxu0 %v1323
        %5931 = vmatpush.msra.mxu0 %v1321
        %5932 = vmatpush.msra.mxu0 %v1319
        %5933 = vmatmul.f32.gmra.mxu0 %v4827
        %v5934 = vpop.f32.mrf.mxu0
        %v5935 = vadd.f32 0.0, %v5934
        %5936 = vmatmul.f32.gmra.mxu0 %v4830
        %v5937 = vpop.f32.mrf.mxu0
        %v5938 = vadd.f32 0.0, %v5937
        %5939 = vmatmul.f32.gmra.mxu0 %v4833
        %v5940 = vpop.f32.mrf.mxu0
        %v5941 = vadd.f32 0.0, %v5940
        %5942 = vmatmul.f32.gmra.mxu0 %v4836
        %v5943 = vpop.f32.mrf.mxu0
        %v5944 = vadd.f32 0.0, %v5943
        %5945 = vmatmul.f32.gmra.mxu0 %v4839
        %v5946 = vpop.f32.mrf.mxu0
        %v5947 = vadd.f32 0.0, %v5946
        %5948 = vmatmul.f32.gmra.mxu0 %v4842
        %v5949 = vpop.f32.mrf.mxu0
        %v5950 = vadd.f32 0.0, %v5949
        %5951 = vmatmul.f32.gmra.mxu0 %v4845
        %v5952 = vpop.f32.mrf.mxu0
        %v5953 = vadd.f32 0.0, %v5952
        %5954 = vmatmul.f32.gmra.mxu0 %v4848
        %v5955 = vpop.f32.mrf.mxu0
        %v5956 = vadd.f32 0.0, %v5955
        %5957 = vmatmul.f32.gmra.mxu0 %v4851
        %v5958 = vpop.f32.mrf.mxu0
        %v5959 = vadd.f32 0.0, %v5958
        %5960 = vmatmul.f32.gmra.mxu0 %v4854
        %v5961 = vpop.f32.mrf.mxu0
        %v5962 = vadd.f32 0.0, %v5961
        %5963 = vmatmul.f32.gmra.mxu0 %v4857
        %v5964 = vpop.f32.mrf.mxu0
        %v5965 = vadd.f32 0.0, %v5964
        %5966 = vmatmul.f32.gmra.mxu0 %v4860
        %v5967 = vpop.f32.mrf.mxu0
        %v5968 = vadd.f32 0.0, %v5967
        %5969 = vmatmul.f32.gmra.mxu0 %v4863
        %v5970 = vpop.f32.mrf.mxu0
        %v5971 = vadd.f32 0.0, %v5970
        %5972 = vmatmul.f32.gmra.mxu0 %v4866
        %v5973 = vpop.f32.mrf.mxu0
        %v5974 = vadd.f32 0.0, %v5973
        %5975 = vmatmul.f32.gmra.mxu0 %v4869
        %v5976 = vpop.f32.mrf.mxu0
        %v5977 = vadd.f32 0.0, %v5976
        %5978 = vmatmul.f32.gmra.mxu0 %v4872
        %v5979 = vpop.f32.mrf.mxu0
        %v5980 = vadd.f32 0.0, %v5979
        %5981 = vdwg.mxu0
        %5982 = vmatpush.msra.mxu0 %v1350
        %5983 = vmatpush.msra.mxu0 %v1348
        %5984 = vmatpush.msra.mxu0 %v1346
        %5985 = vmatpush.msra.mxu0 %v1344
        %5986 = vmatpush.msra.mxu0 %v1342
        %5987 = vmatpush.msra.mxu0 %v1340
        %5988 = vmatpush.msra.mxu0 %v1338
        %5989 = vmatpush.msra.mxu0 %v1336
        %5990 = vmatpush.msra.mxu0 %v1334
        %5991 = vmatpush.msra.mxu0 %v1332
        %5992 = vmatpush.msra.mxu0 %v1330
        %5993 = vmatpush.msra.mxu0 %v1328
        %5994 = vmatpush.msra.mxu0 %v1326
        %5995 = vmatpush.msra.mxu0 %v1324
        %5996 = vmatpush.msra.mxu0 %v1322
        %5997 = vmatpush.msra.mxu0 %v1320
        %5998 = vmatmul.f32.gmra.mxu0 %v4827
        %v5999 = vpop.f32.mrf.mxu0
        %v6000 = vadd.f32 0.0, %v5999
        %6001 = vmatmul.f32.gmra.mxu0 %v4830
        %v6002 = vpop.f32.mrf.mxu0
        %v6003 = vadd.f32 0.0, %v6002
        %6004 = vmatmul.f32.gmra.mxu0 %v4833
        %v6005 = vpop.f32.mrf.mxu0
        %v6006 = vadd.f32 0.0, %v6005
        %6007 = vmatmul.f32.gmra.mxu0 %v4836
        %v6008 = vpop.f32.mrf.mxu0
        %v6009 = vadd.f32 0.0, %v6008
        %6010 = vmatmul.f32.gmra.mxu0 %v4839
        %v6011 = vpop.f32.mrf.mxu0
        %v6012 = vadd.f32 0.0, %v6011
        %6013 = vmatmul.f32.gmra.mxu0 %v4842
        %v6014 = vpop.f32.mrf.mxu0
        %v6015 = vadd.f32 0.0, %v6014
        %6016 = vmatmul.f32.gmra.mxu0 %v4845
        %v6017 = vpop.f32.mrf.mxu0
        %v6018 = vadd.f32 0.0, %v6017
        %6019 = vmatmul.f32.gmra.mxu0 %v4848
        %v6020 = vpop.f32.mrf.mxu0
        %v6021 = vadd.f32 0.0, %v6020
        %6022 = vmatmul.f32.gmra.mxu0 %v4851
        %v6023 = vpop.f32.mrf.mxu0
        %v6024 = vadd.f32 0.0, %v6023
        %6025 = vmatmul.f32.gmra.mxu0 %v4854
        %v6026 = vpop.f32.mrf.mxu0
        %v6027 = vadd.f32 0.0, %v6026
        %6028 = vmatmul.f32.gmra.mxu0 %v4857
        %v6029 = vpop.f32.mrf.mxu0
        %v6030 = vadd.f32 0.0, %v6029
        %6031 = vmatmul.f32.gmra.mxu0 %v4860
        %v6032 = vpop.f32.mrf.mxu0
        %v6033 = vadd.f32 0.0, %v6032
        %6034 = vmatmul.f32.gmra.mxu0 %v4863
        %v6035 = vpop.f32.mrf.mxu0
        %v6036 = vadd.f32 0.0, %v6035
        %6037 = vmatmul.f32.gmra.mxu0 %v4866
        %v6038 = vpop.f32.mrf.mxu0
        %v6039 = vadd.f32 0.0, %v6038
        %6040 = vmatmul.f32.gmra.mxu0 %v4869
        %v6041 = vpop.f32.mrf.mxu0
        %v6042 = vadd.f32 0.0, %v6041
        %6043 = vmatmul.f32.gmra.mxu0 %v4872
        %v6044 = vpop.f32.mrf.mxu0
        %v6045 = vadd.f32 0.0, %v6044
        %6046 = vdwg.mxu0
        %6047 = vmatpush.msra.mxu0 %v1316
        %6048 = vmatpush.msra.mxu0 %v1314
        %6049 = vmatpush.msra.mxu0 %v1312
        %6050 = vmatpush.msra.mxu0 %v1310
        %6051 = vmatpush.msra.mxu0 %v1308
        %6052 = vmatpush.msra.mxu0 %v1306
        %6053 = vmatpush.msra.mxu0 %v1304
        %6054 = vmatpush.msra.mxu0 %v1302
        %6055 = vmatpush.msra.mxu0 %v1300
        %6056 = vmatpush.msra.mxu0 %v1298
        %6057 = vmatpush.msra.mxu0 %v1296
        %6058 = vmatpush.msra.mxu0 %v1294
        %6059 = vmatpush.msra.mxu0 %v1292
        %6060 = vmatpush.msra.mxu0 %v1290
        %6061 = vmatpush.msra.mxu0 %v1288
        %6062 = vmatpush.msra.mxu0 %v1286
        %6063 = vmatmul.f32.gmra.mxu0 %v4777
        %v6064 = vpop.f32.mrf.mxu0
        %v6065 = vadd.f32 %v5935, %v6064
        %6066 = vmatmul.f32.gmra.mxu0 %v4778
        %v6067 = vpop.f32.mrf.mxu0
        %v6068 = vadd.f32 %v5938, %v6067
        %6069 = vmatmul.f32.gmra.mxu0 %v4779
        %v6070 = vpop.f32.mrf.mxu0
        %v6071 = vadd.f32 %v5941, %v6070
        %6072 = vmatmul.f32.gmra.mxu0 %v4780
        %v6073 = vpop.f32.mrf.mxu0
        %v6074 = vadd.f32 %v5944, %v6073
        %6075 = vmatmul.f32.gmra.mxu0 %v4781
        %v6076 = vpop.f32.mrf.mxu0
        %v6077 = vadd.f32 %v5947, %v6076
        %6078 = vmatmul.f32.gmra.mxu0 %v4782
        %v6079 = vpop.f32.mrf.mxu0
        %v6080 = vadd.f32 %v5950, %v6079
        %6081 = vmatmul.f32.gmra.mxu0 %v4783
        %v6082 = vpop.f32.mrf.mxu0
        %v6083 = vadd.f32 %v5953, %v6082
        %6084 = vmatmul.f32.gmra.mxu0 %v4784
        %v6085 = vpop.f32.mrf.mxu0
        %v6086 = vadd.f32 %v5956, %v6085
        %6087 = vmatmul.f32.gmra.mxu0 %v4785
        %v6088 = vpop.f32.mrf.mxu0
        %v6089 = vadd.f32 %v5959, %v6088
        %6090 = vmatmul.f32.gmra.mxu0 %v4786
        %v6091 = vpop.f32.mrf.mxu0
        %v6092 = vadd.f32 %v5962, %v6091
        %6093 = vmatmul.f32.gmra.mxu0 %v4787
        %v6094 = vpop.f32.mrf.mxu0
        %v6095 = vadd.f32 %v5965, %v6094
        %6096 = vmatmul.f32.gmra.mxu0 %v4788
        %v6097 = vpop.f32.mrf.mxu0
        %v6098 = vadd.f32 %v5968, %v6097
        %6099 = vmatmul.f32.gmra.mxu0 %v4789
        %v6100 = vpop.f32.mrf.mxu0
        %v6101 = vadd.f32 %v5971, %v6100
        %6102 = vmatmul.f32.gmra.mxu0 %v4790
        %v6103 = vpop.f32.mrf.mxu0
        %v6104 = vadd.f32 %v5974, %v6103
        %6105 = vmatmul.f32.gmra.mxu0 %v4791
        %v6106 = vpop.f32.mrf.mxu0
        %v6107 = vadd.f32 %v5977, %v6106
        %6108 = vmatmul.f32.gmra.mxu0 %v4792
        %v6109 = vpop.f32.mrf.mxu0
        %v6110 = vadd.f32 %v5980, %v6109
        %6111 = vdwg.mxu0
        %6112 = vmatpush.msra.mxu0 %v1317
        %6113 = vmatpush.msra.mxu0 %v1315
        %6114 = vmatpush.msra.mxu0 %v1313
        %6115 = vmatpush.msra.mxu0 %v1311
        %6116 = vmatpush.msra.mxu0 %v1309
        %6117 = vmatpush.msra.mxu0 %v1307
        %6118 = vmatpush.msra.mxu0 %v1305
        %6119 = vmatpush.msra.mxu0 %v1303
        %6120 = vmatpush.msra.mxu0 %v1301
        %6121 = vmatpush.msra.mxu0 %v1299
        %6122 = vmatpush.msra.mxu0 %v1297
        %6123 = vmatpush.msra.mxu0 %v1295
        %6124 = vmatpush.msra.mxu0 %v1293
        %6125 = vmatpush.msra.mxu0 %v1291
        %6126 = vmatpush.msra.mxu0 %v1289
        %6127 = vmatpush.msra.mxu0 %v1287
        %6128 = vmatmul.f32.gmra.mxu0 %v4777
        %v6129 = vpop.f32.mrf.mxu0
        %v6130 = vadd.f32 %v6000, %v6129
        %6131 = vmatmul.f32.gmra.mxu0 %v4778
        %v6132 = vpop.f32.mrf.mxu0
        %v6133 = vadd.f32 %v6003, %v6132
        %6134 = vmatmul.f32.gmra.mxu0 %v4779
        %v6135 = vpop.f32.mrf.mxu0
        %v6136 = vadd.f32 %v6006, %v6135
        %6137 = vmatmul.f32.gmra.mxu0 %v4780
        %v6138 = vpop.f32.mrf.mxu0
        %v6139 = vadd.f32 %v6009, %v6138
        %6140 = vmatmul.f32.gmra.mxu0 %v4781
        %v6141 = vpop.f32.mrf.mxu0
        %v6142 = vadd.f32 %v6012, %v6141
        %6143 = vmatmul.f32.gmra.mxu0 %v4782
        %v6144 = vpop.f32.mrf.mxu0
        %v6145 = vadd.f32 %v6015, %v6144
        %6146 = vmatmul.f32.gmra.mxu0 %v4783
        %v6147 = vpop.f32.mrf.mxu0
        %v6148 = vadd.f32 %v6018, %v6147
        %6149 = vmatmul.f32.gmra.mxu0 %v4784
        %v6150 = vpop.f32.mrf.mxu0
        %v6151 = vadd.f32 %v6021, %v6150
        %6152 = vmatmul.f32.gmra.mxu0 %v4785
        %v6153 = vpop.f32.mrf.mxu0
        %v6154 = vadd.f32 %v6024, %v6153
        %6155 = vmatmul.f32.gmra.mxu0 %v4786
        %v6156 = vpop.f32.mrf.mxu0
        %v6157 = vadd.f32 %v6027, %v6156
        %6158 = vmatmul.f32.gmra.mxu0 %v4787
        %v6159 = vpop.f32.mrf.mxu0
        %v6160 = vadd.f32 %v6030, %v6159
        %6161 = vmatmul.f32.gmra.mxu0 %v4788
        %v6162 = vpop.f32.mrf.mxu0
        %v6163 = vadd.f32 %v6033, %v6162
        %6164 = vmatmul.f32.gmra.mxu0 %v4789
        %v6165 = vpop.f32.mrf.mxu0
        %v6166 = vadd.f32 %v6036, %v6165
        %6167 = vmatmul.f32.gmra.mxu0 %v4790
        %v6168 = vpop.f32.mrf.mxu0
        %v6169 = vadd.f32 %v6039, %v6168
        %6170 = vmatmul.f32.gmra.mxu0 %v4791
        %v6171 = vpop.f32.mrf.mxu0
        %v6172 = vadd.f32 %v6042, %v6171
        %6173 = vmatmul.f32.gmra.mxu0 %v4792
        %v6174 = vpop.f32.mrf.mxu0
        %v6175 = vadd.f32 %v6045, %v6174
        %6176 = vdwg.mxu0
        %6177 = vmatpush.msra.mxu0 %v1382
        %6178 = vmatpush.msra.mxu0 %v1380
        %6179 = vmatpush.msra.mxu0 %v1378
        %6180 = vmatpush.msra.mxu0 %v1376
        %6181 = vmatpush.msra.mxu0 %v1374
        %6182 = vmatpush.msra.mxu0 %v1372
        %6183 = vmatpush.msra.mxu0 %v1370
        %6184 = vmatpush.msra.mxu0 %v1368
        %6185 = vmatpush.msra.mxu0 %v1366
        %6186 = vmatpush.msra.mxu0 %v1364
        %6187 = vmatpush.msra.mxu0 %v1362
        %6188 = vmatpush.msra.mxu0 %v1360
        %6189 = vmatpush.msra.mxu0 %v1358
        %6190 = vmatpush.msra.mxu0 %v1356
        %6191 = vmatpush.msra.mxu0 %v1354
        %6192 = vmatpush.msra.mxu0 %v1352
        %6193 = vmatmul.f32.gmra.mxu0 %v4892
        %v6194 = vpop.f32.mrf.mxu0
        %v6195 = vadd.f32 0.0, %v6194
        %6196 = vmatmul.f32.gmra.mxu0 %v4895
        %v6197 = vpop.f32.mrf.mxu0
        %v6198 = vadd.f32 0.0, %v6197
        %6199 = vmatmul.f32.gmra.mxu0 %v4898
        %v6200 = vpop.f32.mrf.mxu0
        %v6201 = vadd.f32 0.0, %v6200
        %6202 = vmatmul.f32.gmra.mxu0 %v4901
        %v6203 = vpop.f32.mrf.mxu0
        %v6204 = vadd.f32 0.0, %v6203
        %6205 = vmatmul.f32.gmra.mxu0 %v4904
        %v6206 = vpop.f32.mrf.mxu0
        %v6207 = vadd.f32 0.0, %v6206
        %6208 = vmatmul.f32.gmra.mxu0 %v4907
        %v6209 = vpop.f32.mrf.mxu0
        %v6210 = vadd.f32 0.0, %v6209
        %6211 = vmatmul.f32.gmra.mxu0 %v4910
        %v6212 = vpop.f32.mrf.mxu0
        %v6213 = vadd.f32 0.0, %v6212
        %6214 = vmatmul.f32.gmra.mxu0 %v4913
        %v6215 = vpop.f32.mrf.mxu0
        %v6216 = vadd.f32 0.0, %v6215
        %6217 = vmatmul.f32.gmra.mxu0 %v4916
        %v6218 = vpop.f32.mrf.mxu0
        %v6219 = vadd.f32 0.0, %v6218
        %6220 = vmatmul.f32.gmra.mxu0 %v4919
        %v6221 = vpop.f32.mrf.mxu0
        %v6222 = vadd.f32 0.0, %v6221
        %6223 = vmatmul.f32.gmra.mxu0 %v4922
        %v6224 = vpop.f32.mrf.mxu0
        %v6225 = vadd.f32 0.0, %v6224
        %6226 = vmatmul.f32.gmra.mxu0 %v4925
        %v6227 = vpop.f32.mrf.mxu0
        %v6228 = vadd.f32 0.0, %v6227
        %6229 = vmatmul.f32.gmra.mxu0 %v4928
        %v6230 = vpop.f32.mrf.mxu0
        %v6231 = vadd.f32 0.0, %v6230
        %6232 = vmatmul.f32.gmra.mxu0 %v4931
        %v6233 = vpop.f32.mrf.mxu0
        %v6234 = vadd.f32 0.0, %v6233
        %6235 = vmatmul.f32.gmra.mxu0 %v4934
        %v6236 = vpop.f32.mrf.mxu0
        %v6237 = vadd.f32 0.0, %v6236
        %6238 = vmatmul.f32.gmra.mxu0 %v4937
        %v6239 = vpop.f32.mrf.mxu0
        %v6240 = vadd.f32 0.0, %v6239
        %6241 = vdwg.mxu0
        %6242 = vmatpush.msra.mxu0 %v1383
        %6243 = vmatpush.msra.mxu0 %v1381
        %6244 = vmatpush.msra.mxu0 %v1379
        %6245 = vmatpush.msra.mxu0 %v1377
        %6246 = vmatpush.msra.mxu0 %v1375
        %6247 = vmatpush.msra.mxu0 %v1373
        %6248 = vmatpush.msra.mxu0 %v1371
        %6249 = vmatpush.msra.mxu0 %v1369
        %6250 = vmatpush.msra.mxu0 %v1367
        %6251 = vmatpush.msra.mxu0 %v1365
        %6252 = vmatpush.msra.mxu0 %v1363
        %6253 = vmatpush.msra.mxu0 %v1361
        %6254 = vmatpush.msra.mxu0 %v1359
        %6255 = vmatpush.msra.mxu0 %v1357
        %6256 = vmatpush.msra.mxu0 %v1355
        %6257 = vmatpush.msra.mxu0 %v1353
        %6258 = vmatmul.f32.gmra.mxu0 %v4892
        %v6259 = vpop.f32.mrf.mxu0
        %v6260 = vadd.f32 0.0, %v6259
        %6261 = vmatmul.f32.gmra.mxu0 %v4895
        %v6262 = vpop.f32.mrf.mxu0
        %v6263 = vadd.f32 0.0, %v6262
        %6264 = vmatmul.f32.gmra.mxu0 %v4898
        %v6265 = vpop.f32.mrf.mxu0
        %v6266 = vadd.f32 0.0, %v6265
        %6267 = vmatmul.f32.gmra.mxu0 %v4901
        %v6268 = vpop.f32.mrf.mxu0
        %v6269 = vadd.f32 0.0, %v6268
        %6270 = vmatmul.f32.gmra.mxu0 %v4904
        %v6271 = vpop.f32.mrf.mxu0
        %v6272 = vadd.f32 0.0, %v6271
        %6273 = vmatmul.f32.gmra.mxu0 %v4907
        %v6274 = vpop.f32.mrf.mxu0
        %v6275 = vadd.f32 0.0, %v6274
        %6276 = vmatmul.f32.gmra.mxu0 %v4910
        %v6277 = vpop.f32.mrf.mxu0
        %v6278 = vadd.f32 0.0, %v6277
        %6279 = vmatmul.f32.gmra.mxu0 %v4913
        %v6280 = vpop.f32.mrf.mxu0
        %v6281 = vadd.f32 0.0, %v6280
        %6282 = vmatmul.f32.gmra.mxu0 %v4916
        %v6283 = vpop.f32.mrf.mxu0
        %v6284 = vadd.f32 0.0, %v6283
        %6285 = vmatmul.f32.gmra.mxu0 %v4919
        %v6286 = vpop.f32.mrf.mxu0
        %v6287 = vadd.f32 0.0, %v6286
        %6288 = vmatmul.f32.gmra.mxu0 %v4922
        %v6289 = vpop.f32.mrf.mxu0
        %v6290 = vadd.f32 0.0, %v6289
        %6291 = vmatmul.f32.gmra.mxu0 %v4925
        %v6292 = vpop.f32.mrf.mxu0
        %v6293 = vadd.f32 0.0, %v6292
        %6294 = vmatmul.f32.gmra.mxu0 %v4928
        %v6295 = vpop.f32.mrf.mxu0
        %v6296 = vadd.f32 0.0, %v6295
        %6297 = vmatmul.f32.gmra.mxu0 %v4931
        %v6298 = vpop.f32.mrf.mxu0
        %v6299 = vadd.f32 0.0, %v6298
        %6300 = vmatmul.f32.gmra.mxu0 %v4934
        %v6301 = vpop.f32.mrf.mxu0
        %v6302 = vadd.f32 0.0, %v6301
        %6303 = vmatmul.f32.gmra.mxu0 %v4937
        %v6304 = vpop.f32.mrf.mxu0
        %v6305 = vadd.f32 0.0, %v6304
        %6306 = vdwg.mxu0
        %v6307 = vadd.f32 %v6065, %v6195
        %v6308 = vadd.f32 %v6130, %v6260
        %v6309 = vadd.f32 %v6068, %v6198
        %v6310 = vadd.f32 %v6133, %v6263
        %v6311 = vadd.f32 %v6071, %v6201
        %v6312 = vadd.f32 %v6136, %v6266
        %v6313 = vadd.f32 %v6074, %v6204
        %v6314 = vadd.f32 %v6139, %v6269
        %v6315 = vadd.f32 %v6077, %v6207
        %v6316 = vadd.f32 %v6142, %v6272
        %v6317 = vadd.f32 %v6080, %v6210
        %v6318 = vadd.f32 %v6145, %v6275
        %v6319 = vadd.f32 %v6083, %v6213
        %v6320 = vadd.f32 %v6148, %v6278
        %v6321 = vadd.f32 %v6086, %v6216
        %v6322 = vadd.f32 %v6151, %v6281
        %v6323 = vadd.f32 %v6089, %v6219
        %v6324 = vadd.f32 %v6154, %v6284
        %v6325 = vadd.f32 %v6092, %v6222
        %v6326 = vadd.f32 %v6157, %v6287
        %v6327 = vadd.f32 %v6095, %v6225
        %v6328 = vadd.f32 %v6160, %v6290
        %v6329 = vadd.f32 %v6098, %v6228
        %v6330 = vadd.f32 %v6163, %v6293
        %v6331 = vadd.f32 %v6101, %v6231
        %v6332 = vadd.f32 %v6166, %v6296
        %v6333 = vadd.f32 %v6104, %v6234
        %v6334 = vadd.f32 %v6169, %v6299
        %v6335 = vadd.f32 %v6107, %v6237
        %v6336 = vadd.f32 %v6172, %v6302
        %v6337 = vadd.f32 %v6110, %v6240
        %v6338 = vadd.f32 %v6175, %v6305
        %6339 = vmatpush.msra.mxu0 %v1415
        %6340 = vmatpush.msra.mxu0 %v1413
        %6341 = vmatpush.msra.mxu0 %v1411
        %6342 = vmatpush.msra.mxu0 %v1409
        %6343 = vmatpush.msra.mxu0 %v1407
        %6344 = vmatpush.msra.mxu0 %v1405
        %6345 = vmatpush.msra.mxu0 %v1403
        %6346 = vmatpush.msra.mxu0 %v1401
        %6347 = vmatpush.msra.mxu0 %v1399
        %6348 = vmatpush.msra.mxu0 %v1397
        %6349 = vmatpush.msra.mxu0 %v1395
        %6350 = vmatpush.msra.mxu0 %v1393
        %6351 = vmatpush.msra.mxu0 %v1391
        %6352 = vmatpush.msra.mxu0 %v1389
        %6353 = vmatpush.msra.mxu0 %v1387
        %6354 = vmatpush.msra.mxu0 %v1385
        %6355 = vmatmul.f32.gmra.mxu0 %v4974
        %v6356 = vpop.f32.mrf.mxu0
        %v6357 = vadd.f32 0.0, %v6356
        %6358 = vmatmul.f32.gmra.mxu0 %v4977
        %v6359 = vpop.f32.mrf.mxu0
        %v6360 = vadd.f32 0.0, %v6359
        %6361 = vmatmul.f32.gmra.mxu0 %v4980
        %v6362 = vpop.f32.mrf.mxu0
        %v6363 = vadd.f32 0.0, %v6362
        %6364 = vmatmul.f32.gmra.mxu0 %v4983
        %v6365 = vpop.f32.mrf.mxu0
        %v6366 = vadd.f32 0.0, %v6365
        %6367 = vmatmul.f32.gmra.mxu0 %v4986
        %v6368 = vpop.f32.mrf.mxu0
        %v6369 = vadd.f32 0.0, %v6368
        %6370 = vmatmul.f32.gmra.mxu0 %v4989
        %v6371 = vpop.f32.mrf.mxu0
        %v6372 = vadd.f32 0.0, %v6371
        %6373 = vmatmul.f32.gmra.mxu0 %v4992
        %v6374 = vpop.f32.mrf.mxu0
        %v6375 = vadd.f32 0.0, %v6374
        %6376 = vmatmul.f32.gmra.mxu0 %v4995
        %v6377 = vpop.f32.mrf.mxu0
        %v6378 = vadd.f32 0.0, %v6377
        %6379 = vmatmul.f32.gmra.mxu0 %v4998
        %v6380 = vpop.f32.mrf.mxu0
        %v6381 = vadd.f32 0.0, %v6380
        %6382 = vmatmul.f32.gmra.mxu0 %v5001
        %v6383 = vpop.f32.mrf.mxu0
        %v6384 = vadd.f32 0.0, %v6383
        %6385 = vmatmul.f32.gmra.mxu0 %v5004
        %v6386 = vpop.f32.mrf.mxu0
        %v6387 = vadd.f32 0.0, %v6386
        %6388 = vmatmul.f32.gmra.mxu0 %v5007
        %v6389 = vpop.f32.mrf.mxu0
        %v6390 = vadd.f32 0.0, %v6389
        %6391 = vmatmul.f32.gmra.mxu0 %v5010
        %v6392 = vpop.f32.mrf.mxu0
        %v6393 = vadd.f32 0.0, %v6392
        %6394 = vmatmul.f32.gmra.mxu0 %v5013
        %v6395 = vpop.f32.mrf.mxu0
        %v6396 = vadd.f32 0.0, %v6395
        %6397 = vmatmul.f32.gmra.mxu0 %v5016
        %v6398 = vpop.f32.mrf.mxu0
        %v6399 = vadd.f32 0.0, %v6398
        %6400 = vmatmul.f32.gmra.mxu0 %v5019
        %v6401 = vpop.f32.mrf.mxu0
        %v6402 = vadd.f32 0.0, %v6401
        %6403 = vdwg.mxu0
        %6404 = vmatpush.msra.mxu0 %v1416
        %6405 = vmatpush.msra.mxu0 %v1414
        %6406 = vmatpush.msra.mxu0 %v1412
        %6407 = vmatpush.msra.mxu0 %v1410
        %6408 = vmatpush.msra.mxu0 %v1408
        %6409 = vmatpush.msra.mxu0 %v1406
        %6410 = vmatpush.msra.mxu0 %v1404
        %6411 = vmatpush.msra.mxu0 %v1402
        %6412 = vmatpush.msra.mxu0 %v1400
        %6413 = vmatpush.msra.mxu0 %v1398
        %6414 = vmatpush.msra.mxu0 %v1396
        %6415 = vmatpush.msra.mxu0 %v1394
        %6416 = vmatpush.msra.mxu0 %v1392
        %6417 = vmatpush.msra.mxu0 %v1390
        %6418 = vmatpush.msra.mxu0 %v1388
        %6419 = vmatpush.msra.mxu0 %v1386
        %6420 = vmatmul.f32.gmra.mxu0 %v4974
        %v6421 = vpop.f32.mrf.mxu0
        %v6422 = vadd.f32 0.0, %v6421
        %6423 = vmatmul.f32.gmra.mxu0 %v4977
        %v6424 = vpop.f32.mrf.mxu0
        %v6425 = vadd.f32 0.0, %v6424
        %6426 = vmatmul.f32.gmra.mxu0 %v4980
        %v6427 = vpop.f32.mrf.mxu0
        %v6428 = vadd.f32 0.0, %v6427
        %6429 = vmatmul.f32.gmra.mxu0 %v4983
        %v6430 = vpop.f32.mrf.mxu0
        %v6431 = vadd.f32 0.0, %v6430
        %6432 = vmatmul.f32.gmra.mxu0 %v4986
        %v6433 = vpop.f32.mrf.mxu0
        %v6434 = vadd.f32 0.0, %v6433
        %6435 = vmatmul.f32.gmra.mxu0 %v4989
        %v6436 = vpop.f32.mrf.mxu0
        %v6437 = vadd.f32 0.0, %v6436
        %6438 = vmatmul.f32.gmra.mxu0 %v4992
        %v6439 = vpop.f32.mrf.mxu0
        %v6440 = vadd.f32 0.0, %v6439
        %6441 = vmatmul.f32.gmra.mxu0 %v4995
        %v6442 = vpop.f32.mrf.mxu0
        %v6443 = vadd.f32 0.0, %v6442
        %6444 = vmatmul.f32.gmra.mxu0 %v4998
        %v6445 = vpop.f32.mrf.mxu0
        %v6446 = vadd.f32 0.0, %v6445
        %6447 = vmatmul.f32.gmra.mxu0 %v5001
        %v6448 = vpop.f32.mrf.mxu0
        %v6449 = vadd.f32 0.0, %v6448
        %6450 = vmatmul.f32.gmra.mxu0 %v5004
        %v6451 = vpop.f32.mrf.mxu0
        %v6452 = vadd.f32 0.0, %v6451
        %6453 = vmatmul.f32.gmra.mxu0 %v5007
        %v6454 = vpop.f32.mrf.mxu0
        %v6455 = vadd.f32 0.0, %v6454
        %6456 = vmatmul.f32.gmra.mxu0 %v5010
        %v6457 = vpop.f32.mrf.mxu0
        %v6458 = vadd.f32 0.0, %v6457
        %6459 = vmatmul.f32.gmra.mxu0 %v5013
        %v6460 = vpop.f32.mrf.mxu0
        %v6461 = vadd.f32 0.0, %v6460
        %6462 = vmatmul.f32.gmra.mxu0 %v5016
        %v6463 = vpop.f32.mrf.mxu0
        %v6464 = vadd.f32 0.0, %v6463
        %6465 = vmatmul.f32.gmra.mxu0 %v5019
        %v6466 = vpop.f32.mrf.mxu0
        %v6467 = vadd.f32 0.0, %v6466
        %6468 = vdwg.mxu0
        %v6469 = vadd.f32 %v6307, %v6357
        %v6470 = vadd.f32 %v6308, %v6422
        %v6471 = vadd.f32 %v6309, %v6360
        %v6472 = vadd.f32 %v6310, %v6425
        %v6473 = vadd.f32 %v6311, %v6363
        %v6474 = vadd.f32 %v6312, %v6428
        %v6475 = vadd.f32 %v6313, %v6366
        %v6476 = vadd.f32 %v6314, %v6431
        %v6477 = vadd.f32 %v6315, %v6369
        %v6478 = vadd.f32 %v6316, %v6434
        %v6479 = vadd.f32 %v6317, %v6372
        %v6480 = vadd.f32 %v6318, %v6437
        %v6481 = vadd.f32 %v6319, %v6375
        %v6482 = vadd.f32 %v6320, %v6440
        %v6483 = vadd.f32 %v6321, %v6378
        %v6484 = vadd.f32 %v6322, %v6443
        %v6485 = vadd.f32 %v6323, %v6381
        %v6486 = vadd.f32 %v6324, %v6446
        %v6487 = vadd.f32 %v6325, %v6384
        %v6488 = vadd.f32 %v6326, %v6449
        %v6489 = vadd.f32 %v6327, %v6387
        %v6490 = vadd.f32 %v6328, %v6452
        %v6491 = vadd.f32 %v6329, %v6390
        %v6492 = vadd.f32 %v6330, %v6455
        %v6493 = vadd.f32 %v6331, %v6393
        %v6494 = vadd.f32 %v6332, %v6458
        %v6495 = vadd.f32 %v6333, %v6396
        %v6496 = vadd.f32 %v6334, %v6461
        %v6497 = vadd.f32 %v6335, %v6399
        %v6498 = vadd.f32 %v6336, %v6464
        %v6499 = vadd.f32 %v6337, %v6402
        %v6500 = vadd.f32 %v6338, %v6467
        %6501 = vmatpush.msra.mxu0 %v1448
        %6502 = vmatpush.msra.mxu0 %v1446
        %6503 = vmatpush.msra.mxu0 %v1444
        %6504 = vmatpush.msra.mxu0 %v1442
        %6505 = vmatpush.msra.mxu0 %v1440
        %6506 = vmatpush.msra.mxu0 %v1438
        %6507 = vmatpush.msra.mxu0 %v1436
        %6508 = vmatpush.msra.mxu0 %v1434
        %6509 = vmatpush.msra.mxu0 %v1432
        %6510 = vmatpush.msra.mxu0 %v1430
        %6511 = vmatpush.msra.mxu0 %v1428
        %6512 = vmatpush.msra.mxu0 %v1426
        %6513 = vmatpush.msra.mxu0 %v1424
        %6514 = vmatpush.msra.mxu0 %v1422
        %6515 = vmatpush.msra.mxu0 %v1420
        %6516 = vmatpush.msra.mxu0 %v1418
        %6517 = vmatmul.f32.gmra.mxu0 %v5039
        %v6518 = vpop.f32.mrf.mxu0
        %v6519 = vadd.f32 0.0, %v6518
        %6520 = vmatmul.f32.gmra.mxu0 %v5042
        %v6521 = vpop.f32.mrf.mxu0
        %v6522 = vadd.f32 0.0, %v6521
        %6523 = vmatmul.f32.gmra.mxu0 %v5045
        %v6524 = vpop.f32.mrf.mxu0
        %v6525 = vadd.f32 0.0, %v6524
        %6526 = vmatmul.f32.gmra.mxu0 %v5048
        %v6527 = vpop.f32.mrf.mxu0
        %v6528 = vadd.f32 0.0, %v6527
        %6529 = vmatmul.f32.gmra.mxu0 %v5051
        %v6530 = vpop.f32.mrf.mxu0
        %v6531 = vadd.f32 0.0, %v6530
        %6532 = vmatmul.f32.gmra.mxu0 %v5054
        %v6533 = vpop.f32.mrf.mxu0
        %v6534 = vadd.f32 0.0, %v6533
        %6535 = vmatmul.f32.gmra.mxu0 %v5057
        %v6536 = vpop.f32.mrf.mxu0
        %v6537 = vadd.f32 0.0, %v6536
        %6538 = vmatmul.f32.gmra.mxu0 %v5060
        %v6539 = vpop.f32.mrf.mxu0
        %v6540 = vadd.f32 0.0, %v6539
        %6541 = vmatmul.f32.gmra.mxu0 %v5063
        %v6542 = vpop.f32.mrf.mxu0
        %v6543 = vadd.f32 0.0, %v6542
        %6544 = vmatmul.f32.gmra.mxu0 %v5066
        %v6545 = vpop.f32.mrf.mxu0
        %v6546 = vadd.f32 0.0, %v6545
        %6547 = vmatmul.f32.gmra.mxu0 %v5069
        %v6548 = vpop.f32.mrf.mxu0
        %v6549 = vadd.f32 0.0, %v6548
        %6550 = vmatmul.f32.gmra.mxu0 %v5072
        %v6551 = vpop.f32.mrf.mxu0
        %v6552 = vadd.f32 0.0, %v6551
        %6553 = vmatmul.f32.gmra.mxu0 %v5075
        %v6554 = vpop.f32.mrf.mxu0
        %v6555 = vadd.f32 0.0, %v6554
        %6556 = vmatmul.f32.gmra.mxu0 %v5078
        %v6557 = vpop.f32.mrf.mxu0
        %v6558 = vadd.f32 0.0, %v6557
        %6559 = vmatmul.f32.gmra.mxu0 %v5081
        %v6560 = vpop.f32.mrf.mxu0
        %v6561 = vadd.f32 0.0, %v6560
        %6562 = vmatmul.f32.gmra.mxu0 %v5084
        %v6563 = vpop.f32.mrf.mxu0
        %v6564 = vadd.f32 0.0, %v6563
        %6565 = vdwg.mxu0
        %6566 = vmatpush.msra.mxu0 %v1449
        %6567 = vmatpush.msra.mxu0 %v1447
        %6568 = vmatpush.msra.mxu0 %v1445
        %6569 = vmatpush.msra.mxu0 %v1443
        %6570 = vmatpush.msra.mxu0 %v1441
        %6571 = vmatpush.msra.mxu0 %v1439
        %6572 = vmatpush.msra.mxu0 %v1437
        %6573 = vmatpush.msra.mxu0 %v1435
        %6574 = vmatpush.msra.mxu0 %v1433
        %6575 = vmatpush.msra.mxu0 %v1431
        %6576 = vmatpush.msra.mxu0 %v1429
        %6577 = vmatpush.msra.mxu0 %v1427
        %6578 = vmatpush.msra.mxu0 %v1425
        %6579 = vmatpush.msra.mxu0 %v1423
        %6580 = vmatpush.msra.mxu0 %v1421
        %6581 = vmatpush.msra.mxu0 %v1419
        %6582 = vmatmul.f32.gmra.mxu0 %v5039
        %v6583 = vpop.f32.mrf.mxu0
        %v6584 = vadd.f32 0.0, %v6583
        %6585 = vmatmul.f32.gmra.mxu0 %v5042
        %v6586 = vpop.f32.mrf.mxu0
        %v6587 = vadd.f32 0.0, %v6586
        %6588 = vmatmul.f32.gmra.mxu0 %v5045
        %v6589 = vpop.f32.mrf.mxu0
        %v6590 = vadd.f32 0.0, %v6589
        %6591 = vmatmul.f32.gmra.mxu0 %v5048
        %v6592 = vpop.f32.mrf.mxu0
        %v6593 = vadd.f32 0.0, %v6592
        %6594 = vmatmul.f32.gmra.mxu0 %v5051
        %v6595 = vpop.f32.mrf.mxu0
        %v6596 = vadd.f32 0.0, %v6595
        %6597 = vmatmul.f32.gmra.mxu0 %v5054
        %v6598 = vpop.f32.mrf.mxu0
        %v6599 = vadd.f32 0.0, %v6598
        %6600 = vmatmul.f32.gmra.mxu0 %v5057
        %v6601 = vpop.f32.mrf.mxu0
        %v6602 = vadd.f32 0.0, %v6601
        %6603 = vmatmul.f32.gmra.mxu0 %v5060
        %v6604 = vpop.f32.mrf.mxu0
        %v6605 = vadd.f32 0.0, %v6604
        %6606 = vmatmul.f32.gmra.mxu0 %v5063
        %v6607 = vpop.f32.mrf.mxu0
        %v6608 = vadd.f32 0.0, %v6607
        %6609 = vmatmul.f32.gmra.mxu0 %v5066
        %v6610 = vpop.f32.mrf.mxu0
        %v6611 = vadd.f32 0.0, %v6610
        %6612 = vmatmul.f32.gmra.mxu0 %v5069
        %v6613 = vpop.f32.mrf.mxu0
        %v6614 = vadd.f32 0.0, %v6613
        %6615 = vmatmul.f32.gmra.mxu0 %v5072
        %v6616 = vpop.f32.mrf.mxu0
        %v6617 = vadd.f32 0.0, %v6616
        %6618 = vmatmul.f32.gmra.mxu0 %v5075
        %v6619 = vpop.f32.mrf.mxu0
        %v6620 = vadd.f32 0.0, %v6619
        %6621 = vmatmul.f32.gmra.mxu0 %v5078
        %v6622 = vpop.f32.mrf.mxu0
        %v6623 = vadd.f32 0.0, %v6622
        %6624 = vmatmul.f32.gmra.mxu0 %v5081
        %v6625 = vpop.f32.mrf.mxu0
        %v6626 = vadd.f32 0.0, %v6625
        %6627 = vmatmul.f32.gmra.mxu0 %v5084
        %v6628 = vpop.f32.mrf.mxu0
        %v6629 = vadd.f32 0.0, %v6628
        %6630 = vdwg.mxu0
        %v6631 = vadd.f32 %v6469, %v6519
        %v6632 = vadd.f32 %v6470, %v6584
        %v6633 = vadd.f32 %v6471, %v6522
        %v6634 = vadd.f32 %v6472, %v6587
        %v6635 = vadd.f32 %v6473, %v6525
        %v6636 = vadd.f32 %v6474, %v6590
        %v6637 = vadd.f32 %v6475, %v6528
        %v6638 = vadd.f32 %v6476, %v6593
        %v6639 = vadd.f32 %v6477, %v6531
        %v6640 = vadd.f32 %v6478, %v6596
        %v6641 = vadd.f32 %v6479, %v6534
        %v6642 = vadd.f32 %v6480, %v6599
        %v6643 = vadd.f32 %v6481, %v6537
        %v6644 = vadd.f32 %v6482, %v6602
        %v6645 = vadd.f32 %v6483, %v6540
        %v6646 = vadd.f32 %v6484, %v6605
        %v6647 = vadd.f32 %v6485, %v6543
        %v6648 = vadd.f32 %v6486, %v6608
        %v6649 = vadd.f32 %v6487, %v6546
        %v6650 = vadd.f32 %v6488, %v6611
        %v6651 = vadd.f32 %v6489, %v6549
        %v6652 = vadd.f32 %v6490, %v6614
        %v6653 = vadd.f32 %v6491, %v6552
        %v6654 = vadd.f32 %v6492, %v6617
        %v6655 = vadd.f32 %v6493, %v6555
        %v6656 = vadd.f32 %v6494, %v6620
        %v6657 = vadd.f32 %v6495, %v6558
        %v6658 = vadd.f32 %v6496, %v6623
        %v6659 = vadd.f32 %v6497, %v6561
        %v6660 = vadd.f32 %v6498, %v6626
        %v6661 = vadd.f32 %v6499, %v6564
        %v6662 = vadd.f32 %v6500, %v6629
        %v6663 = vadd.f32 %v6631, %v5833
        %v6664 = vadd.f32 %v6632, %v5834
        %v6665 = vadd.f32 %v6633, %v5833
        %v6666 = vadd.f32 %v6634, %v5834
        %v6667 = vadd.f32 %v6635, %v5833
        %v6668 = vadd.f32 %v6636, %v5834
        %v6669 = vadd.f32 %v6637, %v5833
        %v6670 = vadd.f32 %v6638, %v5834
        %v6671 = vadd.f32 %v6639, %v5833
        %v6672 = vadd.f32 %v6640, %v5834
        %v6673 = vadd.f32 %v6641, %v5833
        %v6674 = vadd.f32 %v6642, %v5834
        %v6675 = vadd.f32 %v6643, %v5833
        %v6676 = vadd.f32 %v6644, %v5834
        %v6677 = vadd.f32 %v6645, %v5833
        %v6678 = vadd.f32 %v6646, %v5834
        %v6679 = vadd.f32 %v6647, %v5833
        %v6680 = vadd.f32 %v6648, %v5834
        %v6681 = vadd.f32 %v6649, %v5833
        %v6682 = vadd.f32 %v6650, %v5834
        %v6683 = vadd.f32 %v6651, %v5833
        %v6684 = vadd.f32 %v6652, %v5834
        %v6685 = vadd.f32 %v6653, %v5833
        %v6686 = vadd.f32 %v6654, %v5834
        %v6687 = vadd.f32 %v6655, %v5833
        %v6688 = vadd.f32 %v6656, %v5834
        %v6689 = vadd.f32 %v6657, %v5833
        %v6690 = vadd.f32 %v6658, %v5834
        %v6691 = vadd.f32 %v6659, %v5833
        %v6692 = vadd.f32 %v6660, %v5834
        %v6693 = vadd.f32 %v6661, %v5833
        %v6694 = vadd.f32 %v6662, %v5834
        %v6695 = vmax.f32 %v6663, 0.0
        %v6696 = vmax.f32 %v6664, 0.0
        %v6697 = vmax.f32 %v6665, 0.0
        %v6698 = vmax.f32 %v6666, 0.0
        %v6699 = vmax.f32 %v6667, 0.0
        %v6700 = vmax.f32 %v6668, 0.0
        %v6701 = vmax.f32 %v6669, 0.0
        %v6702 = vmax.f32 %v6670, 0.0
        %v6703 = vmax.f32 %v6671, 0.0
        %v6704 = vmax.f32 %v6672, 0.0
        %v6705 = vmax.f32 %v6673, 0.0
        %v6706 = vmax.f32 %v6674, 0.0
        %v6707 = vmax.f32 %v6675, 0.0
        %v6708 = vmax.f32 %v6676, 0.0
        %v6709 = vmax.f32 %v6677, 0.0
        %v6710 = vmax.f32 %v6678, 0.0
        %v6711 = vmax.f32 %v6679, 0.0
        %v6712 = vmax.f32 %v6680, 0.0
        %v6713 = vmax.f32 %v6681, 0.0
        %v6714 = vmax.f32 %v6682, 0.0
        %v6715 = vmax.f32 %v6683, 0.0
        %v6716 = vmax.f32 %v6684, 0.0
        %v6717 = vmax.f32 %v6685, 0.0
        %v6718 = vmax.f32 %v6686, 0.0
        %v6719 = vmax.f32 %v6687, 0.0
        %v6720 = vmax.f32 %v6688, 0.0
        %v6721 = vmax.f32 %v6689, 0.0
        %v6722 = vmax.f32 %v6690, 0.0
        %v6723 = vmax.f32 %v6691, 0.0
        %v6724 = vmax.f32 %v6692, 0.0
        %v6725 = vmax.f32 %v6693, 0.0
        %v6726 = vmax.f32 %v6694, 0.0
        %v6727 = vmax.f32 %v6695, %v6696
        %v6728 = vmax.f32 %v6697, %v6698
        %v6729 = vmax.f32 %v6699, %v6700
        %v6730 = vmax.f32 %v6701, %v6702
        %v6731 = vmax.f32 %v6703, %v6704
        %v6732 = vmax.f32 %v6705, %v6706
        %v6733 = vmax.f32 %v6707, %v6708
        %v6734 = vmax.f32 %v6709, %v6710
        %v6735 = vmax.f32 %v6711, %v6712
        %v6736 = vmax.f32 %v6713, %v6714
        %v6737 = vmax.f32 %v6715, %v6716
        %v6738 = vmax.f32 %v6717, %v6718
        %v6739 = vmax.f32 %v6719, %v6720
        %v6740 = vmax.f32 %v6721, %v6722
        %v6741 = vmax.f32 %v6723, %v6724
        %v6742 = vmax.f32 %v6725, %v6726
        %v6743 = vmax.f32 %v5901, %v6727
        %v6744 = vmax.f32 %v5902, %v6728
        %v6745 = vmax.f32 %v5903, %v6729
        %v6746 = vmax.f32 %v5904, %v6730
        %v6747 = vmax.f32 %v5905, %v6731
        %v6748 = vmax.f32 %v5906, %v6732
        %v6749 = vmax.f32 %v5907, %v6733
        %v6750 = vmax.f32 %v5908, %v6734
        %v6751 = vmax.f32 %v5909, %v6735
        %v6752 = vmax.f32 %v5910, %v6736
        %v6753 = vmax.f32 %v5911, %v6737
        %v6754 = vmax.f32 %v5912, %v6738
        %v6755 = vmax.f32 %v5913, %v6739
        %v6756 = vmax.f32 %v5914, %v6740
        %v6757 = vmax.f32 %v5915, %v6741
        %v6758 = vmax.f32 %v5916, %v6742
        %v6759 = vld [vmem:[%s6] sm:$0xff]
        %v6760 = vld [vmem:[%s6 + $0x8] sm:$0xff]
        %6761 = vmatpush.msra.mxu0 %v6758
        %6762 = vmatpush.msra.mxu0 %v6757
        %6763 = vmatpush.msra.mxu0 %v6756
        %6764 = vmatpush.msra.mxu0 %v6755
        %6765 = vmatpush.msra.mxu0 %v6754
        %6766 = vmatpush.msra.mxu0 %v6753
        %6767 = vmatpush.msra.mxu0 %v6752
        %6768 = vmatpush.msra.mxu0 %v6751
        %6769 = vmatpush.msra.mxu0 %v6750
        %6770 = vmatpush.msra.mxu0 %v6749
        %6771 = vmatpush.msra.mxu0 %v6748
        %6772 = vmatpush.msra.mxu0 %v6747
        %6773 = vmatpush.msra.mxu0 %v6746
        %6774 = vmatpush.msra.mxu0 %v6745
        %6775 = vmatpush.msra.mxu0 %v6744
        %6776 = vmatpush.msra.mxu0 %v6743
        %6777 = vmatmul.f32.gmra.mxu0 %v6759
        %v6778 = vpop.f32.mrf.mxu0
        %v6779 = vadd.f32 0.0, %v6778
        %6780 = vmatmul.f32.gmra.mxu0 %v6760
        %v6781 = vpop.f32.mrf.mxu0
        %v6782 = vadd.f32 0.0, %v6781
        %6783 = vdwg.mxu0
        %v6784 = vld [vmem:[%s7] sm:$0xff]
        %v6785 = vld [vmem:[%s7 + $0x8] sm:$0xff]
        %v6786 = vld [vmem:[%s7 + $0x10] sm:$0xff]
        %v6787 = vld [vmem:[%s7 + $0x18] sm:$0xff]
        %v6788 = vld [vmem:[%s7 + $0x20] sm:$0xff]
        %v6789 = vld [vmem:[%s7 + $0x28] sm:$0xff]
        %v6790 = vld [vmem:[%s7 + $0x30] sm:$0xff]
        %v6791 = vld [vmem:[%s7 + $0x38] sm:$0xff]
        %v6792 = vld [vmem:[%s7 + $0x40] sm:$0xff]
        %v6793 = vld [vmem:[%s7 + $0x48] sm:$0xff]
        %v6794 = vld [vmem:[%s7 + $0x50] sm:$0xff]
        %v6795 = vld [vmem:[%s7 + $0x58] sm:$0xff]
        %v6796 = vld [vmem:[%s7 + $0x60] sm:$0xff]
        %v6797 = vld [vmem:[%s7 + $0x68] sm:$0xff]
        %v6798 = vld [vmem:[%s7 + $0x70] sm:$0xff]
        %v6799 = vld [vmem:[%s7 + $0x78] sm:$0xff]
        %s6800 = scalar_lea.vmem %s6, 16
        %v6801 = vld [vmem:[%s6800] sm:$0xff]
        %v6802 = vld [vmem:[%s6800 + $0x8] sm:$0xff]
        %6803 = vmatpush.msra.mxu0 %v6758
        %6804 = vmatpush.msra.mxu0 %v6757
        %6805 = vmatpush.msra.mxu0 %v6756
        %6806 = vmatpush.msra.mxu0 %v6755
        %6807 = vmatpush.msra.mxu0 %v6754
        %6808 = vmatpush.msra.mxu0 %v6753
        %6809 = vmatpush.msra.mxu0 %v6752
        %6810 = vmatpush.msra.mxu0 %v6751
        %6811 = vmatpush.msra.mxu0 %v6750
        %6812 = vmatpush.msra.mxu0 %v6749
        %6813 = vmatpush.msra.mxu0 %v6748
        %6814 = vmatpush.msra.mxu0 %v6747
        %6815 = vmatpush.msra.mxu0 %v6746
        %6816 = vmatpush.msra.mxu0 %v6745
        %6817 = vmatpush.msra.mxu0 %v6744
        %6818 = vmatpush.msra.mxu0 %v6743
        %6819 = vmatmul.f32.gmra.mxu0 %v6801
        %v6820 = vpop.f32.mrf.mxu0
        %v6821 = vadd.f32 0.0, %v6820
        %6822 = vmatmul.f32.gmra.mxu0 %v6802
        %v6823 = vpop.f32.mrf.mxu0
        %v6824 = vadd.f32 0.0, %v6823
        %6825 = vdwg.mxu0
        %s6826 = scalar_lea.vmem %s7, 128
        %v6827 = vld [vmem:[%s6826] sm:$0xff]
        %v6828 = vld [vmem:[%s6826 + $0x8] sm:$0xff]
        %v6829 = vld [vmem:[%s6826 + $0x10] sm:$0xff]
        %v6830 = vld [vmem:[%s6826 + $0x18] sm:$0xff]
        %v6831 = vld [vmem:[%s6826 + $0x20] sm:$0xff]
        %v6832 = vld [vmem:[%s6826 + $0x28] sm:$0xff]
        %v6833 = vld [vmem:[%s6826 + $0x30] sm:$0xff]
        %v6834 = vld [vmem:[%s6826 + $0x38] sm:$0xff]
        %v6835 = vld [vmem:[%s6826 + $0x40] sm:$0xff]
        %v6836 = vld [vmem:[%s6826 + $0x48] sm:$0xff]
        %v6837 = vld [vmem:[%s6826 + $0x50] sm:$0xff]
        %v6838 = vld [vmem:[%s6826 + $0x58] sm:$0xff]
        %v6839 = vld [vmem:[%s6826 + $0x60] sm:$0xff]
        %v6840 = vld [vmem:[%s6826 + $0x68] sm:$0xff]
        %v6841 = vld [vmem:[%s6826 + $0x70] sm:$0xff]
        %v6842 = vld [vmem:[%s6826 + $0x78] sm:$0xff]
        %6843 = vmatpush.msra.mxu0 %v6842
        %6844 = vmatpush.msra.mxu0 %v6841
        %6845 = vmatpush.msra.mxu0 %v6840
        %6846 = vmatpush.msra.mxu0 %v6839
        %6847 = vmatpush.msra.mxu0 %v6838
        %6848 = vmatpush.msra.mxu0 %v6837
        %6849 = vmatpush.msra.mxu0 %v6836
        %6850 = vmatpush.msra.mxu0 %v6835
        %6851 = vmatpush.msra.mxu0 %v6834
        %6852 = vmatpush.msra.mxu0 %v6833
        %6853 = vmatpush.msra.mxu0 %v6832
        %6854 = vmatpush.msra.mxu0 %v6831
        %6855 = vmatpush.msra.mxu0 %v6830
        %6856 = vmatpush.msra.mxu0 %v6829
        %6857 = vmatpush.msra.mxu0 %v6828
        %6858 = vmatpush.msra.mxu0 %v6827
        %6859 = vmatmul.f32.gmra.mxu0 %v6821
        %v6860 = vpop.f32.mrf.mxu0
        %v6861 = vadd.f32 0.0, %v6860
        %6862 = vmatmul.f32.gmra.mxu0 %v6824
        %v6863 = vpop.f32.mrf.mxu0
        %v6864 = vadd.f32 0.0, %v6863
        %6865 = vdwg.mxu0
        %6866 = vmatpush.msra.mxu0 %v6799
        %6867 = vmatpush.msra.mxu0 %v6798
        %6868 = vmatpush.msra.mxu0 %v6797
        %6869 = vmatpush.msra.mxu0 %v6796
        %6870 = vmatpush.msra.mxu0 %v6795
        %6871 = vmatpush.msra.mxu0 %v6794
        %6872 = vmatpush.msra.mxu0 %v6793
        %6873 = vmatpush.msra.mxu0 %v6792
        %6874 = vmatpush.msra.mxu0 %v6791
        %6875 = vmatpush.msra.mxu0 %v6790
        %6876 = vmatpush.msra.mxu0 %v6789
        %6877 = vmatpush.msra.mxu0 %v6788
        %6878 = vmatpush.msra.mxu0 %v6787
        %6879 = vmatpush.msra.mxu0 %v6786
        %6880 = vmatpush.msra.mxu0 %v6785
        %6881 = vmatpush.msra.mxu0 %v6784
        %6882 = vmatmul.f32.gmra.mxu0 %v6779
        %v6883 = vpop.f32.mrf.mxu0
        %v6884 = vadd.f32 %v6861, %v6883
        %6885 = vmatmul.f32.gmra.mxu0 %v6782
        %v6886 = vpop.f32.mrf.mxu0
        %v6887 = vadd.f32 %v6864, %v6886
        %6888 = vdwg.mxu0
        %s6889 = scalar_lea.vmem %s6, 32
        %v6890 = vld [vmem:[%s6889] sm:$0xff]
        %v6891 = vld [vmem:[%s6889 + $0x8] sm:$0xff]
        %6892 = vmatpush.msra.mxu0 %v6758
        %6893 = vmatpush.msra.mxu0 %v6757
        %6894 = vmatpush.msra.mxu0 %v6756
        %6895 = vmatpush.msra.mxu0 %v6755
        %6896 = vmatpush.msra.mxu0 %v6754
        %6897 = vmatpush.msra.mxu0 %v6753
        %6898 = vmatpush.msra.mxu0 %v6752
        %6899 = vmatpush.msra.mxu0 %v6751
        %6900 = vmatpush.msra.mxu0 %v6750
        %6901 = vmatpush.msra.mxu0 %v6749
        %6902 = vmatpush.msra.mxu0 %v6748
        %6903 = vmatpush.msra.mxu0 %v6747
        %6904 = vmatpush.msra.mxu0 %v6746
        %6905 = vmatpush.msra.mxu0 %v6745
        %6906 = vmatpush.msra.mxu0 %v6744
        %6907 = vmatpush.msra.mxu0 %v6743
        %6908 = vmatmul.f32.gmra.mxu0 %v6890
        %v6909 = vpop.f32.mrf.mxu0
        %v6910 = vadd.f32 0.0, %v6909
        %6911 = vmatmul.f32.gmra.mxu0 %v6891
        %v6912 = vpop.f32.mrf.mxu0
        %v6913 = vadd.f32 0.0, %v6912
        %6914 = vdwg.mxu0
        %s6915 = scalar_lea.vmem %s7, 256
        %v6916 = vld [vmem:[%s6915] sm:$0xff]
        %v6917 = vld [vmem:[%s6915 + $0x8] sm:$0xff]
        %v6918 = vld [vmem:[%s6915 + $0x10] sm:$0xff]
        %v6919 = vld [vmem:[%s6915 + $0x18] sm:$0xff]
        %v6920 = vld [vmem:[%s6915 + $0x20] sm:$0xff]
        %v6921 = vld [vmem:[%s6915 + $0x28] sm:$0xff]
        %v6922 = vld [vmem:[%s6915 + $0x30] sm:$0xff]
        %v6923 = vld [vmem:[%s6915 + $0x38] sm:$0xff]
        %v6924 = vld [vmem:[%s6915 + $0x40] sm:$0xff]
        %v6925 = vld [vmem:[%s6915 + $0x48] sm:$0xff]
        %v6926 = vld [vmem:[%s6915 + $0x50] sm:$0xff]
        %v6927 = vld [vmem:[%s6915 + $0x58] sm:$0xff]
        %v6928 = vld [vmem:[%s6915 + $0x60] sm:$0xff]
        %v6929 = vld [vmem:[%s6915 + $0x68] sm:$0xff]
        %v6930 = vld [vmem:[%s6915 + $0x70] sm:$0xff]
        %v6931 = vld [vmem:[%s6915 + $0x78] sm:$0xff]
        %6932 = vmatpush.msra.mxu0 %v6931
        %6933 = vmatpush.msra.mxu0 %v6930
        %6934 = vmatpush.msra.mxu0 %v6929
        %6935 = vmatpush.msra.mxu0 %v6928
        %6936 = vmatpush.msra.mxu0 %v6927
        %6937 = vmatpush.msra.mxu0 %v6926
        %6938 = vmatpush.msra.mxu0 %v6925
        %6939 = vmatpush.msra.mxu0 %v6924
        %6940 = vmatpush.msra.mxu0 %v6923
        %6941 = vmatpush.msra.mxu0 %v6922
        %6942 = vmatpush.msra.mxu0 %v6921
        %6943 = vmatpush.msra.mxu0 %v6920
        %6944 = vmatpush.msra.mxu0 %v6919
        %6945 = vmatpush.msra.mxu0 %v6918
        %6946 = vmatpush.msra.mxu0 %v6917
        %6947 = vmatpush.msra.mxu0 %v6916
        %6948 = vmatmul.f32.gmra.mxu0 %v6910
        %v6949 = vpop.f32.mrf.mxu0
        %v6950 = vadd.f32 0.0, %v6949
        %6951 = vmatmul.f32.gmra.mxu0 %v6913
        %v6952 = vpop.f32.mrf.mxu0
        %v6953 = vadd.f32 0.0, %v6952
        %6954 = vdwg.mxu0
        %v6955 = vadd.f32 %v6884, %v6950
        %v6956 = vadd.f32 %v6887, %v6953
        %s6957 = scalar_lea.vmem %s6, 48
        %v6958 = vld [vmem:[%s6957] sm:$0xff]
        %v6959 = vld [vmem:[%s6957 + $0x8] sm:$0xff]
        %6960 = vmatpush.msra.mxu0 %v6758
        %6961 = vmatpush.msra.mxu0 %v6757
        %6962 = vmatpush.msra.mxu0 %v6756
        %6963 = vmatpush.msra.mxu0 %v6755
        %6964 = vmatpush.msra.mxu0 %v6754
        %6965 = vmatpush.msra.mxu0 %v6753
        %6966 = vmatpush.msra.mxu0 %v6752
        %6967 = vmatpush.msra.mxu0 %v6751
        %6968 = vmatpush.msra.mxu0 %v6750
        %6969 = vmatpush.msra.mxu0 %v6749
        %6970 = vmatpush.msra.mxu0 %v6748
        %6971 = vmatpush.msra.mxu0 %v6747
        %6972 = vmatpush.msra.mxu0 %v6746
        %6973 = vmatpush.msra.mxu0 %v6745
        %6974 = vmatpush.msra.mxu0 %v6744
        %6975 = vmatpush.msra.mxu0 %v6743
        %6976 = vmatmul.f32.gmra.mxu0 %v6958
        %v6977 = vpop.f32.mrf.mxu0
        %v6978 = vadd.f32 0.0, %v6977
        %6979 = vmatmul.f32.gmra.mxu0 %v6959
        %v6980 = vpop.f32.mrf.mxu0
        %v6981 = vadd.f32 0.0, %v6980
        %6982 = vdwg.mxu0
        %s6983 = scalar_lea.vmem %s7, 384
        %v6984 = vld [vmem:[%s6983] sm:$0xff]
        %v6985 = vld [vmem:[%s6983 + $0x8] sm:$0xff]
        %v6986 = vld [vmem:[%s6983 + $0x10] sm:$0xff]
        %v6987 = vld [vmem:[%s6983 + $0x18] sm:$0xff]
        %v6988 = vld [vmem:[%s6983 + $0x20] sm:$0xff]
        %v6989 = vld [vmem:[%s6983 + $0x28] sm:$0xff]
        %v6990 = vld [vmem:[%s6983 + $0x30] sm:$0xff]
        %v6991 = vld [vmem:[%s6983 + $0x38] sm:$0xff]
        %v6992 = vld [vmem:[%s6983 + $0x40] sm:$0xff]
        %v6993 = vld [vmem:[%s6983 + $0x48] sm:$0xff]
        %v6994 = vld [vmem:[%s6983 + $0x50] sm:$0xff]
        %v6995 = vld [vmem:[%s6983 + $0x58] sm:$0xff]
        %v6996 = vld [vmem:[%s6983 + $0x60] sm:$0xff]
        %v6997 = vld [vmem:[%s6983 + $0x68] sm:$0xff]
        %v6998 = vld [vmem:[%s6983 + $0x70] sm:$0xff]
        %v6999 = vld [vmem:[%s6983 + $0x78] sm:$0xff]
        %7000 = vmatpush.msra.mxu0 %v6999
        %7001 = vmatpush.msra.mxu0 %v6998
        %7002 = vmatpush.msra.mxu0 %v6997
        %7003 = vmatpush.msra.mxu0 %v6996
        %7004 = vmatpush.msra.mxu0 %v6995
        %7005 = vmatpush.msra.mxu0 %v6994
        %7006 = vmatpush.msra.mxu0 %v6993
        %7007 = vmatpush.msra.mxu0 %v6992
        %7008 = vmatpush.msra.mxu0 %v6991
        %7009 = vmatpush.msra.mxu0 %v6990
        %7010 = vmatpush.msra.mxu0 %v6989
        %7011 = vmatpush.msra.mxu0 %v6988
        %7012 = vmatpush.msra.mxu0 %v6987
        %7013 = vmatpush.msra.mxu0 %v6986
        %7014 = vmatpush.msra.mxu0 %v6985
        %7015 = vmatpush.msra.mxu0 %v6984
        %7016 = vmatmul.f32.gmra.mxu0 %v6978
        %v7017 = vpop.f32.mrf.mxu0
        %v7018 = vadd.f32 0.0, %v7017
        %7019 = vmatmul.f32.gmra.mxu0 %v6981
        %v7020 = vpop.f32.mrf.mxu0
        %v7021 = vadd.f32 0.0, %v7020
        %7022 = vdwg.mxu0
        %v7023 = vadd.f32 %v6955, %v7018
        %v7024 = vadd.f32 %v6956, %v7021
        %s7025 = scalar_lea.vmem %s6, 64
        %v7026 = vld [vmem:[%s7025] sm:$0xff]
        %v7027 = vld [vmem:[%s7025 + $0x8] sm:$0xff]
        %7028 = vmatpush.msra.mxu0 %v6758
        %7029 = vmatpush.msra.mxu0 %v6757
        %7030 = vmatpush.msra.mxu0 %v6756
        %7031 = vmatpush.msra.mxu0 %v6755
        %7032 = vmatpush.msra.mxu0 %v6754
        %7033 = vmatpush.msra.mxu0 %v6753
        %7034 = vmatpush.msra.mxu0 %v6752
        %7035 = vmatpush.msra.mxu0 %v6751
        %7036 = vmatpush.msra.mxu0 %v6750
        %7037 = vmatpush.msra.mxu0 %v6749
        %7038 = vmatpush.msra.mxu0 %v6748
        %7039 = vmatpush.msra.mxu0 %v6747
        %7040 = vmatpush.msra.mxu0 %v6746
        %7041 = vmatpush.msra.mxu0 %v6745
        %7042 = vmatpush.msra.mxu0 %v6744
        %7043 = vmatpush.msra.mxu0 %v6743
        %7044 = vmatmul.f32.gmra.mxu0 %v7026
        %v7045 = vpop.f32.mrf.mxu0
        %v7046 = vadd.f32 0.0, %v7045
        %7047 = vmatmul.f32.gmra.mxu0 %v7027
        %v7048 = vpop.f32.mrf.mxu0
        %v7049 = vadd.f32 0.0, %v7048
        %7050 = vdwg.mxu0
        %s7051 = scalar_lea.vmem %s7, 512
        %v7052 = vld [vmem:[%s7051] sm:$0xff]
        %v7053 = vld [vmem:[%s7051 + $0x8] sm:$0xff]
        %v7054 = vld [vmem:[%s7051 + $0x10] sm:$0xff]
        %v7055 = vld [vmem:[%s7051 + $0x18] sm:$0xff]
        %v7056 = vld [vmem:[%s7051 + $0x20] sm:$0xff]
        %v7057 = vld [vmem:[%s7051 + $0x28] sm:$0xff]
        %v7058 = vld [vmem:[%s7051 + $0x30] sm:$0xff]
        %v7059 = vld [vmem:[%s7051 + $0x38] sm:$0xff]
        %v7060 = vld [vmem:[%s7051 + $0x40] sm:$0xff]
        %v7061 = vld [vmem:[%s7051 + $0x48] sm:$0xff]
        %v7062 = vld [vmem:[%s7051 + $0x50] sm:$0xff]
        %v7063 = vld [vmem:[%s7051 + $0x58] sm:$0xff]
        %v7064 = vld [vmem:[%s7051 + $0x60] sm:$0xff]
        %v7065 = vld [vmem:[%s7051 + $0x68] sm:$0xff]
        %v7066 = vld [vmem:[%s7051 + $0x70] sm:$0xff]
        %v7067 = vld [vmem:[%s7051 + $0x78] sm:$0xff]
        %7068 = vmatpush.msra.mxu0 %v7067
        %7069 = vmatpush.msra.mxu0 %v7066
        %7070 = vmatpush.msra.mxu0 %v7065
        %7071 = vmatpush.msra.mxu0 %v7064
        %7072 = vmatpush.msra.mxu0 %v7063
        %7073 = vmatpush.msra.mxu0 %v7062
        %7074 = vmatpush.msra.mxu0 %v7061
        %7075 = vmatpush.msra.mxu0 %v7060
        %7076 = vmatpush.msra.mxu0 %v7059
        %7077 = vmatpush.msra.mxu0 %v7058
        %7078 = vmatpush.msra.mxu0 %v7057
        %7079 = vmatpush.msra.mxu0 %v7056
        %7080 = vmatpush.msra.mxu0 %v7055
        %7081 = vmatpush.msra.mxu0 %v7054
        %7082 = vmatpush.msra.mxu0 %v7053
        %7083 = vmatpush.msra.mxu0 %v7052
        %7084 = vmatmul.f32.gmra.mxu0 %v7046
        %v7085 = vpop.f32.mrf.mxu0
        %v7086 = vadd.f32 0.0, %v7085
        %7087 = vmatmul.f32.gmra.mxu0 %v7049
        %v7088 = vpop.f32.mrf.mxu0
        %v7089 = vadd.f32 0.0, %v7088
        %7090 = vdwg.mxu0
        %v7091 = vadd.f32 %v7023, %v7086
        %v7092 = vadd.f32 %v7024, %v7089
        %v7093 = vld [vmem:[%s8] sm:$0x1]
        %v7095 = vperm.slane %v7093, 0
        %v7097 = vadd.f32 %v7091, %v7095
        %v7098 = vadd.f32 %v7092, %v7095
        %v7099 = vmax.f32 %v7097, 0.0
        %v7100 = vmax.f32 %v7098, 0.0
        %v7101 = vld [vmem:[%s9] sm:$0xff]
        %v7102 = vld [vmem:[%s9 + $0x8] sm:$0xff]
        %v7103 = vld [vmem:[%s9 + $0x10] sm:$0xff]
        %v7104 = vld [vmem:[%s9 + $0x18] sm:$0xff]
        %v7105 = vld [vmem:[%s9 + $0x20] sm:$0xff]
        %v7106 = vld [vmem:[%s9 + $0x28] sm:$0xff]
        %v7107 = vld [vmem:[%s9 + $0x30] sm:$0xff]
        %v7108 = vld [vmem:[%s9 + $0x38] sm:$0xff]
        %v7109 = vld [vmem:[%s9 + $0x40] sm:$0xff]
        %v7110 = vld [vmem:[%s9 + $0x48] sm:$0xff]
        %v7111 = vld [vmem:[%s9 + $0x50] sm:$0xff]
        %v7112 = vld [vmem:[%s9 + $0x58] sm:$0xff]
        %v7113 = vld [vmem:[%s9 + $0x60] sm:$0xff]
        %v7114 = vld [vmem:[%s9 + $0x68] sm:$0xff]
        %v7115 = vld [vmem:[%s9 + $0x70] sm:$0xff]
        %v7116 = vld [vmem:[%s9 + $0x78] sm:$0xff]
        %v7117 = vld [vmem:[%s10] sm:$0x1]
        %v7119 = vperm.slane %v7117, 0
        %7121 = vmatpush.msra.mxu0 %v7116
        %7122 = vmatpush.msra.mxu0 %v7115
        %7123 = vmatpush.msra.mxu0 %v7114
        %7124 = vmatpush.msra.mxu0 %v7113
        %7125 = vmatpush.msra.mxu0 %v7112
        %7126 = vmatpush.msra.mxu0 %v7111
        %7127 = vmatpush.msra.mxu0 %v7110
        %7128 = vmatpush.msra.mxu0 %v7109
        %7129 = vmatpush.msra.mxu0 %v7108
        %7130 = vmatpush.msra.mxu0 %v7107
        %7131 = vmatpush.msra.mxu0 %v7106
        %7132 = vmatpush.msra.mxu0 %v7105
        %7133 = vmatpush.msra.mxu0 %v7104
        %7134 = vmatpush.msra.mxu0 %v7103
        %7135 = vmatpush.msra.mxu0 %v7102
        %7136 = vmatpush.msra.mxu0 %v7101
        %7137 = vmatmul.f32.gmra.mxu0 %v7099
        %v7138 = vpop.f32.mrf.mxu0
        %v7139 = vadd.f32 %v7119, %v7138
        %7140 = vmatmul.f32.gmra.mxu0 %v7100
        %v7141 = vpop.f32.mrf.mxu0
        %v7142 = vadd.f32 %v7119, %v7141
        %7143 = vdwg.mxu0
        %v7144 = vmax.f32 %v7139, 0.0
        %v7145 = vmax.f32 %v7142, 0.0
        %v7146 = vld [vmem:[%s11] sm:$0xff]
        %v7147 = vld [vmem:[%s11 + $0x8] sm:$0xff]
        %v7148 = vld [vmem:[%s11 + $0x10] sm:$0xff]
        %v7149 = vld [vmem:[%s11 + $0x18] sm:$0xff]
        %v7150 = vld [vmem:[%s11 + $0x20] sm:$0xff]
        %v7151 = vld [vmem:[%s11 + $0x28] sm:$0xff]
        %v7152 = vld [vmem:[%s11 + $0x30] sm:$0xff]
        %v7153 = vld [vmem:[%s11 + $0x38] sm:$0xff]
        %v7154 = vld [vmem:[%s11 + $0x40] sm:$0xff]
        %v7155 = vld [vmem:[%s11 + $0x48] sm:$0xff]
        %v7156 = vld [vmem:[%s11 + $0x50] sm:$0xff]
        %v7157 = vld [vmem:[%s11 + $0x58] sm:$0xff]
        %v7158 = vld [vmem:[%s11 + $0x60] sm:$0xff]
        %v7159 = vld [vmem:[%s11 + $0x68] sm:$0xff]
        %v7160 = vld [vmem:[%s11 + $0x70] sm:$0xff]
        %v7161 = vld [vmem:[%s11 + $0x78] sm:$0xff]
        %v7162 = vld [vmem:[%s12] sm:$0x1]
        %v7164 = vperm.slane %v7162, 0
        %7166 = vmatpush.msra.mxu0 %v7161
        %7167 = vmatpush.msra.mxu0 %v7160
        %7168 = vmatpush.msra.mxu0 %v7159
        %7169 = vmatpush.msra.mxu0 %v7158
        %7170 = vmatpush.msra.mxu0 %v7157
        %7171 = vmatpush.msra.mxu0 %v7156
        %7172 = vmatpush.msra.mxu0 %v7155
        %7173 = vmatpush.msra.mxu0 %v7154
        %7174 = vmatpush.msra.mxu0 %v7153
        %7175 = vmatpush.msra.mxu0 %v7152
        %7176 = vmatpush.msra.mxu0 %v7151
        %7177 = vmatpush.msra.mxu0 %v7150
        %7178 = vmatpush.msra.mxu0 %v7149
        %7179 = vmatpush.msra.mxu0 %v7148
        %7180 = vmatpush.msra.mxu0 %v7147
        %7181 = vmatpush.msra.mxu0 %v7146
        %7182 = vmatmul.f32.gmra.mxu0 %v7144
        %v7183 = vpop.f32.mrf.mxu0
        %v7184 = vadd.f32 %v7164, %v7183
        %7185 = vmatmul.f32.gmra.mxu0 %v7145
        %v7186 = vpop.f32.mrf.mxu0
        %v7187 = vadd.f32 %v7164, %v7186
        %7188 = vdwg.mxu0
        %7189 = vst [vmem:[%s985] sm:$0xff] %v7184
        %7190 = vst [vmem:[%s985 + $0x8] sm:$0xff] %v7187
        %s7191 = smul.u32 2, %s24
        %p7192 = scmp.lt.s32.totalorder %s7191, 3
        %s7193 = scalar_select %p7192, %s7191, 3
        %s7194 = smul.addr %s7193, 8
        %s7195 = scalar_lea.vmem %s13, %s7194
        // Predicated region
        $region111: #{_lambda_.1} parent=105 // pred_check
          %p7196 = pneg %p320
        $region112: #{_lambda_.1} parent=105 // pred_check_branch
          %7198 = sbr.rel (%p7196) target = $region114
        $region113: #{_lambda_.1} parent=105 // pred_region
          %s7199 = smul.u32 2, %s24
        $region114: #{_lambda_.1} parent=105 // pred_fallthru
          _
      $region106: #{_lambda_.1} parent=5 // pred_fallthru
        _
      %p7200 = scmp.le.s32.totalorder 2, %s19
      // Predicated region
      $region115: #{_lambda_.1} parent=5 // pred_check
        %p7201 = pneg %p7200
      $region116: #{_lambda_.1} parent=5 // pred_check_branch
        %7203 = sbr.rel (%p7201) target = $region118
      $region117: #{_lambda_.1} parent=5 // pred_region
        %s7204 = ssub.s32 %s19, 2
        // Predicated region
        $region119: #{_lambda_.1} parent=117 // pred_check
          %p7205 = pneg %p326
        $region120: #{_lambda_.1} parent=117 // pred_check_branch
          %7207 = sbr.rel (%p7205) target = $region122
        $region121: #{_lambda_.1} parent=117 // pred_region
          %s7208 = smul.u32 2, %s25
          %p7209 = scmp.lt.s32.totalorder %s7208, 3
          %s7210 = scalar_select %p7209, %s7208, 3
          %s7211 = smul.addr %s7210, 8
          %s7212 = scalar_lea.vmem %s13, %s7211
        $region122: #{_lambda_.1} parent=117 // pred_fallthru
          _
      $region118: #{_lambda_.1} parent=5 // pred_fallthru
        _
    $region6: #{_lambda_.1} parent=1 // loop_footer
      %s23 = sadd.s32 1, %s19
    $region7: #{_lambda_.1} parent=1 // loop_footer_branch
      %18 = sbr.rel target = $region3
    $region8: #{_lambda_.1} parent=1 // loop_exit
      _

</llo_original>
